<compile_context>
chip_gen: v7x
topology: tpu7x:2x2x1
jax: 0.10.0
libtpu: 0.0.40
codegen_flags: <defaults>
</compile_context>

<pallas_src>
import functools

import jax
import jax.numpy as jnp
from jax.experimental import pallas as pl
from jax.experimental.pallas import tpu as pltpu


# ------------------------------- Pallas kernel ------------------------------ #

def _res1_fused_kernel(x_ref, w_ref, shift_ref, o_ref,
                       a_ref, b_ref, c_ref, stack_ref, *, w0, t_cols, cmax):
    # x_ref:     (Cmax, S_in)        input, channel-first, n_per images packed on
    #                                lanes in slots of s_slot cols (row stride w0)
    # w_ref:     (7, Cout, 9*Cmax)   BN-scale-folded stacked-tap weights (bf16)
    # shift_ref: (7, Cout, 1)        folded BN shift (conv bias included), f32
    # o_ref:     (Cout, T)           final layer output (same slot layout)
    # a/b/c_ref: (Cout, S_scr) f32   rotating activation buffers
    # stack_ref: (9*Cmax, T) bf16    stacked-tap source for the per-layer matmul
    #
    # Only the tail [T, S_scr) of a/b/c is ever read before being written
    # (taps/residual look ahead by up to 2*w0+2 cols); zero just that tail.
    tail = a_ref.shape[1] - t_cols
    zero_tail = jnp.zeros((a_ref.shape[0], tail), jnp.float32)
    a_ref[:, t_cols:] = zero_tail
    b_ref[:, t_cols:] = zero_tail
    c_ref[:, t_cols:] = zero_tail

    res_off = 2 * w0 + 2  # flat offset of h[..., 2:, 2:] residual window

    def conv(layer, src_ref, res_ref=None):
        # Build the (9*Cmax, T) stacked-tap source in bf16: one realignment
        # pass per tap, then a single K=9*Cmax MXU matmul for the whole layer.
        for tap in range(9):                                   # static unroll
            off = (tap // 3) * w0 + (tap % 3)
            stack_ref[tap * cmax:(tap + 1) * cmax, :] = (
                src_ref[:, off:off + t_cols].astype(jnp.bfloat16))
        acc = jnp.dot(w_ref[layer], stack_ref[...],
                      preferred_element_type=jnp.float32)
        acc = jnp.maximum(acc + shift_ref[layer], 0.0)         # BN shift + ReLU
        if res_ref is not None:                                # subset residual
            acc = acc + res_ref[:, res_off:res_off + t_cols]
        return acc

    # Conv1 stem: x -> A
    a_ref[:, :t_cols] = conv(0, x_ref)
    # subset1: A -> B -> C   (residual = A)
    b_ref[:, :t_cols] = conv(1, a_ref)
    c_ref[:, :t_cols] = conv(2, b_ref, res_ref=a_ref)
    # subset2: C -> B -> A   (residual = C)
    b_ref[:, :t_cols] = conv(3, c_ref)
    a_ref[:, :t_cols] = conv(4, b_ref, res_ref=c_ref)
    # subset3: A -> B -> out (residual = A)
    b_ref[:, :t_cols] = conv(5, a_ref)
    o_ref[...] = conv(6, b_ref, res_ref=a_ref)


# ------------------------------- JAX wrapper -------------------------------- #

def _round_up(v, m):
    return ((v + m - 1) // m) * m


def res1_forward_pallas(x_nchw, w_packed, shift_packed, *, num_grid_steps=2):
    """Fused res1 forward.  x_nchw: (N, Cin, H, W) f32 -> (N, 16, H-14, W-14)."""
    n, cin, h, w0 = x_nchw.shape
    n_layers, cout, k9 = w_packed.shape
    cmax = k9 // 9
    assert cin <= cmax

    h_out, w_out = h - 2 * n_layers, w0 - 2 * n_layers
    assert h_out > 0 and w_out > 0

    # Images per grid step (lane-axis batching); 2 parallel steps keeps both
    # v7x TensorCores busy while still amortizing per-step overhead.
    num_steps = max(1, min(num_grid_steps, n))
    n_per = -(-n // num_steps)
    n_pad = num_steps * n_per

    s_slot = _round_up(h * w0, 128)        # per-image lane slot (row stride stays w0)
    t_cols = n_per * s_slot                # lanes written per layer per grid step
    tap_max = 2 * w0 + 2                   # largest tap / residual lookahead
    s_in = _round_up(t_cols + tap_max, 128)
    s_scr = s_in

    # NCHW -> channel-first flat spatial, pad channels to Cmax, pack n_per
    # images side-by-side on the lane axis, zero-pad the lookahead tail.
    x_flat = x_nchw.reshape(n, cin, h * w0).astype(jnp.float32)
    x_flat = jnp.pad(x_flat, ((0, n_pad - n), (0, cmax - cin), (0, s_slot - h * w0)))
    x_flat = x_flat.reshape(num_steps, n_per, cmax, s_slot)
    x_flat = jnp.transpose(x_flat, (0, 2, 1, 3)).reshape(num_steps, cmax, t_cols)
    x_flat = jnp.pad(x_flat, ((0, 0), (0, 0), (0, s_in - t_cols)))

    kernel = functools.partial(_res1_fused_kernel, w0=w0, t_cols=t_cols, cmax=cmax)
    out_flat = pl.pallas_call(
        kernel,
        out_shape=jax.ShapeDtypeStruct((num_steps, cout, t_cols), jnp.float32),
        grid=(num_steps,),
        in_specs=[
            pl.BlockSpec((None, cmax, s_in), lambda i: (i, 0, 0)),          # x
            pl.BlockSpec((n_layers, cout, k9), lambda i: (0, 0, 0)),        # weights
            pl.BlockSpec((n_layers, cout, 1), lambda i: (0, 0, 0)),         # shifts
        ],
        out_specs=pl.BlockSpec((None, cout, t_cols), lambda i: (i, 0, 0)),
        scratch_shapes=[pltpu.VMEM((cout, s_scr), jnp.float32),
                        pltpu.VMEM((cout, s_scr), jnp.float32),
                        pltpu.VMEM((cout, s_scr), jnp.float32),
                        pltpu.VMEM((9 * cmax, t_cols), jnp.bfloat16)],
        compiler_params=pltpu.CompilerParams(
            dimension_semantics=("parallel",)),
    )(x_flat, w_packed, shift_packed)

    # Unpack slot layout -> NCHW crop.  A consumer that accepts the lane-dense
    # w0-strided slot layout can skip this entirely (kernel output is final).
    out = out_flat.reshape(num_steps, cout, n_per, s_slot)
    out = jnp.transpose(out, (0, 2, 1, 3)).reshape(n_pad, cout, s_slot)
    out = out[:n, :, :h_out * w0].reshape(n, cout, h_out, w0)
    return out[:, :, :, :w_out]


# ------------------------------ pure-JAX reference --------------------------- #

def _conv_bn_relu_ref(x, w_hwio, scale, shift, residual=None):
    y = jax.lax.conv_general_dilated(
        x, w_hwio, window_strides=(1, 1), padding="VALID",
        dimension_numbers=("NCHW", "HWIO", "NCHW"))
    y = jnp.maximum(y * scale[None, :, None, None] + shift[None, :, None, None], 0.0)
    if residual is not None:
        y = y + residual
    return y


def res1_forward_ref(x, params):
    h = _conv_bn_relu_ref(x, *params["conv1"])
    for name in ("subset1", "subset2", "subset3"):
        (w1, s1, b1), (w2, s2, b2) = params[name]
        h1 = _conv_bn_relu_ref(h, w1, s1, b1)
        h = _conv_bn_relu_ref(h1, w2, s2, b2, residual=h[:, :, 2:-2, 2:-2])
    return h


# --------------------------- deterministic params ---------------------------- #

def init_conv_bn(key, cin, cout):
    """Conv(3x3, bias) + BatchNorm(eval) folded into (w_hwio, scale, shift)."""
    k1, k2, k3, k4, k5, k6 = jax.random.split(key, 6)
    fan_in = 9 * cin
    w = jax.random.normal(k1, (3, 3, cin, cout), jnp.float32) / jnp.sqrt(
        jnp.float32(fan_in))
    bias = jax.random.normal(k2, (cout,), jnp.float32) * 0.1
    gamma = jax.random.uniform(k3, (cout,), jnp.float32, 0.5, 1.5)
    beta = jax.random.normal(k4, (cout,), jnp.float32) * 0.1
    running_mean = jax.random.normal(k5, (cout,), jnp.float32) * 0.1
    running_var = jax.random.uniform(k6, (cout,), jnp.float32, 0.5, 1.5)
    eps = 1e-5
    scale = gamma / jnp.sqrt(running_var + eps)
    shift = (bias - running_mean) * scale + beta
    return w, scale, shift


def make_res1_params(key, ch_in, indim=16):
    ks = jax.random.split(key, 7)
    return {
        "conv1": init_conv_bn(ks[0], ch_in, indim),
        "subset1": (init_conv_bn(ks[1], indim, indim),
                    init_conv_bn(ks[2], indim, indim)),
        "subset2": (init_conv_bn(ks[3], indim, indim),
                    init_conv_bn(ks[4], indim, indim)),
        "subset3": (init_conv_bn(ks[5], indim, indim),
                    init_conv_bn(ks[6], indim, indim)),
    }


def pack_params(raw, cmax=16):
    """Pack 7 conv layers into stacked-tap, BN-scale-folded weights.

    Returns:
      w_packed:     (7, Cout, 9*Cmax) bf16 -- row index = tap*Cmax + cin
      shift_packed: (7, Cout, 1) f32
    """
    layers = [raw["conv1"],
              raw["subset1"][0], raw["subset1"][1],
              raw["subset2"][0], raw["subset2"][1],
              raw["subset3"][0], raw["subset3"][1]]
    ws, shifts = [], []
    for (w, scale, shift) in layers:
        kh, kw, ci, co = w.shape
        wt = jnp.transpose(w, (0, 1, 3, 2)).reshape(kh * kw, co, ci)  # (9, Cout, Cin)
        wt = wt * scale[None, :, None]                                # fold BN scale
        if ci < cmax:
            wt = jnp.pad(wt, ((0, 0), (0, 0), (0, cmax - ci)))        # pad Cin -> Cmax
        wt = jnp.transpose(wt, (1, 0, 2)).reshape(co, kh * kw * cmax)  # (Cout, 9*Cmax)
        ws.append(wt.astype(jnp.bfloat16))
        shifts.append(shift.reshape(co, 1).astype(jnp.float32))
    return jnp.stack(ws), jnp.stack(shifts)


# ----------------------------------- main ------------------------------------ #

if __name__ == "__main__":
    key = jax.random.PRNGKey(0)
    kx, kp = jax.random.split(key)

    # Spatial shrink is 14 (2 from Conv1 + 4 per subset) -> H,W must exceed 14.
    N, CH_IN, H, W = 4, 4, 24, 24
    x_nchw = jax.random.normal(kx, (N, CH_IN, H, W), jnp.float32)

    raw_params = make_res1_params(kp, CH_IN, indim=16)
    w_packed, shift_packed = pack_params(raw_params, cmax=16)

    fwd = jax.jit(functools.partial(res1_forward_pallas, num_grid_steps=2))
    out = jax.block_until_ready(fwd(x_nchw, w_packed, shift_packed))

    ref = jax.block_until_ready(res1_forward_ref(x_nchw, raw_params))

    assert out.shape == (N, 16, H - 14, W - 14), out.shape
    max_err = float(jnp.max(jnp.abs(out - ref)))
    # bf16 MXU operands through the 7-layer residual chain -> relaxed tolerance
    # vs. the f32 reference.
    assert jnp.allclose(out, ref, rtol=5e-2, atol=5e-2), max_err

    print("KERNEL_OK")
</pallas_src>

<mosaic_0001>
module attributes {stable_mosaic.version = 11 : i64} {
  func.func @_res1_fused_kernel(%arg0: i32, %arg1: memref<1x16x1408xf32, #tpu.memory_space<vmem>>, %arg2: memref<7x16x144xbf16, #tpu.memory_space<vmem>>, %arg3: memref<7x16x1xf32, #tpu.memory_space<vmem>>, %arg4: memref<1x16x1280xf32, #tpu.memory_space<vmem>>, %arg5: memref<16x1408xf32, #tpu.memory_space<vmem>>, %arg6: memref<16x1408xf32, #tpu.memory_space<vmem>>, %arg7: memref<16x1408xf32, #tpu.memory_space<vmem>>, %arg8: memref<144x1280xbf16, #tpu.memory_space<vmem>>) attributes {dimension_semantics = [#tpu.dimension_semantics<parallel>], iteration_bounds = array<i64: 2>, scalar_prefetch = 0 : i64, scratch_operands = 4 : i64, tpu.core_type = #tpu.core_type<tc>, window_params = [{transform_indices = @transform_0, window_bounds = array<i64: 1, 16, 1408>}, {pipeline_mode = #tpu.pipeline_mode<synchronous>, transform_indices = @transform_1, window_bounds = array<i64: 7, 16, 144>}, {pipeline_mode = #tpu.pipeline_mode<synchronous>, transform_indices = @transform_2, window_bounds = array<i64: 7, 16, 1>}, {transform_indices = @transform_3, window_bounds = array<i64: 1, 16, 1280>}]} {
    %cst = arith.constant 0.000000e+00 : f32
    %0 = vector.broadcast %cst : f32 to vector<16x128xf32>
    %c0 = arith.constant 0 : index
    %c1280 = arith.constant 1280 : index
    %1 = vector.load %arg5[%c0, %c1280] : memref<16x1408xf32, #tpu.memory_space<vmem>>, vector<16x128xf32>
    tpu.vector_store %arg5[%c0, %c1280], %0 {strides = array<i32>} : memref<16x1408xf32, #tpu.memory_space<vmem>>, vector<16x128xf32>,
    %c0_0 = arith.constant 0 : index
    %c1280_1 = arith.constant 1280 : index
    %2 = vector.load %arg6[%c0_0, %c1280_1] : memref<16x1408xf32, #tpu.memory_space<vmem>>, vector<16x128xf32>
    tpu.vector_store %arg6[%c0_0, %c1280_1], %0 {strides = array<i32>} : memref<16x1408xf32, #tpu.memory_space<vmem>>, vector<16x128xf32>,
    %c0_2 = arith.constant 0 : index
    %c1280_3 = arith.constant 1280 : index
    %3 = vector.load %arg7[%c0_2, %c1280_3] : memref<16x1408xf32, #tpu.memory_space<vmem>>, vector<16x128xf32>
    tpu.vector_store %arg7[%c0_2, %c1280_3], %0 {strides = array<i32>} : memref<16x1408xf32, #tpu.memory_space<vmem>>, vector<16x128xf32>,
    %c0_4 = arith.constant 0 : index
    %c0_5 = arith.constant 0 : index
    %c0_6 = arith.constant 0 : index
    %4 = vector.load %arg1[%c0_4, %c0_5, %c0_6] : memref<1x16x1408xf32, #tpu.memory_space<vmem>>, vector<1x16x1280xf32>
    %5 = vector.shape_cast %4 : vector<1x16x1280xf32> to vector<16x1280xf32>
    %6 = arith.truncf %5 : vector<16x1280xf32> to vector<16x1280xbf16>
    %c0_7 = arith.constant 0 : index
    %c0_8 = arith.constant 0 : index
    %7 = vector.load %arg8[%c0_7, %c0_8] : memref<144x1280xbf16, #tpu.memory_space<vmem>>, vector<16x1280xbf16>
    tpu.vector_store %arg8[%c0_7, %c0_8], %6 {strides = array<i32>} : memref<144x1280xbf16, #tpu.memory_space<vmem>>, vector<16x1280xbf16>,
    %c0_9 = arith.constant 0 : index
    %c0_10 = arith.constant 0 : index
    %c1 = arith.constant 1 : index
    %8 = vector.load %arg1[%c0_9, %c0_10, %c1] : memref<1x16x1408xf32, #tpu.memory_space<vmem>>, vector<1x16x1280xf32>
    %9 = vector.shape_cast %8 : vector<1x16x1280xf32> to vector<16x1280xf32>
    %10 = arith.truncf %9 : vector<16x1280xf32> to vector<16x1280xbf16>
    %c16 = arith.constant 16 : index
    %c0_11 = arith.constant 0 : index
    %11 = vector.load %arg8[%c16, %c0_11] : memref<144x1280xbf16, #tpu.memory_space<vmem>>, vector<16x1280xbf16>
    tpu.vector_store %arg8[%c16, %c0_11], %10 {strides = array<i32>} : memref<144x1280xbf16, #tpu.memory_space<vmem>>, vector<16x1280xbf16>,
    %c0_12 = arith.constant 0 : index
    %c0_13 = arith.constant 0 : index
    %c2 = arith.constant 2 : index
    %12 = vector.load %arg1[%c0_12, %c0_13, %c2] : memref<1x16x1408xf32, #tpu.memory_space<vmem>>, vector<1x16x1280xf32>
    %13 = vector.shape_cast %12 : vector<1x16x1280xf32> to vector<16x1280xf32>
    %14 = arith.truncf %13 : vector<16x1280xf32> to vector<16x1280xbf16>
    %c32 = arith.constant 32 : index
    %c0_14 = arith.constant 0 : index
    %15 = vector.load %arg8[%c32, %c0_14] : memref<144x1280xbf16, #tpu.memory_space<vmem>>, vector<16x1280xbf16>
    tpu.vector_store %arg8[%c32, %c0_14], %14 {strides = array<i32>} : memref<144x1280xbf16, #tpu.memory_space<vmem>>, vector<16x1280xbf16>,
    %c0_15 = arith.constant 0 : index
    %c0_16 = arith.constant 0 : index
    %c24 = arith.constant 24 : index
    %16 = vector.load %arg1[%c0_15, %c0_16, %c24] : memref<1x16x1408xf32, #tpu.memory_space<vmem>>, vector<1x16x1280xf32>
    %17 = vector.shape_cast %16 : vector<1x16x1280xf32> to vector<16x1280xf32>
    %18 = arith.truncf %17 : vector<16x1280xf32> to vector<16x1280xbf16>
    %c48 = arith.constant 48 : index
    %c0_17 = arith.constant 0 : index
    %19 = vector.load %arg8[%c48, %c0_17] : memref<144x1280xbf16, #tpu.memory_space<vmem>>, vector<16x1280xbf16>
    tpu.vector_store %arg8[%c48, %c0_17], %18 {strides = array<i32>} : memref<144x1280xbf16, #tpu.memory_space<vmem>>, vector<16x1280xbf16>,
    %c0_18 = arith.constant 0 : index
    %c0_19 = arith.constant 0 : index
    %c25 = arith.constant 25 : index
    %20 = vector.load %arg1[%c0_18, %c0_19, %c25] : memref<1x16x1408xf32, #tpu.memory_space<vmem>>, vector<1x16x1280xf32>
    %21 = vector.shape_cast %20 : vector<1x16x1280xf32> to vector<16x1280xf32>
    %22 = arith.truncf %21 : vector<16x1280xf32> to vector<16x1280xbf16>
    %c64 = arith.constant 64 : index
    %c0_20 = arith.constant 0 : index
    %23 = vector.load %arg8[%c64, %c0_20] : memref<144x1280xbf16, #tpu.memory_space<vmem>>, vector<16x1280xbf16>
    tpu.vector_store %arg8[%c64, %c0_20], %22 {strides = array<i32>} : memref<144x1280xbf16, #tpu.memory_space<vmem>>, vector<16x1280xbf16>,
    %c0_21 = arith.constant 0 : index
    %c0_22 = arith.constant 0 : index
    %c26 = arith.constant 26 : index
    %24 = vector.load %arg1[%c0_21, %c0_22, %c26] : memref<1x16x1408xf32, #tpu.memory_space<vmem>>, vector<1x16x1280xf32>
    %25 = vector.shape_cast %24 : vector<1x16x1280xf32> to vector<16x1280xf32>
    %26 = arith.truncf %25 : vector<16x1280xf32> to vector<16x1280xbf16>
    %c80 = arith.constant 80 : index
    %c0_23 = arith.constant 0 : index
    %27 = vector.load %arg8[%c80, %c0_23] : memref<144x1280xbf16, #tpu.memory_space<vmem>>, vector<16x1280xbf16>
    tpu.vector_store %arg8[%c80, %c0_23], %26 {strides = array<i32>} : memref<144x1280xbf16, #tpu.memory_space<vmem>>, vector<16x1280xbf16>,
    %c0_24 = arith.constant 0 : index
    %c0_25 = arith.constant 0 : index
    %c48_26 = arith.constant 48 : index
    %28 = vector.load %arg1[%c0_24, %c0_25, %c48_26] : memref<1x16x1408xf32, #tpu.memory_space<vmem>>, vector<1x16x1280xf32>
    %29 = vector.shape_cast %28 : vector<1x16x1280xf32> to vector<16x1280xf32>
    %30 = arith.truncf %29 : vector<16x1280xf32> to vector<16x1280xbf16>
    %c96 = arith.constant 96 : index
    %c0_27 = arith.constant 0 : index
    %31 = vector.load %arg8[%c96, %c0_27] : memref<144x1280xbf16, #tpu.memory_space<vmem>>, vector<16x1280xbf16>
    tpu.vector_store %arg8[%c96, %c0_27], %30 {strides = array<i32>} : memref<144x1280xbf16, #tpu.memory_space<vmem>>, vector<16x1280xbf16>,
    %c0_28 = arith.constant 0 : index
    %c0_29 = arith.constant 0 : index
    %c49 = arith.constant 49 : index
    %32 = vector.load %arg1[%c0_28, %c0_29, %c49] : memref<1x16x1408xf32, #tpu.memory_space<vmem>>, vector<1x16x1280xf32>
    %33 = vector.shape_cast %32 : vector<1x16x1280xf32> to vector<16x1280xf32>
    %34 = arith.truncf %33 : vector<16x1280xf32> to vector<16x1280xbf16>
    %c112 = arith.constant 112 : index
    %c0_30 = arith.constant 0 : index
    %35 = vector.load %arg8[%c112, %c0_30] : memref<144x1280xbf16, #tpu.memory_space<vmem>>, vector<16x1280xbf16>
    tpu.vector_store %arg8[%c112, %c0_30], %34 {strides = array<i32>} : memref<144x1280xbf16, #tpu.memory_space<vmem>>, vector<16x1280xbf16>,
    %c0_31 = arith.constant 0 : index
    %c0_32 = arith.constant 0 : index
    %c50 = arith.constant 50 : index
    %36 = vector.load %arg1[%c0_31, %c0_32, %c50] : memref<1x16x1408xf32, #tpu.memory_space<vmem>>, vector<1x16x1280xf32>
    %37 = vector.shape_cast %36 : vector<1x16x1280xf32> to vector<16x1280xf32>
    %38 = arith.truncf %37 : vector<16x1280xf32> to vector<16x1280xbf16>
    %c128 = arith.constant 128 : index
    %c0_33 = arith.constant 0 : index
    %39 = vector.load %arg8[%c128, %c0_33] : memref<144x1280xbf16, #tpu.memory_space<vmem>>, vector<16x1280xbf16>
    tpu.vector_store %arg8[%c128, %c0_33], %38 {strides = array<i32>} : memref<144x1280xbf16, #tpu.memory_space<vmem>>, vector<16x1280xbf16>,
    %c0_34 = arith.constant 0 : index
    %c0_35 = arith.constant 0 : index
    %c0_36 = arith.constant 0 : index
    %40 = vector.load %arg2[%c0_34, %c0_35, %c0_36] : memref<7x16x144xbf16, #tpu.memory_space<vmem>>, vector<1x16x144xbf16>
    %41 = vector.shape_cast %40 : vector<1x16x144xbf16> to vector<16x144xbf16>
    %c0_37 = arith.constant 0 : index
    %c0_38 = arith.constant 0 : index
    %42 = vector.load %arg8[%c0_37, %c0_38] : memref<144x1280xbf16, #tpu.memory_space<vmem>>, vector<144x1280xbf16>
    %cst_39 = arith.constant dense<0.000000e+00> : vector<16x1280xf32>
    %43 = tpu.matmul %41, %42, %cst_39 {dimension_numbers = #tpu.dot_dimension_numbers<[1], [0], [0], [1], [0, 0, 1, 1], [], []>} : vector<16x144xbf16>, vector<144x1280xbf16>, vector<16x1280xf32> -> vector<16x1280xf32>
    %c0_40 = arith.constant 0 : index
    %c0_41 = arith.constant 0 : index
    %c0_42 = arith.constant 0 : index
    %44 = vector.load %arg3[%c0_40, %c0_41, %c0_42] : memref<7x16x1xf32, #tpu.memory_space<vmem>>, vector<1x16x1xf32>
    %45 = vector.shape_cast %44 : vector<1x16x1xf32> to vector<16x1xf32>
    %46 = vector.broadcast %45 : vector<16x1xf32> to vector<16x1280xf32>
    %47 = arith.addf %43, %46 : vector<16x1280xf32>
    %cst_43 = arith.constant 0.000000e+00 : f32
    %48 = vector.broadcast %cst_43 : f32 to vector<16x1280xf32>
    %49 = arith.maximumf %47, %48 : vector<16x1280xf32>
    %c0_44 = arith.constant 0 : index
    %c0_45 = arith.constant 0 : index
    %50 = vector.load %arg5[%c0_44, %c0_45] : memref<16x1408xf32, #tpu.memory_space<vmem>>, vector<16x1280xf32>
    tpu.vector_store %arg5[%c0_44, %c0_45], %49 {strides = array<i32>} : memref<16x1408xf32, #tpu.memory_space<vmem>>, vector<16x1280xf32>,
    %c0_46 = arith.constant 0 : index
    %c0_47 = arith.constant 0 : index
    %51 = vector.load %arg5[%c0_46, %c0_47] : memref<16x1408xf32, #tpu.memory_space<vmem>>, vector<16x1280xf32>
    %52 = arith.truncf %51 : vector<16x1280xf32> to vector<16x1280xbf16>
    %c0_48 = arith.constant 0 : index
    %c0_49 = arith.constant 0 : index
    %53 = vector.load %arg8[%c0_48, %c0_49] : memref<144x1280xbf16, #tpu.memory_space<vmem>>, vector<16x1280xbf16>
    tpu.vector_store %arg8[%c0_48, %c0_49], %52 {strides = array<i32>} : memref<144x1280xbf16, #tpu.memory_space<vmem>>, vector<16x1280xbf16>,
    %c0_50 = arith.constant 0 : index
    %c1_51 = arith.constant 1 : index
    %54 = vector.load %arg5[%c0_50, %c1_51] : memref<16x1408xf32, #tpu.memory_space<vmem>>, vector<16x1280xf32>
    %55 = arith.truncf %54 : vector<16x1280xf32> to vector<16x1280xbf16>
    %c16_52 = arith.constant 16 : index
    %c0_53 = arith.constant 0 : index
    %56 = vector.load %arg8[%c16_52, %c0_53] : memref<144x1280xbf16, #tpu.memory_space<vmem>>, vector<16x1280xbf16>
    tpu.vector_store %arg8[%c16_52, %c0_53], %55 {strides = array<i32>} : memref<144x1280xbf16, #tpu.memory_space<vmem>>, vector<16x1280xbf16>,
    %c0_54 = arith.constant 0 : index
    %c2_55 = arith.constant 2 : index
    %57 = vector.load %arg5[%c0_54, %c2_55] : memref<16x1408xf32, #tpu.memory_space<vmem>>, vector<16x1280xf32>
    %58 = arith.truncf %57 : vector<16x1280xf32> to vector<16x1280xbf16>
    %c32_56 = arith.constant 32 : index
    %c0_57 = arith.constant 0 : index
    %59 = vector.load %arg8[%c32_56, %c0_57] : memref<144x1280xbf16, #tpu.memory_space<vmem>>, vector<16x1280xbf16>
    tpu.vector_store %arg8[%c32_56, %c0_57], %58 {strides = array<i32>} : memref<144x1280xbf16, #tpu.memory_space<vmem>>, vector<16x1280xbf16>,
    %c0_58 = arith.constant 0 : index
    %c24_59 = arith.constant 24 : index
    %60 = vector.load %arg5[%c0_58, %c24_59] : memref<16x1408xf32, #tpu.memory_space<vmem>>, vector<16x1280xf32>
    %61 = arith.truncf %60 : vector<16x1280xf32> to vector<16x1280xbf16>
    %c48_60 = arith.constant 48 : index
    %c0_61 = arith.constant 0 : index
    %62 = vector.load %arg8[%c48_60, %c0_61] : memref<144x1280xbf16, #tpu.memory_space<vmem>>, vector<16x1280xbf16>
    tpu.vector_store %arg8[%c48_60, %c0_61], %61 {strides = array<i32>} : memref<144x1280xbf16, #tpu.memory_space<vmem>>, vector<16x1280xbf16>,
    %c0_62 = arith.constant 0 : index
    %c25_63 = arith.constant 25 : index
    %63 = vector.load %arg5[%c0_62, %c25_63] : memref<16x1408xf32, #tpu.memory_space<vmem>>, vector<16x1280xf32>
    %64 = arith.truncf %63 : vector<16x1280xf32> to vector<16x1280xbf16>
    %c64_64 = arith.constant 64 : index
    %c0_65 = arith.constant 0 : index
    %65 = vector.load %arg8[%c64_64, %c0_65] : memref<144x1280xbf16, #tpu.memory_space<vmem>>, vector<16x1280xbf16>
    tpu.vector_store %arg8[%c64_64, %c0_65], %64 {strides = array<i32>} : memref<144x1280xbf16, #tpu.memory_space<vmem>>, vector<16x1280xbf16>,
    %c0_66 = arith.constant 0 : index
    %c26_67 = arith.constant 26 : index
    %66 = vector.load %arg5[%c0_66, %c26_67] : memref<16x1408xf32, #tpu.memory_space<vmem>>, vector<16x1280xf32>
    %67 = arith.truncf %66 : vector<16x1280xf32> to vector<16x1280xbf16>
    %c80_68 = arith.constant 80 : index
    %c0_69 = arith.constant 0 : index
    %68 = vector.load %arg8[%c80_68, %c0_69] : memref<144x1280xbf16, #tpu.memory_space<vmem>>, vector<16x1280xbf16>
    tpu.vector_store %arg8[%c80_68, %c0_69], %67 {strides = array<i32>} : memref<144x1280xbf16, #tpu.memory_space<vmem>>, vector<16x1280xbf16>,
    %c0_70 = arith.constant 0 : index
    %c48_71 = arith.constant 48 : index
    %69 = vector.load %arg5[%c0_70, %c48_71] : memref<16x1408xf32, #tpu.memory_space<vmem>>, vector<16x1280xf32>
    %70 = arith.truncf %69 : vector<16x1280xf32> to vector<16x1280xbf16>
    %c96_72 = arith.constant 96 : index
    %c0_73 = arith.constant 0 : index
    %71 = vector.load %arg8[%c96_72, %c0_73] : memref<144x1280xbf16, #tpu.memory_space<vmem>>, vector<16x1280xbf16>
    tpu.vector_store %arg8[%c96_72, %c0_73], %70 {strides = array<i32>} : memref<144x1280xbf16, #tpu.memory_space<vmem>>, vector<16x1280xbf16>,
    %c0_74 = arith.constant 0 : index
    %c49_75 = arith.constant 49 : index
    %72 = vector.load %arg5[%c0_74, %c49_75] : memref<16x1408xf32, #tpu.memory_space<vmem>>, vector<16x1280xf32>
    %73 = arith.truncf %72 : vector<16x1280xf32> to vector<16x1280xbf16>
    %c112_76 = arith.constant 112 : index
    %c0_77 = arith.constant 0 : index
    %74 = vector.load %arg8[%c112_76, %c0_77] : memref<144x1280xbf16, #tpu.memory_space<vmem>>, vector<16x1280xbf16>
    tpu.vector_store %arg8[%c112_76, %c0_77], %73 {strides = array<i32>} : memref<144x1280xbf16, #tpu.memory_space<vmem>>, vector<16x1280xbf16>,
    %c0_78 = arith.constant 0 : index
    %c50_79 = arith.constant 50 : index
    %75 = vector.load %arg5[%c0_78, %c50_79] : memref<16x1408xf32, #tpu.memory_space<vmem>>, vector<16x1280xf32>
    %76 = arith.truncf %75 : vector<16x1280xf32> to vector<16x1280xbf16>
    %c128_80 = arith.constant 128 : index
    %c0_81 = arith.constant 0 : index
    %77 = vector.load %arg8[%c128_80, %c0_81] : memref<144x1280xbf16, #tpu.memory_space<vmem>>, vector<16x1280xbf16>
    tpu.vector_store %arg8[%c128_80, %c0_81], %76 {strides = array<i32>} : memref<144x1280xbf16, #tpu.memory_space<vmem>>, vector<16x1280xbf16>,
    %c1_82 = arith.constant 1 : index
    %c0_83 = arith.constant 0 : index
    %c0_84 = arith.constant 0 : index
    %78 = vector.load %arg2[%c1_82, %c0_83, %c0_84] : memref<7x16x144xbf16, #tpu.memory_space<vmem>>, vector<1x16x144xbf16>
    %79 = vector.shape_cast %78 : vector<1x16x144xbf16> to vector<16x144xbf16>
    %c0_85 = arith.constant 0 : index
    %c0_86 = arith.constant 0 : index
    %80 = vector.load %arg8[%c0_85, %c0_86] : memref<144x1280xbf16, #tpu.memory_space<vmem>>, vector<144x1280xbf16>
    %cst_87 = arith.constant dense<0.000000e+00> : vector<16x1280xf32>
    %81 = tpu.matmul %79, %80, %cst_87 {dimension_numbers = #tpu.dot_dimension_numbers<[1], [0], [0], [1], [0, 0, 1, 1], [], []>} : vector<16x144xbf16>, vector<144x1280xbf16>, vector<16x1280xf32> -> vector<16x1280xf32>
    %c1_88 = arith.constant 1 : index
    %c0_89 = arith.constant 0 : index
    %c0_90 = arith.constant 0 : index
    %82 = vector.load %arg3[%c1_88, %c0_89, %c0_90] : memref<7x16x1xf32, #tpu.memory_space<vmem>>, vector<1x16x1xf32>
    %83 = vector.shape_cast %82 : vector<1x16x1xf32> to vector<16x1xf32>
    %84 = vector.broadcast %83 : vector<16x1xf32> to vector<16x1280xf32>
    %85 = arith.addf %81, %84 : vector<16x1280xf32>
    %cst_91 = arith.constant 0.000000e+00 : f32
    %86 = vector.broadcast %cst_91 : f32 to vector<16x1280xf32>
    %87 = arith.maximumf %85, %86 : vector<16x1280xf32>
    %c0_92 = arith.constant 0 : index
    %c0_93 = arith.constant 0 : index
    %88 = vector.load %arg6[%c0_92, %c0_93] : memref<16x1408xf32, #tpu.memory_space<vmem>>, vector<16x1280xf32>
    tpu.vector_store %arg6[%c0_92, %c0_93], %87 {strides = array<i32>} : memref<16x1408xf32, #tpu.memory_space<vmem>>, vector<16x1280xf32>,
    %c0_94 = arith.constant 0 : index
    %c0_95 = arith.constant 0 : index
    %89 = vector.load %arg6[%c0_94, %c0_95] : memref<16x1408xf32, #tpu.memory_space<vmem>>, vector<16x1280xf32>
    %90 = arith.truncf %89 : vector<16x1280xf32> to vector<16x1280xbf16>
    %c0_96 = arith.constant 0 : index
    %c0_97 = arith.constant 0 : index
    %91 = vector.load %arg8[%c0_96, %c0_97] : memref<144x1280xbf16, #tpu.memory_space<vmem>>, vector<16x1280xbf16>
    tpu.vector_store %arg8[%c0_96, %c0_97], %90 {strides = array<i32>} : memref<144x1280xbf16, #tpu.memory_space<vmem>>, vector<16x1280xbf16>,
    %c0_98 = arith.constant 0 : index
    %c1_99 = arith.constant 1 : index
    %92 = vector.load %arg6[%c0_98, %c1_99] : memref<16x1408xf32, #tpu.memory_space<vmem>>, vector<16x1280xf32>
    %93 = arith.truncf %92 : vector<16x1280xf32> to vector<16x1280xbf16>
    %c16_100 = arith.constant 16 : index
    %c0_101 = arith.constant 0 : index
    %94 = vector.load %arg8[%c16_100, %c0_101] : memref<144x1280xbf16, #tpu.memory_space<vmem>>, vector<16x1280xbf16>
    tpu.vector_store %arg8[%c16_100, %c0_101], %93 {strides = array<i32>} : memref<144x1280xbf16, #tpu.memory_space<vmem>>, vector<16x1280xbf16>,
    %c0_102 = arith.constant 0 : index
    %c2_103 = arith.constant 2 : index
    %95 = vector.load %arg6[%c0_102, %c2_103] : memref<16x1408xf32, #tpu.memory_space<vmem>>, vector<16x1280xf32>
    %96 = arith.truncf %95 : vector<16x1280xf32> to vector<16x1280xbf16>
    %c32_104 = arith.constant 32 : index
    %c0_105 = arith.constant 0 : index
    %97 = vector.load %arg8[%c32_104, %c0_105] : memref<144x1280xbf16, #tpu.memory_space<vmem>>, vector<16x1280xbf16>
    tpu.vector_store %arg8[%c32_104, %c0_105], %96 {strides = array<i32>} : memref<144x1280xbf16, #tpu.memory_space<vmem>>, vector<16x1280xbf16>,
    %c0_106 = arith.constant 0 : index
    %c24_107 = arith.constant 24 : index
    %98 = vector.load %arg6[%c0_106, %c24_107] : memref<16x1408xf32, #tpu.memory_space<vmem>>, vector<16x1280xf32>
    %99 = arith.truncf %98 : vector<16x1280xf32> to vector<16x1280xbf16>
    %c48_108 = arith.constant 48 : index
    %c0_109 = arith.constant 0 : index
    %100 = vector.load %arg8[%c48_108, %c0_109] : memref<144x1280xbf16, #tpu.memory_space<vmem>>, vector<16x1280xbf16>
    tpu.vector_store %arg8[%c48_108, %c0_109], %99 {strides = array<i32>} : memref<144x1280xbf16, #tpu.memory_space<vmem>>, vector<16x1280xbf16>,
    %c0_110 = arith.constant 0 : index
    %c25_111 = arith.constant 25 : index
    %101 = vector.load %arg6[%c0_110, %c25_111] : memref<16x1408xf32, #tpu.memory_space<vmem>>, vector<16x1280xf32>
    %102 = arith.truncf %101 : vector<16x1280xf32> to vector<16x1280xbf16>
    %c64_112 = arith.constant 64 : index
    %c0_113 = arith.constant 0 : index
    %103 = vector.load %arg8[%c64_112, %c0_113] : memref<144x1280xbf16, #tpu.memory_space<vmem>>, vector<16x1280xbf16>
    tpu.vector_store %arg8[%c64_112, %c0_113], %102 {strides = array<i32>} : memref<144x1280xbf16, #tpu.memory_space<vmem>>, vector<16x1280xbf16>,
    %c0_114 = arith.constant 0 : index
    %c26_115 = arith.constant 26 : index
    %104 = vector.load %arg6[%c0_114, %c26_115] : memref<16x1408xf32, #tpu.memory_space<vmem>>, vector<16x1280xf32>
    %105 = arith.truncf %104 : vector<16x1280xf32> to vector<16x1280xbf16>
    %c80_116 = arith.constant 80 : index
    %c0_117 = arith.constant 0 : index
    %106 = vector.load %arg8[%c80_116, %c0_117] : memref<144x1280xbf16, #tpu.memory_space<vmem>>, vector<16x1280xbf16>
    tpu.vector_store %arg8[%c80_116, %c0_117], %105 {strides = array<i32>} : memref<144x1280xbf16, #tpu.memory_space<vmem>>, vector<16x1280xbf16>,
    %c0_118 = arith.constant 0 : index
    %c48_119 = arith.constant 48 : index
    %107 = vector.load %arg6[%c0_118, %c48_119] : memref<16x1408xf32, #tpu.memory_space<vmem>>, vector<16x1280xf32>
    %108 = arith.truncf %107 : vector<16x1280xf32> to vector<16x1280xbf16>
    %c96_120 = arith.constant 96 : index
    %c0_121 = arith.constant 0 : index
    %109 = vector.load %arg8[%c96_120, %c0_121] : memref<144x1280xbf16, #tpu.memory_space<vmem>>, vector<16x1280xbf16>
    tpu.vector_store %arg8[%c96_120, %c0_121], %108 {strides = array<i32>} : memref<144x1280xbf16, #tpu.memory_space<vmem>>, vector<16x1280xbf16>,
    %c0_122 = arith.constant 0 : index
    %c49_123 = arith.constant 49 : index
    %110 = vector.load %arg6[%c0_122, %c49_123] : memref<16x1408xf32, #tpu.memory_space<vmem>>, vector<16x1280xf32>
    %111 = arith.truncf %110 : vector<16x1280xf32> to vector<16x1280xbf16>
    %c112_124 = arith.constant 112 : index
    %c0_125 = arith.constant 0 : index
    %112 = vector.load %arg8[%c112_124, %c0_125] : memref<144x1280xbf16, #tpu.memory_space<vmem>>, vector<16x1280xbf16>
    tpu.vector_store %arg8[%c112_124, %c0_125], %111 {strides = array<i32>} : memref<144x1280xbf16, #tpu.memory_space<vmem>>, vector<16x1280xbf16>,
    %c0_126 = arith.constant 0 : index
    %c50_127 = arith.constant 50 : index
    %113 = vector.load %arg6[%c0_126, %c50_127] : memref<16x1408xf32, #tpu.memory_space<vmem>>, vector<16x1280xf32>
    %114 = arith.truncf %113 : vector<16x1280xf32> to vector<16x1280xbf16>
    %c128_128 = arith.constant 128 : index
    %c0_129 = arith.constant 0 : index
    %115 = vector.load %arg8[%c128_128, %c0_129] : memref<144x1280xbf16, #tpu.memory_space<vmem>>, vector<16x1280xbf16>
    tpu.vector_store %arg8[%c128_128, %c0_129], %114 {strides = array<i32>} : memref<144x1280xbf16, #tpu.memory_space<vmem>>, vector<16x1280xbf16>,
    %c2_130 = arith.constant 2 : index
    %c0_131 = arith.constant 0 : index
    %c0_132 = arith.constant 0 : index
    %116 = vector.load %arg2[%c2_130, %c0_131, %c0_132] : memref<7x16x144xbf16, #tpu.memory_space<vmem>>, vector<1x16x144xbf16>
    %117 = vector.shape_cast %116 : vector<1x16x144xbf16> to vector<16x144xbf16>
    %c0_133 = arith.constant 0 : index
    %c0_134 = arith.constant 0 : index
    %118 = vector.load %arg8[%c0_133, %c0_134] : memref<144x1280xbf16, #tpu.memory_space<vmem>>, vector<144x1280xbf16>
    %cst_135 = arith.constant dense<0.000000e+00> : vector<16x1280xf32>
    %119 = tpu.matmul %117, %118, %cst_135 {dimension_numbers = #tpu.dot_dimension_numbers<[1], [0], [0], [1], [0, 0, 1, 1], [], []>} : vector<16x144xbf16>, vector<144x1280xbf16>, vector<16x1280xf32> -> vector<16x1280xf32>
    %c2_136 = arith.constant 2 : index
    %c0_137 = arith.constant 0 : index
    %c0_138 = arith.constant 0 : index
    %120 = vector.load %arg3[%c2_136, %c0_137, %c0_138] : memref<7x16x1xf32, #tpu.memory_space<vmem>>, vector<1x16x1xf32>
    %121 = vector.shape_cast %120 : vector<1x16x1xf32> to vector<16x1xf32>
    %122 = vector.broadcast %121 : vector<16x1xf32> to vector<16x1280xf32>
    %123 = arith.addf %119, %122 : vector<16x1280xf32>
    %cst_139 = arith.constant 0.000000e+00 : f32
    %124 = vector.broadcast %cst_139 : f32 to vector<16x1280xf32>
    %125 = arith.maximumf %123, %124 : vector<16x1280xf32>
    %c0_140 = arith.constant 0 : index
    %c50_141 = arith.constant 50 : index
    %126 = vector.load %arg5[%c0_140, %c50_141] : memref<16x1408xf32, #tpu.memory_space<vmem>>, vector<16x1280xf32>
    %127 = arith.addf %125, %126 : vector<16x1280xf32>
    %c0_142 = arith.constant 0 : index
    %c0_143 = arith.constant 0 : index
    %128 = vector.load %arg7[%c0_142, %c0_143] : memref<16x1408xf32, #tpu.memory_space<vmem>>, vector<16x1280xf32>
    tpu.vector_store %arg7[%c0_142, %c0_143], %127 {strides = array<i32>} : memref<16x1408xf32, #tpu.memory_space<vmem>>, vector<16x1280xf32>,
    %c0_144 = arith.constant 0 : index
    %c0_145 = arith.constant 0 : index
    %129 = vector.load %arg7[%c0_144, %c0_145] : memref<16x1408xf32, #tpu.memory_space<vmem>>, vector<16x1280xf32>
    %130 = arith.truncf %129 : vector<16x1280xf32> to vector<16x1280xbf16>
    %c0_146 = arith.constant 0 : index
    %c0_147 = arith.constant 0 : index
    %131 = vector.load %arg8[%c0_146, %c0_147] : memref<144x1280xbf16, #tpu.memory_space<vmem>>, vector<16x1280xbf16>
    tpu.vector_store %arg8[%c0_146, %c0_147], %130 {strides = array<i32>} : memref<144x1280xbf16, #tpu.memory_space<vmem>>, vector<16x1280xbf16>,
    %c0_148 = arith.constant 0 : index
    %c1_149 = arith.constant 1 : index
    %132 = vector.load %arg7[%c0_148, %c1_149] : memref<16x1408xf32, #tpu.memory_space<vmem>>, vector<16x1280xf32>
    %133 = arith.truncf %132 : vector<16x1280xf32> to vector<16x1280xbf16>
    %c16_150 = arith.constant 16 : index
    %c0_151 = arith.constant 0 : index
    %134 = vector.load %arg8[%c16_150, %c0_151] : memref<144x1280xbf16, #tpu.memory_space<vmem>>, vector<16x1280xbf16>
    tpu.vector_store %arg8[%c16_150, %c0_151], %133 {strides = array<i32>} : memref<144x1280xbf16, #tpu.memory_space<vmem>>, vector<16x1280xbf16>,
    %c0_152 = arith.constant 0 : index
    %c2_153 = arith.constant 2 : index
    %135 = vector.load %arg7[%c0_152, %c2_153] : memref<16x1408xf32, #tpu.memory_space<vmem>>, vector<16x1280xf32>
    %136 = arith.truncf %135 : vector<16x1280xf32> to vector<16x1280xbf16>
    %c32_154 = arith.constant 32 : index
    %c0_155 = arith.constant 0 : index
    %137 = vector.load %arg8[%c32_154, %c0_155] : memref<144x1280xbf16, #tpu.memory_space<vmem>>, vector<16x1280xbf16>
    tpu.vector_store %arg8[%c32_154, %c0_155], %136 {strides = array<i32>} : memref<144x1280xbf16, #tpu.memory_space<vmem>>, vector<16x1280xbf16>,
    %c0_156 = arith.constant 0 : index
    %c24_157 = arith.constant 24 : index
    %138 = vector.load %arg7[%c0_156, %c24_157] : memref<16x1408xf32, #tpu.memory_space<vmem>>, vector<16x1280xf32>
    %139 = arith.truncf %138 : vector<16x1280xf32> to vector<16x1280xbf16>
    %c48_158 = arith.constant 48 : index
    %c0_159 = arith.constant 0 : index
    %140 = vector.load %arg8[%c48_158, %c0_159] : memref<144x1280xbf16, #tpu.memory_space<vmem>>, vector<16x1280xbf16>
    tpu.vector_store %arg8[%c48_158, %c0_159], %139 {strides = array<i32>} : memref<144x1280xbf16, #tpu.memory_space<vmem>>, vector<16x1280xbf16>,
    %c0_160 = arith.constant 0 : index
    %c25_161 = arith.constant 25 : index
    %141 = vector.load %arg7[%c0_160, %c25_161] : memref<16x1408xf32, #tpu.memory_space<vmem>>, vector<16x1280xf32>
    %142 = arith.truncf %141 : vector<16x1280xf32> to vector<16x1280xbf16>
    %c64_162 = arith.constant 64 : index
    %c0_163 = arith.constant 0 : index
    %143 = vector.load %arg8[%c64_162, %c0_163] : memref<144x1280xbf16, #tpu.memory_space<vmem>>, vector<16x1280xbf16>
    tpu.vector_store %arg8[%c64_162, %c0_163], %142 {strides = array<i32>} : memref<144x1280xbf16, #tpu.memory_space<vmem>>, vector<16x1280xbf16>,
    %c0_164 = arith.constant 0 : index
    %c26_165 = arith.constant 26 : index
    %144 = vector.load %arg7[%c0_164, %c26_165] : memref<16x1408xf32, #tpu.memory_space<vmem>>, vector<16x1280xf32>
    %145 = arith.truncf %144 : vector<16x1280xf32> to vector<16x1280xbf16>
    %c80_166 = arith.constant 80 : index
    %c0_167 = arith.constant 0 : index
    %146 = vector.load %arg8[%c80_166, %c0_167] : memref<144x1280xbf16, #tpu.memory_space<vmem>>, vector<16x1280xbf16>
    tpu.vector_store %arg8[%c80_166, %c0_167], %145 {strides = array<i32>} : memref<144x1280xbf16, #tpu.memory_space<vmem>>, vector<16x1280xbf16>,
    %c0_168 = arith.constant 0 : index
    %c48_169 = arith.constant 48 : index
    %147 = vector.load %arg7[%c0_168, %c48_169] : memref<16x1408xf32, #tpu.memory_space<vmem>>, vector<16x1280xf32>
    %148 = arith.truncf %147 : vector<16x1280xf32> to vector<16x1280xbf16>
    %c96_170 = arith.constant 96 : index
    %c0_171 = arith.constant 0 : index
    %149 = vector.load %arg8[%c96_170, %c0_171] : memref<144x1280xbf16, #tpu.memory_space<vmem>>, vector<16x1280xbf16>
    tpu.vector_store %arg8[%c96_170, %c0_171], %148 {strides = array<i32>} : memref<144x1280xbf16, #tpu.memory_space<vmem>>, vector<16x1280xbf16>,
    %c0_172 = arith.constant 0 : index
    %c49_173 = arith.constant 49 : index
    %150 = vector.load %arg7[%c0_172, %c49_173] : memref<16x1408xf32, #tpu.memory_space<vmem>>, vector<16x1280xf32>
    %151 = arith.truncf %150 : vector<16x1280xf32> to vector<16x1280xbf16>
    %c112_174 = arith.constant 112 : index
    %c0_175 = arith.constant 0 : index
    %152 = vector.load %arg8[%c112_174, %c0_175] : memref<144x1280xbf16, #tpu.memory_space<vmem>>, vector<16x1280xbf16>
    tpu.vector_store %arg8[%c112_174, %c0_175], %151 {strides = array<i32>} : memref<144x1280xbf16, #tpu.memory_space<vmem>>, vector<16x1280xbf16>,
    %c0_176 = arith.constant 0 : index
    %c50_177 = arith.constant 50 : index
    %153 = vector.load %arg7[%c0_176, %c50_177] : memref<16x1408xf32, #tpu.memory_space<vmem>>, vector<16x1280xf32>
    %154 = arith.truncf %153 : vector<16x1280xf32> to vector<16x1280xbf16>
    %c128_178 = arith.constant 128 : index
    %c0_179 = arith.constant 0 : index
    %155 = vector.load %arg8[%c128_178, %c0_179] : memref<144x1280xbf16, #tpu.memory_space<vmem>>, vector<16x1280xbf16>
    tpu.vector_store %arg8[%c128_178, %c0_179], %154 {strides = array<i32>} : memref<144x1280xbf16, #tpu.memory_space<vmem>>, vector<16x1280xbf16>,
    %c3 = arith.constant 3 : index
    %c0_180 = arith.constant 0 : index
    %c0_181 = arith.constant 0 : index
    %156 = vector.load %arg2[%c3, %c0_180, %c0_181] : memref<7x16x144xbf16, #tpu.memory_space<vmem>>, vector<1x16x144xbf16>
    %157 = vector.shape_cast %156 : vector<1x16x144xbf16> to vector<16x144xbf16>
    %c0_182 = arith.constant 0 : index
    %c0_183 = arith.constant 0 : index
    %158 = vector.load %arg8[%c0_182, %c0_183] : memref<144x1280xbf16, #tpu.memory_space<vmem>>, vector<144x1280xbf16>
    %cst_184 = arith.constant dense<0.000000e+00> : vector<16x1280xf32>
    %159 = tpu.matmul %157, %158, %cst_184 {dimension_numbers = #tpu.dot_dimension_numbers<[1], [0], [0], [1], [0, 0, 1, 1], [], []>} : vector<16x144xbf16>, vector<144x1280xbf16>, vector<16x1280xf32> -> vector<16x1280xf32>
    %c3_185 = arith.constant 3 : index
    %c0_186 = arith.constant 0 : index
    %c0_187 = arith.constant 0 : index
    %160 = vector.load %arg3[%c3_185, %c0_186, %c0_187] : memref<7x16x1xf32, #tpu.memory_space<vmem>>, vector<1x16x1xf32>
    %161 = vector.shape_cast %160 : vector<1x16x1xf32> to vector<16x1xf32>
    %162 = vector.broadcast %161 : vector<16x1xf32> to vector<16x1280xf32>
    %163 = arith.addf %159, %162 : vector<16x1280xf32>
    %cst_188 = arith.constant 0.000000e+00 : f32
    %164 = vector.broadcast %cst_188 : f32 to vector<16x1280xf32>
    %165 = arith.maximumf %163, %164 : vector<16x1280xf32>
    %c0_189 = arith.constant 0 : index
    %c0_190 = arith.constant 0 : index
    %166 = vector.load %arg6[%c0_189, %c0_190] : memref<16x1408xf32, #tpu.memory_space<vmem>>, vector<16x1280xf32>
    tpu.vector_store %arg6[%c0_189, %c0_190], %165 {strides = array<i32>} : memref<16x1408xf32, #tpu.memory_space<vmem>>, vector<16x1280xf32>,
    %c0_191 = arith.constant 0 : index
    %c0_192 = arith.constant 0 : index
    %167 = vector.load %arg6[%c0_191, %c0_192] : memref<16x1408xf32, #tpu.memory_space<vmem>>, vector<16x1280xf32>
    %168 = arith.truncf %167 : vector<16x1280xf32> to vector<16x1280xbf16>
    %c0_193 = arith.constant 0 : index
    %c0_194 = arith.constant 0 : index
    %169 = vector.load %arg8[%c0_193, %c0_194] : memref<144x1280xbf16, #tpu.memory_space<vmem>>, vector<16x1280xbf16>
    tpu.vector_store %arg8[%c0_193, %c0_194], %168 {strides = array<i32>} : memref<144x1280xbf16, #tpu.memory_space<vmem>>, vector<16x1280xbf16>,
    %c0_195 = arith.constant 0 : index
    %c1_196 = arith.constant 1 : index
    %170 = vector.load %arg6[%c0_195, %c1_196] : memref<16x1408xf32, #tpu.memory_space<vmem>>, vector<16x1280xf32>
    %171 = arith.truncf %170 : vector<16x1280xf32> to vector<16x1280xbf16>
    %c16_197 = arith.constant 16 : index
    %c0_198 = arith.constant 0 : index
    %172 = vector.load %arg8[%c16_197, %c0_198] : memref<144x1280xbf16, #tpu.memory_space<vmem>>, vector<16x1280xbf16>
    tpu.vector_store %arg8[%c16_197, %c0_198], %171 {strides = array<i32>} : memref<144x1280xbf16, #tpu.memory_space<vmem>>, vector<16x1280xbf16>,
    %c0_199 = arith.constant 0 : index
    %c2_200 = arith.constant 2 : index
    %173 = vector.load %arg6[%c0_199, %c2_200] : memref<16x1408xf32, #tpu.memory_space<vmem>>, vector<16x1280xf32>
    %174 = arith.truncf %173 : vector<16x1280xf32> to vector<16x1280xbf16>
    %c32_201 = arith.constant 32 : index
    %c0_202 = arith.constant 0 : index
    %175 = vector.load %arg8[%c32_201, %c0_202] : memref<144x1280xbf16, #tpu.memory_space<vmem>>, vector<16x1280xbf16>
    tpu.vector_store %arg8[%c32_201, %c0_202], %174 {strides = array<i32>} : memref<144x1280xbf16, #tpu.memory_space<vmem>>, vector<16x1280xbf16>,
    %c0_203 = arith.constant 0 : index
    %c24_204 = arith.constant 24 : index
    %176 = vector.load %arg6[%c0_203, %c24_204] : memref<16x1408xf32, #tpu.memory_space<vmem>>, vector<16x1280xf32>
    %177 = arith.truncf %176 : vector<16x1280xf32> to vector<16x1280xbf16>
    %c48_205 = arith.constant 48 : index
    %c0_206 = arith.constant 0 : index
    %178 = vector.load %arg8[%c48_205, %c0_206] : memref<144x1280xbf16, #tpu.memory_space<vmem>>, vector<16x1280xbf16>
    tpu.vector_store %arg8[%c48_205, %c0_206], %177 {strides = array<i32>} : memref<144x1280xbf16, #tpu.memory_space<vmem>>, vector<16x1280xbf16>,
    %c0_207 = arith.constant 0 : index
    %c25_208 = arith.constant 25 : index
    %179 = vector.load %arg6[%c0_207, %c25_208] : memref<16x1408xf32, #tpu.memory_space<vmem>>, vector<16x1280xf32>
    %180 = arith.truncf %179 : vector<16x1280xf32> to vector<16x1280xbf16>
    %c64_209 = arith.constant 64 : index
    %c0_210 = arith.constant 0 : index
    %181 = vector.load %arg8[%c64_209, %c0_210] : memref<144x1280xbf16, #tpu.memory_space<vmem>>, vector<16x1280xbf16>
    tpu.vector_store %arg8[%c64_209, %c0_210], %180 {strides = array<i32>} : memref<144x1280xbf16, #tpu.memory_space<vmem>>, vector<16x1280xbf16>,
    %c0_211 = arith.constant 0 : index
    %c26_212 = arith.constant 26 : index
    %182 = vector.load %arg6[%c0_211, %c26_212] : memref<16x1408xf32, #tpu.memory_space<vmem>>, vector<16x1280xf32>
    %183 = arith.truncf %182 : vector<16x1280xf32> to vector<16x1280xbf16>
    %c80_213 = arith.constant 80 : index
    %c0_214 = arith.constant 0 : index
    %184 = vector.load %arg8[%c80_213, %c0_214] : memref<144x1280xbf16, #tpu.memory_space<vmem>>, vector<16x1280xbf16>
    tpu.vector_store %arg8[%c80_213, %c0_214], %183 {strides = array<i32>} : memref<144x1280xbf16, #tpu.memory_space<vmem>>, vector<16x1280xbf16>,
    %c0_215 = arith.constant 0 : index
    %c48_216 = arith.constant 48 : index
    %185 = vector.load %arg6[%c0_215, %c48_216] : memref<16x1408xf32, #tpu.memory_space<vmem>>, vector<16x1280xf32>
    %186 = arith.truncf %185 : vector<16x1280xf32> to vector<16x1280xbf16>
    %c96_217 = arith.constant 96 : index
    %c0_218 = arith.constant 0 : index
    %187 = vector.load %arg8[%c96_217, %c0_218] : memref<144x1280xbf16, #tpu.memory_space<vmem>>, vector<16x1280xbf16>
    tpu.vector_store %arg8[%c96_217, %c0_218], %186 {strides = array<i32>} : memref<144x1280xbf16, #tpu.memory_space<vmem>>, vector<16x1280xbf16>,
    %c0_219 = arith.constant 0 : index
    %c49_220 = arith.constant 49 : index
    %188 = vector.load %arg6[%c0_219, %c49_220] : memref<16x1408xf32, #tpu.memory_space<vmem>>, vector<16x1280xf32>
    %189 = arith.truncf %188 : vector<16x1280xf32> to vector<16x1280xbf16>
    %c112_221 = arith.constant 112 : index
    %c0_222 = arith.constant 0 : index
    %190 = vector.load %arg8[%c112_221, %c0_222] : memref<144x1280xbf16, #tpu.memory_space<vmem>>, vector<16x1280xbf16>
    tpu.vector_store %arg8[%c112_221, %c0_222], %189 {strides = array<i32>} : memref<144x1280xbf16, #tpu.memory_space<vmem>>, vector<16x1280xbf16>,
    %c0_223 = arith.constant 0 : index
    %c50_224 = arith.constant 50 : index
    %191 = vector.load %arg6[%c0_223, %c50_224] : memref<16x1408xf32, #tpu.memory_space<vmem>>, vector<16x1280xf32>
    %192 = arith.truncf %191 : vector<16x1280xf32> to vector<16x1280xbf16>
    %c128_225 = arith.constant 128 : index
    %c0_226 = arith.constant 0 : index
    %193 = vector.load %arg8[%c128_225, %c0_226] : memref<144x1280xbf16, #tpu.memory_space<vmem>>, vector<16x1280xbf16>
    tpu.vector_store %arg8[%c128_225, %c0_226], %192 {strides = array<i32>} : memref<144x1280xbf16, #tpu.memory_space<vmem>>, vector<16x1280xbf16>,
    %c4 = arith.constant 4 : index
    %c0_227 = arith.constant 0 : index
    %c0_228 = arith.constant 0 : index
    %194 = vector.load %arg2[%c4, %c0_227, %c0_228] : memref<7x16x144xbf16, #tpu.memory_space<vmem>>, vector<1x16x144xbf16>
    %195 = vector.shape_cast %194 : vector<1x16x144xbf16> to vector<16x144xbf16>
    %c0_229 = arith.constant 0 : index
    %c0_230 = arith.constant 0 : index
    %196 = vector.load %arg8[%c0_229, %c0_230] : memref<144x1280xbf16, #tpu.memory_space<vmem>>, vector<144x1280xbf16>
    %cst_231 = arith.constant dense<0.000000e+00> : vector<16x1280xf32>
    %197 = tpu.matmul %195, %196, %cst_231 {dimension_numbers = #tpu.dot_dimension_numbers<[1], [0], [0], [1], [0, 0, 1, 1], [], []>} : vector<16x144xbf16>, vector<144x1280xbf16>, vector<16x1280xf32> -> vector<16x1280xf32>
    %c4_232 = arith.constant 4 : index
    %c0_233 = arith.constant 0 : index
    %c0_234 = arith.constant 0 : index
    %198 = vector.load %arg3[%c4_232, %c0_233, %c0_234] : memref<7x16x1xf32, #tpu.memory_space<vmem>>, vector<1x16x1xf32>
    %199 = vector.shape_cast %198 : vector<1x16x1xf32> to vector<16x1xf32>
    %200 = vector.broadcast %199 : vector<16x1xf32> to vector<16x1280xf32>
    %201 = arith.addf %197, %200 : vector<16x1280xf32>
    %cst_235 = arith.constant 0.000000e+00 : f32
    %202 = vector.broadcast %cst_235 : f32 to vector<16x1280xf32>
    %203 = arith.maximumf %201, %202 : vector<16x1280xf32>
    %c0_236 = arith.constant 0 : index
    %c50_237 = arith.constant 50 : index
    %204 = vector.load %arg7[%c0_236, %c50_237] : memref<16x1408xf32, #tpu.memory_space<vmem>>, vector<16x1280xf32>
    %205 = arith.addf %203, %204 : vector<16x1280xf32>
    %c0_238 = arith.constant 0 : index
    %c0_239 = arith.constant 0 : index
    %206 = vector.load %arg5[%c0_238, %c0_239] : memref<16x1408xf32, #tpu.memory_space<vmem>>, vector<16x1280xf32>
    tpu.vector_store %arg5[%c0_238, %c0_239], %205 {strides = array<i32>} : memref<16x1408xf32, #tpu.memory_space<vmem>>, vector<16x1280xf32>,
    %c0_240 = arith.constant 0 : index
    %c0_241 = arith.constant 0 : index
    %207 = vector.load %arg5[%c0_240, %c0_241] : memref<16x1408xf32, #tpu.memory_space<vmem>>, vector<16x1280xf32>
    %208 = arith.truncf %207 : vector<16x1280xf32> to vector<16x1280xbf16>
    %c0_242 = arith.constant 0 : index
    %c0_243 = arith.constant 0 : index
    %209 = vector.load %arg8[%c0_242, %c0_243] : memref<144x1280xbf16, #tpu.memory_space<vmem>>, vector<16x1280xbf16>
    tpu.vector_store %arg8[%c0_242, %c0_243], %208 {strides = array<i32>} : memref<144x1280xbf16, #tpu.memory_space<vmem>>, vector<16x1280xbf16>,
    %c0_244 = arith.constant 0 : index
    %c1_245 = arith.constant 1 : index
    %210 = vector.load %arg5[%c0_244, %c1_245] : memref<16x1408xf32, #tpu.memory_space<vmem>>, vector<16x1280xf32>
    %211 = arith.truncf %210 : vector<16x1280xf32> to vector<16x1280xbf16>
    %c16_246 = arith.constant 16 : index
    %c0_247 = arith.constant 0 : index
    %212 = vector.load %arg8[%c16_246, %c0_247] : memref<144x1280xbf16, #tpu.memory_space<vmem>>, vector<16x1280xbf16>
    tpu.vector_store %arg8[%c16_246, %c0_247], %211 {strides = array<i32>} : memref<144x1280xbf16, #tpu.memory_space<vmem>>, vector<16x1280xbf16>,
    %c0_248 = arith.constant 0 : index
    %c2_249 = arith.constant 2 : index
    %213 = vector.load %arg5[%c0_248, %c2_249] : memref<16x1408xf32, #tpu.memory_space<vmem>>, vector<16x1280xf32>
    %214 = arith.truncf %213 : vector<16x1280xf32> to vector<16x1280xbf16>
    %c32_250 = arith.constant 32 : index
    %c0_251 = arith.constant 0 : index
    %215 = vector.load %arg8[%c32_250, %c0_251] : memref<144x1280xbf16, #tpu.memory_space<vmem>>, vector<16x1280xbf16>
    tpu.vector_store %arg8[%c32_250, %c0_251], %214 {strides = array<i32>} : memref<144x1280xbf16, #tpu.memory_space<vmem>>, vector<16x1280xbf16>,
    %c0_252 = arith.constant 0 : index
    %c24_253 = arith.constant 24 : index
    %216 = vector.load %arg5[%c0_252, %c24_253] : memref<16x1408xf32, #tpu.memory_space<vmem>>, vector<16x1280xf32>
    %217 = arith.truncf %216 : vector<16x1280xf32> to vector<16x1280xbf16>
    %c48_254 = arith.constant 48 : index
    %c0_255 = arith.constant 0 : index
    %218 = vector.load %arg8[%c48_254, %c0_255] : memref<144x1280xbf16, #tpu.memory_space<vmem>>, vector<16x1280xbf16>
    tpu.vector_store %arg8[%c48_254, %c0_255], %217 {strides = array<i32>} : memref<144x1280xbf16, #tpu.memory_space<vmem>>, vector<16x1280xbf16>,
    %c0_256 = arith.constant 0 : index
    %c25_257 = arith.constant 25 : index
    %219 = vector.load %arg5[%c0_256, %c25_257] : memref<16x1408xf32, #tpu.memory_space<vmem>>, vector<16x1280xf32>
    %220 = arith.truncf %219 : vector<16x1280xf32> to vector<16x1280xbf16>
    %c64_258 = arith.constant 64 : index
    %c0_259 = arith.constant 0 : index
    %221 = vector.load %arg8[%c64_258, %c0_259] : memref<144x1280xbf16, #tpu.memory_space<vmem>>, vector<16x1280xbf16>
    tpu.vector_store %arg8[%c64_258, %c0_259], %220 {strides = array<i32>} : memref<144x1280xbf16, #tpu.memory_space<vmem>>, vector<16x1280xbf16>,
    %c0_260 = arith.constant 0 : index
    %c26_261 = arith.constant 26 : index
    %222 = vector.load %arg5[%c0_260, %c26_261] : memref<16x1408xf32, #tpu.memory_space<vmem>>, vector<16x1280xf32>
    %223 = arith.truncf %222 : vector<16x1280xf32> to vector<16x1280xbf16>
    %c80_262 = arith.constant 80 : index
    %c0_263 = arith.constant 0 : index
    %224 = vector.load %arg8[%c80_262, %c0_263] : memref<144x1280xbf16, #tpu.memory_space<vmem>>, vector<16x1280xbf16>
    tpu.vector_store %arg8[%c80_262, %c0_263], %223 {strides = array<i32>} : memref<144x1280xbf16, #tpu.memory_space<vmem>>, vector<16x1280xbf16>,
    %c0_264 = arith.constant 0 : index
    %c48_265 = arith.constant 48 : index
    %225 = vector.load %arg5[%c0_264, %c48_265] : memref<16x1408xf32, #tpu.memory_space<vmem>>, vector<16x1280xf32>
    %226 = arith.truncf %225 : vector<16x1280xf32> to vector<16x1280xbf16>
    %c96_266 = arith.constant 96 : index
    %c0_267 = arith.constant 0 : index
    %227 = vector.load %arg8[%c96_266, %c0_267] : memref<144x1280xbf16, #tpu.memory_space<vmem>>, vector<16x1280xbf16>
    tpu.vector_store %arg8[%c96_266, %c0_267], %226 {strides = array<i32>} : memref<144x1280xbf16, #tpu.memory_space<vmem>>, vector<16x1280xbf16>,
    %c0_268 = arith.constant 0 : index
    %c49_269 = arith.constant 49 : index
    %228 = vector.load %arg5[%c0_268, %c49_269] : memref<16x1408xf32, #tpu.memory_space<vmem>>, vector<16x1280xf32>
    %229 = arith.truncf %228 : vector<16x1280xf32> to vector<16x1280xbf16>
    %c112_270 = arith.constant 112 : index
    %c0_271 = arith.constant 0 : index
    %230 = vector.load %arg8[%c112_270, %c0_271] : memref<144x1280xbf16, #tpu.memory_space<vmem>>, vector<16x1280xbf16>
    tpu.vector_store %arg8[%c112_270, %c0_271], %229 {strides = array<i32>} : memref<144x1280xbf16, #tpu.memory_space<vmem>>, vector<16x1280xbf16>,
    %c0_272 = arith.constant 0 : index
    %c50_273 = arith.constant 50 : index
    %231 = vector.load %arg5[%c0_272, %c50_273] : memref<16x1408xf32, #tpu.memory_space<vmem>>, vector<16x1280xf32>
    %232 = arith.truncf %231 : vector<16x1280xf32> to vector<16x1280xbf16>
    %c128_274 = arith.constant 128 : index
    %c0_275 = arith.constant 0 : index
    %233 = vector.load %arg8[%c128_274, %c0_275] : memref<144x1280xbf16, #tpu.memory_space<vmem>>, vector<16x1280xbf16>
    tpu.vector_store %arg8[%c128_274, %c0_275], %232 {strides = array<i32>} : memref<144x1280xbf16, #tpu.memory_space<vmem>>, vector<16x1280xbf16>,
    %c5 = arith.constant 5 : index
    %c0_276 = arith.constant 0 : index
    %c0_277 = arith.constant 0 : index
    %234 = vector.load %arg2[%c5, %c0_276, %c0_277] : memref<7x16x144xbf16, #tpu.memory_space<vmem>>, vector<1x16x144xbf16>
    %235 = vector.shape_cast %234 : vector<1x16x144xbf16> to vector<16x144xbf16>
    %c0_278 = arith.constant 0 : index
    %c0_279 = arith.constant 0 : index
    %236 = vector.load %arg8[%c0_278, %c0_279] : memref<144x1280xbf16, #tpu.memory_space<vmem>>, vector<144x1280xbf16>
    %cst_280 = arith.constant dense<0.000000e+00> : vector<16x1280xf32>
    %237 = tpu.matmul %235, %236, %cst_280 {dimension_numbers = #tpu.dot_dimension_numbers<[1], [0], [0], [1], [0, 0, 1, 1], [], []>} : vector<16x144xbf16>, vector<144x1280xbf16>, vector<16x1280xf32> -> vector<16x1280xf32>
    %c5_281 = arith.constant 5 : index
    %c0_282 = arith.constant 0 : index
    %c0_283 = arith.constant 0 : index
    %238 = vector.load %arg3[%c5_281, %c0_282, %c0_283] : memref<7x16x1xf32, #tpu.memory_space<vmem>>, vector<1x16x1xf32>
    %239 = vector.shape_cast %238 : vector<1x16x1xf32> to vector<16x1xf32>
    %240 = vector.broadcast %239 : vector<16x1xf32> to vector<16x1280xf32>
    %241 = arith.addf %237, %240 : vector<16x1280xf32>
    %cst_284 = arith.constant 0.000000e+00 : f32
    %242 = vector.broadcast %cst_284 : f32 to vector<16x1280xf32>
    %243 = arith.maximumf %241, %242 : vector<16x1280xf32>
    %c0_285 = arith.constant 0 : index
    %c0_286 = arith.constant 0 : index
    %244 = vector.load %arg6[%c0_285, %c0_286] : memref<16x1408xf32, #tpu.memory_space<vmem>>, vector<16x1280xf32>
    tpu.vector_store %arg6[%c0_285, %c0_286], %243 {strides = array<i32>} : memref<16x1408xf32, #tpu.memory_space<vmem>>, vector<16x1280xf32>,
    %c0_287 = arith.constant 0 : index
    %c0_288 = arith.constant 0 : index
    %245 = vector.load %arg6[%c0_287, %c0_288] : memref<16x1408xf32, #tpu.memory_space<vmem>>, vector<16x1280xf32>
    %246 = arith.truncf %245 : vector<16x1280xf32> to vector<16x1280xbf16>
    %c0_289 = arith.constant 0 : index
    %c0_290 = arith.constant 0 : index
    %247 = vector.load %arg8[%c0_289, %c0_290] : memref<144x1280xbf16, #tpu.memory_space<vmem>>, vector<16x1280xbf16>
    tpu.vector_store %arg8[%c0_289, %c0_290], %246 {strides = array<i32>} : memref<144x1280xbf16, #tpu.memory_space<vmem>>, vector<16x1280xbf16>,
    %c0_291 = arith.constant 0 : index
    %c1_292 = arith.constant 1 : index
    %248 = vector.load %arg6[%c0_291, %c1_292] : memref<16x1408xf32, #tpu.memory_space<vmem>>, vector<16x1280xf32>
    %249 = arith.truncf %248 : vector<16x1280xf32> to vector<16x1280xbf16>
    %c16_293 = arith.constant 16 : index
    %c0_294 = arith.constant 0 : index
    %250 = vector.load %arg8[%c16_293, %c0_294] : memref<144x1280xbf16, #tpu.memory_space<vmem>>, vector<16x1280xbf16>
    tpu.vector_store %arg8[%c16_293, %c0_294], %249 {strides = array<i32>} : memref<144x1280xbf16, #tpu.memory_space<vmem>>, vector<16x1280xbf16>,
    %c0_295 = arith.constant 0 : index
    %c2_296 = arith.constant 2 : index
    %251 = vector.load %arg6[%c0_295, %c2_296] : memref<16x1408xf32, #tpu.memory_space<vmem>>, vector<16x1280xf32>
    %252 = arith.truncf %251 : vector<16x1280xf32> to vector<16x1280xbf16>
    %c32_297 = arith.constant 32 : index
    %c0_298 = arith.constant 0 : index
    %253 = vector.load %arg8[%c32_297, %c0_298] : memref<144x1280xbf16, #tpu.memory_space<vmem>>, vector<16x1280xbf16>
    tpu.vector_store %arg8[%c32_297, %c0_298], %252 {strides = array<i32>} : memref<144x1280xbf16, #tpu.memory_space<vmem>>, vector<16x1280xbf16>,
    %c0_299 = arith.constant 0 : index
    %c24_300 = arith.constant 24 : index
    %254 = vector.load %arg6[%c0_299, %c24_300] : memref<16x1408xf32, #tpu.memory_space<vmem>>, vector<16x1280xf32>
    %255 = arith.truncf %254 : vector<16x1280xf32> to vector<16x1280xbf16>
    %c48_301 = arith.constant 48 : index
    %c0_302 = arith.constant 0 : index
    %256 = vector.load %arg8[%c48_301, %c0_302] : memref<144x1280xbf16, #tpu.memory_space<vmem>>, vector<16x1280xbf16>
    tpu.vector_store %arg8[%c48_301, %c0_302], %255 {strides = array<i32>} : memref<144x1280xbf16, #tpu.memory_space<vmem>>, vector<16x1280xbf16>,
    %c0_303 = arith.constant 0 : index
    %c25_304 = arith.constant 25 : index
    %257 = vector.load %arg6[%c0_303, %c25_304] : memref<16x1408xf32, #tpu.memory_space<vmem>>, vector<16x1280xf32>
    %258 = arith.truncf %257 : vector<16x1280xf32> to vector<16x1280xbf16>
    %c64_305 = arith.constant 64 : index
    %c0_306 = arith.constant 0 : index
    %259 = vector.load %arg8[%c64_305, %c0_306] : memref<144x1280xbf16, #tpu.memory_space<vmem>>, vector<16x1280xbf16>
    tpu.vector_store %arg8[%c64_305, %c0_306], %258 {strides = array<i32>} : memref<144x1280xbf16, #tpu.memory_space<vmem>>, vector<16x1280xbf16>,
    %c0_307 = arith.constant 0 : index
    %c26_308 = arith.constant 26 : index
    %260 = vector.load %arg6[%c0_307, %c26_308] : memref<16x1408xf32, #tpu.memory_space<vmem>>, vector<16x1280xf32>
    %261 = arith.truncf %260 : vector<16x1280xf32> to vector<16x1280xbf16>
    %c80_309 = arith.constant 80 : index
    %c0_310 = arith.constant 0 : index
    %262 = vector.load %arg8[%c80_309, %c0_310] : memref<144x1280xbf16, #tpu.memory_space<vmem>>, vector<16x1280xbf16>
    tpu.vector_store %arg8[%c80_309, %c0_310], %261 {strides = array<i32>} : memref<144x1280xbf16, #tpu.memory_space<vmem>>, vector<16x1280xbf16>,
    %c0_311 = arith.constant 0 : index
    %c48_312 = arith.constant 48 : index
    %263 = vector.load %arg6[%c0_311, %c48_312] : memref<16x1408xf32, #tpu.memory_space<vmem>>, vector<16x1280xf32>
    %264 = arith.truncf %263 : vector<16x1280xf32> to vector<16x1280xbf16>
    %c96_313 = arith.constant 96 : index
    %c0_314 = arith.constant 0 : index
    %265 = vector.load %arg8[%c96_313, %c0_314] : memref<144x1280xbf16, #tpu.memory_space<vmem>>, vector<16x1280xbf16>
    tpu.vector_store %arg8[%c96_313, %c0_314], %264 {strides = array<i32>} : memref<144x1280xbf16, #tpu.memory_space<vmem>>, vector<16x1280xbf16>,
    %c0_315 = arith.constant 0 : index
    %c49_316 = arith.constant 49 : index
    %266 = vector.load %arg6[%c0_315, %c49_316] : memref<16x1408xf32, #tpu.memory_space<vmem>>, vector<16x1280xf32>
    %267 = arith.truncf %266 : vector<16x1280xf32> to vector<16x1280xbf16>
    %c112_317 = arith.constant 112 : index
    %c0_318 = arith.constant 0 : index
    %268 = vector.load %arg8[%c112_317, %c0_318] : memref<144x1280xbf16, #tpu.memory_space<vmem>>, vector<16x1280xbf16>
    tpu.vector_store %arg8[%c112_317, %c0_318], %267 {strides = array<i32>} : memref<144x1280xbf16, #tpu.memory_space<vmem>>, vector<16x1280xbf16>,
    %c0_319 = arith.constant 0 : index
    %c50_320 = arith.constant 50 : index
    %269 = vector.load %arg6[%c0_319, %c50_320] : memref<16x1408xf32, #tpu.memory_space<vmem>>, vector<16x1280xf32>
    %270 = arith.truncf %269 : vector<16x1280xf32> to vector<16x1280xbf16>
    %c128_321 = arith.constant 128 : index
    %c0_322 = arith.constant 0 : index
    %271 = vector.load %arg8[%c128_321, %c0_322] : memref<144x1280xbf16, #tpu.memory_space<vmem>>, vector<16x1280xbf16>
    tpu.vector_store %arg8[%c128_321, %c0_322], %270 {strides = array<i32>} : memref<144x1280xbf16, #tpu.memory_space<vmem>>, vector<16x1280xbf16>,
    %c6 = arith.constant 6 : index
    %c0_323 = arith.constant 0 : index
    %c0_324 = arith.constant 0 : index
    %272 = vector.load %arg2[%c6, %c0_323, %c0_324] : memref<7x16x144xbf16, #tpu.memory_space<vmem>>, vector<1x16x144xbf16>
    %273 = vector.shape_cast %272 : vector<1x16x144xbf16> to vector<16x144xbf16>
    %c0_325 = arith.constant 0 : index
    %c0_326 = arith.constant 0 : index
    %274 = vector.load %arg8[%c0_325, %c0_326] : memref<144x1280xbf16, #tpu.memory_space<vmem>>, vector<144x1280xbf16>
    %cst_327 = arith.constant dense<0.000000e+00> : vector<16x1280xf32>
    %275 = tpu.matmul %273, %274, %cst_327 {dimension_numbers = #tpu.dot_dimension_numbers<[1], [0], [0], [1], [0, 0, 1, 1], [], []>} : vector<16x144xbf16>, vector<144x1280xbf16>, vector<16x1280xf32> -> vector<16x1280xf32>
    %c6_328 = arith.constant 6 : index
    %c0_329 = arith.constant 0 : index
    %c0_330 = arith.constant 0 : index
    %276 = vector.load %arg3[%c6_328, %c0_329, %c0_330] : memref<7x16x1xf32, #tpu.memory_space<vmem>>, vector<1x16x1xf32>
    %277 = vector.shape_cast %276 : vector<1x16x1xf32> to vector<16x1xf32>
    %278 = vector.broadcast %277 : vector<16x1xf32> to vector<16x1280xf32>
    %279 = arith.addf %275, %278 : vector<16x1280xf32>
    %cst_331 = arith.constant 0.000000e+00 : f32
    %280 = vector.broadcast %cst_331 : f32 to vector<16x1280xf32>
    %281 = arith.maximumf %279, %280 : vector<16x1280xf32>
    %c0_332 = arith.constant 0 : index
    %c50_333 = arith.constant 50 : index
    %282 = vector.load %arg5[%c0_332, %c50_333] : memref<16x1408xf32, #tpu.memory_space<vmem>>, vector<16x1280xf32>
    %283 = arith.addf %281, %282 : vector<16x1280xf32>
    %c0_334 = arith.constant 0 : index
    %c0_335 = arith.constant 0 : index
    %c0_336 = arith.constant 0 : index
    %284 = vector.load %arg4[%c0_334, %c0_335, %c0_336] : memref<1x16x1280xf32, #tpu.memory_space<vmem>>, vector<1x16x1280xf32>
    %285 = vector.shape_cast %284 : vector<1x16x1280xf32> to vector<16x1280xf32>
    %286 = vector.shape_cast %283 : vector<16x1280xf32> to vector<1x16x1280xf32>
    tpu.vector_store %arg4[%c0_334, %c0_335, %c0_336], %286 {strides = array<i32>} : memref<1x16x1280xf32, #tpu.memory_space<vmem>>, vector<1x16x1280xf32>,
    return
  }
  func.func @transform_0(%arg0: i32) -> (i32, i32, i32) {
    %c0_i32 = arith.constant 0 : i32
    %c0_i32_0 = arith.constant 0 : i32
    %c0_i32_1 = arith.constant 0 : i32
    return %arg0, %c0_i32, %c0_i32_0 : i32, i32, i32
  }
  func.func @transform_1(%arg0: i32) -> (i32, i32, i32) {
    %c0_i32 = arith.constant 0 : i32
    %c0_i32_0 = arith.constant 0 : i32
    %c0_i32_1 = arith.constant 0 : i32
    %c0_i32_2 = arith.constant 0 : i32
    return %c0_i32, %c0_i32_0, %c0_i32_1 : i32, i32, i32
  }
  func.func @transform_2(%arg0: i32) -> (i32, i32, i32) {
    %c0_i32 = arith.constant 0 : i32
    %c0_i32_0 = arith.constant 0 : i32
    %c0_i32_1 = arith.constant 0 : i32
    %c0_i32_2 = arith.constant 0 : i32
    return %c0_i32, %c0_i32_0, %c0_i32_1 : i32, i32, i32
  }
  func.func @transform_3(%arg0: i32) -> (i32, i32, i32) {
    %c0_i32 = arith.constant 0 : i32
    %c0_i32_0 = arith.constant 0 : i32
    %c0_i32_1 = arith.constant 0 : i32
    return %arg0, %c0_i32, %c0_i32_0 : i32, i32, i32
  }
}

</mosaic_0001>

<llo_original>
// kernel: res1_forward_pallas.1
$region0: #{res1_forward_pallas.1}
  #allocation0 [shape = 'u32[]', space=smem, size = 0x4, offset = 0x4, fixed_abs, tag = 'smem constant byte address 0x4 - core index']
  #allocation1 [shape = 'u32[144,128]{1,0:T(1,128)}', space=vmem, size = 0x12000, scoped, tag = 'internal scratch']
  #allocation2 [shape = 'f32[16,1408]{1,0:T(8,128)}', space=vmem, size = 0x16000, scoped, tag = 'scratch operand']
  #allocation3 [shape = 'f32[16,1408]{1,0:T(8,128)}', space=vmem, size = 0x16000, scoped, tag = 'scratch operand']
  #allocation4 [shape = 'f32[16,1408]{1,0:T(8,128)}', space=vmem, size = 0x16000, scoped, tag = 'scratch operand']
  #allocation5 [shape = 'bf16[144,1280]{1,0:T(16,128)(2,1)}', space=vmem, size = 0x5a000, scoped, tag = 'scratch operand']
  %s0 = inlined_call_operand.vmem [shape: f32[2,16,1408], index: 0, kind: input, shape index: {}]
  %s1 = inlined_call_operand.vmem [shape: bf16[7,16,144], index: 1, kind: input, shape index: {}]
  %s2 = inlined_call_operand.vmem [shape: f32[7,16,1], index: 2, kind: input, shape index: {}]
  %s3 = inlined_call_operand.vmem [shape: f32[2,16,1280], index: 3, kind: output, shape index: {}]
  %s4 = sld [smem:[#allocation0]]
  $region45: #{res1_forward_pallas.1} parent=0
    _
  %s6 = ssub.s32 1, %s4
  %s7 = scalar_select 0, %s6, %s4
  loop: start=0, step=1, limit=4
  $region2: #{res1_forward_pallas.1} parent=0 // loop_pre_header
    _
  $region3: #{res1_forward_pallas.1} parent=0 // loop_header
    %s9 = sphi 0, %s13
    %p10 = scmp.ge.s32.totalorder %s9, 4
    %s19 = sphi 0, %s21
    %s22 = sphi 0, %s19
    %s23 = sphi 0, %s22
    %s39 = sphi 0, %s23
    %s43 = sphi 0, %s43
    %s45 = sphi 0, %s43
    %s46 = sphi 0, %s45
    %s60 = sphi 0, %s46
    %s64 = sphi 0, %s64
    %s66 = sphi 0, %s64
    %s67 = sphi 0, %s66
    %s81 = sphi 0, %s67
    %s87 = sphi 0, %s89
    %s90 = sphi 0, %s87
    %s91 = sphi 0, %s90
    %s107 = sphi 0, %s91
  $region4: #{res1_forward_pallas.1} parent=0 // loop_header_branch
    %12 = sbr.rel (%p10) target = $region8
  $region5: #{res1_forward_pallas.1} parent=0 // loop_body
    %s14 = ssub.s32 %s9, 1
    %s15 = ssub.s32 %s9, 2
    %s16 = sadd.s32 %s9, 1
    %s17 = ssub.s32 %s9, %s16
    %p18 = scmp.eq.s32.totalorder %s17, 0
    %s20 = sadd.s32 %s19, 1
    %s21 = scalar_select %p18, %s19, %s20
    %p24 = pneg %p18
    %p25 = scmp.eq.s32.totalorder %s9, 1
    %p26 = por %p24, %p25
    %p27 = scmp.ne.s32.totalorder %s19, %s22
    %p28 = scmp.eq.s32.totalorder %s9, 0
    %p29 = por %p27, %p28
    %p30 = scmp.ne.s32.totalorder %s19, %s22
    %p31 = scmp.eq.s32.totalorder %s14, 1
    %p32 = por %p30, %p31
    %p33 = scmp.ne.s32.totalorder %s22, %s23
    %p34 = scmp.eq.s32.totalorder %s14, 0
    %p35 = por %p33, %p34
    %p36 = scmp.ne.s32.totalorder %s22, %s23
    %p37 = scmp.eq.s32.totalorder %s15, 1
    %p38 = por %p36, %p37
    %p40 = scmp.ne.s32.totalorder %s23, %s39
    %p41 = scmp.eq.s32.totalorder %s15, 0
    %p42 = por %p40, %p41
    %s44 = sadd.s32 %s43, 1
    %p47 = scmp.eq.s32.totalorder %s9, 1
    %p48 = scmp.ne.s32.totalorder %s43, %s45
    %p49 = scmp.eq.s32.totalorder %s9, 0
    %p50 = por %p48, %p49
    %p51 = scmp.ne.s32.totalorder %s43, %s45
    %p52 = scmp.eq.s32.totalorder %s14, 1
    %p53 = por %p51, %p52
    %p54 = scmp.ne.s32.totalorder %s45, %s46
    %p55 = scmp.eq.s32.totalorder %s14, 0
    %p56 = por %p54, %p55
    %p57 = scmp.ne.s32.totalorder %s45, %s46
    %p58 = scmp.eq.s32.totalorder %s15, 1
    %p59 = por %p57, %p58
    %p61 = scmp.ne.s32.totalorder %s46, %s60
    %p62 = scmp.eq.s32.totalorder %s15, 0
    %p63 = por %p61, %p62
    %s65 = sadd.s32 %s64, 1
    %p68 = scmp.eq.s32.totalorder %s9, 1
    %p69 = scmp.ne.s32.totalorder %s64, %s66
    %p70 = scmp.eq.s32.totalorder %s9, 0
    %p71 = por %p69, %p70
    %p72 = scmp.ne.s32.totalorder %s64, %s66
    %p73 = scmp.eq.s32.totalorder %s14, 1
    %p74 = por %p72, %p73
    %p75 = scmp.ne.s32.totalorder %s66, %s67
    %p76 = scmp.eq.s32.totalorder %s14, 0
    %p77 = por %p75, %p76
    %p78 = scmp.ne.s32.totalorder %s66, %s67
    %p79 = scmp.eq.s32.totalorder %s15, 1
    %p80 = por %p78, %p79
    %p82 = scmp.ne.s32.totalorder %s67, %s81
    %p83 = scmp.eq.s32.totalorder %s15, 0
    %p84 = por %p82, %p83
    %s85 = ssub.s32 %s9, %s16
    %p86 = scmp.eq.s32.totalorder %s85, 0
    %s88 = sadd.s32 %s87, 1
    %s89 = scalar_select %p86, %s87, %s88
    %p92 = pneg %p86
    %p93 = scmp.eq.s32.totalorder %s9, 1
    %p94 = por %p92, %p93
    %p95 = scmp.ne.s32.totalorder %s87, %s90
    %p96 = scmp.eq.s32.totalorder %s9, 0
    %p97 = por %p95, %p96
    %p98 = scmp.ne.s32.totalorder %s87, %s90
    %p99 = scmp.eq.s32.totalorder %s14, 1
    %p100 = por %p98, %p99
    %p101 = scmp.ne.s32.totalorder %s90, %s91
    %p102 = scmp.eq.s32.totalorder %s14, 0
    %p103 = por %p101, %p102
    %p104 = scmp.ne.s32.totalorder %s90, %s91
    %p105 = scmp.eq.s32.totalorder %s15, 1
    %p106 = por %p104, %p105
    %p108 = scmp.ne.s32.totalorder %s91, %s107
    %p109 = scmp.eq.s32.totalorder %s15, 0
    %p110 = por %p108, %p109
    %p111 = scmp.le.s32.totalorder 1, %s9
    %p112 = scmp.lt.s32.totalorder %s9, 3
    %p113 = pnand %p111, %p112
    %p114 = pneg %p113
    // Predicated region
    $region9: #{res1_forward_pallas.1} parent=5 // pred_check
      _
    $region10: #{res1_forward_pallas.1} parent=5 // pred_check_branch
      %116 = sbr.rel (%p113) target = $region12
    $region11: #{res1_forward_pallas.1} parent=5 // pred_region
      %s117 = ssub.s32 %s9, 1
      // Predicated region
      $region13: #{res1_forward_pallas.1} parent=11 // pred_check
        %p118 = pneg %p56
      $region14: #{res1_forward_pallas.1} parent=11 // pred_check_branch
        %120 = sbr.rel (%p118) target = $region16
      $region15: #{res1_forward_pallas.1} parent=11 // pred_region
        _
      $region16: #{res1_forward_pallas.1} parent=11 // pred_fallthru
        _
      // Predicated region
      $region17: #{res1_forward_pallas.1} parent=11 // pred_check
        %p121 = pneg %p77
      $region18: #{res1_forward_pallas.1} parent=11 // pred_check_branch
        %123 = sbr.rel (%p121) target = $region20
      $region19: #{res1_forward_pallas.1} parent=11 // pred_region
        _
      $region20: #{res1_forward_pallas.1} parent=11 // pred_fallthru
        _
    $region12: #{res1_forward_pallas.1} parent=5 // pred_fallthru
      _
    %p124 = scmp.lt.s32.totalorder %s9, 2
    // Predicated region
    $region21: #{res1_forward_pallas.1} parent=5 // pred_check
      %p125 = pneg %p124
    $region22: #{res1_forward_pallas.1} parent=5 // pred_check_branch
      %127 = sbr.rel (%p125) target = $region24
    $region23: #{res1_forward_pallas.1} parent=5 // pred_region
      // Predicated region
      $region25: #{res1_forward_pallas.1} parent=23 // pred_check
        %p128 = pneg %p29
      $region26: #{res1_forward_pallas.1} parent=23 // pred_check_branch
        %130 = sbr.rel (%p128) target = $region28
      $region27: #{res1_forward_pallas.1} parent=23 // pred_region
        %p131 = scmp.lt.s32.totalorder %s9, 1
        %s132 = scalar_select %p131, %s9, 1
        %s133 = smul.addr %s132, 22
        %s134 = smul.addr %s133, 8
        %s135 = scalar_lea.vmem %s0, %s134
      $region28: #{res1_forward_pallas.1} parent=23 // pred_fallthru
        _
    $region24: #{res1_forward_pallas.1} parent=5 // pred_fallthru
      _
    %p136 = scmp.le.s32.totalorder 1, %s9
    %p137 = scmp.lt.s32.totalorder %s9, 3
    %p138 = pnand %p136, %p137
    %p139 = pneg %p138
    // Predicated region
    $region29: #{res1_forward_pallas.1} parent=5 // pred_check
      _
    $region30: #{res1_forward_pallas.1} parent=5 // pred_check_branch
      %141 = sbr.rel (%p138) target = $region32
    $region31: #{res1_forward_pallas.1} parent=5 // pred_region
      %s142 = ssub.s32 %s9, 1
      %p143 = scmp.lt.s32.totalorder %s14, 1
      %s144 = scalar_select %p143, %s14, 1
      %s145 = smul.addr %s144, 22
      %s146 = smul.addr %s145, 8
      %s147 = scalar_lea.vmem %s0, %s146
      %p148 = pneg %p35
      %p149 = pneg %p32
      %p150 = pneg %p56
      %p151 = pneg %p53
      %p152 = pneg %p77
      %p153 = pneg %p74
      %p154 = pneg %p103
      %p155 = pneg %p100
      %p156 = scmp.lt.s32.totalorder %s14, 1
      %s157 = scalar_select %p156, %s14, 1
      %s158 = smul.addr %s157, 20
      %s159 = smul.addr %s158, 8
      %s160 = scalar_lea.vmem %s3, %s159
      %p161 = scmp.lt.s32.totalorder %s14, 1
      %s162 = scalar_select %p161, %s14, 1
      %s163 = smul.addr %s162, 22
      %s164 = smul.addr %s163, 8
      %s165 = scalar_lea.vmem %s0, %s164
      %p166 = scmp.lt.s32.totalorder %s14, 1
      %s167 = scalar_select %p166, %s14, 1
      %s168 = smul.addr %s167, 20
      %s169 = smul.addr %s168, 8
      %s170 = scalar_lea.vmem %s3, %s169
      %172 = vst [vmem:[#allocation2 + $0x50] sm:$0xff] 0.0
      %173 = vst [vmem:[#allocation2 + $0xa8] sm:$0xff] 0.0
      %174 = vst [vmem:[#allocation3 + $0x50] sm:$0xff] 0.0
      %175 = vst [vmem:[#allocation3 + $0xa8] sm:$0xff] 0.0
      %176 = vst [vmem:[#allocation4 + $0x50] sm:$0xff] 0.0
      %177 = vst [vmem:[#allocation4 + $0xa8] sm:$0xff] 0.0
      %v178 = vld [vmem:[%s165] sm:$0xff]
      %v179 = vld [vmem:[%s165 + $0x8] sm:$0xff]
      %v180 = vld [vmem:[%s165 + $0x10] sm:$0xff]
      %v181 = vld [vmem:[%s165 + $0x18] sm:$0xff]
      %v182 = vld [vmem:[%s165 + $0x20] sm:$0xff]
      %v183 = vld [vmem:[%s165 + $0x28] sm:$0xff]
      %v184 = vld [vmem:[%s165 + $0x30] sm:$0xff]
      %v185 = vld [vmem:[%s165 + $0x38] sm:$0xff]
      %v186 = vld [vmem:[%s165 + $0x40] sm:$0xff]
      %v187 = vld [vmem:[%s165 + $0x48] sm:$0xff]
      %v188 = vld [vmem:[%s165 + $0x58] sm:$0xff]
      %v189 = vld [vmem:[%s165 + $0x60] sm:$0xff]
      %v190 = vld [vmem:[%s165 + $0x68] sm:$0xff]
      %v191 = vld [vmem:[%s165 + $0x70] sm:$0xff]
      %v192 = vld [vmem:[%s165 + $0x78] sm:$0xff]
      %v193 = vld [vmem:[%s165 + $0x80] sm:$0xff]
      %v194 = vld [vmem:[%s165 + $0x88] sm:$0xff]
      %v195 = vld [vmem:[%s165 + $0x90] sm:$0xff]
      %v196 = vld [vmem:[%s165 + $0x98] sm:$0xff]
      %v197 = vld [vmem:[%s165 + $0xa0] sm:$0xff]
      %v198 = vpack.c.bf16 %v188, %v178
      %v199 = vpack.c.bf16 %v189, %v179
      %v200 = vpack.c.bf16 %v190, %v180
      %v201 = vpack.c.bf16 %v191, %v181
      %v202 = vpack.c.bf16 %v192, %v182
      %v203 = vpack.c.bf16 %v193, %v183
      %v204 = vpack.c.bf16 %v194, %v184
      %v205 = vpack.c.bf16 %v195, %v185
      %v206 = vpack.c.bf16 %v196, %v186
      %v207 = vpack.c.bf16 %v197, %v187
      %208 = vst [vmem:[#allocation5] sm:$0xff] %v198
      %209 = vst [vmem:[#allocation5 + $0x8] sm:$0xff] %v199
      %210 = vst [vmem:[#allocation5 + $0x10] sm:$0xff] %v200
      %211 = vst [vmem:[#allocation5 + $0x18] sm:$0xff] %v201
      %212 = vst [vmem:[#allocation5 + $0x20] sm:$0xff] %v202
      %213 = vst [vmem:[#allocation5 + $0x28] sm:$0xff] %v203
      %214 = vst [vmem:[#allocation5 + $0x30] sm:$0xff] %v204
      %215 = vst [vmem:[#allocation5 + $0x38] sm:$0xff] %v205
      %216 = vst [vmem:[#allocation5 + $0x40] sm:$0xff] %v206
      %217 = vst [vmem:[#allocation5 + $0x48] sm:$0xff] %v207
      %v218 = vld [vmem:[%s165] sm:$0xff]
      %v219 = vld [vmem:[%s165 + $0x8] sm:$0xff]
      %v220 = vld [vmem:[%s165 + $0x10] sm:$0xff]
      %v221 = vld [vmem:[%s165 + $0x18] sm:$0xff]
      %v222 = vld [vmem:[%s165 + $0x20] sm:$0xff]
      %v223 = vld [vmem:[%s165 + $0x28] sm:$0xff]
      %v224 = vld [vmem:[%s165 + $0x30] sm:$0xff]
      %v225 = vld [vmem:[%s165 + $0x38] sm:$0xff]
      %v226 = vld [vmem:[%s165 + $0x40] sm:$0xff]
      %v227 = vld [vmem:[%s165 + $0x48] sm:$0xff]
      %v228 = vld [vmem:[%s165 + $0x50] sm:$0xff]
      %v229 = vld [vmem:[%s165 + $0x58] sm:$0xff]
      %v230 = vld [vmem:[%s165 + $0x60] sm:$0xff]
      %v231 = vld [vmem:[%s165 + $0x68] sm:$0xff]
      %v232 = vld [vmem:[%s165 + $0x70] sm:$0xff]
      %v233 = vld [vmem:[%s165 + $0x78] sm:$0xff]
      %v234 = vld [vmem:[%s165 + $0x80] sm:$0xff]
      %v235 = vld [vmem:[%s165 + $0x88] sm:$0xff]
      %v236 = vld [vmem:[%s165 + $0x90] sm:$0xff]
      %v237 = vld [vmem:[%s165 + $0x98] sm:$0xff]
      %v238 = vld [vmem:[%s165 + $0xa0] sm:$0xff]
      %v239 = vld [vmem:[%s165 + $0xa8] sm:$0xff]
      %v240 = vpack.c.bf16 %v229, %v218
      %v241 = vpack.c.bf16 %v230, %v219
      %v242 = vpack.c.bf16 %v231, %v220
      %v243 = vpack.c.bf16 %v232, %v221
      %v244 = vpack.c.bf16 %v233, %v222
      %v245 = vpack.c.bf16 %v234, %v223
      %v246 = vpack.c.bf16 %v235, %v224
      %v247 = vpack.c.bf16 %v236, %v225
      %v248 = vpack.c.bf16 %v237, %v226
      %v249 = vpack.c.bf16 %v238, %v227
      %v250 = vpack.c.bf16 %v239, %v228
      %262 = vrot.lane.b32.xlu0 %v240, 127
      %v263 = vpop.permute.xlu0 %262
      %264 = vrot.lane.b32.xlu0 %v241, 127
      %v265 = vpop.permute.xlu0 %264
      %266 = vrot.lane.b32.xlu0 %v242, 127
      %v267 = vpop.permute.xlu0 %266
      %268 = vrot.lane.b32.xlu0 %v243, 127
      %v269 = vpop.permute.xlu0 %268
      %270 = vrot.lane.b32.xlu0 %v244, 127
      %v271 = vpop.permute.xlu0 %270
      %272 = vrot.lane.b32.xlu0 %v245, 127
      %v273 = vpop.permute.xlu0 %272
      %274 = vrot.lane.b32.xlu0 %v246, 127
      %v275 = vpop.permute.xlu0 %274
      %276 = vrot.lane.b32.xlu0 %v247, 127
      %v277 = vpop.permute.xlu0 %276
      %278 = vrot.lane.b32.xlu0 %v248, 127
      %v279 = vpop.permute.xlu0 %278
      %280 = vrot.lane.b32.xlu0 %v249, 127
      %v281 = vpop.permute.xlu0 %280
      %282 = vrot.lane.b32.xlu0 %v250, 127
      %v283 = vpop.permute.xlu0 %282
      %vm284 = vcmask 1039360
      %v285 = vsel %vm284, %v263, %v265
      %v286 = vsel %vm284, %v265, %v267
      %v287 = vsel %vm284, %v267, %v269
      %v288 = vsel %vm284, %v269, %v271
      %v289 = vsel %vm284, %v271, %v273
      %v290 = vsel %vm284, %v273, %v275
      %v291 = vsel %vm284, %v275, %v277
      %v292 = vsel %vm284, %v277, %v279
      %v293 = vsel %vm284, %v279, %v281
      %v294 = vsel %vm284, %v281, %v283
      %305 = vst [vmem:[#allocation5 + $0x50] sm:$0xff] %v285
      %306 = vst [vmem:[#allocation5 + $0x58] sm:$0xff] %v286
      %307 = vst [vmem:[#allocation5 + $0x60] sm:$0xff] %v287
      %308 = vst [vmem:[#allocation5 + $0x68] sm:$0xff] %v288
      %309 = vst [vmem:[#allocation5 + $0x70] sm:$0xff] %v289
      %310 = vst [vmem:[#allocation5 + $0x78] sm:$0xff] %v290
      %311 = vst [vmem:[#allocation5 + $0x80] sm:$0xff] %v291
      %312 = vst [vmem:[#allocation5 + $0x88] sm:$0xff] %v292
      %313 = vst [vmem:[#allocation5 + $0x90] sm:$0xff] %v293
      %314 = vst [vmem:[#allocation5 + $0x98] sm:$0xff] %v294
      %v315 = vld [vmem:[%s165] sm:$0xff]
      %v316 = vld [vmem:[%s165 + $0x8] sm:$0xff]
      %v317 = vld [vmem:[%s165 + $0x10] sm:$0xff]
      %v318 = vld [vmem:[%s165 + $0x18] sm:$0xff]
      %v319 = vld [vmem:[%s165 + $0x20] sm:$0xff]
      %v320 = vld [vmem:[%s165 + $0x28] sm:$0xff]
      %v321 = vld [vmem:[%s165 + $0x30] sm:$0xff]
      %v322 = vld [vmem:[%s165 + $0x38] sm:$0xff]
      %v323 = vld [vmem:[%s165 + $0x40] sm:$0xff]
      %v324 = vld [vmem:[%s165 + $0x48] sm:$0xff]
      %v325 = vld [vmem:[%s165 + $0x50] sm:$0xff]
      %v326 = vld [vmem:[%s165 + $0x58] sm:$0xff]
      %v327 = vld [vmem:[%s165 + $0x60] sm:$0xff]
      %v328 = vld [vmem:[%s165 + $0x68] sm:$0xff]
      %v329 = vld [vmem:[%s165 + $0x70] sm:$0xff]
      %v330 = vld [vmem:[%s165 + $0x78] sm:$0xff]
      %v331 = vld [vmem:[%s165 + $0x80] sm:$0xff]
      %v332 = vld [vmem:[%s165 + $0x88] sm:$0xff]
      %v333 = vld [vmem:[%s165 + $0x90] sm:$0xff]
      %v334 = vld [vmem:[%s165 + $0x98] sm:$0xff]
      %v335 = vld [vmem:[%s165 + $0xa0] sm:$0xff]
      %v336 = vld [vmem:[%s165 + $0xa8] sm:$0xff]
      %v337 = vpack.c.bf16 %v326, %v315
      %v338 = vpack.c.bf16 %v327, %v316
      %v339 = vpack.c.bf16 %v328, %v317
      %v340 = vpack.c.bf16 %v329, %v318
      %v341 = vpack.c.bf16 %v330, %v319
      %v342 = vpack.c.bf16 %v331, %v320
      %v343 = vpack.c.bf16 %v332, %v321
      %v344 = vpack.c.bf16 %v333, %v322
      %v345 = vpack.c.bf16 %v334, %v323
      %v346 = vpack.c.bf16 %v335, %v324
      %v347 = vpack.c.bf16 %v336, %v325
      %359 = vrot.lane.b32.xlu0 %v337, 126
      %v360 = vpop.permute.xlu0 %359
      %361 = vrot.lane.b32.xlu0 %v338, 126
      %v362 = vpop.permute.xlu0 %361
      %363 = vrot.lane.b32.xlu0 %v339, 126
      %v364 = vpop.permute.xlu0 %363
      %365 = vrot.lane.b32.xlu0 %v340, 126
      %v366 = vpop.permute.xlu0 %365
      %367 = vrot.lane.b32.xlu0 %v341, 126
      %v368 = vpop.permute.xlu0 %367
      %369 = vrot.lane.b32.xlu0 %v342, 126
      %v370 = vpop.permute.xlu0 %369
      %371 = vrot.lane.b32.xlu0 %v343, 126
      %v372 = vpop.permute.xlu0 %371
      %373 = vrot.lane.b32.xlu0 %v344, 126
      %v374 = vpop.permute.xlu0 %373
      %375 = vrot.lane.b32.xlu0 %v345, 126
      %v376 = vpop.permute.xlu0 %375
      %377 = vrot.lane.b32.xlu0 %v346, 126
      %v378 = vpop.permute.xlu0 %377
      %379 = vrot.lane.b32.xlu0 %v347, 126
      %v380 = vpop.permute.xlu0 %379
      %vm381 = vcmask 1031168
      %v382 = vsel %vm381, %v360, %v362
      %v383 = vsel %vm381, %v362, %v364
      %v384 = vsel %vm381, %v364, %v366
      %v385 = vsel %vm381, %v366, %v368
      %v386 = vsel %vm381, %v368, %v370
      %v387 = vsel %vm381, %v370, %v372
      %v388 = vsel %vm381, %v372, %v374
      %v389 = vsel %vm381, %v374, %v376
      %v390 = vsel %vm381, %v376, %v378
      %v391 = vsel %vm381, %v378, %v380
      %402 = vst [vmem:[#allocation5 + $0xa0] sm:$0xff] %v382
      %403 = vst [vmem:[#allocation5 + $0xa8] sm:$0xff] %v383
      %404 = vst [vmem:[#allocation5 + $0xb0] sm:$0xff] %v384
      %405 = vst [vmem:[#allocation5 + $0xb8] sm:$0xff] %v385
      %406 = vst [vmem:[#allocation5 + $0xc0] sm:$0xff] %v386
      %407 = vst [vmem:[#allocation5 + $0xc8] sm:$0xff] %v387
      %408 = vst [vmem:[#allocation5 + $0xd0] sm:$0xff] %v388
      %409 = vst [vmem:[#allocation5 + $0xd8] sm:$0xff] %v389
      %410 = vst [vmem:[#allocation5 + $0xe0] sm:$0xff] %v390
      %411 = vst [vmem:[#allocation5 + $0xe8] sm:$0xff] %v391
      %v412 = vld [vmem:[%s165] sm:$0xff]
      %v413 = vld [vmem:[%s165 + $0x8] sm:$0xff]
      %v414 = vld [vmem:[%s165 + $0x10] sm:$0xff]
      %v415 = vld [vmem:[%s165 + $0x18] sm:$0xff]
      %v416 = vld [vmem:[%s165 + $0x20] sm:$0xff]
      %v417 = vld [vmem:[%s165 + $0x28] sm:$0xff]
      %v418 = vld [vmem:[%s165 + $0x30] sm:$0xff]
      %v419 = vld [vmem:[%s165 + $0x38] sm:$0xff]
      %v420 = vld [vmem:[%s165 + $0x40] sm:$0xff]
      %v421 = vld [vmem:[%s165 + $0x48] sm:$0xff]
      %v422 = vld [vmem:[%s165 + $0x50] sm:$0xff]
      %v423 = vld [vmem:[%s165 + $0x58] sm:$0xff]
      %v424 = vld [vmem:[%s165 + $0x60] sm:$0xff]
      %v425 = vld [vmem:[%s165 + $0x68] sm:$0xff]
      %v426 = vld [vmem:[%s165 + $0x70] sm:$0xff]
      %v427 = vld [vmem:[%s165 + $0x78] sm:$0xff]
      %v428 = vld [vmem:[%s165 + $0x80] sm:$0xff]
      %v429 = vld [vmem:[%s165 + $0x88] sm:$0xff]
      %v430 = vld [vmem:[%s165 + $0x90] sm:$0xff]
      %v431 = vld [vmem:[%s165 + $0x98] sm:$0xff]
      %v432 = vld [vmem:[%s165 + $0xa0] sm:$0xff]
      %v433 = vld [vmem:[%s165 + $0xa8] sm:$0xff]
      %v434 = vpack.c.bf16 %v423, %v412
      %v435 = vpack.c.bf16 %v424, %v413
      %v436 = vpack.c.bf16 %v425, %v414
      %v437 = vpack.c.bf16 %v426, %v415
      %v438 = vpack.c.bf16 %v427, %v416
      %v439 = vpack.c.bf16 %v428, %v417
      %v440 = vpack.c.bf16 %v429, %v418
      %v441 = vpack.c.bf16 %v430, %v419
      %v442 = vpack.c.bf16 %v431, %v420
      %v443 = vpack.c.bf16 %v432, %v421
      %v444 = vpack.c.bf16 %v433, %v422
      %456 = vrot.lane.b32.xlu0 %v434, 104
      %v457 = vpop.permute.xlu0 %456
      %458 = vrot.lane.b32.xlu0 %v435, 104
      %v459 = vpop.permute.xlu0 %458
      %460 = vrot.lane.b32.xlu0 %v436, 104
      %v461 = vpop.permute.xlu0 %460
      %462 = vrot.lane.b32.xlu0 %v437, 104
      %v463 = vpop.permute.xlu0 %462
      %464 = vrot.lane.b32.xlu0 %v438, 104
      %v465 = vpop.permute.xlu0 %464
      %466 = vrot.lane.b32.xlu0 %v439, 104
      %v467 = vpop.permute.xlu0 %466
      %468 = vrot.lane.b32.xlu0 %v440, 104
      %v469 = vpop.permute.xlu0 %468
      %470 = vrot.lane.b32.xlu0 %v441, 104
      %v471 = vpop.permute.xlu0 %470
      %472 = vrot.lane.b32.xlu0 %v442, 104
      %v473 = vpop.permute.xlu0 %472
      %474 = vrot.lane.b32.xlu0 %v443, 104
      %v475 = vpop.permute.xlu0 %474
      %476 = vrot.lane.b32.xlu0 %v444, 104
      %v477 = vpop.permute.xlu0 %476
      %vm478 = vcmask 850944
      %v479 = vsel %vm478, %v457, %v459
      %v480 = vsel %vm478, %v459, %v461
      %v481 = vsel %vm478, %v461, %v463
      %v482 = vsel %vm478, %v463, %v465
      %v483 = vsel %vm478, %v465, %v467
      %v484 = vsel %vm478, %v467, %v469
      %v485 = vsel %vm478, %v469, %v471
      %v486 = vsel %vm478, %v471, %v473
      %v487 = vsel %vm478, %v473, %v475
      %v488 = vsel %vm478, %v475, %v477
      %499 = vst [vmem:[#allocation5 + $0xf0] sm:$0xff] %v479
      %500 = vst [vmem:[#allocation5 + $0xf8] sm:$0xff] %v480
      %501 = vst [vmem:[#allocation5 + $0x100] sm:$0xff] %v481
      %502 = vst [vmem:[#allocation5 + $0x108] sm:$0xff] %v482
      %503 = vst [vmem:[#allocation5 + $0x110] sm:$0xff] %v483
      %504 = vst [vmem:[#allocation5 + $0x118] sm:$0xff] %v484
      %505 = vst [vmem:[#allocation5 + $0x120] sm:$0xff] %v485
      %506 = vst [vmem:[#allocation5 + $0x128] sm:$0xff] %v486
      %507 = vst [vmem:[#allocation5 + $0x130] sm:$0xff] %v487
      %508 = vst [vmem:[#allocation5 + $0x138] sm:$0xff] %v488
      %v509 = vld [vmem:[%s165] sm:$0xff]
      %v510 = vld [vmem:[%s165 + $0x8] sm:$0xff]
      %v511 = vld [vmem:[%s165 + $0x10] sm:$0xff]
      %v512 = vld [vmem:[%s165 + $0x18] sm:$0xff]
      %v513 = vld [vmem:[%s165 + $0x20] sm:$0xff]
      %v514 = vld [vmem:[%s165 + $0x28] sm:$0xff]
      %v515 = vld [vmem:[%s165 + $0x30] sm:$0xff]
      %v516 = vld [vmem:[%s165 + $0x38] sm:$0xff]
      %v517 = vld [vmem:[%s165 + $0x40] sm:$0xff]
      %v518 = vld [vmem:[%s165 + $0x48] sm:$0xff]
      %v519 = vld [vmem:[%s165 + $0x50] sm:$0xff]
      %v520 = vld [vmem:[%s165 + $0x58] sm:$0xff]
      %v521 = vld [vmem:[%s165 + $0x60] sm:$0xff]
      %v522 = vld [vmem:[%s165 + $0x68] sm:$0xff]
      %v523 = vld [vmem:[%s165 + $0x70] sm:$0xff]
      %v524 = vld [vmem:[%s165 + $0x78] sm:$0xff]
      %v525 = vld [vmem:[%s165 + $0x80] sm:$0xff]
      %v526 = vld [vmem:[%s165 + $0x88] sm:$0xff]
      %v527 = vld [vmem:[%s165 + $0x90] sm:$0xff]
      %v528 = vld [vmem:[%s165 + $0x98] sm:$0xff]
      %v529 = vld [vmem:[%s165 + $0xa0] sm:$0xff]
      %v530 = vld [vmem:[%s165 + $0xa8] sm:$0xff]
      %v531 = vpack.c.bf16 %v520, %v509
      %v532 = vpack.c.bf16 %v521, %v510
      %v533 = vpack.c.bf16 %v522, %v511
      %v534 = vpack.c.bf16 %v523, %v512
      %v535 = vpack.c.bf16 %v524, %v513
      %v536 = vpack.c.bf16 %v525, %v514
      %v537 = vpack.c.bf16 %v526, %v515
      %v538 = vpack.c.bf16 %v527, %v516
      %v539 = vpack.c.bf16 %v528, %v517
      %v540 = vpack.c.bf16 %v529, %v518
      %v541 = vpack.c.bf16 %v530, %v519
      %553 = vrot.lane.b32.xlu0 %v531, 103
      %v554 = vpop.permute.xlu0 %553
      %555 = vrot.lane.b32.xlu0 %v532, 103
      %v556 = vpop.permute.xlu0 %555
      %557 = vrot.lane.b32.xlu0 %v533, 103
      %v558 = vpop.permute.xlu0 %557
      %559 = vrot.lane.b32.xlu0 %v534, 103
      %v560 = vpop.permute.xlu0 %559
      %561 = vrot.lane.b32.xlu0 %v535, 103
      %v562 = vpop.permute.xlu0 %561
      %563 = vrot.lane.b32.xlu0 %v536, 103
      %v564 = vpop.permute.xlu0 %563
      %565 = vrot.lane.b32.xlu0 %v537, 103
      %v566 = vpop.permute.xlu0 %565
      %567 = vrot.lane.b32.xlu0 %v538, 103
      %v568 = vpop.permute.xlu0 %567
      %569 = vrot.lane.b32.xlu0 %v539, 103
      %v570 = vpop.permute.xlu0 %569
      %571 = vrot.lane.b32.xlu0 %v540, 103
      %v572 = vpop.permute.xlu0 %571
      %573 = vrot.lane.b32.xlu0 %v541, 103
      %v574 = vpop.permute.xlu0 %573
      %vm575 = vcmask 842752
      %v576 = vsel %vm575, %v554, %v556
      %v577 = vsel %vm575, %v556, %v558
      %v578 = vsel %vm575, %v558, %v560
      %v579 = vsel %vm575, %v560, %v562
      %v580 = vsel %vm575, %v562, %v564
      %v581 = vsel %vm575, %v564, %v566
      %v582 = vsel %vm575, %v566, %v568
      %v583 = vsel %vm575, %v568, %v570
      %v584 = vsel %vm575, %v570, %v572
      %v585 = vsel %vm575, %v572, %v574
      %596 = vst [vmem:[#allocation5 + $0x140] sm:$0xff] %v576
      %597 = vst [vmem:[#allocation5 + $0x148] sm:$0xff] %v577
      %598 = vst [vmem:[#allocation5 + $0x150] sm:$0xff] %v578
      %599 = vst [vmem:[#allocation5 + $0x158] sm:$0xff] %v579
      %600 = vst [vmem:[#allocation5 + $0x160] sm:$0xff] %v580
      %601 = vst [vmem:[#allocation5 + $0x168] sm:$0xff] %v581
      %602 = vst [vmem:[#allocation5 + $0x170] sm:$0xff] %v582
      %603 = vst [vmem:[#allocation5 + $0x178] sm:$0xff] %v583
      %604 = vst [vmem:[#allocation5 + $0x180] sm:$0xff] %v584
      %605 = vst [vmem:[#allocation5 + $0x188] sm:$0xff] %v585
      %v606 = vld [vmem:[%s165] sm:$0xff]
      %v607 = vld [vmem:[%s165 + $0x8] sm:$0xff]
      %v608 = vld [vmem:[%s165 + $0x10] sm:$0xff]
      %v609 = vld [vmem:[%s165 + $0x18] sm:$0xff]
      %v610 = vld [vmem:[%s165 + $0x20] sm:$0xff]
      %v611 = vld [vmem:[%s165 + $0x28] sm:$0xff]
      %v612 = vld [vmem:[%s165 + $0x30] sm:$0xff]
      %v613 = vld [vmem:[%s165 + $0x38] sm:$0xff]
      %v614 = vld [vmem:[%s165 + $0x40] sm:$0xff]
      %v615 = vld [vmem:[%s165 + $0x48] sm:$0xff]
      %v616 = vld [vmem:[%s165 + $0x50] sm:$0xff]
      %v617 = vld [vmem:[%s165 + $0x58] sm:$0xff]
      %v618 = vld [vmem:[%s165 + $0x60] sm:$0xff]
      %v619 = vld [vmem:[%s165 + $0x68] sm:$0xff]
      %v620 = vld [vmem:[%s165 + $0x70] sm:$0xff]
      %v621 = vld [vmem:[%s165 + $0x78] sm:$0xff]
      %v622 = vld [vmem:[%s165 + $0x80] sm:$0xff]
      %v623 = vld [vmem:[%s165 + $0x88] sm:$0xff]
      %v624 = vld [vmem:[%s165 + $0x90] sm:$0xff]
      %v625 = vld [vmem:[%s165 + $0x98] sm:$0xff]
      %v626 = vld [vmem:[%s165 + $0xa0] sm:$0xff]
      %v627 = vld [vmem:[%s165 + $0xa8] sm:$0xff]
      %v628 = vpack.c.bf16 %v617, %v606
      %v629 = vpack.c.bf16 %v618, %v607
      %v630 = vpack.c.bf16 %v619, %v608
      %v631 = vpack.c.bf16 %v620, %v609
      %v632 = vpack.c.bf16 %v621, %v610
      %v633 = vpack.c.bf16 %v622, %v611
      %v634 = vpack.c.bf16 %v623, %v612
      %v635 = vpack.c.bf16 %v624, %v613
      %v636 = vpack.c.bf16 %v625, %v614
      %v637 = vpack.c.bf16 %v626, %v615
      %v638 = vpack.c.bf16 %v627, %v616
      %650 = vrot.lane.b32.xlu0 %v628, 102
      %v651 = vpop.permute.xlu0 %650
      %652 = vrot.lane.b32.xlu0 %v629, 102
      %v653 = vpop.permute.xlu0 %652
      %654 = vrot.lane.b32.xlu0 %v630, 102
      %v655 = vpop.permute.xlu0 %654
      %656 = vrot.lane.b32.xlu0 %v631, 102
      %v657 = vpop.permute.xlu0 %656
      %658 = vrot.lane.b32.xlu0 %v632, 102
      %v659 = vpop.permute.xlu0 %658
      %660 = vrot.lane.b32.xlu0 %v633, 102
      %v661 = vpop.permute.xlu0 %660
      %662 = vrot.lane.b32.xlu0 %v634, 102
      %v663 = vpop.permute.xlu0 %662
      %664 = vrot.lane.b32.xlu0 %v635, 102
      %v665 = vpop.permute.xlu0 %664
      %666 = vrot.lane.b32.xlu0 %v636, 102
      %v667 = vpop.permute.xlu0 %666
      %668 = vrot.lane.b32.xlu0 %v637, 102
      %v669 = vpop.permute.xlu0 %668
      %670 = vrot.lane.b32.xlu0 %v638, 102
      %v671 = vpop.permute.xlu0 %670
      %vm672 = vcmask 834560
      %v673 = vsel %vm672, %v651, %v653
      %v674 = vsel %vm672, %v653, %v655
      %v675 = vsel %vm672, %v655, %v657
      %v676 = vsel %vm672, %v657, %v659
      %v677 = vsel %vm672, %v659, %v661
      %v678 = vsel %vm672, %v661, %v663
      %v679 = vsel %vm672, %v663, %v665
      %v680 = vsel %vm672, %v665, %v667
      %v681 = vsel %vm672, %v667, %v669
      %v682 = vsel %vm672, %v669, %v671
      %693 = vst [vmem:[#allocation5 + $0x190] sm:$0xff] %v673
      %694 = vst [vmem:[#allocation5 + $0x198] sm:$0xff] %v674
      %695 = vst [vmem:[#allocation5 + $0x1a0] sm:$0xff] %v675
      %696 = vst [vmem:[#allocation5 + $0x1a8] sm:$0xff] %v676
      %697 = vst [vmem:[#allocation5 + $0x1b0] sm:$0xff] %v677
      %698 = vst [vmem:[#allocation5 + $0x1b8] sm:$0xff] %v678
      %699 = vst [vmem:[#allocation5 + $0x1c0] sm:$0xff] %v679
      %700 = vst [vmem:[#allocation5 + $0x1c8] sm:$0xff] %v680
      %701 = vst [vmem:[#allocation5 + $0x1d0] sm:$0xff] %v681
      %702 = vst [vmem:[#allocation5 + $0x1d8] sm:$0xff] %v682
      %v703 = vld [vmem:[%s165] sm:$0xff]
      %v704 = vld [vmem:[%s165 + $0x8] sm:$0xff]
      %v705 = vld [vmem:[%s165 + $0x10] sm:$0xff]
      %v706 = vld [vmem:[%s165 + $0x18] sm:$0xff]
      %v707 = vld [vmem:[%s165 + $0x20] sm:$0xff]
      %v708 = vld [vmem:[%s165 + $0x28] sm:$0xff]
      %v709 = vld [vmem:[%s165 + $0x30] sm:$0xff]
      %v710 = vld [vmem:[%s165 + $0x38] sm:$0xff]
      %v711 = vld [vmem:[%s165 + $0x40] sm:$0xff]
      %v712 = vld [vmem:[%s165 + $0x48] sm:$0xff]
      %v713 = vld [vmem:[%s165 + $0x50] sm:$0xff]
      %v714 = vld [vmem:[%s165 + $0x58] sm:$0xff]
      %v715 = vld [vmem:[%s165 + $0x60] sm:$0xff]
      %v716 = vld [vmem:[%s165 + $0x68] sm:$0xff]
      %v717 = vld [vmem:[%s165 + $0x70] sm:$0xff]
      %v718 = vld [vmem:[%s165 + $0x78] sm:$0xff]
      %v719 = vld [vmem:[%s165 + $0x80] sm:$0xff]
      %v720 = vld [vmem:[%s165 + $0x88] sm:$0xff]
      %v721 = vld [vmem:[%s165 + $0x90] sm:$0xff]
      %v722 = vld [vmem:[%s165 + $0x98] sm:$0xff]
      %v723 = vld [vmem:[%s165 + $0xa0] sm:$0xff]
      %v724 = vld [vmem:[%s165 + $0xa8] sm:$0xff]
      %v725 = vpack.c.bf16 %v714, %v703
      %v726 = vpack.c.bf16 %v715, %v704
      %v727 = vpack.c.bf16 %v716, %v705
      %v728 = vpack.c.bf16 %v717, %v706
      %v729 = vpack.c.bf16 %v718, %v707
      %v730 = vpack.c.bf16 %v719, %v708
      %v731 = vpack.c.bf16 %v720, %v709
      %v732 = vpack.c.bf16 %v721, %v710
      %v733 = vpack.c.bf16 %v722, %v711
      %v734 = vpack.c.bf16 %v723, %v712
      %v735 = vpack.c.bf16 %v724, %v713
      %747 = vrot.lane.b32.xlu0 %v725, 80
      %v748 = vpop.permute.xlu0 %747
      %749 = vrot.lane.b32.xlu0 %v726, 80
      %v750 = vpop.permute.xlu0 %749
      %751 = vrot.lane.b32.xlu0 %v727, 80
      %v752 = vpop.permute.xlu0 %751
      %753 = vrot.lane.b32.xlu0 %v728, 80
      %v754 = vpop.permute.xlu0 %753
      %755 = vrot.lane.b32.xlu0 %v729, 80
      %v756 = vpop.permute.xlu0 %755
      %757 = vrot.lane.b32.xlu0 %v730, 80
      %v758 = vpop.permute.xlu0 %757
      %759 = vrot.lane.b32.xlu0 %v731, 80
      %v760 = vpop.permute.xlu0 %759
      %761 = vrot.lane.b32.xlu0 %v732, 80
      %v762 = vpop.permute.xlu0 %761
      %763 = vrot.lane.b32.xlu0 %v733, 80
      %v764 = vpop.permute.xlu0 %763
      %765 = vrot.lane.b32.xlu0 %v734, 80
      %v766 = vpop.permute.xlu0 %765
      %767 = vrot.lane.b32.xlu0 %v735, 80
      %v768 = vpop.permute.xlu0 %767
      %vm769 = vcmask 654336
      %v770 = vsel %vm769, %v748, %v750
      %v771 = vsel %vm769, %v750, %v752
      %v772 = vsel %vm769, %v752, %v754
      %v773 = vsel %vm769, %v754, %v756
      %v774 = vsel %vm769, %v756, %v758
      %v775 = vsel %vm769, %v758, %v760
      %v776 = vsel %vm769, %v760, %v762
      %v777 = vsel %vm769, %v762, %v764
      %v778 = vsel %vm769, %v764, %v766
      %v779 = vsel %vm769, %v766, %v768
      %790 = vst [vmem:[#allocation5 + $0x1e0] sm:$0xff] %v770
      %791 = vst [vmem:[#allocation5 + $0x1e8] sm:$0xff] %v771
      %792 = vst [vmem:[#allocation5 + $0x1f0] sm:$0xff] %v772
      %793 = vst [vmem:[#allocation5 + $0x1f8] sm:$0xff] %v773
      %794 = vst [vmem:[#allocation5 + $0x200] sm:$0xff] %v774
      %795 = vst [vmem:[#allocation5 + $0x208] sm:$0xff] %v775
      %796 = vst [vmem:[#allocation5 + $0x210] sm:$0xff] %v776
      %797 = vst [vmem:[#allocation5 + $0x218] sm:$0xff] %v777
      %798 = vst [vmem:[#allocation5 + $0x220] sm:$0xff] %v778
      %799 = vst [vmem:[#allocation5 + $0x228] sm:$0xff] %v779
      %v800 = vld [vmem:[%s165] sm:$0xff]
      %v801 = vld [vmem:[%s165 + $0x8] sm:$0xff]
      %v802 = vld [vmem:[%s165 + $0x10] sm:$0xff]
      %v803 = vld [vmem:[%s165 + $0x18] sm:$0xff]
      %v804 = vld [vmem:[%s165 + $0x20] sm:$0xff]
      %v805 = vld [vmem:[%s165 + $0x28] sm:$0xff]
      %v806 = vld [vmem:[%s165 + $0x30] sm:$0xff]
      %v807 = vld [vmem:[%s165 + $0x38] sm:$0xff]
      %v808 = vld [vmem:[%s165 + $0x40] sm:$0xff]
      %v809 = vld [vmem:[%s165 + $0x48] sm:$0xff]
      %v810 = vld [vmem:[%s165 + $0x50] sm:$0xff]
      %v811 = vld [vmem:[%s165 + $0x58] sm:$0xff]
      %v812 = vld [vmem:[%s165 + $0x60] sm:$0xff]
      %v813 = vld [vmem:[%s165 + $0x68] sm:$0xff]
      %v814 = vld [vmem:[%s165 + $0x70] sm:$0xff]
      %v815 = vld [vmem:[%s165 + $0x78] sm:$0xff]
      %v816 = vld [vmem:[%s165 + $0x80] sm:$0xff]
      %v817 = vld [vmem:[%s165 + $0x88] sm:$0xff]
      %v818 = vld [vmem:[%s165 + $0x90] sm:$0xff]
      %v819 = vld [vmem:[%s165 + $0x98] sm:$0xff]
      %v820 = vld [vmem:[%s165 + $0xa0] sm:$0xff]
      %v821 = vld [vmem:[%s165 + $0xa8] sm:$0xff]
      %v822 = vpack.c.bf16 %v811, %v800
      %v823 = vpack.c.bf16 %v812, %v801
      %v824 = vpack.c.bf16 %v813, %v802
      %v825 = vpack.c.bf16 %v814, %v803
      %v826 = vpack.c.bf16 %v815, %v804
      %v827 = vpack.c.bf16 %v816, %v805
      %v828 = vpack.c.bf16 %v817, %v806
      %v829 = vpack.c.bf16 %v818, %v807
      %v830 = vpack.c.bf16 %v819, %v808
      %v831 = vpack.c.bf16 %v820, %v809
      %v832 = vpack.c.bf16 %v821, %v810
      %844 = vrot.lane.b32.xlu0 %v822, 79
      %v845 = vpop.permute.xlu0 %844
      %846 = vrot.lane.b32.xlu0 %v823, 79
      %v847 = vpop.permute.xlu0 %846
      %848 = vrot.lane.b32.xlu0 %v824, 79
      %v849 = vpop.permute.xlu0 %848
      %850 = vrot.lane.b32.xlu0 %v825, 79
      %v851 = vpop.permute.xlu0 %850
      %852 = vrot.lane.b32.xlu0 %v826, 79
      %v853 = vpop.permute.xlu0 %852
      %854 = vrot.lane.b32.xlu0 %v827, 79
      %v855 = vpop.permute.xlu0 %854
      %856 = vrot.lane.b32.xlu0 %v828, 79
      %v857 = vpop.permute.xlu0 %856
      %858 = vrot.lane.b32.xlu0 %v829, 79
      %v859 = vpop.permute.xlu0 %858
      %860 = vrot.lane.b32.xlu0 %v830, 79
      %v861 = vpop.permute.xlu0 %860
      %862 = vrot.lane.b32.xlu0 %v831, 79
      %v863 = vpop.permute.xlu0 %862
      %864 = vrot.lane.b32.xlu0 %v832, 79
      %v865 = vpop.permute.xlu0 %864
      %vm866 = vcmask 646144
      %v867 = vsel %vm866, %v845, %v847
      %v868 = vsel %vm866, %v847, %v849
      %v869 = vsel %vm866, %v849, %v851
      %v870 = vsel %vm866, %v851, %v853
      %v871 = vsel %vm866, %v853, %v855
      %v872 = vsel %vm866, %v855, %v857
      %v873 = vsel %vm866, %v857, %v859
      %v874 = vsel %vm866, %v859, %v861
      %v875 = vsel %vm866, %v861, %v863
      %v876 = vsel %vm866, %v863, %v865
      %887 = vst [vmem:[#allocation5 + $0x230] sm:$0xff] %v867
      %888 = vst [vmem:[#allocation5 + $0x238] sm:$0xff] %v868
      %889 = vst [vmem:[#allocation5 + $0x240] sm:$0xff] %v869
      %890 = vst [vmem:[#allocation5 + $0x248] sm:$0xff] %v870
      %891 = vst [vmem:[#allocation5 + $0x250] sm:$0xff] %v871
      %892 = vst [vmem:[#allocation5 + $0x258] sm:$0xff] %v872
      %893 = vst [vmem:[#allocation5 + $0x260] sm:$0xff] %v873
      %894 = vst [vmem:[#allocation5 + $0x268] sm:$0xff] %v874
      %895 = vst [vmem:[#allocation5 + $0x270] sm:$0xff] %v875
      %896 = vst [vmem:[#allocation5 + $0x278] sm:$0xff] %v876
      %v897 = vld [vmem:[%s165] sm:$0xff]
      %v898 = vld [vmem:[%s165 + $0x8] sm:$0xff]
      %v899 = vld [vmem:[%s165 + $0x10] sm:$0xff]
      %v900 = vld [vmem:[%s165 + $0x18] sm:$0xff]
      %v901 = vld [vmem:[%s165 + $0x20] sm:$0xff]
      %v902 = vld [vmem:[%s165 + $0x28] sm:$0xff]
      %v903 = vld [vmem:[%s165 + $0x30] sm:$0xff]
      %v904 = vld [vmem:[%s165 + $0x38] sm:$0xff]
      %v905 = vld [vmem:[%s165 + $0x40] sm:$0xff]
      %v906 = vld [vmem:[%s165 + $0x48] sm:$0xff]
      %v907 = vld [vmem:[%s165 + $0x50] sm:$0xff]
      %v908 = vld [vmem:[%s165 + $0x58] sm:$0xff]
      %v909 = vld [vmem:[%s165 + $0x60] sm:$0xff]
      %v910 = vld [vmem:[%s165 + $0x68] sm:$0xff]
      %v911 = vld [vmem:[%s165 + $0x70] sm:$0xff]
      %v912 = vld [vmem:[%s165 + $0x78] sm:$0xff]
      %v913 = vld [vmem:[%s165 + $0x80] sm:$0xff]
      %v914 = vld [vmem:[%s165 + $0x88] sm:$0xff]
      %v915 = vld [vmem:[%s165 + $0x90] sm:$0xff]
      %v916 = vld [vmem:[%s165 + $0x98] sm:$0xff]
      %v917 = vld [vmem:[%s165 + $0xa0] sm:$0xff]
      %v918 = vld [vmem:[%s165 + $0xa8] sm:$0xff]
      %v919 = vpack.c.bf16 %v908, %v897
      %v920 = vpack.c.bf16 %v909, %v898
      %v921 = vpack.c.bf16 %v910, %v899
      %v922 = vpack.c.bf16 %v911, %v900
      %v923 = vpack.c.bf16 %v912, %v901
      %v924 = vpack.c.bf16 %v913, %v902
      %v925 = vpack.c.bf16 %v914, %v903
      %v926 = vpack.c.bf16 %v915, %v904
      %v927 = vpack.c.bf16 %v916, %v905
      %v928 = vpack.c.bf16 %v917, %v906
      %v929 = vpack.c.bf16 %v918, %v907
      %941 = vrot.lane.b32.xlu0 %v919, 78
      %v942 = vpop.permute.xlu0 %941
      %943 = vrot.lane.b32.xlu0 %v920, 78
      %v944 = vpop.permute.xlu0 %943
      %945 = vrot.lane.b32.xlu0 %v921, 78
      %v946 = vpop.permute.xlu0 %945
      %947 = vrot.lane.b32.xlu0 %v922, 78
      %v948 = vpop.permute.xlu0 %947
      %949 = vrot.lane.b32.xlu0 %v923, 78
      %v950 = vpop.permute.xlu0 %949
      %951 = vrot.lane.b32.xlu0 %v924, 78
      %v952 = vpop.permute.xlu0 %951
      %953 = vrot.lane.b32.xlu0 %v925, 78
      %v954 = vpop.permute.xlu0 %953
      %955 = vrot.lane.b32.xlu0 %v926, 78
      %v956 = vpop.permute.xlu0 %955
      %957 = vrot.lane.b32.xlu0 %v927, 78
      %v958 = vpop.permute.xlu0 %957
      %959 = vrot.lane.b32.xlu0 %v928, 78
      %v960 = vpop.permute.xlu0 %959
      %961 = vrot.lane.b32.xlu0 %v929, 78
      %v962 = vpop.permute.xlu0 %961
      %vm963 = vcmask 637952
      %v964 = vsel %vm963, %v942, %v944
      %v965 = vsel %vm963, %v944, %v946
      %v966 = vsel %vm963, %v946, %v948
      %v967 = vsel %vm963, %v948, %v950
      %v968 = vsel %vm963, %v950, %v952
      %v969 = vsel %vm963, %v952, %v954
      %v970 = vsel %vm963, %v954, %v956
      %v971 = vsel %vm963, %v956, %v958
      %v972 = vsel %vm963, %v958, %v960
      %v973 = vsel %vm963, %v960, %v962
      %984 = vst [vmem:[#allocation5 + $0x280] sm:$0xff] %v964
      %985 = vst [vmem:[#allocation5 + $0x288] sm:$0xff] %v965
      %986 = vst [vmem:[#allocation5 + $0x290] sm:$0xff] %v966
      %987 = vst [vmem:[#allocation5 + $0x298] sm:$0xff] %v967
      %988 = vst [vmem:[#allocation5 + $0x2a0] sm:$0xff] %v968
      %989 = vst [vmem:[#allocation5 + $0x2a8] sm:$0xff] %v969
      %990 = vst [vmem:[#allocation5 + $0x2b0] sm:$0xff] %v970
      %991 = vst [vmem:[#allocation5 + $0x2b8] sm:$0xff] %v971
      %992 = vst [vmem:[#allocation5 + $0x2c0] sm:$0xff] %v972
      %993 = vst [vmem:[#allocation5 + $0x2c8] sm:$0xff] %v973
      %v994 = vld [vmem:[%s1] sm:$0xff]
      %v995 = vld [vmem:[%s1 + $0x8] sm:$0xff]
      %v996 = vld [vmem:[#allocation5] sm:$0xff]
      %v997 = vld [vmem:[#allocation5 + $0x8] sm:$0xff]
      %v998 = vld [vmem:[#allocation5 + $0x10] sm:$0xff]
      %v999 = vld [vmem:[#allocation5 + $0x18] sm:$0xff]
      %v1000 = vld [vmem:[#allocation5 + $0x20] sm:$0xff]
      %v1001 = vld [vmem:[#allocation5 + $0x28] sm:$0xff]
      %v1002 = vld [vmem:[#allocation5 + $0x30] sm:$0xff]
      %v1003 = vld [vmem:[#allocation5 + $0x38] sm:$0xff]
      %v1004 = vld [vmem:[#allocation5 + $0x40] sm:$0xff]
      %v1005 = vld [vmem:[#allocation5 + $0x48] sm:$0xff]
      %v1006 = vld [vmem:[#allocation5 + $0x50] sm:$0xff]
      %v1007 = vld [vmem:[#allocation5 + $0x58] sm:$0xff]
      %v1008 = vld [vmem:[#allocation5 + $0x60] sm:$0xff]
      %v1009 = vld [vmem:[#allocation5 + $0x68] sm:$0xff]
      %v1010 = vld [vmem:[#allocation5 + $0x70] sm:$0xff]
      %v1011 = vld [vmem:[#allocation5 + $0x78] sm:$0xff]
      %v1012 = vld [vmem:[#allocation5 + $0x80] sm:$0xff]
      %v1013 = vld [vmem:[#allocation5 + $0x88] sm:$0xff]
      %v1014 = vld [vmem:[#allocation5 + $0x90] sm:$0xff]
      %v1015 = vld [vmem:[#allocation5 + $0x98] sm:$0xff]
      %v1016 = vld [vmem:[#allocation5 + $0xa0] sm:$0xff]
      %v1017 = vld [vmem:[#allocation5 + $0xa8] sm:$0xff]
      %v1018 = vld [vmem:[#allocation5 + $0xb0] sm:$0xff]
      %v1019 = vld [vmem:[#allocation5 + $0xb8] sm:$0xff]
      %v1020 = vld [vmem:[#allocation5 + $0xc0] sm:$0xff]
      %v1021 = vld [vmem:[#allocation5 + $0xc8] sm:$0xff]
      %v1022 = vld [vmem:[#allocation5 + $0xd0] sm:$0xff]
      %v1023 = vld [vmem:[#allocation5 + $0xd8] sm:$0xff]
      %v1024 = vld [vmem:[#allocation5 + $0xe0] sm:$0xff]
      %v1025 = vld [vmem:[#allocation5 + $0xe8] sm:$0xff]
      %v1026 = vld [vmem:[#allocation5 + $0xf0] sm:$0xff]
      %v1027 = vld [vmem:[#allocation5 + $0xf8] sm:$0xff]
      %v1028 = vld [vmem:[#allocation5 + $0x100] sm:$0xff]
      %v1029 = vld [vmem:[#allocation5 + $0x108] sm:$0xff]
      %v1030 = vld [vmem:[#allocation5 + $0x110] sm:$0xff]
      %v1031 = vld [vmem:[#allocation5 + $0x118] sm:$0xff]
      %v1032 = vld [vmem:[#allocation5 + $0x120] sm:$0xff]
      %v1033 = vld [vmem:[#allocation5 + $0x128] sm:$0xff]
      %v1034 = vld [vmem:[#allocation5 + $0x130] sm:$0xff]
      %v1035 = vld [vmem:[#allocation5 + $0x138] sm:$0xff]
      %v1036 = vld [vmem:[#allocation5 + $0x140] sm:$0xff]
      %v1037 = vld [vmem:[#allocation5 + $0x148] sm:$0xff]
      %v1038 = vld [vmem:[#allocation5 + $0x150] sm:$0xff]
      %v1039 = vld [vmem:[#allocation5 + $0x158] sm:$0xff]
      %v1040 = vld [vmem:[#allocation5 + $0x160] sm:$0xff]
      %v1041 = vld [vmem:[#allocation5 + $0x168] sm:$0xff]
      %v1042 = vld [vmem:[#allocation5 + $0x170] sm:$0xff]
      %v1043 = vld [vmem:[#allocation5 + $0x178] sm:$0xff]
      %v1044 = vld [vmem:[#allocation5 + $0x180] sm:$0xff]
      %v1045 = vld [vmem:[#allocation5 + $0x188] sm:$0xff]
      %v1046 = vld [vmem:[#allocation5 + $0x190] sm:$0xff]
      %v1047 = vld [vmem:[#allocation5 + $0x198] sm:$0xff]
      %v1048 = vld [vmem:[#allocation5 + $0x1a0] sm:$0xff]
      %v1049 = vld [vmem:[#allocation5 + $0x1a8] sm:$0xff]
      %v1050 = vld [vmem:[#allocation5 + $0x1b0] sm:$0xff]
      %v1051 = vld [vmem:[#allocation5 + $0x1b8] sm:$0xff]
      %v1052 = vld [vmem:[#allocation5 + $0x1c0] sm:$0xff]
      %v1053 = vld [vmem:[#allocation5 + $0x1c8] sm:$0xff]
      %v1054 = vld [vmem:[#allocation5 + $0x1d0] sm:$0xff]
      %v1055 = vld [vmem:[#allocation5 + $0x1d8] sm:$0xff]
      %v1056 = vld [vmem:[#allocation5 + $0x1e0] sm:$0xff]
      %v1057 = vld [vmem:[#allocation5 + $0x1e8] sm:$0xff]
      %v1058 = vld [vmem:[#allocation5 + $0x1f0] sm:$0xff]
      %v1059 = vld [vmem:[#allocation5 + $0x1f8] sm:$0xff]
      %v1060 = vld [vmem:[#allocation5 + $0x200] sm:$0xff]
      %v1061 = vld [vmem:[#allocation5 + $0x208] sm:$0xff]
      %v1062 = vld [vmem:[#allocation5 + $0x210] sm:$0xff]
      %v1063 = vld [vmem:[#allocation5 + $0x218] sm:$0xff]
      %v1064 = vld [vmem:[#allocation5 + $0x220] sm:$0xff]
      %v1065 = vld [vmem:[#allocation5 + $0x228] sm:$0xff]
      %v1066 = vld [vmem:[#allocation5 + $0x230] sm:$0xff]
      %v1067 = vld [vmem:[#allocation5 + $0x238] sm:$0xff]
      %v1068 = vld [vmem:[#allocation5 + $0x240] sm:$0xff]
      %v1069 = vld [vmem:[#allocation5 + $0x248] sm:$0xff]
      %v1070 = vld [vmem:[#allocation5 + $0x250] sm:$0xff]
      %v1071 = vld [vmem:[#allocation5 + $0x258] sm:$0xff]
      %v1072 = vld [vmem:[#allocation5 + $0x260] sm:$0xff]
      %v1073 = vld [vmem:[#allocation5 + $0x268] sm:$0xff]
      %v1074 = vld [vmem:[#allocation5 + $0x270] sm:$0xff]
      %v1075 = vld [vmem:[#allocation5 + $0x278] sm:$0xff]
      %v1076 = vld [vmem:[#allocation5 + $0x280] sm:$0xff]
      %v1077 = vld [vmem:[#allocation5 + $0x288] sm:$0xff]
      %v1078 = vld [vmem:[#allocation5 + $0x290] sm:$0xff]
      %v1079 = vld [vmem:[#allocation5 + $0x298] sm:$0xff]
      %v1080 = vld [vmem:[#allocation5 + $0x2a0] sm:$0xff]
      %v1081 = vld [vmem:[#allocation5 + $0x2a8] sm:$0xff]
      %v1082 = vld [vmem:[#allocation5 + $0x2b0] sm:$0xff]
      %v1083 = vld [vmem:[#allocation5 + $0x2b8] sm:$0xff]
      %v1084 = vld [vmem:[#allocation5 + $0x2c0] sm:$0xff]
      %v1085 = vld [vmem:[#allocation5 + $0x2c8] sm:$0xff]
      %v1086 = vld [vmem:[%s2] sm:$0xff]
      %v1087 = vld [vmem:[%s2 + $0x8] sm:$0xff]
      %1089 = vset.pattern.permute.xlu0 0
      %1090 = vperm.xlu0 %1089, %v1086
      %v1091 = vpop.permute.xlu0 %1090
      %1094 = vset.pattern.permute.xlu0 0
      %1095 = vperm.xlu0 %1094, %v1087
      %v1096 = vpop.permute.xlu0 %1095
      %v1100 = vunpack.c.l.b16 %v994
      %v1101 = vunpack.c.h.b16 %v994
      %v1102 = vunpack.c.l.b16 %v995
      %v1103 = vunpack.c.h.b16 %v995
      %v1104 = vpack.c.b16 %v1102, %v1100
      %v1105 = vpack.c.b16 %v1103, %v1101
      %vm1107 = vcmask 130048
      %v1109 = vsel %vm1107, %v1105, 0
      %1111 = vmatprep.subr.bf16.mxu0 %v997
      %1112 = vmatpush1.bf16.msra.mxu0 %v996
      %1113 = vmatprep.subr.bf16.mxu0 %v1007
      %1114 = vmatpush1.bf16.msra.mxu0 %v1006
      %1115 = vmatprep.subr.bf16.mxu0 %v1017
      %1116 = vmatpush1.bf16.msra.mxu0 %v1016
      %1117 = vmatprep.subr.bf16.mxu0 %v1027
      %1118 = vmatpush1.bf16.msra.mxu0 %v1026
      %1119 = vmatprep.subr.bf16.mxu0 %v1037
      %1120 = vmatpush1.bf16.msra.mxu0 %v1036
      %1121 = vmatprep.subr.bf16.mxu0 %v1047
      %1122 = vmatpush1.bf16.msra.mxu0 %v1046
      %1123 = vmatprep.subr.bf16.mxu0 %v1057
      %1124 = vmatpush1.bf16.msra.mxu0 %v1056
      %1125 = vmatprep.subr.bf16.mxu0 %v1067
      %1126 = vmatpush1.bf16.msra.mxu0 %v1066
      %1127 = vmatprep.subr.bf16.mxu0 %v1077
      %1128 = vmatpush1.bf16.msra.mxu0 %v1076
      %1129 = vmatprep.subr.bf16.mxu0 0
      %1130 = vmatpush1.bf16.msra.mxu0 0
      %1131 = vmatprep.subr.bf16.mxu0 0
      %1132 = vmatpush1.bf16.msra.mxu0 0
      %1133 = vmatprep.subr.bf16.mxu0 0
      %1134 = vmatpush1.bf16.msra.mxu0 0
      %1135 = vmatprep.subr.bf16.mxu0 0
      %1136 = vmatpush1.bf16.msra.mxu0 0
      %1137 = vmatprep.subr.bf16.mxu0 0
      %1138 = vmatpush1.bf16.msra.mxu0 0
      %1139 = vmatprep.subr.bf16.mxu0 0
      %1140 = vmatpush1.bf16.msra.mxu0 0
      %1141 = vmatprep.subr.bf16.mxu0 0
      %1142 = vmatpush1.bf16.msra.mxu0 0
      %1143 = vmatprep.mubr.bf16.mxu0 %v1109
      %1144 = vmatmul.mubr.bf16.gmra.mrb[0].mxu0 %v1104
      %v1145 = vpop.f32.mrb[0].mxu0
      %v1146 = vadd.f32 %v1091, %v1145
      %v1147 = vpop.f32.mrb[0].mxu0
      %v1148 = vadd.f32 %v1091, %v1147
      %v1149 = vpop.f32.mrb[0].mxu0
      %v1150 = vadd.f32 %v1096, %v1149
      %v1151 = vpop.f32.mrb[0].mxu0
      %v1152 = vadd.f32 %v1096, %v1151
      %1153 = vdwg.mxu0
      %1154 = vmatprep.subr.bf16.mxu0 %v999
      %1155 = vmatpush1.bf16.msra.mxu0 %v998
      %1156 = vmatprep.subr.bf16.mxu0 %v1009
      %1157 = vmatpush1.bf16.msra.mxu0 %v1008
      %1158 = vmatprep.subr.bf16.mxu0 %v1019
      %1159 = vmatpush1.bf16.msra.mxu0 %v1018
      %1160 = vmatprep.subr.bf16.mxu0 %v1029
      %1161 = vmatpush1.bf16.msra.mxu0 %v1028
      %1162 = vmatprep.subr.bf16.mxu0 %v1039
      %1163 = vmatpush1.bf16.msra.mxu0 %v1038
      %1164 = vmatprep.subr.bf16.mxu0 %v1049
      %1165 = vmatpush1.bf16.msra.mxu0 %v1048
      %1166 = vmatprep.subr.bf16.mxu0 %v1059
      %1167 = vmatpush1.bf16.msra.mxu0 %v1058
      %1168 = vmatprep.subr.bf16.mxu0 %v1069
      %1169 = vmatpush1.bf16.msra.mxu0 %v1068
      %1170 = vmatprep.subr.bf16.mxu0 %v1079
      %1171 = vmatpush1.bf16.msra.mxu0 %v1078
      %1172 = vmatprep.subr.bf16.mxu0 0
      %1173 = vmatpush1.bf16.msra.mxu0 0
      %1174 = vmatprep.subr.bf16.mxu0 0
      %1175 = vmatpush1.bf16.msra.mxu0 0
      %1176 = vmatprep.subr.bf16.mxu0 0
      %1177 = vmatpush1.bf16.msra.mxu0 0
      %1178 = vmatprep.subr.bf16.mxu0 0
      %1179 = vmatpush1.bf16.msra.mxu0 0
      %1180 = vmatprep.subr.bf16.mxu0 0
      %1181 = vmatpush1.bf16.msra.mxu0 0
      %1182 = vmatprep.subr.bf16.mxu0 0
      %1183 = vmatpush1.bf16.msra.mxu0 0
      %1184 = vmatprep.subr.bf16.mxu0 0
      %1185 = vmatpush1.bf16.msra.mxu0 0
      %1186 = vmatprep.mubr.bf16.mxu0 %v1109
      %1187 = vmatmul.mubr.bf16.gmra.mrb[0].mxu0 %v1104
      %v1188 = vpop.f32.mrb[0].mxu0
      %v1189 = vadd.f32 %v1091, %v1188
      %v1190 = vpop.f32.mrb[0].mxu0
      %v1191 = vadd.f32 %v1091, %v1190
      %v1192 = vpop.f32.mrb[0].mxu0
      %v1193 = vadd.f32 %v1096, %v1192
      %v1194 = vpop.f32.mrb[0].mxu0
      %v1195 = vadd.f32 %v1096, %v1194
      %1196 = vdwg.mxu0
      %1197 = vmatprep.subr.bf16.mxu0 %v1001
      %1198 = vmatpush1.bf16.msra.mxu0 %v1000
      %1199 = vmatprep.subr.bf16.mxu0 %v1011
      %1200 = vmatpush1.bf16.msra.mxu0 %v1010
      %1201 = vmatprep.subr.bf16.mxu0 %v1021
      %1202 = vmatpush1.bf16.msra.mxu0 %v1020
      %1203 = vmatprep.subr.bf16.mxu0 %v1031
      %1204 = vmatpush1.bf16.msra.mxu0 %v1030
      %1205 = vmatprep.subr.bf16.mxu0 %v1041
      %1206 = vmatpush1.bf16.msra.mxu0 %v1040
      %1207 = vmatprep.subr.bf16.mxu0 %v1051
      %1208 = vmatpush1.bf16.msra.mxu0 %v1050
      %1209 = vmatprep.subr.bf16.mxu0 %v1061
      %1210 = vmatpush1.bf16.msra.mxu0 %v1060
      %1211 = vmatprep.subr.bf16.mxu0 %v1071
      %1212 = vmatpush1.bf16.msra.mxu0 %v1070
      %1213 = vmatprep.subr.bf16.mxu0 %v1081
      %1214 = vmatpush1.bf16.msra.mxu0 %v1080
      %1215 = vmatprep.subr.bf16.mxu0 0
      %1216 = vmatpush1.bf16.msra.mxu0 0
      %1217 = vmatprep.subr.bf16.mxu0 0
      %1218 = vmatpush1.bf16.msra.mxu0 0
      %1219 = vmatprep.subr.bf16.mxu0 0
      %1220 = vmatpush1.bf16.msra.mxu0 0
      %1221 = vmatprep.subr.bf16.mxu0 0
      %1222 = vmatpush1.bf16.msra.mxu0 0
      %1223 = vmatprep.subr.bf16.mxu0 0
      %1224 = vmatpush1.bf16.msra.mxu0 0
      %1225 = vmatprep.subr.bf16.mxu0 0
      %1226 = vmatpush1.bf16.msra.mxu0 0
      %1227 = vmatprep.subr.bf16.mxu0 0
      %1228 = vmatpush1.bf16.msra.mxu0 0
      %1229 = vmatprep.mubr.bf16.mxu0 %v1109
      %1230 = vmatmul.mubr.bf16.gmra.mrb[0].mxu0 %v1104
      %v1231 = vpop.f32.mrb[0].mxu0
      %v1232 = vadd.f32 %v1091, %v1231
      %v1233 = vpop.f32.mrb[0].mxu0
      %v1234 = vadd.f32 %v1091, %v1233
      %v1235 = vpop.f32.mrb[0].mxu0
      %v1236 = vadd.f32 %v1096, %v1235
      %v1237 = vpop.f32.mrb[0].mxu0
      %v1238 = vadd.f32 %v1096, %v1237
      %1239 = vdwg.mxu0
      %1240 = vmatprep.subr.bf16.mxu0 %v1003
      %1241 = vmatpush1.bf16.msra.mxu0 %v1002
      %1242 = vmatprep.subr.bf16.mxu0 %v1013
      %1243 = vmatpush1.bf16.msra.mxu0 %v1012
      %1244 = vmatprep.subr.bf16.mxu0 %v1023
      %1245 = vmatpush1.bf16.msra.mxu0 %v1022
      %1246 = vmatprep.subr.bf16.mxu0 %v1033
      %1247 = vmatpush1.bf16.msra.mxu0 %v1032
      %1248 = vmatprep.subr.bf16.mxu0 %v1043
      %1249 = vmatpush1.bf16.msra.mxu0 %v1042
      %1250 = vmatprep.subr.bf16.mxu0 %v1053
      %1251 = vmatpush1.bf16.msra.mxu0 %v1052
      %1252 = vmatprep.subr.bf16.mxu0 %v1063
      %1253 = vmatpush1.bf16.msra.mxu0 %v1062
      %1254 = vmatprep.subr.bf16.mxu0 %v1073
      %1255 = vmatpush1.bf16.msra.mxu0 %v1072
      %1256 = vmatprep.subr.bf16.mxu0 %v1083
      %1257 = vmatpush1.bf16.msra.mxu0 %v1082
      %1258 = vmatprep.subr.bf16.mxu0 0
      %1259 = vmatpush1.bf16.msra.mxu0 0
      %1260 = vmatprep.subr.bf16.mxu0 0
      %1261 = vmatpush1.bf16.msra.mxu0 0
      %1262 = vmatprep.subr.bf16.mxu0 0
      %1263 = vmatpush1.bf16.msra.mxu0 0
      %1264 = vmatprep.subr.bf16.mxu0 0
      %1265 = vmatpush1.bf16.msra.mxu0 0
      %1266 = vmatprep.subr.bf16.mxu0 0
      %1267 = vmatpush1.bf16.msra.mxu0 0
      %1268 = vmatprep.subr.bf16.mxu0 0
      %1269 = vmatpush1.bf16.msra.mxu0 0
      %1270 = vmatprep.subr.bf16.mxu0 0
      %1271 = vmatpush1.bf16.msra.mxu0 0
      %1272 = vmatprep.mubr.bf16.mxu0 %v1109
      %1273 = vmatmul.mubr.bf16.gmra.mrb[0].mxu0 %v1104
      %v1274 = vpop.f32.mrb[0].mxu0
      %v1275 = vadd.f32 %v1091, %v1274
      %v1276 = vpop.f32.mrb[0].mxu0
      %v1277 = vadd.f32 %v1091, %v1276
      %v1278 = vpop.f32.mrb[0].mxu0
      %v1279 = vadd.f32 %v1096, %v1278
      %v1280 = vpop.f32.mrb[0].mxu0
      %v1281 = vadd.f32 %v1096, %v1280
      %1282 = vdwg.mxu0
      %1283 = vmatprep.subr.bf16.mxu0 %v1005
      %1284 = vmatpush1.bf16.msra.mxu0 %v1004
      %1285 = vmatprep.subr.bf16.mxu0 %v1015
      %1286 = vmatpush1.bf16.msra.mxu0 %v1014
      %1287 = vmatprep.subr.bf16.mxu0 %v1025
      %1288 = vmatpush1.bf16.msra.mxu0 %v1024
      %1289 = vmatprep.subr.bf16.mxu0 %v1035
      %1290 = vmatpush1.bf16.msra.mxu0 %v1034
      %1291 = vmatprep.subr.bf16.mxu0 %v1045
      %1292 = vmatpush1.bf16.msra.mxu0 %v1044
      %1293 = vmatprep.subr.bf16.mxu0 %v1055
      %1294 = vmatpush1.bf16.msra.mxu0 %v1054
      %1295 = vmatprep.subr.bf16.mxu0 %v1065
      %1296 = vmatpush1.bf16.msra.mxu0 %v1064
      %1297 = vmatprep.subr.bf16.mxu0 %v1075
      %1298 = vmatpush1.bf16.msra.mxu0 %v1074
      %1299 = vmatprep.subr.bf16.mxu0 %v1085
      %1300 = vmatpush1.bf16.msra.mxu0 %v1084
      %1301 = vmatprep.subr.bf16.mxu0 0
      %1302 = vmatpush1.bf16.msra.mxu0 0
      %1303 = vmatprep.subr.bf16.mxu0 0
      %1304 = vmatpush1.bf16.msra.mxu0 0
      %1305 = vmatprep.subr.bf16.mxu0 0
      %1306 = vmatpush1.bf16.msra.mxu0 0
      %1307 = vmatprep.subr.bf16.mxu0 0
      %1308 = vmatpush1.bf16.msra.mxu0 0
      %1309 = vmatprep.subr.bf16.mxu0 0
      %1310 = vmatpush1.bf16.msra.mxu0 0
      %1311 = vmatprep.subr.bf16.mxu0 0
      %1312 = vmatpush1.bf16.msra.mxu0 0
      %1313 = vmatprep.subr.bf16.mxu0 0
      %1314 = vmatpush1.bf16.msra.mxu0 0
      %1315 = vmatprep.mubr.bf16.mxu0 %v1109
      %1316 = vmatmul.mubr.bf16.gmra.mrb[0].mxu0 %v1104
      %v1317 = vpop.f32.mrb[0].mxu0
      %v1318 = vadd.f32 %v1091, %v1317
      %v1319 = vpop.f32.mrb[0].mxu0
      %v1320 = vadd.f32 %v1091, %v1319
      %v1321 = vpop.f32.mrb[0].mxu0
      %v1322 = vadd.f32 %v1096, %v1321
      %v1323 = vpop.f32.mrb[0].mxu0
      %v1324 = vadd.f32 %v1096, %v1323
      %1325 = vdwg.mxu0
      %v1326 = vmax.f32 %v1146, 0.0
      %v1327 = vmax.f32 %v1148, 0.0
      %v1328 = vmax.f32 %v1189, 0.0
      %v1329 = vmax.f32 %v1191, 0.0
      %v1330 = vmax.f32 %v1232, 0.0
      %v1331 = vmax.f32 %v1234, 0.0
      %v1332 = vmax.f32 %v1275, 0.0
      %v1333 = vmax.f32 %v1277, 0.0
      %v1334 = vmax.f32 %v1318, 0.0
      %v1335 = vmax.f32 %v1320, 0.0
      %v1336 = vmax.f32 %v1150, 0.0
      %v1337 = vmax.f32 %v1152, 0.0
      %v1338 = vmax.f32 %v1193, 0.0
      %v1339 = vmax.f32 %v1195, 0.0
      %v1340 = vmax.f32 %v1236, 0.0
      %v1341 = vmax.f32 %v1238, 0.0
      %v1342 = vmax.f32 %v1279, 0.0
      %v1343 = vmax.f32 %v1281, 0.0
      %v1344 = vmax.f32 %v1322, 0.0
      %v1345 = vmax.f32 %v1324, 0.0
      %1346 = vst [vmem:[#allocation2] sm:$0xff] %v1326
      %1347 = vst [vmem:[#allocation2 + $0x8] sm:$0xff] %v1327
      %1348 = vst [vmem:[#allocation2 + $0x10] sm:$0xff] %v1328
      %1349 = vst [vmem:[#allocation2 + $0x18] sm:$0xff] %v1329
      %1350 = vst [vmem:[#allocation2 + $0x20] sm:$0xff] %v1330
      %1351 = vst [vmem:[#allocation2 + $0x28] sm:$0xff] %v1331
      %1352 = vst [vmem:[#allocation2 + $0x30] sm:$0xff] %v1332
      %1353 = vst [vmem:[#allocation2 + $0x38] sm:$0xff] %v1333
      %1354 = vst [vmem:[#allocation2 + $0x40] sm:$0xff] %v1334
      %1355 = vst [vmem:[#allocation2 + $0x48] sm:$0xff] %v1335
      %1356 = vst [vmem:[#allocation2 + $0x58] sm:$0xff] %v1336
      %1357 = vst [vmem:[#allocation2 + $0x60] sm:$0xff] %v1337
      %1358 = vst [vmem:[#allocation2 + $0x68] sm:$0xff] %v1338
      %1359 = vst [vmem:[#allocation2 + $0x70] sm:$0xff] %v1339
      %1360 = vst [vmem:[#allocation2 + $0x78] sm:$0xff] %v1340
      %1361 = vst [vmem:[#allocation2 + $0x80] sm:$0xff] %v1341
      %1362 = vst [vmem:[#allocation2 + $0x88] sm:$0xff] %v1342
      %1363 = vst [vmem:[#allocation2 + $0x90] sm:$0xff] %v1343
      %1364 = vst [vmem:[#allocation2 + $0x98] sm:$0xff] %v1344
      %1365 = vst [vmem:[#allocation2 + $0xa0] sm:$0xff] %v1345
      %v1366 = vld [vmem:[#allocation2] sm:$0xff]
      %v1367 = vld [vmem:[#allocation2 + $0x8] sm:$0xff]
      %v1368 = vld [vmem:[#allocation2 + $0x10] sm:$0xff]
      %v1369 = vld [vmem:[#allocation2 + $0x18] sm:$0xff]
      %v1370 = vld [vmem:[#allocation2 + $0x20] sm:$0xff]
      %v1371 = vld [vmem:[#allocation2 + $0x28] sm:$0xff]
      %v1372 = vld [vmem:[#allocation2 + $0x30] sm:$0xff]
      %v1373 = vld [vmem:[#allocation2 + $0x38] sm:$0xff]
      %v1374 = vld [vmem:[#allocation2 + $0x40] sm:$0xff]
      %v1375 = vld [vmem:[#allocation2 + $0x48] sm:$0xff]
      %v1376 = vld [vmem:[#allocation2 + $0x58] sm:$0xff]
      %v1377 = vld [vmem:[#allocation2 + $0x60] sm:$0xff]
      %v1378 = vld [vmem:[#allocation2 + $0x68] sm:$0xff]
      %v1379 = vld [vmem:[#allocation2 + $0x70] sm:$0xff]
      %v1380 = vld [vmem:[#allocation2 + $0x78] sm:$0xff]
      %v1381 = vld [vmem:[#allocation2 + $0x80] sm:$0xff]
      %v1382 = vld [vmem:[#allocation2 + $0x88] sm:$0xff]
      %v1383 = vld [vmem:[#allocation2 + $0x90] sm:$0xff]
      %v1384 = vld [vmem:[#allocation2 + $0x98] sm:$0xff]
      %v1385 = vld [vmem:[#allocation2 + $0xa0] sm:$0xff]
      %v1386 = vpack.c.bf16 %v1376, %v1366
      %v1387 = vpack.c.bf16 %v1377, %v1367
      %v1388 = vpack.c.bf16 %v1378, %v1368
      %v1389 = vpack.c.bf16 %v1379, %v1369
      %v1390 = vpack.c.bf16 %v1380, %v1370
      %v1391 = vpack.c.bf16 %v1381, %v1371
      %v1392 = vpack.c.bf16 %v1382, %v1372
      %v1393 = vpack.c.bf16 %v1383, %v1373
      %v1394 = vpack.c.bf16 %v1384, %v1374
      %v1395 = vpack.c.bf16 %v1385, %v1375
      %1396 = vst [vmem:[#allocation5] sm:$0xff] %v1386
      %1397 = vst [vmem:[#allocation5 + $0x8] sm:$0xff] %v1387
      %1398 = vst [vmem:[#allocation5 + $0x10] sm:$0xff] %v1388
      %1399 = vst [vmem:[#allocation5 + $0x18] sm:$0xff] %v1389
      %1400 = vst [vmem:[#allocation5 + $0x20] sm:$0xff] %v1390
      %1401 = vst [vmem:[#allocation5 + $0x28] sm:$0xff] %v1391
      %1402 = vst [vmem:[#allocation5 + $0x30] sm:$0xff] %v1392
      %1403 = vst [vmem:[#allocation5 + $0x38] sm:$0xff] %v1393
      %1404 = vst [vmem:[#allocation5 + $0x40] sm:$0xff] %v1394
      %1405 = vst [vmem:[#allocation5 + $0x48] sm:$0xff] %v1395
      %v1406 = vld [vmem:[#allocation2] sm:$0xff]
      %v1407 = vld [vmem:[#allocation2 + $0x8] sm:$0xff]
      %v1408 = vld [vmem:[#allocation2 + $0x10] sm:$0xff]
      %v1409 = vld [vmem:[#allocation2 + $0x18] sm:$0xff]
      %v1410 = vld [vmem:[#allocation2 + $0x20] sm:$0xff]
      %v1411 = vld [vmem:[#allocation2 + $0x28] sm:$0xff]
      %v1412 = vld [vmem:[#allocation2 + $0x30] sm:$0xff]
      %v1413 = vld [vmem:[#allocation2 + $0x38] sm:$0xff]
      %v1414 = vld [vmem:[#allocation2 + $0x40] sm:$0xff]
      %v1415 = vld [vmem:[#allocation2 + $0x48] sm:$0xff]
      %v1416 = vld [vmem:[#allocation2 + $0x50] sm:$0xff]
      %v1417 = vld [vmem:[#allocation2 + $0x58] sm:$0xff]
      %v1418 = vld [vmem:[#allocation2 + $0x60] sm:$0xff]
      %v1419 = vld [vmem:[#allocation2 + $0x68] sm:$0xff]
      %v1420 = vld [vmem:[#allocation2 + $0x70] sm:$0xff]
      %v1421 = vld [vmem:[#allocation2 + $0x78] sm:$0xff]
      %v1422 = vld [vmem:[#allocation2 + $0x80] sm:$0xff]
      %v1423 = vld [vmem:[#allocation2 + $0x88] sm:$0xff]
      %v1424 = vld [vmem:[#allocation2 + $0x90] sm:$0xff]
      %v1425 = vld [vmem:[#allocation2 + $0x98] sm:$0xff]
      %v1426 = vld [vmem:[#allocation2 + $0xa0] sm:$0xff]
      %v1427 = vld [vmem:[#allocation2 + $0xa8] sm:$0xff]
      %v1428 = vpack.c.bf16 %v1417, %v1406
      %v1429 = vpack.c.bf16 %v1418, %v1407
      %v1430 = vpack.c.bf16 %v1419, %v1408
      %v1431 = vpack.c.bf16 %v1420, %v1409
      %v1432 = vpack.c.bf16 %v1421, %v1410
      %v1433 = vpack.c.bf16 %v1422, %v1411
      %v1434 = vpack.c.bf16 %v1423, %v1412
      %v1435 = vpack.c.bf16 %v1424, %v1413
      %v1436 = vpack.c.bf16 %v1425, %v1414
      %v1437 = vpack.c.bf16 %v1426, %v1415
      %v1438 = vpack.c.bf16 %v1427, %v1416
      %1450 = vrot.lane.b32.xlu0 %v1428, 127
      %v1451 = vpop.permute.xlu0 %1450
      %1452 = vrot.lane.b32.xlu0 %v1429, 127
      %v1453 = vpop.permute.xlu0 %1452
      %1454 = vrot.lane.b32.xlu0 %v1430, 127
      %v1455 = vpop.permute.xlu0 %1454
      %1456 = vrot.lane.b32.xlu0 %v1431, 127
      %v1457 = vpop.permute.xlu0 %1456
      %1458 = vrot.lane.b32.xlu0 %v1432, 127
      %v1459 = vpop.permute.xlu0 %1458
      %1460 = vrot.lane.b32.xlu0 %v1433, 127
      %v1461 = vpop.permute.xlu0 %1460
      %1462 = vrot.lane.b32.xlu0 %v1434, 127
      %v1463 = vpop.permute.xlu0 %1462
      %1464 = vrot.lane.b32.xlu0 %v1435, 127
      %v1465 = vpop.permute.xlu0 %1464
      %1466 = vrot.lane.b32.xlu0 %v1436, 127
      %v1467 = vpop.permute.xlu0 %1466
      %1468 = vrot.lane.b32.xlu0 %v1437, 127
      %v1469 = vpop.permute.xlu0 %1468
      %1470 = vrot.lane.b32.xlu0 %v1438, 127
      %v1471 = vpop.permute.xlu0 %1470
      %v1472 = vsel %vm284, %v1451, %v1453
      %v1473 = vsel %vm284, %v1453, %v1455
      %v1474 = vsel %vm284, %v1455, %v1457
      %v1475 = vsel %vm284, %v1457, %v1459
      %v1476 = vsel %vm284, %v1459, %v1461
      %v1477 = vsel %vm284, %v1461, %v1463
      %v1478 = vsel %vm284, %v1463, %v1465
      %v1479 = vsel %vm284, %v1465, %v1467
      %v1480 = vsel %vm284, %v1467, %v1469
      %v1481 = vsel %vm284, %v1469, %v1471
      %1492 = vst [vmem:[#allocation5 + $0x50] sm:$0xff] %v1472
      %1493 = vst [vmem:[#allocation5 + $0x58] sm:$0xff] %v1473
      %1494 = vst [vmem:[#allocation5 + $0x60] sm:$0xff] %v1474
      %1495 = vst [vmem:[#allocation5 + $0x68] sm:$0xff] %v1475
      %1496 = vst [vmem:[#allocation5 + $0x70] sm:$0xff] %v1476
      %1497 = vst [vmem:[#allocation5 + $0x78] sm:$0xff] %v1477
      %1498 = vst [vmem:[#allocation5 + $0x80] sm:$0xff] %v1478
      %1499 = vst [vmem:[#allocation5 + $0x88] sm:$0xff] %v1479
      %1500 = vst [vmem:[#allocation5 + $0x90] sm:$0xff] %v1480
      %1501 = vst [vmem:[#allocation5 + $0x98] sm:$0xff] %v1481
      %v1502 = vld [vmem:[#allocation2] sm:$0xff]
      %v1503 = vld [vmem:[#allocation2 + $0x8] sm:$0xff]
      %v1504 = vld [vmem:[#allocation2 + $0x10] sm:$0xff]
      %v1505 = vld [vmem:[#allocation2 + $0x18] sm:$0xff]
      %v1506 = vld [vmem:[#allocation2 + $0x20] sm:$0xff]
      %v1507 = vld [vmem:[#allocation2 + $0x28] sm:$0xff]
      %v1508 = vld [vmem:[#allocation2 + $0x30] sm:$0xff]
      %v1509 = vld [vmem:[#allocation2 + $0x38] sm:$0xff]
      %v1510 = vld [vmem:[#allocation2 + $0x40] sm:$0xff]
      %v1511 = vld [vmem:[#allocation2 + $0x48] sm:$0xff]
      %v1512 = vld [vmem:[#allocation2 + $0x50] sm:$0xff]
      %v1513 = vld [vmem:[#allocation2 + $0x58] sm:$0xff]
      %v1514 = vld [vmem:[#allocation2 + $0x60] sm:$0xff]
      %v1515 = vld [vmem:[#allocation2 + $0x68] sm:$0xff]
      %v1516 = vld [vmem:[#allocation2 + $0x70] sm:$0xff]
      %v1517 = vld [vmem:[#allocation2 + $0x78] sm:$0xff]
      %v1518 = vld [vmem:[#allocation2 + $0x80] sm:$0xff]
      %v1519 = vld [vmem:[#allocation2 + $0x88] sm:$0xff]
      %v1520 = vld [vmem:[#allocation2 + $0x90] sm:$0xff]
      %v1521 = vld [vmem:[#allocation2 + $0x98] sm:$0xff]
      %v1522 = vld [vmem:[#allocation2 + $0xa0] sm:$0xff]
      %v1523 = vld [vmem:[#allocation2 + $0xa8] sm:$0xff]
      %v1524 = vpack.c.bf16 %v1513, %v1502
      %v1525 = vpack.c.bf16 %v1514, %v1503
      %v1526 = vpack.c.bf16 %v1515, %v1504
      %v1527 = vpack.c.bf16 %v1516, %v1505
      %v1528 = vpack.c.bf16 %v1517, %v1506
      %v1529 = vpack.c.bf16 %v1518, %v1507
      %v1530 = vpack.c.bf16 %v1519, %v1508
      %v1531 = vpack.c.bf16 %v1520, %v1509
      %v1532 = vpack.c.bf16 %v1521, %v1510
      %v1533 = vpack.c.bf16 %v1522, %v1511
      %v1534 = vpack.c.bf16 %v1523, %v1512
      %1546 = vrot.lane.b32.xlu0 %v1524, 126
      %v1547 = vpop.permute.xlu0 %1546
      %1548 = vrot.lane.b32.xlu0 %v1525, 126
      %v1549 = vpop.permute.xlu0 %1548
      %1550 = vrot.lane.b32.xlu0 %v1526, 126
      %v1551 = vpop.permute.xlu0 %1550
      %1552 = vrot.lane.b32.xlu0 %v1527, 126
      %v1553 = vpop.permute.xlu0 %1552
      %1554 = vrot.lane.b32.xlu0 %v1528, 126
      %v1555 = vpop.permute.xlu0 %1554
      %1556 = vrot.lane.b32.xlu0 %v1529, 126
      %v1557 = vpop.permute.xlu0 %1556
      %1558 = vrot.lane.b32.xlu0 %v1530, 126
      %v1559 = vpop.permute.xlu0 %1558
      %1560 = vrot.lane.b32.xlu0 %v1531, 126
      %v1561 = vpop.permute.xlu0 %1560
      %1562 = vrot.lane.b32.xlu0 %v1532, 126
      %v1563 = vpop.permute.xlu0 %1562
      %1564 = vrot.lane.b32.xlu0 %v1533, 126
      %v1565 = vpop.permute.xlu0 %1564
      %1566 = vrot.lane.b32.xlu0 %v1534, 126
      %v1567 = vpop.permute.xlu0 %1566
      %v1568 = vsel %vm381, %v1547, %v1549
      %v1569 = vsel %vm381, %v1549, %v1551
      %v1570 = vsel %vm381, %v1551, %v1553
      %v1571 = vsel %vm381, %v1553, %v1555
      %v1572 = vsel %vm381, %v1555, %v1557
      %v1573 = vsel %vm381, %v1557, %v1559
      %v1574 = vsel %vm381, %v1559, %v1561
      %v1575 = vsel %vm381, %v1561, %v1563
      %v1576 = vsel %vm381, %v1563, %v1565
      %v1577 = vsel %vm381, %v1565, %v1567
      %1588 = vst [vmem:[#allocation5 + $0xa0] sm:$0xff] %v1568
      %1589 = vst [vmem:[#allocation5 + $0xa8] sm:$0xff] %v1569
      %1590 = vst [vmem:[#allocation5 + $0xb0] sm:$0xff] %v1570
      %1591 = vst [vmem:[#allocation5 + $0xb8] sm:$0xff] %v1571
      %1592 = vst [vmem:[#allocation5 + $0xc0] sm:$0xff] %v1572
      %1593 = vst [vmem:[#allocation5 + $0xc8] sm:$0xff] %v1573
      %1594 = vst [vmem:[#allocation5 + $0xd0] sm:$0xff] %v1574
      %1595 = vst [vmem:[#allocation5 + $0xd8] sm:$0xff] %v1575
      %1596 = vst [vmem:[#allocation5 + $0xe0] sm:$0xff] %v1576
      %1597 = vst [vmem:[#allocation5 + $0xe8] sm:$0xff] %v1577
      %v1598 = vld [vmem:[#allocation2] sm:$0xff]
      %v1599 = vld [vmem:[#allocation2 + $0x8] sm:$0xff]
      %v1600 = vld [vmem:[#allocation2 + $0x10] sm:$0xff]
      %v1601 = vld [vmem:[#allocation2 + $0x18] sm:$0xff]
      %v1602 = vld [vmem:[#allocation2 + $0x20] sm:$0xff]
      %v1603 = vld [vmem:[#allocation2 + $0x28] sm:$0xff]
      %v1604 = vld [vmem:[#allocation2 + $0x30] sm:$0xff]
      %v1605 = vld [vmem:[#allocation2 + $0x38] sm:$0xff]
      %v1606 = vld [vmem:[#allocation2 + $0x40] sm:$0xff]
      %v1607 = vld [vmem:[#allocation2 + $0x48] sm:$0xff]
      %v1608 = vld [vmem:[#allocation2 + $0x50] sm:$0xff]
      %v1609 = vld [vmem:[#allocation2 + $0x58] sm:$0xff]
      %v1610 = vld [vmem:[#allocation2 + $0x60] sm:$0xff]
      %v1611 = vld [vmem:[#allocation2 + $0x68] sm:$0xff]
      %v1612 = vld [vmem:[#allocation2 + $0x70] sm:$0xff]
      %v1613 = vld [vmem:[#allocation2 + $0x78] sm:$0xff]
      %v1614 = vld [vmem:[#allocation2 + $0x80] sm:$0xff]
      %v1615 = vld [vmem:[#allocation2 + $0x88] sm:$0xff]
      %v1616 = vld [vmem:[#allocation2 + $0x90] sm:$0xff]
      %v1617 = vld [vmem:[#allocation2 + $0x98] sm:$0xff]
      %v1618 = vld [vmem:[#allocation2 + $0xa0] sm:$0xff]
      %v1619 = vld [vmem:[#allocation2 + $0xa8] sm:$0xff]
      %v1620 = vpack.c.bf16 %v1609, %v1598
      %v1621 = vpack.c.bf16 %v1610, %v1599
      %v1622 = vpack.c.bf16 %v1611, %v1600
      %v1623 = vpack.c.bf16 %v1612, %v1601
      %v1624 = vpack.c.bf16 %v1613, %v1602
      %v1625 = vpack.c.bf16 %v1614, %v1603
      %v1626 = vpack.c.bf16 %v1615, %v1604
      %v1627 = vpack.c.bf16 %v1616, %v1605
      %v1628 = vpack.c.bf16 %v1617, %v1606
      %v1629 = vpack.c.bf16 %v1618, %v1607
      %v1630 = vpack.c.bf16 %v1619, %v1608
      %1642 = vrot.lane.b32.xlu0 %v1620, 104
      %v1643 = vpop.permute.xlu0 %1642
      %1644 = vrot.lane.b32.xlu0 %v1621, 104
      %v1645 = vpop.permute.xlu0 %1644
      %1646 = vrot.lane.b32.xlu0 %v1622, 104
      %v1647 = vpop.permute.xlu0 %1646
      %1648 = vrot.lane.b32.xlu0 %v1623, 104
      %v1649 = vpop.permute.xlu0 %1648
      %1650 = vrot.lane.b32.xlu0 %v1624, 104
      %v1651 = vpop.permute.xlu0 %1650
      %1652 = vrot.lane.b32.xlu0 %v1625, 104
      %v1653 = vpop.permute.xlu0 %1652
      %1654 = vrot.lane.b32.xlu0 %v1626, 104
      %v1655 = vpop.permute.xlu0 %1654
      %1656 = vrot.lane.b32.xlu0 %v1627, 104
      %v1657 = vpop.permute.xlu0 %1656
      %1658 = vrot.lane.b32.xlu0 %v1628, 104
      %v1659 = vpop.permute.xlu0 %1658
      %1660 = vrot.lane.b32.xlu0 %v1629, 104
      %v1661 = vpop.permute.xlu0 %1660
      %1662 = vrot.lane.b32.xlu0 %v1630, 104
      %v1663 = vpop.permute.xlu0 %1662
      %v1664 = vsel %vm478, %v1643, %v1645
      %v1665 = vsel %vm478, %v1645, %v1647
      %v1666 = vsel %vm478, %v1647, %v1649
      %v1667 = vsel %vm478, %v1649, %v1651
      %v1668 = vsel %vm478, %v1651, %v1653
      %v1669 = vsel %vm478, %v1653, %v1655
      %v1670 = vsel %vm478, %v1655, %v1657
      %v1671 = vsel %vm478, %v1657, %v1659
      %v1672 = vsel %vm478, %v1659, %v1661
      %v1673 = vsel %vm478, %v1661, %v1663
      %1684 = vst [vmem:[#allocation5 + $0xf0] sm:$0xff] %v1664
      %1685 = vst [vmem:[#allocation5 + $0xf8] sm:$0xff] %v1665
      %1686 = vst [vmem:[#allocation5 + $0x100] sm:$0xff] %v1666
      %1687 = vst [vmem:[#allocation5 + $0x108] sm:$0xff] %v1667
      %1688 = vst [vmem:[#allocation5 + $0x110] sm:$0xff] %v1668
      %1689 = vst [vmem:[#allocation5 + $0x118] sm:$0xff] %v1669
      %1690 = vst [vmem:[#allocation5 + $0x120] sm:$0xff] %v1670
      %1691 = vst [vmem:[#allocation5 + $0x128] sm:$0xff] %v1671
      %1692 = vst [vmem:[#allocation5 + $0x130] sm:$0xff] %v1672
      %1693 = vst [vmem:[#allocation5 + $0x138] sm:$0xff] %v1673
      %v1694 = vld [vmem:[#allocation2] sm:$0xff]
      %v1695 = vld [vmem:[#allocation2 + $0x8] sm:$0xff]
      %v1696 = vld [vmem:[#allocation2 + $0x10] sm:$0xff]
      %v1697 = vld [vmem:[#allocation2 + $0x18] sm:$0xff]
      %v1698 = vld [vmem:[#allocation2 + $0x20] sm:$0xff]
      %v1699 = vld [vmem:[#allocation2 + $0x28] sm:$0xff]
      %v1700 = vld [vmem:[#allocation2 + $0x30] sm:$0xff]
      %v1701 = vld [vmem:[#allocation2 + $0x38] sm:$0xff]
      %v1702 = vld [vmem:[#allocation2 + $0x40] sm:$0xff]
      %v1703 = vld [vmem:[#allocation2 + $0x48] sm:$0xff]
      %v1704 = vld [vmem:[#allocation2 + $0x50] sm:$0xff]
      %v1705 = vld [vmem:[#allocation2 + $0x58] sm:$0xff]
      %v1706 = vld [vmem:[#allocation2 + $0x60] sm:$0xff]
      %v1707 = vld [vmem:[#allocation2 + $0x68] sm:$0xff]
      %v1708 = vld [vmem:[#allocation2 + $0x70] sm:$0xff]
      %v1709 = vld [vmem:[#allocation2 + $0x78] sm:$0xff]
      %v1710 = vld [vmem:[#allocation2 + $0x80] sm:$0xff]
      %v1711 = vld [vmem:[#allocation2 + $0x88] sm:$0xff]
      %v1712 = vld [vmem:[#allocation2 + $0x90] sm:$0xff]
      %v1713 = vld [vmem:[#allocation2 + $0x98] sm:$0xff]
      %v1714 = vld [vmem:[#allocation2 + $0xa0] sm:$0xff]
      %v1715 = vld [vmem:[#allocation2 + $0xa8] sm:$0xff]
      %v1716 = vpack.c.bf16 %v1705, %v1694
      %v1717 = vpack.c.bf16 %v1706, %v1695
      %v1718 = vpack.c.bf16 %v1707, %v1696
      %v1719 = vpack.c.bf16 %v1708, %v1697
      %v1720 = vpack.c.bf16 %v1709, %v1698
      %v1721 = vpack.c.bf16 %v1710, %v1699
      %v1722 = vpack.c.bf16 %v1711, %v1700
      %v1723 = vpack.c.bf16 %v1712, %v1701
      %v1724 = vpack.c.bf16 %v1713, %v1702
      %v1725 = vpack.c.bf16 %v1714, %v1703
      %v1726 = vpack.c.bf16 %v1715, %v1704
      %1738 = vrot.lane.b32.xlu0 %v1716, 103
      %v1739 = vpop.permute.xlu0 %1738
      %1740 = vrot.lane.b32.xlu0 %v1717, 103
      %v1741 = vpop.permute.xlu0 %1740
      %1742 = vrot.lane.b32.xlu0 %v1718, 103
      %v1743 = vpop.permute.xlu0 %1742
      %1744 = vrot.lane.b32.xlu0 %v1719, 103
      %v1745 = vpop.permute.xlu0 %1744
      %1746 = vrot.lane.b32.xlu0 %v1720, 103
      %v1747 = vpop.permute.xlu0 %1746
      %1748 = vrot.lane.b32.xlu0 %v1721, 103
      %v1749 = vpop.permute.xlu0 %1748
      %1750 = vrot.lane.b32.xlu0 %v1722, 103
      %v1751 = vpop.permute.xlu0 %1750
      %1752 = vrot.lane.b32.xlu0 %v1723, 103
      %v1753 = vpop.permute.xlu0 %1752
      %1754 = vrot.lane.b32.xlu0 %v1724, 103
      %v1755 = vpop.permute.xlu0 %1754
      %1756 = vrot.lane.b32.xlu0 %v1725, 103
      %v1757 = vpop.permute.xlu0 %1756
      %1758 = vrot.lane.b32.xlu0 %v1726, 103
      %v1759 = vpop.permute.xlu0 %1758
      %v1760 = vsel %vm575, %v1739, %v1741
      %v1761 = vsel %vm575, %v1741, %v1743
      %v1762 = vsel %vm575, %v1743, %v1745
      %v1763 = vsel %vm575, %v1745, %v1747
      %v1764 = vsel %vm575, %v1747, %v1749
      %v1765 = vsel %vm575, %v1749, %v1751
      %v1766 = vsel %vm575, %v1751, %v1753
      %v1767 = vsel %vm575, %v1753, %v1755
      %v1768 = vsel %vm575, %v1755, %v1757
      %v1769 = vsel %vm575, %v1757, %v1759
      %1780 = vst [vmem:[#allocation5 + $0x140] sm:$0xff] %v1760
      %1781 = vst [vmem:[#allocation5 + $0x148] sm:$0xff] %v1761
      %1782 = vst [vmem:[#allocation5 + $0x150] sm:$0xff] %v1762
      %1783 = vst [vmem:[#allocation5 + $0x158] sm:$0xff] %v1763
      %1784 = vst [vmem:[#allocation5 + $0x160] sm:$0xff] %v1764
      %1785 = vst [vmem:[#allocation5 + $0x168] sm:$0xff] %v1765
      %1786 = vst [vmem:[#allocation5 + $0x170] sm:$0xff] %v1766
      %1787 = vst [vmem:[#allocation5 + $0x178] sm:$0xff] %v1767
      %1788 = vst [vmem:[#allocation5 + $0x180] sm:$0xff] %v1768
      %1789 = vst [vmem:[#allocation5 + $0x188] sm:$0xff] %v1769
      %v1790 = vld [vmem:[#allocation2] sm:$0xff]
      %v1791 = vld [vmem:[#allocation2 + $0x8] sm:$0xff]
      %v1792 = vld [vmem:[#allocation2 + $0x10] sm:$0xff]
      %v1793 = vld [vmem:[#allocation2 + $0x18] sm:$0xff]
      %v1794 = vld [vmem:[#allocation2 + $0x20] sm:$0xff]
      %v1795 = vld [vmem:[#allocation2 + $0x28] sm:$0xff]
      %v1796 = vld [vmem:[#allocation2 + $0x30] sm:$0xff]
      %v1797 = vld [vmem:[#allocation2 + $0x38] sm:$0xff]
      %v1798 = vld [vmem:[#allocation2 + $0x40] sm:$0xff]
      %v1799 = vld [vmem:[#allocation2 + $0x48] sm:$0xff]
      %v1800 = vld [vmem:[#allocation2 + $0x50] sm:$0xff]
      %v1801 = vld [vmem:[#allocation2 + $0x58] sm:$0xff]
      %v1802 = vld [vmem:[#allocation2 + $0x60] sm:$0xff]
      %v1803 = vld [vmem:[#allocation2 + $0x68] sm:$0xff]
      %v1804 = vld [vmem:[#allocation2 + $0x70] sm:$0xff]
      %v1805 = vld [vmem:[#allocation2 + $0x78] sm:$0xff]
      %v1806 = vld [vmem:[#allocation2 + $0x80] sm:$0xff]
      %v1807 = vld [vmem:[#allocation2 + $0x88] sm:$0xff]
      %v1808 = vld [vmem:[#allocation2 + $0x90] sm:$0xff]
      %v1809 = vld [vmem:[#allocation2 + $0x98] sm:$0xff]
      %v1810 = vld [vmem:[#allocation2 + $0xa0] sm:$0xff]
      %v1811 = vld [vmem:[#allocation2 + $0xa8] sm:$0xff]
      %v1812 = vpack.c.bf16 %v1801, %v1790
      %v1813 = vpack.c.bf16 %v1802, %v1791
      %v1814 = vpack.c.bf16 %v1803, %v1792
      %v1815 = vpack.c.bf16 %v1804, %v1793
      %v1816 = vpack.c.bf16 %v1805, %v1794
      %v1817 = vpack.c.bf16 %v1806, %v1795
      %v1818 = vpack.c.bf16 %v1807, %v1796
      %v1819 = vpack.c.bf16 %v1808, %v1797
      %v1820 = vpack.c.bf16 %v1809, %v1798
      %v1821 = vpack.c.bf16 %v1810, %v1799
      %v1822 = vpack.c.bf16 %v1811, %v1800
      %1834 = vrot.lane.b32.xlu0 %v1812, 102
      %v1835 = vpop.permute.xlu0 %1834
      %1836 = vrot.lane.b32.xlu0 %v1813, 102
      %v1837 = vpop.permute.xlu0 %1836
      %1838 = vrot.lane.b32.xlu0 %v1814, 102
      %v1839 = vpop.permute.xlu0 %1838
      %1840 = vrot.lane.b32.xlu0 %v1815, 102
      %v1841 = vpop.permute.xlu0 %1840
      %1842 = vrot.lane.b32.xlu0 %v1816, 102
      %v1843 = vpop.permute.xlu0 %1842
      %1844 = vrot.lane.b32.xlu0 %v1817, 102
      %v1845 = vpop.permute.xlu0 %1844
      %1846 = vrot.lane.b32.xlu0 %v1818, 102
      %v1847 = vpop.permute.xlu0 %1846
      %1848 = vrot.lane.b32.xlu0 %v1819, 102
      %v1849 = vpop.permute.xlu0 %1848
      %1850 = vrot.lane.b32.xlu0 %v1820, 102
      %v1851 = vpop.permute.xlu0 %1850
      %1852 = vrot.lane.b32.xlu0 %v1821, 102
      %v1853 = vpop.permute.xlu0 %1852
      %1854 = vrot.lane.b32.xlu0 %v1822, 102
      %v1855 = vpop.permute.xlu0 %1854
      %v1856 = vsel %vm672, %v1835, %v1837
      %v1857 = vsel %vm672, %v1837, %v1839
      %v1858 = vsel %vm672, %v1839, %v1841
      %v1859 = vsel %vm672, %v1841, %v1843
      %v1860 = vsel %vm672, %v1843, %v1845
      %v1861 = vsel %vm672, %v1845, %v1847
      %v1862 = vsel %vm672, %v1847, %v1849
      %v1863 = vsel %vm672, %v1849, %v1851
      %v1864 = vsel %vm672, %v1851, %v1853
      %v1865 = vsel %vm672, %v1853, %v1855
      %1876 = vst [vmem:[#allocation5 + $0x190] sm:$0xff] %v1856
      %1877 = vst [vmem:[#allocation5 + $0x198] sm:$0xff] %v1857
      %1878 = vst [vmem:[#allocation5 + $0x1a0] sm:$0xff] %v1858
      %1879 = vst [vmem:[#allocation5 + $0x1a8] sm:$0xff] %v1859
      %1880 = vst [vmem:[#allocation5 + $0x1b0] sm:$0xff] %v1860
      %1881 = vst [vmem:[#allocation5 + $0x1b8] sm:$0xff] %v1861
      %1882 = vst [vmem:[#allocation5 + $0x1c0] sm:$0xff] %v1862
      %1883 = vst [vmem:[#allocation5 + $0x1c8] sm:$0xff] %v1863
      %1884 = vst [vmem:[#allocation5 + $0x1d0] sm:$0xff] %v1864
      %1885 = vst [vmem:[#allocation5 + $0x1d8] sm:$0xff] %v1865
      %v1886 = vld [vmem:[#allocation2] sm:$0xff]
      %v1887 = vld [vmem:[#allocation2 + $0x8] sm:$0xff]
      %v1888 = vld [vmem:[#allocation2 + $0x10] sm:$0xff]
      %v1889 = vld [vmem:[#allocation2 + $0x18] sm:$0xff]
      %v1890 = vld [vmem:[#allocation2 + $0x20] sm:$0xff]
      %v1891 = vld [vmem:[#allocation2 + $0x28] sm:$0xff]
      %v1892 = vld [vmem:[#allocation2 + $0x30] sm:$0xff]
      %v1893 = vld [vmem:[#allocation2 + $0x38] sm:$0xff]
      %v1894 = vld [vmem:[#allocation2 + $0x40] sm:$0xff]
      %v1895 = vld [vmem:[#allocation2 + $0x48] sm:$0xff]
      %v1896 = vld [vmem:[#allocation2 + $0x50] sm:$0xff]
      %v1897 = vld [vmem:[#allocation2 + $0x58] sm:$0xff]
      %v1898 = vld [vmem:[#allocation2 + $0x60] sm:$0xff]
      %v1899 = vld [vmem:[#allocation2 + $0x68] sm:$0xff]
      %v1900 = vld [vmem:[#allocation2 + $0x70] sm:$0xff]
      %v1901 = vld [vmem:[#allocation2 + $0x78] sm:$0xff]
      %v1902 = vld [vmem:[#allocation2 + $0x80] sm:$0xff]
      %v1903 = vld [vmem:[#allocation2 + $0x88] sm:$0xff]
      %v1904 = vld [vmem:[#allocation2 + $0x90] sm:$0xff]
      %v1905 = vld [vmem:[#allocation2 + $0x98] sm:$0xff]
      %v1906 = vld [vmem:[#allocation2 + $0xa0] sm:$0xff]
      %v1907 = vld [vmem:[#allocation2 + $0xa8] sm:$0xff]
      %v1908 = vpack.c.bf16 %v1897, %v1886
      %v1909 = vpack.c.bf16 %v1898, %v1887
      %v1910 = vpack.c.bf16 %v1899, %v1888
      %v1911 = vpack.c.bf16 %v1900, %v1889
      %v1912 = vpack.c.bf16 %v1901, %v1890
      %v1913 = vpack.c.bf16 %v1902, %v1891
      %v1914 = vpack.c.bf16 %v1903, %v1892
      %v1915 = vpack.c.bf16 %v1904, %v1893
      %v1916 = vpack.c.bf16 %v1905, %v1894
      %v1917 = vpack.c.bf16 %v1906, %v1895
      %v1918 = vpack.c.bf16 %v1907, %v1896
      %1930 = vrot.lane.b32.xlu0 %v1908, 80
      %v1931 = vpop.permute.xlu0 %1930
      %1932 = vrot.lane.b32.xlu0 %v1909, 80
      %v1933 = vpop.permute.xlu0 %1932
      %1934 = vrot.lane.b32.xlu0 %v1910, 80
      %v1935 = vpop.permute.xlu0 %1934
      %1936 = vrot.lane.b32.xlu0 %v1911, 80
      %v1937 = vpop.permute.xlu0 %1936
      %1938 = vrot.lane.b32.xlu0 %v1912, 80
      %v1939 = vpop.permute.xlu0 %1938
      %1940 = vrot.lane.b32.xlu0 %v1913, 80
      %v1941 = vpop.permute.xlu0 %1940
      %1942 = vrot.lane.b32.xlu0 %v1914, 80
      %v1943 = vpop.permute.xlu0 %1942
      %1944 = vrot.lane.b32.xlu0 %v1915, 80
      %v1945 = vpop.permute.xlu0 %1944
      %1946 = vrot.lane.b32.xlu0 %v1916, 80
      %v1947 = vpop.permute.xlu0 %1946
      %1948 = vrot.lane.b32.xlu0 %v1917, 80
      %v1949 = vpop.permute.xlu0 %1948
      %1950 = vrot.lane.b32.xlu0 %v1918, 80
      %v1951 = vpop.permute.xlu0 %1950
      %v1952 = vsel %vm769, %v1931, %v1933
      %v1953 = vsel %vm769, %v1933, %v1935
      %v1954 = vsel %vm769, %v1935, %v1937
      %v1955 = vsel %vm769, %v1937, %v1939
      %v1956 = vsel %vm769, %v1939, %v1941
      %v1957 = vsel %vm769, %v1941, %v1943
      %v1958 = vsel %vm769, %v1943, %v1945
      %v1959 = vsel %vm769, %v1945, %v1947
      %v1960 = vsel %vm769, %v1947, %v1949
      %v1961 = vsel %vm769, %v1949, %v1951
      %1972 = vst [vmem:[#allocation5 + $0x1e0] sm:$0xff] %v1952
      %1973 = vst [vmem:[#allocation5 + $0x1e8] sm:$0xff] %v1953
      %1974 = vst [vmem:[#allocation5 + $0x1f0] sm:$0xff] %v1954
      %1975 = vst [vmem:[#allocation5 + $0x1f8] sm:$0xff] %v1955
      %1976 = vst [vmem:[#allocation5 + $0x200] sm:$0xff] %v1956
      %1977 = vst [vmem:[#allocation5 + $0x208] sm:$0xff] %v1957
      %1978 = vst [vmem:[#allocation5 + $0x210] sm:$0xff] %v1958
      %1979 = vst [vmem:[#allocation5 + $0x218] sm:$0xff] %v1959
      %1980 = vst [vmem:[#allocation5 + $0x220] sm:$0xff] %v1960
      %1981 = vst [vmem:[#allocation5 + $0x228] sm:$0xff] %v1961
      %v1982 = vld [vmem:[#allocation2] sm:$0xff]
      %v1983 = vld [vmem:[#allocation2 + $0x8] sm:$0xff]
      %v1984 = vld [vmem:[#allocation2 + $0x10] sm:$0xff]
      %v1985 = vld [vmem:[#allocation2 + $0x18] sm:$0xff]
      %v1986 = vld [vmem:[#allocation2 + $0x20] sm:$0xff]
      %v1987 = vld [vmem:[#allocation2 + $0x28] sm:$0xff]
      %v1988 = vld [vmem:[#allocation2 + $0x30] sm:$0xff]
      %v1989 = vld [vmem:[#allocation2 + $0x38] sm:$0xff]
      %v1990 = vld [vmem:[#allocation2 + $0x40] sm:$0xff]
      %v1991 = vld [vmem:[#allocation2 + $0x48] sm:$0xff]
      %v1992 = vld [vmem:[#allocation2 + $0x50] sm:$0xff]
      %v1993 = vld [vmem:[#allocation2 + $0x58] sm:$0xff]
      %v1994 = vld [vmem:[#allocation2 + $0x60] sm:$0xff]
      %v1995 = vld [vmem:[#allocation2 + $0x68] sm:$0xff]
      %v1996 = vld [vmem:[#allocation2 + $0x70] sm:$0xff]
      %v1997 = vld [vmem:[#allocation2 + $0x78] sm:$0xff]
      %v1998 = vld [vmem:[#allocation2 + $0x80] sm:$0xff]
      %v1999 = vld [vmem:[#allocation2 + $0x88] sm:$0xff]
      %v2000 = vld [vmem:[#allocation2 + $0x90] sm:$0xff]
      %v2001 = vld [vmem:[#allocation2 + $0x98] sm:$0xff]
      %v2002 = vld [vmem:[#allocation2 + $0xa0] sm:$0xff]
      %v2003 = vld [vmem:[#allocation2 + $0xa8] sm:$0xff]
      %v2004 = vpack.c.bf16 %v1993, %v1982
      %v2005 = vpack.c.bf16 %v1994, %v1983
      %v2006 = vpack.c.bf16 %v1995, %v1984
      %v2007 = vpack.c.bf16 %v1996, %v1985
      %v2008 = vpack.c.bf16 %v1997, %v1986
      %v2009 = vpack.c.bf16 %v1998, %v1987
      %v2010 = vpack.c.bf16 %v1999, %v1988
      %v2011 = vpack.c.bf16 %v2000, %v1989
      %v2012 = vpack.c.bf16 %v2001, %v1990
      %v2013 = vpack.c.bf16 %v2002, %v1991
      %v2014 = vpack.c.bf16 %v2003, %v1992
      %2026 = vrot.lane.b32.xlu0 %v2004, 79
      %v2027 = vpop.permute.xlu0 %2026
      %2028 = vrot.lane.b32.xlu0 %v2005, 79
      %v2029 = vpop.permute.xlu0 %2028
      %2030 = vrot.lane.b32.xlu0 %v2006, 79
      %v2031 = vpop.permute.xlu0 %2030
      %2032 = vrot.lane.b32.xlu0 %v2007, 79
      %v2033 = vpop.permute.xlu0 %2032
      %2034 = vrot.lane.b32.xlu0 %v2008, 79
      %v2035 = vpop.permute.xlu0 %2034
      %2036 = vrot.lane.b32.xlu0 %v2009, 79
      %v2037 = vpop.permute.xlu0 %2036
      %2038 = vrot.lane.b32.xlu0 %v2010, 79
      %v2039 = vpop.permute.xlu0 %2038
      %2040 = vrot.lane.b32.xlu0 %v2011, 79
      %v2041 = vpop.permute.xlu0 %2040
      %2042 = vrot.lane.b32.xlu0 %v2012, 79
      %v2043 = vpop.permute.xlu0 %2042
      %2044 = vrot.lane.b32.xlu0 %v2013, 79
      %v2045 = vpop.permute.xlu0 %2044
      %2046 = vrot.lane.b32.xlu0 %v2014, 79
      %v2047 = vpop.permute.xlu0 %2046
      %v2048 = vsel %vm866, %v2027, %v2029
      %v2049 = vsel %vm866, %v2029, %v2031
      %v2050 = vsel %vm866, %v2031, %v2033
      %v2051 = vsel %vm866, %v2033, %v2035
      %v2052 = vsel %vm866, %v2035, %v2037
      %v2053 = vsel %vm866, %v2037, %v2039
      %v2054 = vsel %vm866, %v2039, %v2041
      %v2055 = vsel %vm866, %v2041, %v2043
      %v2056 = vsel %vm866, %v2043, %v2045
      %v2057 = vsel %vm866, %v2045, %v2047
      %2068 = vst [vmem:[#allocation5 + $0x230] sm:$0xff] %v2048
      %2069 = vst [vmem:[#allocation5 + $0x238] sm:$0xff] %v2049
      %2070 = vst [vmem:[#allocation5 + $0x240] sm:$0xff] %v2050
      %2071 = vst [vmem:[#allocation5 + $0x248] sm:$0xff] %v2051
      %2072 = vst [vmem:[#allocation5 + $0x250] sm:$0xff] %v2052
      %2073 = vst [vmem:[#allocation5 + $0x258] sm:$0xff] %v2053
      %2074 = vst [vmem:[#allocation5 + $0x260] sm:$0xff] %v2054
      %2075 = vst [vmem:[#allocation5 + $0x268] sm:$0xff] %v2055
      %2076 = vst [vmem:[#allocation5 + $0x270] sm:$0xff] %v2056
      %2077 = vst [vmem:[#allocation5 + $0x278] sm:$0xff] %v2057
      %v2078 = vld [vmem:[#allocation2] sm:$0xff]
      %v2079 = vld [vmem:[#allocation2 + $0x8] sm:$0xff]
      %v2080 = vld [vmem:[#allocation2 + $0x10] sm:$0xff]
      %v2081 = vld [vmem:[#allocation2 + $0x18] sm:$0xff]
      %v2082 = vld [vmem:[#allocation2 + $0x20] sm:$0xff]
      %v2083 = vld [vmem:[#allocation2 + $0x28] sm:$0xff]
      %v2084 = vld [vmem:[#allocation2 + $0x30] sm:$0xff]
      %v2085 = vld [vmem:[#allocation2 + $0x38] sm:$0xff]
      %v2086 = vld [vmem:[#allocation2 + $0x40] sm:$0xff]
      %v2087 = vld [vmem:[#allocation2 + $0x48] sm:$0xff]
      %v2088 = vld [vmem:[#allocation2 + $0x50] sm:$0xff]
      %v2089 = vld [vmem:[#allocation2 + $0x58] sm:$0xff]
      %v2090 = vld [vmem:[#allocation2 + $0x60] sm:$0xff]
      %v2091 = vld [vmem:[#allocation2 + $0x68] sm:$0xff]
      %v2092 = vld [vmem:[#allocation2 + $0x70] sm:$0xff]
      %v2093 = vld [vmem:[#allocation2 + $0x78] sm:$0xff]
      %v2094 = vld [vmem:[#allocation2 + $0x80] sm:$0xff]
      %v2095 = vld [vmem:[#allocation2 + $0x88] sm:$0xff]
      %v2096 = vld [vmem:[#allocation2 + $0x90] sm:$0xff]
      %v2097 = vld [vmem:[#allocation2 + $0x98] sm:$0xff]
      %v2098 = vld [vmem:[#allocation2 + $0xa0] sm:$0xff]
      %v2099 = vld [vmem:[#allocation2 + $0xa8] sm:$0xff]
      %v2100 = vpack.c.bf16 %v2089, %v2078
      %v2101 = vpack.c.bf16 %v2090, %v2079
      %v2102 = vpack.c.bf16 %v2091, %v2080
      %v2103 = vpack.c.bf16 %v2092, %v2081
      %v2104 = vpack.c.bf16 %v2093, %v2082
      %v2105 = vpack.c.bf16 %v2094, %v2083
      %v2106 = vpack.c.bf16 %v2095, %v2084
      %v2107 = vpack.c.bf16 %v2096, %v2085
      %v2108 = vpack.c.bf16 %v2097, %v2086
      %v2109 = vpack.c.bf16 %v2098, %v2087
      %v2110 = vpack.c.bf16 %v2099, %v2088
      %2122 = vrot.lane.b32.xlu0 %v2100, 78
      %v2123 = vpop.permute.xlu0 %2122
      %2124 = vrot.lane.b32.xlu0 %v2101, 78
      %v2125 = vpop.permute.xlu0 %2124
      %2126 = vrot.lane.b32.xlu0 %v2102, 78
      %v2127 = vpop.permute.xlu0 %2126
      %2128 = vrot.lane.b32.xlu0 %v2103, 78
      %v2129 = vpop.permute.xlu0 %2128
      %2130 = vrot.lane.b32.xlu0 %v2104, 78
      %v2131 = vpop.permute.xlu0 %2130
      %2132 = vrot.lane.b32.xlu0 %v2105, 78
      %v2133 = vpop.permute.xlu0 %2132
      %2134 = vrot.lane.b32.xlu0 %v2106, 78
      %v2135 = vpop.permute.xlu0 %2134
      %2136 = vrot.lane.b32.xlu0 %v2107, 78
      %v2137 = vpop.permute.xlu0 %2136
      %2138 = vrot.lane.b32.xlu0 %v2108, 78
      %v2139 = vpop.permute.xlu0 %2138
      %2140 = vrot.lane.b32.xlu0 %v2109, 78
      %v2141 = vpop.permute.xlu0 %2140
      %2142 = vrot.lane.b32.xlu0 %v2110, 78
      %v2143 = vpop.permute.xlu0 %2142
      %v2144 = vsel %vm963, %v2123, %v2125
      %v2145 = vsel %vm963, %v2125, %v2127
      %v2146 = vsel %vm963, %v2127, %v2129
      %v2147 = vsel %vm963, %v2129, %v2131
      %v2148 = vsel %vm963, %v2131, %v2133
      %v2149 = vsel %vm963, %v2133, %v2135
      %v2150 = vsel %vm963, %v2135, %v2137
      %v2151 = vsel %vm963, %v2137, %v2139
      %v2152 = vsel %vm963, %v2139, %v2141
      %v2153 = vsel %vm963, %v2141, %v2143
      %2164 = vst [vmem:[#allocation5 + $0x280] sm:$0xff] %v2144
      %2165 = vst [vmem:[#allocation5 + $0x288] sm:$0xff] %v2145
      %2166 = vst [vmem:[#allocation5 + $0x290] sm:$0xff] %v2146
      %2167 = vst [vmem:[#allocation5 + $0x298] sm:$0xff] %v2147
      %2168 = vst [vmem:[#allocation5 + $0x2a0] sm:$0xff] %v2148
      %2169 = vst [vmem:[#allocation5 + $0x2a8] sm:$0xff] %v2149
      %2170 = vst [vmem:[#allocation5 + $0x2b0] sm:$0xff] %v2150
      %2171 = vst [vmem:[#allocation5 + $0x2b8] sm:$0xff] %v2151
      %2172 = vst [vmem:[#allocation5 + $0x2c0] sm:$0xff] %v2152
      %2173 = vst [vmem:[#allocation5 + $0x2c8] sm:$0xff] %v2153
      %s2174 = scalar_lea.vmem %s1, 16
      %v2175 = vld [vmem:[%s2174] sm:$0xff]
      %v2176 = vld [vmem:[%s2174 + $0x8] sm:$0xff]
      %v2177 = vld [vmem:[#allocation5] sm:$0xff]
      %v2178 = vld [vmem:[#allocation5 + $0x8] sm:$0xff]
      %v2179 = vld [vmem:[#allocation5 + $0x10] sm:$0xff]
      %v2180 = vld [vmem:[#allocation5 + $0x18] sm:$0xff]
      %v2181 = vld [vmem:[#allocation5 + $0x20] sm:$0xff]
      %v2182 = vld [vmem:[#allocation5 + $0x28] sm:$0xff]
      %v2183 = vld [vmem:[#allocation5 + $0x30] sm:$0xff]
      %v2184 = vld [vmem:[#allocation5 + $0x38] sm:$0xff]
      %v2185 = vld [vmem:[#allocation5 + $0x40] sm:$0xff]
      %v2186 = vld [vmem:[#allocation5 + $0x48] sm:$0xff]
      %v2187 = vld [vmem:[#allocation5 + $0x50] sm:$0xff]
      %v2188 = vld [vmem:[#allocation5 + $0x58] sm:$0xff]
      %v2189 = vld [vmem:[#allocation5 + $0x60] sm:$0xff]
      %v2190 = vld [vmem:[#allocation5 + $0x68] sm:$0xff]
      %v2191 = vld [vmem:[#allocation5 + $0x70] sm:$0xff]
      %v2192 = vld [vmem:[#allocation5 + $0x78] sm:$0xff]
      %v2193 = vld [vmem:[#allocation5 + $0x80] sm:$0xff]
      %v2194 = vld [vmem:[#allocation5 + $0x88] sm:$0xff]
      %v2195 = vld [vmem:[#allocation5 + $0x90] sm:$0xff]
      %v2196 = vld [vmem:[#allocation5 + $0x98] sm:$0xff]
      %v2197 = vld [vmem:[#allocation5 + $0xa0] sm:$0xff]
      %v2198 = vld [vmem:[#allocation5 + $0xa8] sm:$0xff]
      %v2199 = vld [vmem:[#allocation5 + $0xb0] sm:$0xff]
      %v2200 = vld [vmem:[#allocation5 + $0xb8] sm:$0xff]
      %v2201 = vld [vmem:[#allocation5 + $0xc0] sm:$0xff]
      %v2202 = vld [vmem:[#allocation5 + $0xc8] sm:$0xff]
      %v2203 = vld [vmem:[#allocation5 + $0xd0] sm:$0xff]
      %v2204 = vld [vmem:[#allocation5 + $0xd8] sm:$0xff]
      %v2205 = vld [vmem:[#allocation5 + $0xe0] sm:$0xff]
      %v2206 = vld [vmem:[#allocation5 + $0xe8] sm:$0xff]
      %v2207 = vld [vmem:[#allocation5 + $0xf0] sm:$0xff]
      %v2208 = vld [vmem:[#allocation5 + $0xf8] sm:$0xff]
      %v2209 = vld [vmem:[#allocation5 + $0x100] sm:$0xff]
      %v2210 = vld [vmem:[#allocation5 + $0x108] sm:$0xff]
      %v2211 = vld [vmem:[#allocation5 + $0x110] sm:$0xff]
      %v2212 = vld [vmem:[#allocation5 + $0x118] sm:$0xff]
      %v2213 = vld [vmem:[#allocation5 + $0x120] sm:$0xff]
      %v2214 = vld [vmem:[#allocation5 + $0x128] sm:$0xff]
      %v2215 = vld [vmem:[#allocation5 + $0x130] sm:$0xff]
      %v2216 = vld [vmem:[#allocation5 + $0x138] sm:$0xff]
      %v2217 = vld [vmem:[#allocation5 + $0x140] sm:$0xff]
      %v2218 = vld [vmem:[#allocation5 + $0x148] sm:$0xff]
      %v2219 = vld [vmem:[#allocation5 + $0x150] sm:$0xff]
      %v2220 = vld [vmem:[#allocation5 + $0x158] sm:$0xff]
      %v2221 = vld [vmem:[#allocation5 + $0x160] sm:$0xff]
      %v2222 = vld [vmem:[#allocation5 + $0x168] sm:$0xff]
      %v2223 = vld [vmem:[#allocation5 + $0x170] sm:$0xff]
      %v2224 = vld [vmem:[#allocation5 + $0x178] sm:$0xff]
      %v2225 = vld [vmem:[#allocation5 + $0x180] sm:$0xff]
      %v2226 = vld [vmem:[#allocation5 + $0x188] sm:$0xff]
      %v2227 = vld [vmem:[#allocation5 + $0x190] sm:$0xff]
      %v2228 = vld [vmem:[#allocation5 + $0x198] sm:$0xff]
      %v2229 = vld [vmem:[#allocation5 + $0x1a0] sm:$0xff]
      %v2230 = vld [vmem:[#allocation5 + $0x1a8] sm:$0xff]
      %v2231 = vld [vmem:[#allocation5 + $0x1b0] sm:$0xff]
      %v2232 = vld [vmem:[#allocation5 + $0x1b8] sm:$0xff]
      %v2233 = vld [vmem:[#allocation5 + $0x1c0] sm:$0xff]
      %v2234 = vld [vmem:[#allocation5 + $0x1c8] sm:$0xff]
      %v2235 = vld [vmem:[#allocation5 + $0x1d0] sm:$0xff]
      %v2236 = vld [vmem:[#allocation5 + $0x1d8] sm:$0xff]
      %v2237 = vld [vmem:[#allocation5 + $0x1e0] sm:$0xff]
      %v2238 = vld [vmem:[#allocation5 + $0x1e8] sm:$0xff]
      %v2239 = vld [vmem:[#allocation5 + $0x1f0] sm:$0xff]
      %v2240 = vld [vmem:[#allocation5 + $0x1f8] sm:$0xff]
      %v2241 = vld [vmem:[#allocation5 + $0x200] sm:$0xff]
      %v2242 = vld [vmem:[#allocation5 + $0x208] sm:$0xff]
      %v2243 = vld [vmem:[#allocation5 + $0x210] sm:$0xff]
      %v2244 = vld [vmem:[#allocation5 + $0x218] sm:$0xff]
      %v2245 = vld [vmem:[#allocation5 + $0x220] sm:$0xff]
      %v2246 = vld [vmem:[#allocation5 + $0x228] sm:$0xff]
      %v2247 = vld [vmem:[#allocation5 + $0x230] sm:$0xff]
      %v2248 = vld [vmem:[#allocation5 + $0x238] sm:$0xff]
      %v2249 = vld [vmem:[#allocation5 + $0x240] sm:$0xff]
      %v2250 = vld [vmem:[#allocation5 + $0x248] sm:$0xff]
      %v2251 = vld [vmem:[#allocation5 + $0x250] sm:$0xff]
      %v2252 = vld [vmem:[#allocation5 + $0x258] sm:$0xff]
      %v2253 = vld [vmem:[#allocation5 + $0x260] sm:$0xff]
      %v2254 = vld [vmem:[#allocation5 + $0x268] sm:$0xff]
      %v2255 = vld [vmem:[#allocation5 + $0x270] sm:$0xff]
      %v2256 = vld [vmem:[#allocation5 + $0x278] sm:$0xff]
      %v2257 = vld [vmem:[#allocation5 + $0x280] sm:$0xff]
      %v2258 = vld [vmem:[#allocation5 + $0x288] sm:$0xff]
      %v2259 = vld [vmem:[#allocation5 + $0x290] sm:$0xff]
      %v2260 = vld [vmem:[#allocation5 + $0x298] sm:$0xff]
      %v2261 = vld [vmem:[#allocation5 + $0x2a0] sm:$0xff]
      %v2262 = vld [vmem:[#allocation5 + $0x2a8] sm:$0xff]
      %v2263 = vld [vmem:[#allocation5 + $0x2b0] sm:$0xff]
      %v2264 = vld [vmem:[#allocation5 + $0x2b8] sm:$0xff]
      %v2265 = vld [vmem:[#allocation5 + $0x2c0] sm:$0xff]
      %v2266 = vld [vmem:[#allocation5 + $0x2c8] sm:$0xff]
      %s2267 = scalar_lea.vmem %s2, 16
      %v2268 = vld [vmem:[%s2267] sm:$0xff]
      %v2269 = vld [vmem:[%s2267 + $0x8] sm:$0xff]
      %2271 = vset.pattern.permute.xlu0 0
      %2272 = vperm.xlu0 %2271, %v2268
      %v2273 = vpop.permute.xlu0 %2272
      %2276 = vset.pattern.permute.xlu0 0
      %2277 = vperm.xlu0 %2276, %v2269
      %v2278 = vpop.permute.xlu0 %2277
      %v2282 = vunpack.c.l.b16 %v2175
      %v2283 = vunpack.c.h.b16 %v2175
      %v2284 = vunpack.c.l.b16 %v2176
      %v2285 = vunpack.c.h.b16 %v2176
      %v2286 = vpack.c.b16 %v2284, %v2282
      %v2287 = vpack.c.b16 %v2285, %v2283
      %v2290 = vsel %vm1107, %v2287, 0
      %2292 = vmatprep.subr.bf16.mxu0 %v2178
      %2293 = vmatpush1.bf16.msra.mxu0 %v2177
      %2294 = vmatprep.subr.bf16.mxu0 %v2188
      %2295 = vmatpush1.bf16.msra.mxu0 %v2187
      %2296 = vmatprep.subr.bf16.mxu0 %v2198
      %2297 = vmatpush1.bf16.msra.mxu0 %v2197
      %2298 = vmatprep.subr.bf16.mxu0 %v2208
      %2299 = vmatpush1.bf16.msra.mxu0 %v2207
      %2300 = vmatprep.subr.bf16.mxu0 %v2218
      %2301 = vmatpush1.bf16.msra.mxu0 %v2217
      %2302 = vmatprep.subr.bf16.mxu0 %v2228
      %2303 = vmatpush1.bf16.msra.mxu0 %v2227
      %2304 = vmatprep.subr.bf16.mxu0 %v2238
      %2305 = vmatpush1.bf16.msra.mxu0 %v2237
      %2306 = vmatprep.subr.bf16.mxu0 %v2248
      %2307 = vmatpush1.bf16.msra.mxu0 %v2247
      %2308 = vmatprep.subr.bf16.mxu0 %v2258
      %2309 = vmatpush1.bf16.msra.mxu0 %v2257
      %2310 = vmatprep.subr.bf16.mxu0 0
      %2311 = vmatpush1.bf16.msra.mxu0 0
      %2312 = vmatprep.subr.bf16.mxu0 0
      %2313 = vmatpush1.bf16.msra.mxu0 0
      %2314 = vmatprep.subr.bf16.mxu0 0
      %2315 = vmatpush1.bf16.msra.mxu0 0
      %2316 = vmatprep.subr.bf16.mxu0 0
      %2317 = vmatpush1.bf16.msra.mxu0 0
      %2318 = vmatprep.subr.bf16.mxu0 0
      %2319 = vmatpush1.bf16.msra.mxu0 0
      %2320 = vmatprep.subr.bf16.mxu0 0
      %2321 = vmatpush1.bf16.msra.mxu0 0
      %2322 = vmatprep.subr.bf16.mxu0 0
      %2323 = vmatpush1.bf16.msra.mxu0 0
      %2324 = vmatprep.mubr.bf16.mxu0 %v2290
      %2325 = vmatmul.mubr.bf16.gmra.mrb[0].mxu0 %v2286
      %v2326 = vpop.f32.mrb[0].mxu0
      %v2327 = vadd.f32 %v2273, %v2326
      %v2328 = vpop.f32.mrb[0].mxu0
      %v2329 = vadd.f32 %v2273, %v2328
      %v2330 = vpop.f32.mrb[0].mxu0
      %v2331 = vadd.f32 %v2278, %v2330
      %v2332 = vpop.f32.mrb[0].mxu0
      %v2333 = vadd.f32 %v2278, %v2332
      %2334 = vdwg.mxu0
      %2335 = vmatprep.subr.bf16.mxu0 %v2180
      %2336 = vmatpush1.bf16.msra.mxu0 %v2179
      %2337 = vmatprep.subr.bf16.mxu0 %v2190
      %2338 = vmatpush1.bf16.msra.mxu0 %v2189
      %2339 = vmatprep.subr.bf16.mxu0 %v2200
      %2340 = vmatpush1.bf16.msra.mxu0 %v2199
      %2341 = vmatprep.subr.bf16.mxu0 %v2210
      %2342 = vmatpush1.bf16.msra.mxu0 %v2209
      %2343 = vmatprep.subr.bf16.mxu0 %v2220
      %2344 = vmatpush1.bf16.msra.mxu0 %v2219
      %2345 = vmatprep.subr.bf16.mxu0 %v2230
      %2346 = vmatpush1.bf16.msra.mxu0 %v2229
      %2347 = vmatprep.subr.bf16.mxu0 %v2240
      %2348 = vmatpush1.bf16.msra.mxu0 %v2239
      %2349 = vmatprep.subr.bf16.mxu0 %v2250
      %2350 = vmatpush1.bf16.msra.mxu0 %v2249
      %2351 = vmatprep.subr.bf16.mxu0 %v2260
      %2352 = vmatpush1.bf16.msra.mxu0 %v2259
      %2353 = vmatprep.subr.bf16.mxu0 0
      %2354 = vmatpush1.bf16.msra.mxu0 0
      %2355 = vmatprep.subr.bf16.mxu0 0
      %2356 = vmatpush1.bf16.msra.mxu0 0
      %2357 = vmatprep.subr.bf16.mxu0 0
      %2358 = vmatpush1.bf16.msra.mxu0 0
      %2359 = vmatprep.subr.bf16.mxu0 0
      %2360 = vmatpush1.bf16.msra.mxu0 0
      %2361 = vmatprep.subr.bf16.mxu0 0
      %2362 = vmatpush1.bf16.msra.mxu0 0
      %2363 = vmatprep.subr.bf16.mxu0 0
      %2364 = vmatpush1.bf16.msra.mxu0 0
      %2365 = vmatprep.subr.bf16.mxu0 0
      %2366 = vmatpush1.bf16.msra.mxu0 0
      %2367 = vmatprep.mubr.bf16.mxu0 %v2290
      %2368 = vmatmul.mubr.bf16.gmra.mrb[0].mxu0 %v2286
      %v2369 = vpop.f32.mrb[0].mxu0
      %v2370 = vadd.f32 %v2273, %v2369
      %v2371 = vpop.f32.mrb[0].mxu0
      %v2372 = vadd.f32 %v2273, %v2371
      %v2373 = vpop.f32.mrb[0].mxu0
      %v2374 = vadd.f32 %v2278, %v2373
      %v2375 = vpop.f32.mrb[0].mxu0
      %v2376 = vadd.f32 %v2278, %v2375
      %2377 = vdwg.mxu0
      %2378 = vmatprep.subr.bf16.mxu0 %v2182
      %2379 = vmatpush1.bf16.msra.mxu0 %v2181
      %2380 = vmatprep.subr.bf16.mxu0 %v2192
      %2381 = vmatpush1.bf16.msra.mxu0 %v2191
      %2382 = vmatprep.subr.bf16.mxu0 %v2202
      %2383 = vmatpush1.bf16.msra.mxu0 %v2201
      %2384 = vmatprep.subr.bf16.mxu0 %v2212
      %2385 = vmatpush1.bf16.msra.mxu0 %v2211
      %2386 = vmatprep.subr.bf16.mxu0 %v2222
      %2387 = vmatpush1.bf16.msra.mxu0 %v2221
      %2388 = vmatprep.subr.bf16.mxu0 %v2232
      %2389 = vmatpush1.bf16.msra.mxu0 %v2231
      %2390 = vmatprep.subr.bf16.mxu0 %v2242
      %2391 = vmatpush1.bf16.msra.mxu0 %v2241
      %2392 = vmatprep.subr.bf16.mxu0 %v2252
      %2393 = vmatpush1.bf16.msra.mxu0 %v2251
      %2394 = vmatprep.subr.bf16.mxu0 %v2262
      %2395 = vmatpush1.bf16.msra.mxu0 %v2261
      %2396 = vmatprep.subr.bf16.mxu0 0
      %2397 = vmatpush1.bf16.msra.mxu0 0
      %2398 = vmatprep.subr.bf16.mxu0 0
      %2399 = vmatpush1.bf16.msra.mxu0 0
      %2400 = vmatprep.subr.bf16.mxu0 0
      %2401 = vmatpush1.bf16.msra.mxu0 0
      %2402 = vmatprep.subr.bf16.mxu0 0
      %2403 = vmatpush1.bf16.msra.mxu0 0
      %2404 = vmatprep.subr.bf16.mxu0 0
      %2405 = vmatpush1.bf16.msra.mxu0 0
      %2406 = vmatprep.subr.bf16.mxu0 0
      %2407 = vmatpush1.bf16.msra.mxu0 0
      %2408 = vmatprep.subr.bf16.mxu0 0
      %2409 = vmatpush1.bf16.msra.mxu0 0
      %2410 = vmatprep.mubr.bf16.mxu0 %v2290
      %2411 = vmatmul.mubr.bf16.gmra.mrb[0].mxu0 %v2286
      %v2412 = vpop.f32.mrb[0].mxu0
      %v2413 = vadd.f32 %v2273, %v2412
      %v2414 = vpop.f32.mrb[0].mxu0
      %v2415 = vadd.f32 %v2273, %v2414
      %v2416 = vpop.f32.mrb[0].mxu0
      %v2417 = vadd.f32 %v2278, %v2416
      %v2418 = vpop.f32.mrb[0].mxu0
      %v2419 = vadd.f32 %v2278, %v2418
      %2420 = vdwg.mxu0
      %2421 = vmatprep.subr.bf16.mxu0 %v2184
      %2422 = vmatpush1.bf16.msra.mxu0 %v2183
      %2423 = vmatprep.subr.bf16.mxu0 %v2194
      %2424 = vmatpush1.bf16.msra.mxu0 %v2193
      %2425 = vmatprep.subr.bf16.mxu0 %v2204
      %2426 = vmatpush1.bf16.msra.mxu0 %v2203
      %2427 = vmatprep.subr.bf16.mxu0 %v2214
      %2428 = vmatpush1.bf16.msra.mxu0 %v2213
      %2429 = vmatprep.subr.bf16.mxu0 %v2224
      %2430 = vmatpush1.bf16.msra.mxu0 %v2223
      %2431 = vmatprep.subr.bf16.mxu0 %v2234
      %2432 = vmatpush1.bf16.msra.mxu0 %v2233
      %2433 = vmatprep.subr.bf16.mxu0 %v2244
      %2434 = vmatpush1.bf16.msra.mxu0 %v2243
      %2435 = vmatprep.subr.bf16.mxu0 %v2254
      %2436 = vmatpush1.bf16.msra.mxu0 %v2253
      %2437 = vmatprep.subr.bf16.mxu0 %v2264
      %2438 = vmatpush1.bf16.msra.mxu0 %v2263
      %2439 = vmatprep.subr.bf16.mxu0 0
      %2440 = vmatpush1.bf16.msra.mxu0 0
      %2441 = vmatprep.subr.bf16.mxu0 0
      %2442 = vmatpush1.bf16.msra.mxu0 0
      %2443 = vmatprep.subr.bf16.mxu0 0
      %2444 = vmatpush1.bf16.msra.mxu0 0
      %2445 = vmatprep.subr.bf16.mxu0 0
      %2446 = vmatpush1.bf16.msra.mxu0 0
      %2447 = vmatprep.subr.bf16.mxu0 0
      %2448 = vmatpush1.bf16.msra.mxu0 0
      %2449 = vmatprep.subr.bf16.mxu0 0
      %2450 = vmatpush1.bf16.msra.mxu0 0
      %2451 = vmatprep.subr.bf16.mxu0 0
      %2452 = vmatpush1.bf16.msra.mxu0 0
      %2453 = vmatprep.mubr.bf16.mxu0 %v2290
      %2454 = vmatmul.mubr.bf16.gmra.mrb[0].mxu0 %v2286
      %v2455 = vpop.f32.mrb[0].mxu0
      %v2456 = vadd.f32 %v2273, %v2455
      %v2457 = vpop.f32.mrb[0].mxu0
      %v2458 = vadd.f32 %v2273, %v2457
      %v2459 = vpop.f32.mrb[0].mxu0
      %v2460 = vadd.f32 %v2278, %v2459
      %v2461 = vpop.f32.mrb[0].mxu0
      %v2462 = vadd.f32 %v2278, %v2461
      %2463 = vdwg.mxu0
      %2464 = vmatprep.subr.bf16.mxu0 %v2186
      %2465 = vmatpush1.bf16.msra.mxu0 %v2185
      %2466 = vmatprep.subr.bf16.mxu0 %v2196
      %2467 = vmatpush1.bf16.msra.mxu0 %v2195
      %2468 = vmatprep.subr.bf16.mxu0 %v2206
      %2469 = vmatpush1.bf16.msra.mxu0 %v2205
      %2470 = vmatprep.subr.bf16.mxu0 %v2216
      %2471 = vmatpush1.bf16.msra.mxu0 %v2215
      %2472 = vmatprep.subr.bf16.mxu0 %v2226
      %2473 = vmatpush1.bf16.msra.mxu0 %v2225
      %2474 = vmatprep.subr.bf16.mxu0 %v2236
      %2475 = vmatpush1.bf16.msra.mxu0 %v2235
      %2476 = vmatprep.subr.bf16.mxu0 %v2246
      %2477 = vmatpush1.bf16.msra.mxu0 %v2245
      %2478 = vmatprep.subr.bf16.mxu0 %v2256
      %2479 = vmatpush1.bf16.msra.mxu0 %v2255
      %2480 = vmatprep.subr.bf16.mxu0 %v2266
      %2481 = vmatpush1.bf16.msra.mxu0 %v2265
      %2482 = vmatprep.subr.bf16.mxu0 0
      %2483 = vmatpush1.bf16.msra.mxu0 0
      %2484 = vmatprep.subr.bf16.mxu0 0
      %2485 = vmatpush1.bf16.msra.mxu0 0
      %2486 = vmatprep.subr.bf16.mxu0 0
      %2487 = vmatpush1.bf16.msra.mxu0 0
      %2488 = vmatprep.subr.bf16.mxu0 0
      %2489 = vmatpush1.bf16.msra.mxu0 0
      %2490 = vmatprep.subr.bf16.mxu0 0
      %2491 = vmatpush1.bf16.msra.mxu0 0
      %2492 = vmatprep.subr.bf16.mxu0 0
      %2493 = vmatpush1.bf16.msra.mxu0 0
      %2494 = vmatprep.subr.bf16.mxu0 0
      %2495 = vmatpush1.bf16.msra.mxu0 0
      %2496 = vmatprep.mubr.bf16.mxu0 %v2290
      %2497 = vmatmul.mubr.bf16.gmra.mrb[0].mxu0 %v2286
      %v2498 = vpop.f32.mrb[0].mxu0
      %v2499 = vadd.f32 %v2273, %v2498
      %v2500 = vpop.f32.mrb[0].mxu0
      %v2501 = vadd.f32 %v2273, %v2500
      %v2502 = vpop.f32.mrb[0].mxu0
      %v2503 = vadd.f32 %v2278, %v2502
      %v2504 = vpop.f32.mrb[0].mxu0
      %v2505 = vadd.f32 %v2278, %v2504
      %2506 = vdwg.mxu0
      %v2507 = vmax.f32 %v2327, 0.0
      %v2508 = vmax.f32 %v2329, 0.0
      %v2509 = vmax.f32 %v2370, 0.0
      %v2510 = vmax.f32 %v2372, 0.0
      %v2511 = vmax.f32 %v2413, 0.0
      %v2512 = vmax.f32 %v2415, 0.0
      %v2513 = vmax.f32 %v2456, 0.0
      %v2514 = vmax.f32 %v2458, 0.0
      %v2515 = vmax.f32 %v2499, 0.0
      %v2516 = vmax.f32 %v2501, 0.0
      %v2517 = vmax.f32 %v2331, 0.0
      %v2518 = vmax.f32 %v2333, 0.0
      %v2519 = vmax.f32 %v2374, 0.0
      %v2520 = vmax.f32 %v2376, 0.0
      %v2521 = vmax.f32 %v2417, 0.0
      %v2522 = vmax.f32 %v2419, 0.0
      %v2523 = vmax.f32 %v2460, 0.0
      %v2524 = vmax.f32 %v2462, 0.0
      %v2525 = vmax.f32 %v2503, 0.0
      %v2526 = vmax.f32 %v2505, 0.0
      %2527 = vst [vmem:[#allocation3] sm:$0xff] %v2507
      %2528 = vst [vmem:[#allocation3 + $0x8] sm:$0xff] %v2508
      %2529 = vst [vmem:[#allocation3 + $0x10] sm:$0xff] %v2509
      %2530 = vst [vmem:[#allocation3 + $0x18] sm:$0xff] %v2510
      %2531 = vst [vmem:[#allocation3 + $0x20] sm:$0xff] %v2511
      %2532 = vst [vmem:[#allocation3 + $0x28] sm:$0xff] %v2512
      %2533 = vst [vmem:[#allocation3 + $0x30] sm:$0xff] %v2513
      %2534 = vst [vmem:[#allocation3 + $0x38] sm:$0xff] %v2514
      %2535 = vst [vmem:[#allocation3 + $0x40] sm:$0xff] %v2515
      %2536 = vst [vmem:[#allocation3 + $0x48] sm:$0xff] %v2516
      %2537 = vst [vmem:[#allocation3 + $0x58] sm:$0xff] %v2517
      %2538 = vst [vmem:[#allocation3 + $0x60] sm:$0xff] %v2518
      %2539 = vst [vmem:[#allocation3 + $0x68] sm:$0xff] %v2519
      %2540 = vst [vmem:[#allocation3 + $0x70] sm:$0xff] %v2520
      %2541 = vst [vmem:[#allocation3 + $0x78] sm:$0xff] %v2521
      %2542 = vst [vmem:[#allocation3 + $0x80] sm:$0xff] %v2522
      %2543 = vst [vmem:[#allocation3 + $0x88] sm:$0xff] %v2523
      %2544 = vst [vmem:[#allocation3 + $0x90] sm:$0xff] %v2524
      %2545 = vst [vmem:[#allocation3 + $0x98] sm:$0xff] %v2525
      %2546 = vst [vmem:[#allocation3 + $0xa0] sm:$0xff] %v2526
      %v2547 = vld [vmem:[#allocation3] sm:$0xff]
      %v2548 = vld [vmem:[#allocation3 + $0x8] sm:$0xff]
      %v2549 = vld [vmem:[#allocation3 + $0x10] sm:$0xff]
      %v2550 = vld [vmem:[#allocation3 + $0x18] sm:$0xff]
      %v2551 = vld [vmem:[#allocation3 + $0x20] sm:$0xff]
      %v2552 = vld [vmem:[#allocation3 + $0x28] sm:$0xff]
      %v2553 = vld [vmem:[#allocation3 + $0x30] sm:$0xff]
      %v2554 = vld [vmem:[#allocation3 + $0x38] sm:$0xff]
      %v2555 = vld [vmem:[#allocation3 + $0x40] sm:$0xff]
      %v2556 = vld [vmem:[#allocation3 + $0x48] sm:$0xff]
      %v2557 = vld [vmem:[#allocation3 + $0x58] sm:$0xff]
      %v2558 = vld [vmem:[#allocation3 + $0x60] sm:$0xff]
      %v2559 = vld [vmem:[#allocation3 + $0x68] sm:$0xff]
      %v2560 = vld [vmem:[#allocation3 + $0x70] sm:$0xff]
      %v2561 = vld [vmem:[#allocation3 + $0x78] sm:$0xff]
      %v2562 = vld [vmem:[#allocation3 + $0x80] sm:$0xff]
      %v2563 = vld [vmem:[#allocation3 + $0x88] sm:$0xff]
      %v2564 = vld [vmem:[#allocation3 + $0x90] sm:$0xff]
      %v2565 = vld [vmem:[#allocation3 + $0x98] sm:$0xff]
      %v2566 = vld [vmem:[#allocation3 + $0xa0] sm:$0xff]
      %v2567 = vpack.c.bf16 %v2557, %v2547
      %v2568 = vpack.c.bf16 %v2558, %v2548
      %v2569 = vpack.c.bf16 %v2559, %v2549
      %v2570 = vpack.c.bf16 %v2560, %v2550
      %v2571 = vpack.c.bf16 %v2561, %v2551
      %v2572 = vpack.c.bf16 %v2562, %v2552
      %v2573 = vpack.c.bf16 %v2563, %v2553
      %v2574 = vpack.c.bf16 %v2564, %v2554
      %v2575 = vpack.c.bf16 %v2565, %v2555
      %v2576 = vpack.c.bf16 %v2566, %v2556
      %2577 = vst [vmem:[#allocation5] sm:$0xff] %v2567
      %2578 = vst [vmem:[#allocation5 + $0x8] sm:$0xff] %v2568
      %2579 = vst [vmem:[#allocation5 + $0x10] sm:$0xff] %v2569
      %2580 = vst [vmem:[#allocation5 + $0x18] sm:$0xff] %v2570
      %2581 = vst [vmem:[#allocation5 + $0x20] sm:$0xff] %v2571
      %2582 = vst [vmem:[#allocation5 + $0x28] sm:$0xff] %v2572
      %2583 = vst [vmem:[#allocation5 + $0x30] sm:$0xff] %v2573
      %2584 = vst [vmem:[#allocation5 + $0x38] sm:$0xff] %v2574
      %2585 = vst [vmem:[#allocation5 + $0x40] sm:$0xff] %v2575
      %2586 = vst [vmem:[#allocation5 + $0x48] sm:$0xff] %v2576
      %v2587 = vld [vmem:[#allocation3] sm:$0xff]
      %v2588 = vld [vmem:[#allocation3 + $0x8] sm:$0xff]
      %v2589 = vld [vmem:[#allocation3 + $0x10] sm:$0xff]
      %v2590 = vld [vmem:[#allocation3 + $0x18] sm:$0xff]
      %v2591 = vld [vmem:[#allocation3 + $0x20] sm:$0xff]
      %v2592 = vld [vmem:[#allocation3 + $0x28] sm:$0xff]
      %v2593 = vld [vmem:[#allocation3 + $0x30] sm:$0xff]
      %v2594 = vld [vmem:[#allocation3 + $0x38] sm:$0xff]
      %v2595 = vld [vmem:[#allocation3 + $0x40] sm:$0xff]
      %v2596 = vld [vmem:[#allocation3 + $0x48] sm:$0xff]
      %v2597 = vld [vmem:[#allocation3 + $0x50] sm:$0xff]
      %v2598 = vld [vmem:[#allocation3 + $0x58] sm:$0xff]
      %v2599 = vld [vmem:[#allocation3 + $0x60] sm:$0xff]
      %v2600 = vld [vmem:[#allocation3 + $0x68] sm:$0xff]
      %v2601 = vld [vmem:[#allocation3 + $0x70] sm:$0xff]
      %v2602 = vld [vmem:[#allocation3 + $0x78] sm:$0xff]
      %v2603 = vld [vmem:[#allocation3 + $0x80] sm:$0xff]
      %v2604 = vld [vmem:[#allocation3 + $0x88] sm:$0xff]
      %v2605 = vld [vmem:[#allocation3 + $0x90] sm:$0xff]
      %v2606 = vld [vmem:[#allocation3 + $0x98] sm:$0xff]
      %v2607 = vld [vmem:[#allocation3 + $0xa0] sm:$0xff]
      %v2608 = vld [vmem:[#allocation3 + $0xa8] sm:$0xff]
      %v2609 = vpack.c.bf16 %v2598, %v2587
      %v2610 = vpack.c.bf16 %v2599, %v2588
      %v2611 = vpack.c.bf16 %v2600, %v2589
      %v2612 = vpack.c.bf16 %v2601, %v2590
      %v2613 = vpack.c.bf16 %v2602, %v2591
      %v2614 = vpack.c.bf16 %v2603, %v2592
      %v2615 = vpack.c.bf16 %v2604, %v2593
      %v2616 = vpack.c.bf16 %v2605, %v2594
      %v2617 = vpack.c.bf16 %v2606, %v2595
      %v2618 = vpack.c.bf16 %v2607, %v2596
      %v2619 = vpack.c.bf16 %v2608, %v2597
      %2631 = vrot.lane.b32.xlu0 %v2609, 127
      %v2632 = vpop.permute.xlu0 %2631
      %2633 = vrot.lane.b32.xlu0 %v2610, 127
      %v2634 = vpop.permute.xlu0 %2633
      %2635 = vrot.lane.b32.xlu0 %v2611, 127
      %v2636 = vpop.permute.xlu0 %2635
      %2637 = vrot.lane.b32.xlu0 %v2612, 127
      %v2638 = vpop.permute.xlu0 %2637
      %2639 = vrot.lane.b32.xlu0 %v2613, 127
      %v2640 = vpop.permute.xlu0 %2639
      %2641 = vrot.lane.b32.xlu0 %v2614, 127
      %v2642 = vpop.permute.xlu0 %2641
      %2643 = vrot.lane.b32.xlu0 %v2615, 127
      %v2644 = vpop.permute.xlu0 %2643
      %2645 = vrot.lane.b32.xlu0 %v2616, 127
      %v2646 = vpop.permute.xlu0 %2645
      %2647 = vrot.lane.b32.xlu0 %v2617, 127
      %v2648 = vpop.permute.xlu0 %2647
      %2649 = vrot.lane.b32.xlu0 %v2618, 127
      %v2650 = vpop.permute.xlu0 %2649
      %2651 = vrot.lane.b32.xlu0 %v2619, 127
      %v2652 = vpop.permute.xlu0 %2651
      %v2653 = vsel %vm284, %v2632, %v2634
      %v2654 = vsel %vm284, %v2634, %v2636
      %v2655 = vsel %vm284, %v2636, %v2638
      %v2656 = vsel %vm284, %v2638, %v2640
      %v2657 = vsel %vm284, %v2640, %v2642
      %v2658 = vsel %vm284, %v2642, %v2644
      %v2659 = vsel %vm284, %v2644, %v2646
      %v2660 = vsel %vm284, %v2646, %v2648
      %v2661 = vsel %vm284, %v2648, %v2650
      %v2662 = vsel %vm284, %v2650, %v2652
      %2673 = vst [vmem:[#allocation5 + $0x50] sm:$0xff] %v2653
      %2674 = vst [vmem:[#allocation5 + $0x58] sm:$0xff] %v2654
      %2675 = vst [vmem:[#allocation5 + $0x60] sm:$0xff] %v2655
      %2676 = vst [vmem:[#allocation5 + $0x68] sm:$0xff] %v2656
      %2677 = vst [vmem:[#allocation5 + $0x70] sm:$0xff] %v2657
      %2678 = vst [vmem:[#allocation5 + $0x78] sm:$0xff] %v2658
      %2679 = vst [vmem:[#allocation5 + $0x80] sm:$0xff] %v2659
      %2680 = vst [vmem:[#allocation5 + $0x88] sm:$0xff] %v2660
      %2681 = vst [vmem:[#allocation5 + $0x90] sm:$0xff] %v2661
      %2682 = vst [vmem:[#allocation5 + $0x98] sm:$0xff] %v2662
      %v2683 = vld [vmem:[#allocation3] sm:$0xff]
      %v2684 = vld [vmem:[#allocation3 + $0x8] sm:$0xff]
      %v2685 = vld [vmem:[#allocation3 + $0x10] sm:$0xff]
      %v2686 = vld [vmem:[#allocation3 + $0x18] sm:$0xff]
      %v2687 = vld [vmem:[#allocation3 + $0x20] sm:$0xff]
      %v2688 = vld [vmem:[#allocation3 + $0x28] sm:$0xff]
      %v2689 = vld [vmem:[#allocation3 + $0x30] sm:$0xff]
      %v2690 = vld [vmem:[#allocation3 + $0x38] sm:$0xff]
      %v2691 = vld [vmem:[#allocation3 + $0x40] sm:$0xff]
      %v2692 = vld [vmem:[#allocation3 + $0x48] sm:$0xff]
      %v2693 = vld [vmem:[#allocation3 + $0x50] sm:$0xff]
      %v2694 = vld [vmem:[#allocation3 + $0x58] sm:$0xff]
      %v2695 = vld [vmem:[#allocation3 + $0x60] sm:$0xff]
      %v2696 = vld [vmem:[#allocation3 + $0x68] sm:$0xff]
      %v2697 = vld [vmem:[#allocation3 + $0x70] sm:$0xff]
      %v2698 = vld [vmem:[#allocation3 + $0x78] sm:$0xff]
      %v2699 = vld [vmem:[#allocation3 + $0x80] sm:$0xff]
      %v2700 = vld [vmem:[#allocation3 + $0x88] sm:$0xff]
      %v2701 = vld [vmem:[#allocation3 + $0x90] sm:$0xff]
      %v2702 = vld [vmem:[#allocation3 + $0x98] sm:$0xff]
      %v2703 = vld [vmem:[#allocation3 + $0xa0] sm:$0xff]
      %v2704 = vld [vmem:[#allocation3 + $0xa8] sm:$0xff]
      %v2705 = vpack.c.bf16 %v2694, %v2683
      %v2706 = vpack.c.bf16 %v2695, %v2684
      %v2707 = vpack.c.bf16 %v2696, %v2685
      %v2708 = vpack.c.bf16 %v2697, %v2686
      %v2709 = vpack.c.bf16 %v2698, %v2687
      %v2710 = vpack.c.bf16 %v2699, %v2688
      %v2711 = vpack.c.bf16 %v2700, %v2689
      %v2712 = vpack.c.bf16 %v2701, %v2690
      %v2713 = vpack.c.bf16 %v2702, %v2691
      %v2714 = vpack.c.bf16 %v2703, %v2692
      %v2715 = vpack.c.bf16 %v2704, %v2693
      %2727 = vrot.lane.b32.xlu0 %v2705, 126
      %v2728 = vpop.permute.xlu0 %2727
      %2729 = vrot.lane.b32.xlu0 %v2706, 126
      %v2730 = vpop.permute.xlu0 %2729
      %2731 = vrot.lane.b32.xlu0 %v2707, 126
      %v2732 = vpop.permute.xlu0 %2731
      %2733 = vrot.lane.b32.xlu0 %v2708, 126
      %v2734 = vpop.permute.xlu0 %2733
      %2735 = vrot.lane.b32.xlu0 %v2709, 126
      %v2736 = vpop.permute.xlu0 %2735
      %2737 = vrot.lane.b32.xlu0 %v2710, 126
      %v2738 = vpop.permute.xlu0 %2737
      %2739 = vrot.lane.b32.xlu0 %v2711, 126
      %v2740 = vpop.permute.xlu0 %2739
      %2741 = vrot.lane.b32.xlu0 %v2712, 126
      %v2742 = vpop.permute.xlu0 %2741
      %2743 = vrot.lane.b32.xlu0 %v2713, 126
      %v2744 = vpop.permute.xlu0 %2743
      %2745 = vrot.lane.b32.xlu0 %v2714, 126
      %v2746 = vpop.permute.xlu0 %2745
      %2747 = vrot.lane.b32.xlu0 %v2715, 126
      %v2748 = vpop.permute.xlu0 %2747
      %v2749 = vsel %vm381, %v2728, %v2730
      %v2750 = vsel %vm381, %v2730, %v2732
      %v2751 = vsel %vm381, %v2732, %v2734
      %v2752 = vsel %vm381, %v2734, %v2736
      %v2753 = vsel %vm381, %v2736, %v2738
      %v2754 = vsel %vm381, %v2738, %v2740
      %v2755 = vsel %vm381, %v2740, %v2742
      %v2756 = vsel %vm381, %v2742, %v2744
      %v2757 = vsel %vm381, %v2744, %v2746
      %v2758 = vsel %vm381, %v2746, %v2748
      %2769 = vst [vmem:[#allocation5 + $0xa0] sm:$0xff] %v2749
      %2770 = vst [vmem:[#allocation5 + $0xa8] sm:$0xff] %v2750
      %2771 = vst [vmem:[#allocation5 + $0xb0] sm:$0xff] %v2751
      %2772 = vst [vmem:[#allocation5 + $0xb8] sm:$0xff] %v2752
      %2773 = vst [vmem:[#allocation5 + $0xc0] sm:$0xff] %v2753
      %2774 = vst [vmem:[#allocation5 + $0xc8] sm:$0xff] %v2754
      %2775 = vst [vmem:[#allocation5 + $0xd0] sm:$0xff] %v2755
      %2776 = vst [vmem:[#allocation5 + $0xd8] sm:$0xff] %v2756
      %2777 = vst [vmem:[#allocation5 + $0xe0] sm:$0xff] %v2757
      %2778 = vst [vmem:[#allocation5 + $0xe8] sm:$0xff] %v2758
      %v2779 = vld [vmem:[#allocation3] sm:$0xff]
      %v2780 = vld [vmem:[#allocation3 + $0x8] sm:$0xff]
      %v2781 = vld [vmem:[#allocation3 + $0x10] sm:$0xff]
      %v2782 = vld [vmem:[#allocation3 + $0x18] sm:$0xff]
      %v2783 = vld [vmem:[#allocation3 + $0x20] sm:$0xff]
      %v2784 = vld [vmem:[#allocation3 + $0x28] sm:$0xff]
      %v2785 = vld [vmem:[#allocation3 + $0x30] sm:$0xff]
      %v2786 = vld [vmem:[#allocation3 + $0x38] sm:$0xff]
      %v2787 = vld [vmem:[#allocation3 + $0x40] sm:$0xff]
      %v2788 = vld [vmem:[#allocation3 + $0x48] sm:$0xff]
      %v2789 = vld [vmem:[#allocation3 + $0x50] sm:$0xff]
      %v2790 = vld [vmem:[#allocation3 + $0x58] sm:$0xff]
      %v2791 = vld [vmem:[#allocation3 + $0x60] sm:$0xff]
      %v2792 = vld [vmem:[#allocation3 + $0x68] sm:$0xff]
      %v2793 = vld [vmem:[#allocation3 + $0x70] sm:$0xff]
      %v2794 = vld [vmem:[#allocation3 + $0x78] sm:$0xff]
      %v2795 = vld [vmem:[#allocation3 + $0x80] sm:$0xff]
      %v2796 = vld [vmem:[#allocation3 + $0x88] sm:$0xff]
      %v2797 = vld [vmem:[#allocation3 + $0x90] sm:$0xff]
      %v2798 = vld [vmem:[#allocation3 + $0x98] sm:$0xff]
      %v2799 = vld [vmem:[#allocation3 + $0xa0] sm:$0xff]
      %v2800 = vld [vmem:[#allocation3 + $0xa8] sm:$0xff]
      %v2801 = vpack.c.bf16 %v2790, %v2779
      %v2802 = vpack.c.bf16 %v2791, %v2780
      %v2803 = vpack.c.bf16 %v2792, %v2781
      %v2804 = vpack.c.bf16 %v2793, %v2782
      %v2805 = vpack.c.bf16 %v2794, %v2783
      %v2806 = vpack.c.bf16 %v2795, %v2784
      %v2807 = vpack.c.bf16 %v2796, %v2785
      %v2808 = vpack.c.bf16 %v2797, %v2786
      %v2809 = vpack.c.bf16 %v2798, %v2787
      %v2810 = vpack.c.bf16 %v2799, %v2788
      %v2811 = vpack.c.bf16 %v2800, %v2789
      %2823 = vrot.lane.b32.xlu0 %v2801, 104
      %v2824 = vpop.permute.xlu0 %2823
      %2825 = vrot.lane.b32.xlu0 %v2802, 104
      %v2826 = vpop.permute.xlu0 %2825
      %2827 = vrot.lane.b32.xlu0 %v2803, 104
      %v2828 = vpop.permute.xlu0 %2827
      %2829 = vrot.lane.b32.xlu0 %v2804, 104
      %v2830 = vpop.permute.xlu0 %2829
      %2831 = vrot.lane.b32.xlu0 %v2805, 104
      %v2832 = vpop.permute.xlu0 %2831
      %2833 = vrot.lane.b32.xlu0 %v2806, 104
      %v2834 = vpop.permute.xlu0 %2833
      %2835 = vrot.lane.b32.xlu0 %v2807, 104
      %v2836 = vpop.permute.xlu0 %2835
      %2837 = vrot.lane.b32.xlu0 %v2808, 104
      %v2838 = vpop.permute.xlu0 %2837
      %2839 = vrot.lane.b32.xlu0 %v2809, 104
      %v2840 = vpop.permute.xlu0 %2839
      %2841 = vrot.lane.b32.xlu0 %v2810, 104
      %v2842 = vpop.permute.xlu0 %2841
      %2843 = vrot.lane.b32.xlu0 %v2811, 104
      %v2844 = vpop.permute.xlu0 %2843
      %v2845 = vsel %vm478, %v2824, %v2826
      %v2846 = vsel %vm478, %v2826, %v2828
      %v2847 = vsel %vm478, %v2828, %v2830
      %v2848 = vsel %vm478, %v2830, %v2832
      %v2849 = vsel %vm478, %v2832, %v2834
      %v2850 = vsel %vm478, %v2834, %v2836
      %v2851 = vsel %vm478, %v2836, %v2838
      %v2852 = vsel %vm478, %v2838, %v2840
      %v2853 = vsel %vm478, %v2840, %v2842
      %v2854 = vsel %vm478, %v2842, %v2844
      %2865 = vst [vmem:[#allocation5 + $0xf0] sm:$0xff] %v2845
      %2866 = vst [vmem:[#allocation5 + $0xf8] sm:$0xff] %v2846
      %2867 = vst [vmem:[#allocation5 + $0x100] sm:$0xff] %v2847
      %2868 = vst [vmem:[#allocation5 + $0x108] sm:$0xff] %v2848
      %2869 = vst [vmem:[#allocation5 + $0x110] sm:$0xff] %v2849
      %2870 = vst [vmem:[#allocation5 + $0x118] sm:$0xff] %v2850
      %2871 = vst [vmem:[#allocation5 + $0x120] sm:$0xff] %v2851
      %2872 = vst [vmem:[#allocation5 + $0x128] sm:$0xff] %v2852
      %2873 = vst [vmem:[#allocation5 + $0x130] sm:$0xff] %v2853
      %2874 = vst [vmem:[#allocation5 + $0x138] sm:$0xff] %v2854
      %v2875 = vld [vmem:[#allocation3] sm:$0xff]
      %v2876 = vld [vmem:[#allocation3 + $0x8] sm:$0xff]
      %v2877 = vld [vmem:[#allocation3 + $0x10] sm:$0xff]
      %v2878 = vld [vmem:[#allocation3 + $0x18] sm:$0xff]
      %v2879 = vld [vmem:[#allocation3 + $0x20] sm:$0xff]
      %v2880 = vld [vmem:[#allocation3 + $0x28] sm:$0xff]
      %v2881 = vld [vmem:[#allocation3 + $0x30] sm:$0xff]
      %v2882 = vld [vmem:[#allocation3 + $0x38] sm:$0xff]
      %v2883 = vld [vmem:[#allocation3 + $0x40] sm:$0xff]
      %v2884 = vld [vmem:[#allocation3 + $0x48] sm:$0xff]
      %v2885 = vld [vmem:[#allocation3 + $0x50] sm:$0xff]
      %v2886 = vld [vmem:[#allocation3 + $0x58] sm:$0xff]
      %v2887 = vld [vmem:[#allocation3 + $0x60] sm:$0xff]
      %v2888 = vld [vmem:[#allocation3 + $0x68] sm:$0xff]
      %v2889 = vld [vmem:[#allocation3 + $0x70] sm:$0xff]
      %v2890 = vld [vmem:[#allocation3 + $0x78] sm:$0xff]
      %v2891 = vld [vmem:[#allocation3 + $0x80] sm:$0xff]
      %v2892 = vld [vmem:[#allocation3 + $0x88] sm:$0xff]
      %v2893 = vld [vmem:[#allocation3 + $0x90] sm:$0xff]
      %v2894 = vld [vmem:[#allocation3 + $0x98] sm:$0xff]
      %v2895 = vld [vmem:[#allocation3 + $0xa0] sm:$0xff]
      %v2896 = vld [vmem:[#allocation3 + $0xa8] sm:$0xff]
      %v2897 = vpack.c.bf16 %v2886, %v2875
      %v2898 = vpack.c.bf16 %v2887, %v2876
      %v2899 = vpack.c.bf16 %v2888, %v2877
      %v2900 = vpack.c.bf16 %v2889, %v2878
      %v2901 = vpack.c.bf16 %v2890, %v2879
      %v2902 = vpack.c.bf16 %v2891, %v2880
      %v2903 = vpack.c.bf16 %v2892, %v2881
      %v2904 = vpack.c.bf16 %v2893, %v2882
      %v2905 = vpack.c.bf16 %v2894, %v2883
      %v2906 = vpack.c.bf16 %v2895, %v2884
      %v2907 = vpack.c.bf16 %v2896, %v2885
      %2919 = vrot.lane.b32.xlu0 %v2897, 103
      %v2920 = vpop.permute.xlu0 %2919
      %2921 = vrot.lane.b32.xlu0 %v2898, 103
      %v2922 = vpop.permute.xlu0 %2921
      %2923 = vrot.lane.b32.xlu0 %v2899, 103
      %v2924 = vpop.permute.xlu0 %2923
      %2925 = vrot.lane.b32.xlu0 %v2900, 103
      %v2926 = vpop.permute.xlu0 %2925
      %2927 = vrot.lane.b32.xlu0 %v2901, 103
      %v2928 = vpop.permute.xlu0 %2927
      %2929 = vrot.lane.b32.xlu0 %v2902, 103
      %v2930 = vpop.permute.xlu0 %2929
      %2931 = vrot.lane.b32.xlu0 %v2903, 103
      %v2932 = vpop.permute.xlu0 %2931
      %2933 = vrot.lane.b32.xlu0 %v2904, 103
      %v2934 = vpop.permute.xlu0 %2933
      %2935 = vrot.lane.b32.xlu0 %v2905, 103
      %v2936 = vpop.permute.xlu0 %2935
      %2937 = vrot.lane.b32.xlu0 %v2906, 103
      %v2938 = vpop.permute.xlu0 %2937
      %2939 = vrot.lane.b32.xlu0 %v2907, 103
      %v2940 = vpop.permute.xlu0 %2939
      %v2941 = vsel %vm575, %v2920, %v2922
      %v2942 = vsel %vm575, %v2922, %v2924
      %v2943 = vsel %vm575, %v2924, %v2926
      %v2944 = vsel %vm575, %v2926, %v2928
      %v2945 = vsel %vm575, %v2928, %v2930
      %v2946 = vsel %vm575, %v2930, %v2932
      %v2947 = vsel %vm575, %v2932, %v2934
      %v2948 = vsel %vm575, %v2934, %v2936
      %v2949 = vsel %vm575, %v2936, %v2938
      %v2950 = vsel %vm575, %v2938, %v2940
      %2961 = vst [vmem:[#allocation5 + $0x140] sm:$0xff] %v2941
      %2962 = vst [vmem:[#allocation5 + $0x148] sm:$0xff] %v2942
      %2963 = vst [vmem:[#allocation5 + $0x150] sm:$0xff] %v2943
      %2964 = vst [vmem:[#allocation5 + $0x158] sm:$0xff] %v2944
      %2965 = vst [vmem:[#allocation5 + $0x160] sm:$0xff] %v2945
      %2966 = vst [vmem:[#allocation5 + $0x168] sm:$0xff] %v2946
      %2967 = vst [vmem:[#allocation5 + $0x170] sm:$0xff] %v2947
      %2968 = vst [vmem:[#allocation5 + $0x178] sm:$0xff] %v2948
      %2969 = vst [vmem:[#allocation5 + $0x180] sm:$0xff] %v2949
      %2970 = vst [vmem:[#allocation5 + $0x188] sm:$0xff] %v2950
      %v2971 = vld [vmem:[#allocation3] sm:$0xff]
      %v2972 = vld [vmem:[#allocation3 + $0x8] sm:$0xff]
      %v2973 = vld [vmem:[#allocation3 + $0x10] sm:$0xff]
      %v2974 = vld [vmem:[#allocation3 + $0x18] sm:$0xff]
      %v2975 = vld [vmem:[#allocation3 + $0x20] sm:$0xff]
      %v2976 = vld [vmem:[#allocation3 + $0x28] sm:$0xff]
      %v2977 = vld [vmem:[#allocation3 + $0x30] sm:$0xff]
      %v2978 = vld [vmem:[#allocation3 + $0x38] sm:$0xff]
      %v2979 = vld [vmem:[#allocation3 + $0x40] sm:$0xff]
      %v2980 = vld [vmem:[#allocation3 + $0x48] sm:$0xff]
      %v2981 = vld [vmem:[#allocation3 + $0x50] sm:$0xff]
      %v2982 = vld [vmem:[#allocation3 + $0x58] sm:$0xff]
      %v2983 = vld [vmem:[#allocation3 + $0x60] sm:$0xff]
      %v2984 = vld [vmem:[#allocation3 + $0x68] sm:$0xff]
      %v2985 = vld [vmem:[#allocation3 + $0x70] sm:$0xff]
      %v2986 = vld [vmem:[#allocation3 + $0x78] sm:$0xff]
      %v2987 = vld [vmem:[#allocation3 + $0x80] sm:$0xff]
      %v2988 = vld [vmem:[#allocation3 + $0x88] sm:$0xff]
      %v2989 = vld [vmem:[#allocation3 + $0x90] sm:$0xff]
      %v2990 = vld [vmem:[#allocation3 + $0x98] sm:$0xff]
      %v2991 = vld [vmem:[#allocation3 + $0xa0] sm:$0xff]
      %v2992 = vld [vmem:[#allocation3 + $0xa8] sm:$0xff]
      %v2993 = vpack.c.bf16 %v2982, %v2971
      %v2994 = vpack.c.bf16 %v2983, %v2972
      %v2995 = vpack.c.bf16 %v2984, %v2973
      %v2996 = vpack.c.bf16 %v2985, %v2974
      %v2997 = vpack.c.bf16 %v2986, %v2975
      %v2998 = vpack.c.bf16 %v2987, %v2976
      %v2999 = vpack.c.bf16 %v2988, %v2977
      %v3000 = vpack.c.bf16 %v2989, %v2978
      %v3001 = vpack.c.bf16 %v2990, %v2979
      %v3002 = vpack.c.bf16 %v2991, %v2980
      %v3003 = vpack.c.bf16 %v2992, %v2981
      %3015 = vrot.lane.b32.xlu0 %v2993, 102
      %v3016 = vpop.permute.xlu0 %3015
      %3017 = vrot.lane.b32.xlu0 %v2994, 102
      %v3018 = vpop.permute.xlu0 %3017
      %3019 = vrot.lane.b32.xlu0 %v2995, 102
      %v3020 = vpop.permute.xlu0 %3019
      %3021 = vrot.lane.b32.xlu0 %v2996, 102
      %v3022 = vpop.permute.xlu0 %3021
      %3023 = vrot.lane.b32.xlu0 %v2997, 102
      %v3024 = vpop.permute.xlu0 %3023
      %3025 = vrot.lane.b32.xlu0 %v2998, 102
      %v3026 = vpop.permute.xlu0 %3025
      %3027 = vrot.lane.b32.xlu0 %v2999, 102
      %v3028 = vpop.permute.xlu0 %3027
      %3029 = vrot.lane.b32.xlu0 %v3000, 102
      %v3030 = vpop.permute.xlu0 %3029
      %3031 = vrot.lane.b32.xlu0 %v3001, 102
      %v3032 = vpop.permute.xlu0 %3031
      %3033 = vrot.lane.b32.xlu0 %v3002, 102
      %v3034 = vpop.permute.xlu0 %3033
      %3035 = vrot.lane.b32.xlu0 %v3003, 102
      %v3036 = vpop.permute.xlu0 %3035
      %v3037 = vsel %vm672, %v3016, %v3018
      %v3038 = vsel %vm672, %v3018, %v3020
      %v3039 = vsel %vm672, %v3020, %v3022
      %v3040 = vsel %vm672, %v3022, %v3024
      %v3041 = vsel %vm672, %v3024, %v3026
      %v3042 = vsel %vm672, %v3026, %v3028
      %v3043 = vsel %vm672, %v3028, %v3030
      %v3044 = vsel %vm672, %v3030, %v3032
      %v3045 = vsel %vm672, %v3032, %v3034
      %v3046 = vsel %vm672, %v3034, %v3036
      %3057 = vst [vmem:[#allocation5 + $0x190] sm:$0xff] %v3037
      %3058 = vst [vmem:[#allocation5 + $0x198] sm:$0xff] %v3038
      %3059 = vst [vmem:[#allocation5 + $0x1a0] sm:$0xff] %v3039
      %3060 = vst [vmem:[#allocation5 + $0x1a8] sm:$0xff] %v3040
      %3061 = vst [vmem:[#allocation5 + $0x1b0] sm:$0xff] %v3041
      %3062 = vst [vmem:[#allocation5 + $0x1b8] sm:$0xff] %v3042
      %3063 = vst [vmem:[#allocation5 + $0x1c0] sm:$0xff] %v3043
      %3064 = vst [vmem:[#allocation5 + $0x1c8] sm:$0xff] %v3044
      %3065 = vst [vmem:[#allocation5 + $0x1d0] sm:$0xff] %v3045
      %3066 = vst [vmem:[#allocation5 + $0x1d8] sm:$0xff] %v3046
      %v3067 = vld [vmem:[#allocation3] sm:$0xff]
      %v3068 = vld [vmem:[#allocation3 + $0x8] sm:$0xff]
      %v3069 = vld [vmem:[#allocation3 + $0x10] sm:$0xff]
      %v3070 = vld [vmem:[#allocation3 + $0x18] sm:$0xff]
      %v3071 = vld [vmem:[#allocation3 + $0x20] sm:$0xff]
      %v3072 = vld [vmem:[#allocation3 + $0x28] sm:$0xff]
      %v3073 = vld [vmem:[#allocation3 + $0x30] sm:$0xff]
      %v3074 = vld [vmem:[#allocation3 + $0x38] sm:$0xff]
      %v3075 = vld [vmem:[#allocation3 + $0x40] sm:$0xff]
      %v3076 = vld [vmem:[#allocation3 + $0x48] sm:$0xff]
      %v3077 = vld [vmem:[#allocation3 + $0x50] sm:$0xff]
      %v3078 = vld [vmem:[#allocation3 + $0x58] sm:$0xff]
      %v3079 = vld [vmem:[#allocation3 + $0x60] sm:$0xff]
      %v3080 = vld [vmem:[#allocation3 + $0x68] sm:$0xff]
      %v3081 = vld [vmem:[#allocation3 + $0x70] sm:$0xff]
      %v3082 = vld [vmem:[#allocation3 + $0x78] sm:$0xff]
      %v3083 = vld [vmem:[#allocation3 + $0x80] sm:$0xff]
      %v3084 = vld [vmem:[#allocation3 + $0x88] sm:$0xff]
      %v3085 = vld [vmem:[#allocation3 + $0x90] sm:$0xff]
      %v3086 = vld [vmem:[#allocation3 + $0x98] sm:$0xff]
      %v3087 = vld [vmem:[#allocation3 + $0xa0] sm:$0xff]
      %v3088 = vld [vmem:[#allocation3 + $0xa8] sm:$0xff]
      %v3089 = vpack.c.bf16 %v3078, %v3067
      %v3090 = vpack.c.bf16 %v3079, %v3068
      %v3091 = vpack.c.bf16 %v3080, %v3069
      %v3092 = vpack.c.bf16 %v3081, %v3070
      %v3093 = vpack.c.bf16 %v3082, %v3071
      %v3094 = vpack.c.bf16 %v3083, %v3072
      %v3095 = vpack.c.bf16 %v3084, %v3073
      %v3096 = vpack.c.bf16 %v3085, %v3074
      %v3097 = vpack.c.bf16 %v3086, %v3075
      %v3098 = vpack.c.bf16 %v3087, %v3076
      %v3099 = vpack.c.bf16 %v3088, %v3077
      %3111 = vrot.lane.b32.xlu0 %v3089, 80
      %v3112 = vpop.permute.xlu0 %3111
      %3113 = vrot.lane.b32.xlu0 %v3090, 80
      %v3114 = vpop.permute.xlu0 %3113
      %3115 = vrot.lane.b32.xlu0 %v3091, 80
      %v3116 = vpop.permute.xlu0 %3115
      %3117 = vrot.lane.b32.xlu0 %v3092, 80
      %v3118 = vpop.permute.xlu0 %3117
      %3119 = vrot.lane.b32.xlu0 %v3093, 80
      %v3120 = vpop.permute.xlu0 %3119
      %3121 = vrot.lane.b32.xlu0 %v3094, 80
      %v3122 = vpop.permute.xlu0 %3121
      %3123 = vrot.lane.b32.xlu0 %v3095, 80
      %v3124 = vpop.permute.xlu0 %3123
      %3125 = vrot.lane.b32.xlu0 %v3096, 80
      %v3126 = vpop.permute.xlu0 %3125
      %3127 = vrot.lane.b32.xlu0 %v3097, 80
      %v3128 = vpop.permute.xlu0 %3127
      %3129 = vrot.lane.b32.xlu0 %v3098, 80
      %v3130 = vpop.permute.xlu0 %3129
      %3131 = vrot.lane.b32.xlu0 %v3099, 80
      %v3132 = vpop.permute.xlu0 %3131
      %v3133 = vsel %vm769, %v3112, %v3114
      %v3134 = vsel %vm769, %v3114, %v3116
      %v3135 = vsel %vm769, %v3116, %v3118
      %v3136 = vsel %vm769, %v3118, %v3120
      %v3137 = vsel %vm769, %v3120, %v3122
      %v3138 = vsel %vm769, %v3122, %v3124
      %v3139 = vsel %vm769, %v3124, %v3126
      %v3140 = vsel %vm769, %v3126, %v3128
      %v3141 = vsel %vm769, %v3128, %v3130
      %v3142 = vsel %vm769, %v3130, %v3132
      %3153 = vst [vmem:[#allocation5 + $0x1e0] sm:$0xff] %v3133
      %3154 = vst [vmem:[#allocation5 + $0x1e8] sm:$0xff] %v3134
      %3155 = vst [vmem:[#allocation5 + $0x1f0] sm:$0xff] %v3135
      %3156 = vst [vmem:[#allocation5 + $0x1f8] sm:$0xff] %v3136
      %3157 = vst [vmem:[#allocation5 + $0x200] sm:$0xff] %v3137
      %3158 = vst [vmem:[#allocation5 + $0x208] sm:$0xff] %v3138
      %3159 = vst [vmem:[#allocation5 + $0x210] sm:$0xff] %v3139
      %3160 = vst [vmem:[#allocation5 + $0x218] sm:$0xff] %v3140
      %3161 = vst [vmem:[#allocation5 + $0x220] sm:$0xff] %v3141
      %3162 = vst [vmem:[#allocation5 + $0x228] sm:$0xff] %v3142
      %v3163 = vld [vmem:[#allocation3] sm:$0xff]
      %v3164 = vld [vmem:[#allocation3 + $0x8] sm:$0xff]
      %v3165 = vld [vmem:[#allocation3 + $0x10] sm:$0xff]
      %v3166 = vld [vmem:[#allocation3 + $0x18] sm:$0xff]
      %v3167 = vld [vmem:[#allocation3 + $0x20] sm:$0xff]
      %v3168 = vld [vmem:[#allocation3 + $0x28] sm:$0xff]
      %v3169 = vld [vmem:[#allocation3 + $0x30] sm:$0xff]
      %v3170 = vld [vmem:[#allocation3 + $0x38] sm:$0xff]
      %v3171 = vld [vmem:[#allocation3 + $0x40] sm:$0xff]
      %v3172 = vld [vmem:[#allocation3 + $0x48] sm:$0xff]
      %v3173 = vld [vmem:[#allocation3 + $0x50] sm:$0xff]
      %v3174 = vld [vmem:[#allocation3 + $0x58] sm:$0xff]
      %v3175 = vld [vmem:[#allocation3 + $0x60] sm:$0xff]
      %v3176 = vld [vmem:[#allocation3 + $0x68] sm:$0xff]
      %v3177 = vld [vmem:[#allocation3 + $0x70] sm:$0xff]
      %v3178 = vld [vmem:[#allocation3 + $0x78] sm:$0xff]
      %v3179 = vld [vmem:[#allocation3 + $0x80] sm:$0xff]
      %v3180 = vld [vmem:[#allocation3 + $0x88] sm:$0xff]
      %v3181 = vld [vmem:[#allocation3 + $0x90] sm:$0xff]
      %v3182 = vld [vmem:[#allocation3 + $0x98] sm:$0xff]
      %v3183 = vld [vmem:[#allocation3 + $0xa0] sm:$0xff]
      %v3184 = vld [vmem:[#allocation3 + $0xa8] sm:$0xff]
      %v3185 = vpack.c.bf16 %v3174, %v3163
      %v3186 = vpack.c.bf16 %v3175, %v3164
      %v3187 = vpack.c.bf16 %v3176, %v3165
      %v3188 = vpack.c.bf16 %v3177, %v3166
      %v3189 = vpack.c.bf16 %v3178, %v3167
      %v3190 = vpack.c.bf16 %v3179, %v3168
      %v3191 = vpack.c.bf16 %v3180, %v3169
      %v3192 = vpack.c.bf16 %v3181, %v3170
      %v3193 = vpack.c.bf16 %v3182, %v3171
      %v3194 = vpack.c.bf16 %v3183, %v3172
      %v3195 = vpack.c.bf16 %v3184, %v3173
      %3207 = vrot.lane.b32.xlu0 %v3185, 79
      %v3208 = vpop.permute.xlu0 %3207
      %3209 = vrot.lane.b32.xlu0 %v3186, 79
      %v3210 = vpop.permute.xlu0 %3209
      %3211 = vrot.lane.b32.xlu0 %v3187, 79
      %v3212 = vpop.permute.xlu0 %3211
      %3213 = vrot.lane.b32.xlu0 %v3188, 79
      %v3214 = vpop.permute.xlu0 %3213
      %3215 = vrot.lane.b32.xlu0 %v3189, 79
      %v3216 = vpop.permute.xlu0 %3215
      %3217 = vrot.lane.b32.xlu0 %v3190, 79
      %v3218 = vpop.permute.xlu0 %3217
      %3219 = vrot.lane.b32.xlu0 %v3191, 79
      %v3220 = vpop.permute.xlu0 %3219
      %3221 = vrot.lane.b32.xlu0 %v3192, 79
      %v3222 = vpop.permute.xlu0 %3221
      %3223 = vrot.lane.b32.xlu0 %v3193, 79
      %v3224 = vpop.permute.xlu0 %3223
      %3225 = vrot.lane.b32.xlu0 %v3194, 79
      %v3226 = vpop.permute.xlu0 %3225
      %3227 = vrot.lane.b32.xlu0 %v3195, 79
      %v3228 = vpop.permute.xlu0 %3227
      %v3229 = vsel %vm866, %v3208, %v3210
      %v3230 = vsel %vm866, %v3210, %v3212
      %v3231 = vsel %vm866, %v3212, %v3214
      %v3232 = vsel %vm866, %v3214, %v3216
      %v3233 = vsel %vm866, %v3216, %v3218
      %v3234 = vsel %vm866, %v3218, %v3220
      %v3235 = vsel %vm866, %v3220, %v3222
      %v3236 = vsel %vm866, %v3222, %v3224
      %v3237 = vsel %vm866, %v3224, %v3226
      %v3238 = vsel %vm866, %v3226, %v3228
      %3249 = vst [vmem:[#allocation5 + $0x230] sm:$0xff] %v3229
      %3250 = vst [vmem:[#allocation5 + $0x238] sm:$0xff] %v3230
      %3251 = vst [vmem:[#allocation5 + $0x240] sm:$0xff] %v3231
      %3252 = vst [vmem:[#allocation5 + $0x248] sm:$0xff] %v3232
      %3253 = vst [vmem:[#allocation5 + $0x250] sm:$0xff] %v3233
      %3254 = vst [vmem:[#allocation5 + $0x258] sm:$0xff] %v3234
      %3255 = vst [vmem:[#allocation5 + $0x260] sm:$0xff] %v3235
      %3256 = vst [vmem:[#allocation5 + $0x268] sm:$0xff] %v3236
      %3257 = vst [vmem:[#allocation5 + $0x270] sm:$0xff] %v3237
      %3258 = vst [vmem:[#allocation5 + $0x278] sm:$0xff] %v3238
      %v3259 = vld [vmem:[#allocation3] sm:$0xff]
      %v3260 = vld [vmem:[#allocation3 + $0x8] sm:$0xff]
      %v3261 = vld [vmem:[#allocation3 + $0x10] sm:$0xff]
      %v3262 = vld [vmem:[#allocation3 + $0x18] sm:$0xff]
      %v3263 = vld [vmem:[#allocation3 + $0x20] sm:$0xff]
      %v3264 = vld [vmem:[#allocation3 + $0x28] sm:$0xff]
      %v3265 = vld [vmem:[#allocation3 + $0x30] sm:$0xff]
      %v3266 = vld [vmem:[#allocation3 + $0x38] sm:$0xff]
      %v3267 = vld [vmem:[#allocation3 + $0x40] sm:$0xff]
      %v3268 = vld [vmem:[#allocation3 + $0x48] sm:$0xff]
      %v3269 = vld [vmem:[#allocation3 + $0x50] sm:$0xff]
      %v3270 = vld [vmem:[#allocation3 + $0x58] sm:$0xff]
      %v3271 = vld [vmem:[#allocation3 + $0x60] sm:$0xff]
      %v3272 = vld [vmem:[#allocation3 + $0x68] sm:$0xff]
      %v3273 = vld [vmem:[#allocation3 + $0x70] sm:$0xff]
      %v3274 = vld [vmem:[#allocation3 + $0x78] sm:$0xff]
      %v3275 = vld [vmem:[#allocation3 + $0x80] sm:$0xff]
      %v3276 = vld [vmem:[#allocation3 + $0x88] sm:$0xff]
      %v3277 = vld [vmem:[#allocation3 + $0x90] sm:$0xff]
      %v3278 = vld [vmem:[#allocation3 + $0x98] sm:$0xff]
      %v3279 = vld [vmem:[#allocation3 + $0xa0] sm:$0xff]
      %v3280 = vld [vmem:[#allocation3 + $0xa8] sm:$0xff]
      %v3281 = vpack.c.bf16 %v3270, %v3259
      %v3282 = vpack.c.bf16 %v3271, %v3260
      %v3283 = vpack.c.bf16 %v3272, %v3261
      %v3284 = vpack.c.bf16 %v3273, %v3262
      %v3285 = vpack.c.bf16 %v3274, %v3263
      %v3286 = vpack.c.bf16 %v3275, %v3264
      %v3287 = vpack.c.bf16 %v3276, %v3265
      %v3288 = vpack.c.bf16 %v3277, %v3266
      %v3289 = vpack.c.bf16 %v3278, %v3267
      %v3290 = vpack.c.bf16 %v3279, %v3268
      %v3291 = vpack.c.bf16 %v3280, %v3269
      %3303 = vrot.lane.b32.xlu0 %v3281, 78
      %v3304 = vpop.permute.xlu0 %3303
      %3305 = vrot.lane.b32.xlu0 %v3282, 78
      %v3306 = vpop.permute.xlu0 %3305
      %3307 = vrot.lane.b32.xlu0 %v3283, 78
      %v3308 = vpop.permute.xlu0 %3307
      %3309 = vrot.lane.b32.xlu0 %v3284, 78
      %v3310 = vpop.permute.xlu0 %3309
      %3311 = vrot.lane.b32.xlu0 %v3285, 78
      %v3312 = vpop.permute.xlu0 %3311
      %3313 = vrot.lane.b32.xlu0 %v3286, 78
      %v3314 = vpop.permute.xlu0 %3313
      %3315 = vrot.lane.b32.xlu0 %v3287, 78
      %v3316 = vpop.permute.xlu0 %3315
      %3317 = vrot.lane.b32.xlu0 %v3288, 78
      %v3318 = vpop.permute.xlu0 %3317
      %3319 = vrot.lane.b32.xlu0 %v3289, 78
      %v3320 = vpop.permute.xlu0 %3319
      %3321 = vrot.lane.b32.xlu0 %v3290, 78
      %v3322 = vpop.permute.xlu0 %3321
      %3323 = vrot.lane.b32.xlu0 %v3291, 78
      %v3324 = vpop.permute.xlu0 %3323
      %v3325 = vsel %vm963, %v3304, %v3306
      %v3326 = vsel %vm963, %v3306, %v3308
      %v3327 = vsel %vm963, %v3308, %v3310
      %v3328 = vsel %vm963, %v3310, %v3312
      %v3329 = vsel %vm963, %v3312, %v3314
      %v3330 = vsel %vm963, %v3314, %v3316
      %v3331 = vsel %vm963, %v3316, %v3318
      %v3332 = vsel %vm963, %v3318, %v3320
      %v3333 = vsel %vm963, %v3320, %v3322
      %v3334 = vsel %vm963, %v3322, %v3324
      %3345 = vst [vmem:[#allocation5 + $0x280] sm:$0xff] %v3325
      %3346 = vst [vmem:[#allocation5 + $0x288] sm:$0xff] %v3326
      %3347 = vst [vmem:[#allocation5 + $0x290] sm:$0xff] %v3327
      %3348 = vst [vmem:[#allocation5 + $0x298] sm:$0xff] %v3328
      %3349 = vst [vmem:[#allocation5 + $0x2a0] sm:$0xff] %v3329
      %3350 = vst [vmem:[#allocation5 + $0x2a8] sm:$0xff] %v3330
      %3351 = vst [vmem:[#allocation5 + $0x2b0] sm:$0xff] %v3331
      %3352 = vst [vmem:[#allocation5 + $0x2b8] sm:$0xff] %v3332
      %3353 = vst [vmem:[#allocation5 + $0x2c0] sm:$0xff] %v3333
      %3354 = vst [vmem:[#allocation5 + $0x2c8] sm:$0xff] %v3334
      %s3355 = scalar_lea.vmem %s1, 32
      %v3356 = vld [vmem:[%s3355] sm:$0xff]
      %v3357 = vld [vmem:[%s3355 + $0x8] sm:$0xff]
      %v3358 = vld [vmem:[#allocation5] sm:$0xff]
      %v3359 = vld [vmem:[#allocation5 + $0x8] sm:$0xff]
      %v3360 = vld [vmem:[#allocation5 + $0x10] sm:$0xff]
      %v3361 = vld [vmem:[#allocation5 + $0x18] sm:$0xff]
      %v3362 = vld [vmem:[#allocation5 + $0x20] sm:$0xff]
      %v3363 = vld [vmem:[#allocation5 + $0x28] sm:$0xff]
      %v3364 = vld [vmem:[#allocation5 + $0x30] sm:$0xff]
      %v3365 = vld [vmem:[#allocation5 + $0x38] sm:$0xff]
      %v3366 = vld [vmem:[#allocation5 + $0x40] sm:$0xff]
      %v3367 = vld [vmem:[#allocation5 + $0x48] sm:$0xff]
      %v3368 = vld [vmem:[#allocation5 + $0x50] sm:$0xff]
      %v3369 = vld [vmem:[#allocation5 + $0x58] sm:$0xff]
      %v3370 = vld [vmem:[#allocation5 + $0x60] sm:$0xff]
      %v3371 = vld [vmem:[#allocation5 + $0x68] sm:$0xff]
      %v3372 = vld [vmem:[#allocation5 + $0x70] sm:$0xff]
      %v3373 = vld [vmem:[#allocation5 + $0x78] sm:$0xff]
      %v3374 = vld [vmem:[#allocation5 + $0x80] sm:$0xff]
      %v3375 = vld [vmem:[#allocation5 + $0x88] sm:$0xff]
      %v3376 = vld [vmem:[#allocation5 + $0x90] sm:$0xff]
      %v3377 = vld [vmem:[#allocation5 + $0x98] sm:$0xff]
      %v3378 = vld [vmem:[#allocation5 + $0xa0] sm:$0xff]
      %v3379 = vld [vmem:[#allocation5 + $0xa8] sm:$0xff]
      %v3380 = vld [vmem:[#allocation5 + $0xb0] sm:$0xff]
      %v3381 = vld [vmem:[#allocation5 + $0xb8] sm:$0xff]
      %v3382 = vld [vmem:[#allocation5 + $0xc0] sm:$0xff]
      %v3383 = vld [vmem:[#allocation5 + $0xc8] sm:$0xff]
      %v3384 = vld [vmem:[#allocation5 + $0xd0] sm:$0xff]
      %v3385 = vld [vmem:[#allocation5 + $0xd8] sm:$0xff]
      %v3386 = vld [vmem:[#allocation5 + $0xe0] sm:$0xff]
      %v3387 = vld [vmem:[#allocation5 + $0xe8] sm:$0xff]
      %v3388 = vld [vmem:[#allocation5 + $0xf0] sm:$0xff]
      %v3389 = vld [vmem:[#allocation5 + $0xf8] sm:$0xff]
      %v3390 = vld [vmem:[#allocation5 + $0x100] sm:$0xff]
      %v3391 = vld [vmem:[#allocation5 + $0x108] sm:$0xff]
      %v3392 = vld [vmem:[#allocation5 + $0x110] sm:$0xff]
      %v3393 = vld [vmem:[#allocation5 + $0x118] sm:$0xff]
      %v3394 = vld [vmem:[#allocation5 + $0x120] sm:$0xff]
      %v3395 = vld [vmem:[#allocation5 + $0x128] sm:$0xff]
      %v3396 = vld [vmem:[#allocation5 + $0x130] sm:$0xff]
      %v3397 = vld [vmem:[#allocation5 + $0x138] sm:$0xff]
      %v3398 = vld [vmem:[#allocation5 + $0x140] sm:$0xff]
      %v3399 = vld [vmem:[#allocation5 + $0x148] sm:$0xff]
      %v3400 = vld [vmem:[#allocation5 + $0x150] sm:$0xff]
      %v3401 = vld [vmem:[#allocation5 + $0x158] sm:$0xff]
      %v3402 = vld [vmem:[#allocation5 + $0x160] sm:$0xff]
      %v3403 = vld [vmem:[#allocation5 + $0x168] sm:$0xff]
      %v3404 = vld [vmem:[#allocation5 + $0x170] sm:$0xff]
      %v3405 = vld [vmem:[#allocation5 + $0x178] sm:$0xff]
      %v3406 = vld [vmem:[#allocation5 + $0x180] sm:$0xff]
      %v3407 = vld [vmem:[#allocation5 + $0x188] sm:$0xff]
      %v3408 = vld [vmem:[#allocation5 + $0x190] sm:$0xff]
      %v3409 = vld [vmem:[#allocation5 + $0x198] sm:$0xff]
      %v3410 = vld [vmem:[#allocation5 + $0x1a0] sm:$0xff]
      %v3411 = vld [vmem:[#allocation5 + $0x1a8] sm:$0xff]
      %v3412 = vld [vmem:[#allocation5 + $0x1b0] sm:$0xff]
      %v3413 = vld [vmem:[#allocation5 + $0x1b8] sm:$0xff]
      %v3414 = vld [vmem:[#allocation5 + $0x1c0] sm:$0xff]
      %v3415 = vld [vmem:[#allocation5 + $0x1c8] sm:$0xff]
      %v3416 = vld [vmem:[#allocation5 + $0x1d0] sm:$0xff]
      %v3417 = vld [vmem:[#allocation5 + $0x1d8] sm:$0xff]
      %v3418 = vld [vmem:[#allocation5 + $0x1e0] sm:$0xff]
      %v3419 = vld [vmem:[#allocation5 + $0x1e8] sm:$0xff]
      %v3420 = vld [vmem:[#allocation5 + $0x1f0] sm:$0xff]
      %v3421 = vld [vmem:[#allocation5 + $0x1f8] sm:$0xff]
      %v3422 = vld [vmem:[#allocation5 + $0x200] sm:$0xff]
      %v3423 = vld [vmem:[#allocation5 + $0x208] sm:$0xff]
      %v3424 = vld [vmem:[#allocation5 + $0x210] sm:$0xff]
      %v3425 = vld [vmem:[#allocation5 + $0x218] sm:$0xff]
      %v3426 = vld [vmem:[#allocation5 + $0x220] sm:$0xff]
      %v3427 = vld [vmem:[#allocation5 + $0x228] sm:$0xff]
      %v3428 = vld [vmem:[#allocation5 + $0x230] sm:$0xff]
      %v3429 = vld [vmem:[#allocation5 + $0x238] sm:$0xff]
      %v3430 = vld [vmem:[#allocation5 + $0x240] sm:$0xff]
      %v3431 = vld [vmem:[#allocation5 + $0x248] sm:$0xff]
      %v3432 = vld [vmem:[#allocation5 + $0x250] sm:$0xff]
      %v3433 = vld [vmem:[#allocation5 + $0x258] sm:$0xff]
      %v3434 = vld [vmem:[#allocation5 + $0x260] sm:$0xff]
      %v3435 = vld [vmem:[#allocation5 + $0x268] sm:$0xff]
      %v3436 = vld [vmem:[#allocation5 + $0x270] sm:$0xff]
      %v3437 = vld [vmem:[#allocation5 + $0x278] sm:$0xff]
      %v3438 = vld [vmem:[#allocation5 + $0x280] sm:$0xff]
      %v3439 = vld [vmem:[#allocation5 + $0x288] sm:$0xff]
      %v3440 = vld [vmem:[#allocation5 + $0x290] sm:$0xff]
      %v3441 = vld [vmem:[#allocation5 + $0x298] sm:$0xff]
      %v3442 = vld [vmem:[#allocation5 + $0x2a0] sm:$0xff]
      %v3443 = vld [vmem:[#allocation5 + $0x2a8] sm:$0xff]
      %v3444 = vld [vmem:[#allocation5 + $0x2b0] sm:$0xff]
      %v3445 = vld [vmem:[#allocation5 + $0x2b8] sm:$0xff]
      %v3446 = vld [vmem:[#allocation5 + $0x2c0] sm:$0xff]
      %v3447 = vld [vmem:[#allocation5 + $0x2c8] sm:$0xff]
      %s3448 = scalar_lea.vmem %s2, 32
      %v3449 = vld [vmem:[%s3448] sm:$0xff]
      %v3450 = vld [vmem:[%s3448 + $0x8] sm:$0xff]
      %3452 = vset.pattern.permute.xlu0 0
      %3453 = vperm.xlu0 %3452, %v3449
      %v3454 = vpop.permute.xlu0 %3453
      %3457 = vset.pattern.permute.xlu0 0
      %3458 = vperm.xlu0 %3457, %v3450
      %v3459 = vpop.permute.xlu0 %3458
      %v3463 = vunpack.c.l.b16 %v3356
      %v3464 = vunpack.c.h.b16 %v3356
      %v3465 = vunpack.c.l.b16 %v3357
      %v3466 = vunpack.c.h.b16 %v3357
      %v3467 = vpack.c.b16 %v3465, %v3463
      %v3468 = vpack.c.b16 %v3466, %v3464
      %v3471 = vsel %vm1107, %v3468, 0
      %3473 = vmatprep.subr.bf16.mxu0 %v3359
      %3474 = vmatpush1.bf16.msra.mxu0 %v3358
      %3475 = vmatprep.subr.bf16.mxu0 %v3369
      %3476 = vmatpush1.bf16.msra.mxu0 %v3368
      %3477 = vmatprep.subr.bf16.mxu0 %v3379
      %3478 = vmatpush1.bf16.msra.mxu0 %v3378
      %3479 = vmatprep.subr.bf16.mxu0 %v3389
      %3480 = vmatpush1.bf16.msra.mxu0 %v3388
      %3481 = vmatprep.subr.bf16.mxu0 %v3399
      %3482 = vmatpush1.bf16.msra.mxu0 %v3398
      %3483 = vmatprep.subr.bf16.mxu0 %v3409
      %3484 = vmatpush1.bf16.msra.mxu0 %v3408
      %3485 = vmatprep.subr.bf16.mxu0 %v3419
      %3486 = vmatpush1.bf16.msra.mxu0 %v3418
      %3487 = vmatprep.subr.bf16.mxu0 %v3429
      %3488 = vmatpush1.bf16.msra.mxu0 %v3428
      %3489 = vmatprep.subr.bf16.mxu0 %v3439
      %3490 = vmatpush1.bf16.msra.mxu0 %v3438
      %3491 = vmatprep.subr.bf16.mxu0 0
      %3492 = vmatpush1.bf16.msra.mxu0 0
      %3493 = vmatprep.subr.bf16.mxu0 0
      %3494 = vmatpush1.bf16.msra.mxu0 0
      %3495 = vmatprep.subr.bf16.mxu0 0
      %3496 = vmatpush1.bf16.msra.mxu0 0
      %3497 = vmatprep.subr.bf16.mxu0 0
      %3498 = vmatpush1.bf16.msra.mxu0 0
      %3499 = vmatprep.subr.bf16.mxu0 0
      %3500 = vmatpush1.bf16.msra.mxu0 0
      %3501 = vmatprep.subr.bf16.mxu0 0
      %3502 = vmatpush1.bf16.msra.mxu0 0
      %3503 = vmatprep.subr.bf16.mxu0 0
      %3504 = vmatpush1.bf16.msra.mxu0 0
      %3505 = vmatprep.mubr.bf16.mxu0 %v3471
      %3506 = vmatmul.mubr.bf16.gmra.mrb[0].mxu0 %v3467
      %v3507 = vpop.f32.mrb[0].mxu0
      %v3508 = vadd.f32 %v3454, %v3507
      %v3509 = vpop.f32.mrb[0].mxu0
      %v3510 = vadd.f32 %v3454, %v3509
      %v3511 = vpop.f32.mrb[0].mxu0
      %v3512 = vadd.f32 %v3459, %v3511
      %v3513 = vpop.f32.mrb[0].mxu0
      %v3514 = vadd.f32 %v3459, %v3513
      %3515 = vdwg.mxu0
      %3516 = vmatprep.subr.bf16.mxu0 %v3361
      %3517 = vmatpush1.bf16.msra.mxu0 %v3360
      %3518 = vmatprep.subr.bf16.mxu0 %v3371
      %3519 = vmatpush1.bf16.msra.mxu0 %v3370
      %3520 = vmatprep.subr.bf16.mxu0 %v3381
      %3521 = vmatpush1.bf16.msra.mxu0 %v3380
      %3522 = vmatprep.subr.bf16.mxu0 %v3391
      %3523 = vmatpush1.bf16.msra.mxu0 %v3390
      %3524 = vmatprep.subr.bf16.mxu0 %v3401
      %3525 = vmatpush1.bf16.msra.mxu0 %v3400
      %3526 = vmatprep.subr.bf16.mxu0 %v3411
      %3527 = vmatpush1.bf16.msra.mxu0 %v3410
      %3528 = vmatprep.subr.bf16.mxu0 %v3421
      %3529 = vmatpush1.bf16.msra.mxu0 %v3420
      %3530 = vmatprep.subr.bf16.mxu0 %v3431
      %3531 = vmatpush1.bf16.msra.mxu0 %v3430
      %3532 = vmatprep.subr.bf16.mxu0 %v3441
      %3533 = vmatpush1.bf16.msra.mxu0 %v3440
      %3534 = vmatprep.subr.bf16.mxu0 0
      %3535 = vmatpush1.bf16.msra.mxu0 0
      %3536 = vmatprep.subr.bf16.mxu0 0
      %3537 = vmatpush1.bf16.msra.mxu0 0
      %3538 = vmatprep.subr.bf16.mxu0 0
      %3539 = vmatpush1.bf16.msra.mxu0 0
      %3540 = vmatprep.subr.bf16.mxu0 0
      %3541 = vmatpush1.bf16.msra.mxu0 0
      %3542 = vmatprep.subr.bf16.mxu0 0
      %3543 = vmatpush1.bf16.msra.mxu0 0
      %3544 = vmatprep.subr.bf16.mxu0 0
      %3545 = vmatpush1.bf16.msra.mxu0 0
      %3546 = vmatprep.subr.bf16.mxu0 0
      %3547 = vmatpush1.bf16.msra.mxu0 0
      %3548 = vmatprep.mubr.bf16.mxu0 %v3471
      %3549 = vmatmul.mubr.bf16.gmra.mrb[0].mxu0 %v3467
      %v3550 = vpop.f32.mrb[0].mxu0
      %v3551 = vadd.f32 %v3454, %v3550
      %v3552 = vpop.f32.mrb[0].mxu0
      %v3553 = vadd.f32 %v3454, %v3552
      %v3554 = vpop.f32.mrb[0].mxu0
      %v3555 = vadd.f32 %v3459, %v3554
      %v3556 = vpop.f32.mrb[0].mxu0
      %v3557 = vadd.f32 %v3459, %v3556
      %3558 = vdwg.mxu0
      %3559 = vmatprep.subr.bf16.mxu0 %v3363
      %3560 = vmatpush1.bf16.msra.mxu0 %v3362
      %3561 = vmatprep.subr.bf16.mxu0 %v3373
      %3562 = vmatpush1.bf16.msra.mxu0 %v3372
      %3563 = vmatprep.subr.bf16.mxu0 %v3383
      %3564 = vmatpush1.bf16.msra.mxu0 %v3382
      %3565 = vmatprep.subr.bf16.mxu0 %v3393
      %3566 = vmatpush1.bf16.msra.mxu0 %v3392
      %3567 = vmatprep.subr.bf16.mxu0 %v3403
      %3568 = vmatpush1.bf16.msra.mxu0 %v3402
      %3569 = vmatprep.subr.bf16.mxu0 %v3413
      %3570 = vmatpush1.bf16.msra.mxu0 %v3412
      %3571 = vmatprep.subr.bf16.mxu0 %v3423
      %3572 = vmatpush1.bf16.msra.mxu0 %v3422
      %3573 = vmatprep.subr.bf16.mxu0 %v3433
      %3574 = vmatpush1.bf16.msra.mxu0 %v3432
      %3575 = vmatprep.subr.bf16.mxu0 %v3443
      %3576 = vmatpush1.bf16.msra.mxu0 %v3442
      %3577 = vmatprep.subr.bf16.mxu0 0
      %3578 = vmatpush1.bf16.msra.mxu0 0
      %3579 = vmatprep.subr.bf16.mxu0 0
      %3580 = vmatpush1.bf16.msra.mxu0 0
      %3581 = vmatprep.subr.bf16.mxu0 0
      %3582 = vmatpush1.bf16.msra.mxu0 0
      %3583 = vmatprep.subr.bf16.mxu0 0
      %3584 = vmatpush1.bf16.msra.mxu0 0
      %3585 = vmatprep.subr.bf16.mxu0 0
      %3586 = vmatpush1.bf16.msra.mxu0 0
      %3587 = vmatprep.subr.bf16.mxu0 0
      %3588 = vmatpush1.bf16.msra.mxu0 0
      %3589 = vmatprep.subr.bf16.mxu0 0
      %3590 = vmatpush1.bf16.msra.mxu0 0
      %3591 = vmatprep.mubr.bf16.mxu0 %v3471
      %3592 = vmatmul.mubr.bf16.gmra.mrb[0].mxu0 %v3467
      %v3593 = vpop.f32.mrb[0].mxu0
      %v3594 = vadd.f32 %v3454, %v3593
      %v3595 = vpop.f32.mrb[0].mxu0
      %v3596 = vadd.f32 %v3454, %v3595
      %v3597 = vpop.f32.mrb[0].mxu0
      %v3598 = vadd.f32 %v3459, %v3597
      %v3599 = vpop.f32.mrb[0].mxu0
      %v3600 = vadd.f32 %v3459, %v3599
      %3601 = vdwg.mxu0
      %3602 = vmatprep.subr.bf16.mxu0 %v3365
      %3603 = vmatpush1.bf16.msra.mxu0 %v3364
      %3604 = vmatprep.subr.bf16.mxu0 %v3375
      %3605 = vmatpush1.bf16.msra.mxu0 %v3374
      %3606 = vmatprep.subr.bf16.mxu0 %v3385
      %3607 = vmatpush1.bf16.msra.mxu0 %v3384
      %3608 = vmatprep.subr.bf16.mxu0 %v3395
      %3609 = vmatpush1.bf16.msra.mxu0 %v3394
      %3610 = vmatprep.subr.bf16.mxu0 %v3405
      %3611 = vmatpush1.bf16.msra.mxu0 %v3404
      %3612 = vmatprep.subr.bf16.mxu0 %v3415
      %3613 = vmatpush1.bf16.msra.mxu0 %v3414
      %3614 = vmatprep.subr.bf16.mxu0 %v3425
      %3615 = vmatpush1.bf16.msra.mxu0 %v3424
      %3616 = vmatprep.subr.bf16.mxu0 %v3435
      %3617 = vmatpush1.bf16.msra.mxu0 %v3434
      %3618 = vmatprep.subr.bf16.mxu0 %v3445
      %3619 = vmatpush1.bf16.msra.mxu0 %v3444
      %3620 = vmatprep.subr.bf16.mxu0 0
      %3621 = vmatpush1.bf16.msra.mxu0 0
      %3622 = vmatprep.subr.bf16.mxu0 0
      %3623 = vmatpush1.bf16.msra.mxu0 0
      %3624 = vmatprep.subr.bf16.mxu0 0
      %3625 = vmatpush1.bf16.msra.mxu0 0
      %3626 = vmatprep.subr.bf16.mxu0 0
      %3627 = vmatpush1.bf16.msra.mxu0 0
      %3628 = vmatprep.subr.bf16.mxu0 0
      %3629 = vmatpush1.bf16.msra.mxu0 0
      %3630 = vmatprep.subr.bf16.mxu0 0
      %3631 = vmatpush1.bf16.msra.mxu0 0
      %3632 = vmatprep.subr.bf16.mxu0 0
      %3633 = vmatpush1.bf16.msra.mxu0 0
      %3634 = vmatprep.mubr.bf16.mxu0 %v3471
      %3635 = vmatmul.mubr.bf16.gmra.mrb[0].mxu0 %v3467
      %v3636 = vpop.f32.mrb[0].mxu0
      %v3637 = vadd.f32 %v3454, %v3636
      %v3638 = vpop.f32.mrb[0].mxu0
      %v3639 = vadd.f32 %v3454, %v3638
      %v3640 = vpop.f32.mrb[0].mxu0
      %v3641 = vadd.f32 %v3459, %v3640
      %v3642 = vpop.f32.mrb[0].mxu0
      %v3643 = vadd.f32 %v3459, %v3642
      %3644 = vdwg.mxu0
      %3645 = vmatprep.subr.bf16.mxu0 %v3367
      %3646 = vmatpush1.bf16.msra.mxu0 %v3366
      %3647 = vmatprep.subr.bf16.mxu0 %v3377
      %3648 = vmatpush1.bf16.msra.mxu0 %v3376
      %3649 = vmatprep.subr.bf16.mxu0 %v3387
      %3650 = vmatpush1.bf16.msra.mxu0 %v3386
      %3651 = vmatprep.subr.bf16.mxu0 %v3397
      %3652 = vmatpush1.bf16.msra.mxu0 %v3396
      %3653 = vmatprep.subr.bf16.mxu0 %v3407
      %3654 = vmatpush1.bf16.msra.mxu0 %v3406
      %3655 = vmatprep.subr.bf16.mxu0 %v3417
      %3656 = vmatpush1.bf16.msra.mxu0 %v3416
      %3657 = vmatprep.subr.bf16.mxu0 %v3427
      %3658 = vmatpush1.bf16.msra.mxu0 %v3426
      %3659 = vmatprep.subr.bf16.mxu0 %v3437
      %3660 = vmatpush1.bf16.msra.mxu0 %v3436
      %3661 = vmatprep.subr.bf16.mxu0 %v3447
      %3662 = vmatpush1.bf16.msra.mxu0 %v3446
      %3663 = vmatprep.subr.bf16.mxu0 0
      %3664 = vmatpush1.bf16.msra.mxu0 0
      %3665 = vmatprep.subr.bf16.mxu0 0
      %3666 = vmatpush1.bf16.msra.mxu0 0
      %3667 = vmatprep.subr.bf16.mxu0 0
      %3668 = vmatpush1.bf16.msra.mxu0 0
      %3669 = vmatprep.subr.bf16.mxu0 0
      %3670 = vmatpush1.bf16.msra.mxu0 0
      %3671 = vmatprep.subr.bf16.mxu0 0
      %3672 = vmatpush1.bf16.msra.mxu0 0
      %3673 = vmatprep.subr.bf16.mxu0 0
      %3674 = vmatpush1.bf16.msra.mxu0 0
      %3675 = vmatprep.subr.bf16.mxu0 0
      %3676 = vmatpush1.bf16.msra.mxu0 0
      %3677 = vmatprep.mubr.bf16.mxu0 %v3471
      %3678 = vmatmul.mubr.bf16.gmra.mrb[0].mxu0 %v3467
      %v3679 = vpop.f32.mrb[0].mxu0
      %v3680 = vadd.f32 %v3454, %v3679
      %v3681 = vpop.f32.mrb[0].mxu0
      %v3682 = vadd.f32 %v3454, %v3681
      %v3683 = vpop.f32.mrb[0].mxu0
      %v3684 = vadd.f32 %v3459, %v3683
      %v3685 = vpop.f32.mrb[0].mxu0
      %v3686 = vadd.f32 %v3459, %v3685
      %3687 = vdwg.mxu0
      %v3688 = vmax.f32 %v3508, 0.0
      %v3689 = vmax.f32 %v3510, 0.0
      %v3690 = vmax.f32 %v3551, 0.0
      %v3691 = vmax.f32 %v3553, 0.0
      %v3692 = vmax.f32 %v3594, 0.0
      %v3693 = vmax.f32 %v3596, 0.0
      %v3694 = vmax.f32 %v3637, 0.0
      %v3695 = vmax.f32 %v3639, 0.0
      %v3696 = vmax.f32 %v3680, 0.0
      %v3697 = vmax.f32 %v3682, 0.0
      %v3698 = vmax.f32 %v3512, 0.0
      %v3699 = vmax.f32 %v3514, 0.0
      %v3700 = vmax.f32 %v3555, 0.0
      %v3701 = vmax.f32 %v3557, 0.0
      %v3702 = vmax.f32 %v3598, 0.0
      %v3703 = vmax.f32 %v3600, 0.0
      %v3704 = vmax.f32 %v3641, 0.0
      %v3705 = vmax.f32 %v3643, 0.0
      %v3706 = vmax.f32 %v3684, 0.0
      %v3707 = vmax.f32 %v3686, 0.0
      %v3708 = vld [vmem:[#allocation2] sm:$0xff]
      %v3709 = vld [vmem:[#allocation2 + $0x8] sm:$0xff]
      %v3710 = vld [vmem:[#allocation2 + $0x10] sm:$0xff]
      %v3711 = vld [vmem:[#allocation2 + $0x18] sm:$0xff]
      %v3712 = vld [vmem:[#allocation2 + $0x20] sm:$0xff]
      %v3713 = vld [vmem:[#allocation2 + $0x28] sm:$0xff]
      %v3714 = vld [vmem:[#allocation2 + $0x30] sm:$0xff]
      %v3715 = vld [vmem:[#allocation2 + $0x38] sm:$0xff]
      %v3716 = vld [vmem:[#allocation2 + $0x40] sm:$0xff]
      %v3717 = vld [vmem:[#allocation2 + $0x48] sm:$0xff]
      %v3718 = vld [vmem:[#allocation2 + $0x50] sm:$0xff]
      %v3719 = vld [vmem:[#allocation2 + $0x58] sm:$0xff]
      %v3720 = vld [vmem:[#allocation2 + $0x60] sm:$0xff]
      %v3721 = vld [vmem:[#allocation2 + $0x68] sm:$0xff]
      %v3722 = vld [vmem:[#allocation2 + $0x70] sm:$0xff]
      %v3723 = vld [vmem:[#allocation2 + $0x78] sm:$0xff]
      %v3724 = vld [vmem:[#allocation2 + $0x80] sm:$0xff]
      %v3725 = vld [vmem:[#allocation2 + $0x88] sm:$0xff]
      %v3726 = vld [vmem:[#allocation2 + $0x90] sm:$0xff]
      %v3727 = vld [vmem:[#allocation2 + $0x98] sm:$0xff]
      %v3728 = vld [vmem:[#allocation2 + $0xa0] sm:$0xff]
      %v3729 = vld [vmem:[#allocation2 + $0xa8] sm:$0xff]
      %3752 = vrot.lane.b32.xlu0 %v3708, 78
      %v3753 = vpop.permute.xlu0 %3752
      %3754 = vrot.lane.b32.xlu0 %v3709, 78
      %v3755 = vpop.permute.xlu0 %3754
      %3756 = vrot.lane.b32.xlu0 %v3710, 78
      %v3757 = vpop.permute.xlu0 %3756
      %3758 = vrot.lane.b32.xlu0 %v3711, 78
      %v3759 = vpop.permute.xlu0 %3758
      %3760 = vrot.lane.b32.xlu0 %v3712, 78
      %v3761 = vpop.permute.xlu0 %3760
      %3762 = vrot.lane.b32.xlu0 %v3713, 78
      %v3763 = vpop.permute.xlu0 %3762
      %3764 = vrot.lane.b32.xlu0 %v3714, 78
      %v3765 = vpop.permute.xlu0 %3764
      %3766 = vrot.lane.b32.xlu0 %v3715, 78
      %v3767 = vpop.permute.xlu0 %3766
      %3768 = vrot.lane.b32.xlu0 %v3716, 78
      %v3769 = vpop.permute.xlu0 %3768
      %3770 = vrot.lane.b32.xlu0 %v3717, 78
      %v3771 = vpop.permute.xlu0 %3770
      %3772 = vrot.lane.b32.xlu0 %v3718, 78
      %v3773 = vpop.permute.xlu0 %3772
      %3774 = vrot.lane.b32.xlu0 %v3719, 78
      %v3775 = vpop.permute.xlu0 %3774
      %3776 = vrot.lane.b32.xlu0 %v3720, 78
      %v3777 = vpop.permute.xlu0 %3776
      %3778 = vrot.lane.b32.xlu0 %v3721, 78
      %v3779 = vpop.permute.xlu0 %3778
      %3780 = vrot.lane.b32.xlu0 %v3722, 78
      %v3781 = vpop.permute.xlu0 %3780
      %3782 = vrot.lane.b32.xlu0 %v3723, 78
      %v3783 = vpop.permute.xlu0 %3782
      %3784 = vrot.lane.b32.xlu0 %v3724, 78
      %v3785 = vpop.permute.xlu0 %3784
      %3786 = vrot.lane.b32.xlu0 %v3725, 78
      %v3787 = vpop.permute.xlu0 %3786
      %3788 = vrot.lane.b32.xlu0 %v3726, 78
      %v3789 = vpop.permute.xlu0 %3788
      %3790 = vrot.lane.b32.xlu0 %v3727, 78
      %v3791 = vpop.permute.xlu0 %3790
      %3792 = vrot.lane.b32.xlu0 %v3728, 78
      %v3793 = vpop.permute.xlu0 %3792
      %3794 = vrot.lane.b32.xlu0 %v3729, 78
      %v3795 = vpop.permute.xlu0 %3794
      %vm3796 = vcmask 637952
      %v3797 = vsel %vm3796, %v3753, %v3755
      %v3798 = vsel %vm3796, %v3755, %v3757
      %v3799 = vsel %vm3796, %v3757, %v3759
      %v3800 = vsel %vm3796, %v3759, %v3761
      %v3801 = vsel %vm3796, %v3761, %v3763
      %v3802 = vsel %vm3796, %v3763, %v3765
      %v3803 = vsel %vm3796, %v3765, %v3767
      %v3804 = vsel %vm3796, %v3767, %v3769
      %v3805 = vsel %vm3796, %v3769, %v3771
      %v3806 = vsel %vm3796, %v3771, %v3773
      %v3807 = vsel %vm3796, %v3775, %v3777
      %v3808 = vsel %vm3796, %v3777, %v3779
      %v3809 = vsel %vm3796, %v3779, %v3781
      %v3810 = vsel %vm3796, %v3781, %v3783
      %v3811 = vsel %vm3796, %v3783, %v3785
      %v3812 = vsel %vm3796, %v3785, %v3787
      %v3813 = vsel %vm3796, %v3787, %v3789
      %v3814 = vsel %vm3796, %v3789, %v3791
      %v3815 = vsel %vm3796, %v3791, %v3793
      %v3816 = vsel %vm3796, %v3793, %v3795
      %v3837 = vadd.f32 %v3688, %v3797
      %v3838 = vadd.f32 %v3689, %v3798
      %v3839 = vadd.f32 %v3690, %v3799
      %v3840 = vadd.f32 %v3691, %v3800
      %v3841 = vadd.f32 %v3692, %v3801
      %v3842 = vadd.f32 %v3693, %v3802
      %v3843 = vadd.f32 %v3694, %v3803
      %v3844 = vadd.f32 %v3695, %v3804
      %v3845 = vadd.f32 %v3696, %v3805
      %v3846 = vadd.f32 %v3697, %v3806
      %v3847 = vadd.f32 %v3698, %v3807
      %v3848 = vadd.f32 %v3699, %v3808
      %v3849 = vadd.f32 %v3700, %v3809
      %v3850 = vadd.f32 %v3701, %v3810
      %v3851 = vadd.f32 %v3702, %v3811
      %v3852 = vadd.f32 %v3703, %v3812
      %v3853 = vadd.f32 %v3704, %v3813
      %v3854 = vadd.f32 %v3705, %v3814
      %v3855 = vadd.f32 %v3706, %v3815
      %v3856 = vadd.f32 %v3707, %v3816
      %3857 = vst [vmem:[#allocation4] sm:$0xff] %v3837
      %3858 = vst [vmem:[#allocation4 + $0x8] sm:$0xff] %v3838
      %3859 = vst [vmem:[#allocation4 + $0x10] sm:$0xff] %v3839
      %3860 = vst [vmem:[#allocation4 + $0x18] sm:$0xff] %v3840
      %3861 = vst [vmem:[#allocation4 + $0x20] sm:$0xff] %v3841
      %3862 = vst [vmem:[#allocation4 + $0x28] sm:$0xff] %v3842
      %3863 = vst [vmem:[#allocation4 + $0x30] sm:$0xff] %v3843
      %3864 = vst [vmem:[#allocation4 + $0x38] sm:$0xff] %v3844
      %3865 = vst [vmem:[#allocation4 + $0x40] sm:$0xff] %v3845
      %3866 = vst [vmem:[#allocation4 + $0x48] sm:$0xff] %v3846
      %3867 = vst [vmem:[#allocation4 + $0x58] sm:$0xff] %v3847
      %3868 = vst [vmem:[#allocation4 + $0x60] sm:$0xff] %v3848
      %3869 = vst [vmem:[#allocation4 + $0x68] sm:$0xff] %v3849
      %3870 = vst [vmem:[#allocation4 + $0x70] sm:$0xff] %v3850
      %3871 = vst [vmem:[#allocation4 + $0x78] sm:$0xff] %v3851
      %3872 = vst [vmem:[#allocation4 + $0x80] sm:$0xff] %v3852
      %3873 = vst [vmem:[#allocation4 + $0x88] sm:$0xff] %v3853
      %3874 = vst [vmem:[#allocation4 + $0x90] sm:$0xff] %v3854
      %3875 = vst [vmem:[#allocation4 + $0x98] sm:$0xff] %v3855
      %3876 = vst [vmem:[#allocation4 + $0xa0] sm:$0xff] %v3856
      %v3877 = vld [vmem:[#allocation4] sm:$0xff]
      %v3878 = vld [vmem:[#allocation4 + $0x8] sm:$0xff]
      %v3879 = vld [vmem:[#allocation4 + $0x10] sm:$0xff]
      %v3880 = vld [vmem:[#allocation4 + $0x18] sm:$0xff]
      %v3881 = vld [vmem:[#allocation4 + $0x20] sm:$0xff]
      %v3882 = vld [vmem:[#allocation4 + $0x28] sm:$0xff]
      %v3883 = vld [vmem:[#allocation4 + $0x30] sm:$0xff]
      %v3884 = vld [vmem:[#allocation4 + $0x38] sm:$0xff]
      %v3885 = vld [vmem:[#allocation4 + $0x40] sm:$0xff]
      %v3886 = vld [vmem:[#allocation4 + $0x48] sm:$0xff]
      %v3887 = vld [vmem:[#allocation4 + $0x58] sm:$0xff]
      %v3888 = vld [vmem:[#allocation4 + $0x60] sm:$0xff]
      %v3889 = vld [vmem:[#allocation4 + $0x68] sm:$0xff]
      %v3890 = vld [vmem:[#allocation4 + $0x70] sm:$0xff]
      %v3891 = vld [vmem:[#allocation4 + $0x78] sm:$0xff]
      %v3892 = vld [vmem:[#allocation4 + $0x80] sm:$0xff]
      %v3893 = vld [vmem:[#allocation4 + $0x88] sm:$0xff]
      %v3894 = vld [vmem:[#allocation4 + $0x90] sm:$0xff]
      %v3895 = vld [vmem:[#allocation4 + $0x98] sm:$0xff]
      %v3896 = vld [vmem:[#allocation4 + $0xa0] sm:$0xff]
      %v3897 = vpack.c.bf16 %v3887, %v3877
      %v3898 = vpack.c.bf16 %v3888, %v3878
      %v3899 = vpack.c.bf16 %v3889, %v3879
      %v3900 = vpack.c.bf16 %v3890, %v3880
      %v3901 = vpack.c.bf16 %v3891, %v3881
      %v3902 = vpack.c.bf16 %v3892, %v3882
      %v3903 = vpack.c.bf16 %v3893, %v3883
      %v3904 = vpack.c.bf16 %v3894, %v3884
      %v3905 = vpack.c.bf16 %v3895, %v3885
      %v3906 = vpack.c.bf16 %v3896, %v3886
      %3907 = vst [vmem:[#allocation5] sm:$0xff] %v3897
      %3908 = vst [vmem:[#allocation5 + $0x8] sm:$0xff] %v3898
      %3909 = vst [vmem:[#allocation5 + $0x10] sm:$0xff] %v3899
      %3910 = vst [vmem:[#allocation5 + $0x18] sm:$0xff] %v3900
      %3911 = vst [vmem:[#allocation5 + $0x20] sm:$0xff] %v3901
      %3912 = vst [vmem:[#allocation5 + $0x28] sm:$0xff] %v3902
      %3913 = vst [vmem:[#allocation5 + $0x30] sm:$0xff] %v3903
      %3914 = vst [vmem:[#allocation5 + $0x38] sm:$0xff] %v3904
      %3915 = vst [vmem:[#allocation5 + $0x40] sm:$0xff] %v3905
      %3916 = vst [vmem:[#allocation5 + $0x48] sm:$0xff] %v3906
      %v3917 = vld [vmem:[#allocation4] sm:$0xff]
      %v3918 = vld [vmem:[#allocation4 + $0x8] sm:$0xff]
      %v3919 = vld [vmem:[#allocation4 + $0x10] sm:$0xff]
      %v3920 = vld [vmem:[#allocation4 + $0x18] sm:$0xff]
      %v3921 = vld [vmem:[#allocation4 + $0x20] sm:$0xff]
      %v3922 = vld [vmem:[#allocation4 + $0x28] sm:$0xff]
      %v3923 = vld [vmem:[#allocation4 + $0x30] sm:$0xff]
      %v3924 = vld [vmem:[#allocation4 + $0x38] sm:$0xff]
      %v3925 = vld [vmem:[#allocation4 + $0x40] sm:$0xff]
      %v3926 = vld [vmem:[#allocation4 + $0x48] sm:$0xff]
      %v3927 = vld [vmem:[#allocation4 + $0x50] sm:$0xff]
      %v3928 = vld [vmem:[#allocation4 + $0x58] sm:$0xff]
      %v3929 = vld [vmem:[#allocation4 + $0x60] sm:$0xff]
      %v3930 = vld [vmem:[#allocation4 + $0x68] sm:$0xff]
      %v3931 = vld [vmem:[#allocation4 + $0x70] sm:$0xff]
      %v3932 = vld [vmem:[#allocation4 + $0x78] sm:$0xff]
      %v3933 = vld [vmem:[#allocation4 + $0x80] sm:$0xff]
      %v3934 = vld [vmem:[#allocation4 + $0x88] sm:$0xff]
      %v3935 = vld [vmem:[#allocation4 + $0x90] sm:$0xff]
      %v3936 = vld [vmem:[#allocation4 + $0x98] sm:$0xff]
      %v3937 = vld [vmem:[#allocation4 + $0xa0] sm:$0xff]
      %v3938 = vld [vmem:[#allocation4 + $0xa8] sm:$0xff]
      %v3939 = vpack.c.bf16 %v3928, %v3917
      %v3940 = vpack.c.bf16 %v3929, %v3918
      %v3941 = vpack.c.bf16 %v3930, %v3919
      %v3942 = vpack.c.bf16 %v3931, %v3920
      %v3943 = vpack.c.bf16 %v3932, %v3921
      %v3944 = vpack.c.bf16 %v3933, %v3922
      %v3945 = vpack.c.bf16 %v3934, %v3923
      %v3946 = vpack.c.bf16 %v3935, %v3924
      %v3947 = vpack.c.bf16 %v3936, %v3925
      %v3948 = vpack.c.bf16 %v3937, %v3926
      %v3949 = vpack.c.bf16 %v3938, %v3927
      %3961 = vrot.lane.b32.xlu0 %v3939, 127
      %v3962 = vpop.permute.xlu0 %3961
      %3963 = vrot.lane.b32.xlu0 %v3940, 127
      %v3964 = vpop.permute.xlu0 %3963
      %3965 = vrot.lane.b32.xlu0 %v3941, 127
      %v3966 = vpop.permute.xlu0 %3965
      %3967 = vrot.lane.b32.xlu0 %v3942, 127
      %v3968 = vpop.permute.xlu0 %3967
      %3969 = vrot.lane.b32.xlu0 %v3943, 127
      %v3970 = vpop.permute.xlu0 %3969
      %3971 = vrot.lane.b32.xlu0 %v3944, 127
      %v3972 = vpop.permute.xlu0 %3971
      %3973 = vrot.lane.b32.xlu0 %v3945, 127
      %v3974 = vpop.permute.xlu0 %3973
      %3975 = vrot.lane.b32.xlu0 %v3946, 127
      %v3976 = vpop.permute.xlu0 %3975
      %3977 = vrot.lane.b32.xlu0 %v3947, 127
      %v3978 = vpop.permute.xlu0 %3977
      %3979 = vrot.lane.b32.xlu0 %v3948, 127
      %v3980 = vpop.permute.xlu0 %3979
      %3981 = vrot.lane.b32.xlu0 %v3949, 127
      %v3982 = vpop.permute.xlu0 %3981
      %v3983 = vsel %vm284, %v3962, %v3964
      %v3984 = vsel %vm284, %v3964, %v3966
      %v3985 = vsel %vm284, %v3966, %v3968
      %v3986 = vsel %vm284, %v3968, %v3970
      %v3987 = vsel %vm284, %v3970, %v3972
      %v3988 = vsel %vm284, %v3972, %v3974
      %v3989 = vsel %vm284, %v3974, %v3976
      %v3990 = vsel %vm284, %v3976, %v3978
      %v3991 = vsel %vm284, %v3978, %v3980
      %v3992 = vsel %vm284, %v3980, %v3982
      %4003 = vst [vmem:[#allocation5 + $0x50] sm:$0xff] %v3983
      %4004 = vst [vmem:[#allocation5 + $0x58] sm:$0xff] %v3984
      %4005 = vst [vmem:[#allocation5 + $0x60] sm:$0xff] %v3985
      %4006 = vst [vmem:[#allocation5 + $0x68] sm:$0xff] %v3986
      %4007 = vst [vmem:[#allocation5 + $0x70] sm:$0xff] %v3987
      %4008 = vst [vmem:[#allocation5 + $0x78] sm:$0xff] %v3988
      %4009 = vst [vmem:[#allocation5 + $0x80] sm:$0xff] %v3989
      %4010 = vst [vmem:[#allocation5 + $0x88] sm:$0xff] %v3990
      %4011 = vst [vmem:[#allocation5 + $0x90] sm:$0xff] %v3991
      %4012 = vst [vmem:[#allocation5 + $0x98] sm:$0xff] %v3992
      %v4013 = vld [vmem:[#allocation4] sm:$0xff]
      %v4014 = vld [vmem:[#allocation4 + $0x8] sm:$0xff]
      %v4015 = vld [vmem:[#allocation4 + $0x10] sm:$0xff]
      %v4016 = vld [vmem:[#allocation4 + $0x18] sm:$0xff]
      %v4017 = vld [vmem:[#allocation4 + $0x20] sm:$0xff]
      %v4018 = vld [vmem:[#allocation4 + $0x28] sm:$0xff]
      %v4019 = vld [vmem:[#allocation4 + $0x30] sm:$0xff]
      %v4020 = vld [vmem:[#allocation4 + $0x38] sm:$0xff]
      %v4021 = vld [vmem:[#allocation4 + $0x40] sm:$0xff]
      %v4022 = vld [vmem:[#allocation4 + $0x48] sm:$0xff]
      %v4023 = vld [vmem:[#allocation4 + $0x50] sm:$0xff]
      %v4024 = vld [vmem:[#allocation4 + $0x58] sm:$0xff]
      %v4025 = vld [vmem:[#allocation4 + $0x60] sm:$0xff]
      %v4026 = vld [vmem:[#allocation4 + $0x68] sm:$0xff]
      %v4027 = vld [vmem:[#allocation4 + $0x70] sm:$0xff]
      %v4028 = vld [vmem:[#allocation4 + $0x78] sm:$0xff]
      %v4029 = vld [vmem:[#allocation4 + $0x80] sm:$0xff]
      %v4030 = vld [vmem:[#allocation4 + $0x88] sm:$0xff]
      %v4031 = vld [vmem:[#allocation4 + $0x90] sm:$0xff]
      %v4032 = vld [vmem:[#allocation4 + $0x98] sm:$0xff]
      %v4033 = vld [vmem:[#allocation4 + $0xa0] sm:$0xff]
      %v4034 = vld [vmem:[#allocation4 + $0xa8] sm:$0xff]
      %v4035 = vpack.c.bf16 %v4024, %v4013
      %v4036 = vpack.c.bf16 %v4025, %v4014
      %v4037 = vpack.c.bf16 %v4026, %v4015
      %v4038 = vpack.c.bf16 %v4027, %v4016
      %v4039 = vpack.c.bf16 %v4028, %v4017
      %v4040 = vpack.c.bf16 %v4029, %v4018
      %v4041 = vpack.c.bf16 %v4030, %v4019
      %v4042 = vpack.c.bf16 %v4031, %v4020
      %v4043 = vpack.c.bf16 %v4032, %v4021
      %v4044 = vpack.c.bf16 %v4033, %v4022
      %v4045 = vpack.c.bf16 %v4034, %v4023
      %4057 = vrot.lane.b32.xlu0 %v4035, 126
      %v4058 = vpop.permute.xlu0 %4057
      %4059 = vrot.lane.b32.xlu0 %v4036, 126
      %v4060 = vpop.permute.xlu0 %4059
      %4061 = vrot.lane.b32.xlu0 %v4037, 126
      %v4062 = vpop.permute.xlu0 %4061
      %4063 = vrot.lane.b32.xlu0 %v4038, 126
      %v4064 = vpop.permute.xlu0 %4063
      %4065 = vrot.lane.b32.xlu0 %v4039, 126
      %v4066 = vpop.permute.xlu0 %4065
      %4067 = vrot.lane.b32.xlu0 %v4040, 126
      %v4068 = vpop.permute.xlu0 %4067
      %4069 = vrot.lane.b32.xlu0 %v4041, 126
      %v4070 = vpop.permute.xlu0 %4069
      %4071 = vrot.lane.b32.xlu0 %v4042, 126
      %v4072 = vpop.permute.xlu0 %4071
      %4073 = vrot.lane.b32.xlu0 %v4043, 126
      %v4074 = vpop.permute.xlu0 %4073
      %4075 = vrot.lane.b32.xlu0 %v4044, 126
      %v4076 = vpop.permute.xlu0 %4075
      %4077 = vrot.lane.b32.xlu0 %v4045, 126
      %v4078 = vpop.permute.xlu0 %4077
      %v4079 = vsel %vm381, %v4058, %v4060
      %v4080 = vsel %vm381, %v4060, %v4062
      %v4081 = vsel %vm381, %v4062, %v4064
      %v4082 = vsel %vm381, %v4064, %v4066
      %v4083 = vsel %vm381, %v4066, %v4068
      %v4084 = vsel %vm381, %v4068, %v4070
      %v4085 = vsel %vm381, %v4070, %v4072
      %v4086 = vsel %vm381, %v4072, %v4074
      %v4087 = vsel %vm381, %v4074, %v4076
      %v4088 = vsel %vm381, %v4076, %v4078
      %4099 = vst [vmem:[#allocation5 + $0xa0] sm:$0xff] %v4079
      %4100 = vst [vmem:[#allocation5 + $0xa8] sm:$0xff] %v4080
      %4101 = vst [vmem:[#allocation5 + $0xb0] sm:$0xff] %v4081
      %4102 = vst [vmem:[#allocation5 + $0xb8] sm:$0xff] %v4082
      %4103 = vst [vmem:[#allocation5 + $0xc0] sm:$0xff] %v4083
      %4104 = vst [vmem:[#allocation5 + $0xc8] sm:$0xff] %v4084
      %4105 = vst [vmem:[#allocation5 + $0xd0] sm:$0xff] %v4085
      %4106 = vst [vmem:[#allocation5 + $0xd8] sm:$0xff] %v4086
      %4107 = vst [vmem:[#allocation5 + $0xe0] sm:$0xff] %v4087
      %4108 = vst [vmem:[#allocation5 + $0xe8] sm:$0xff] %v4088
      %v4109 = vld [vmem:[#allocation4] sm:$0xff]
      %v4110 = vld [vmem:[#allocation4 + $0x8] sm:$0xff]
      %v4111 = vld [vmem:[#allocation4 + $0x10] sm:$0xff]
      %v4112 = vld [vmem:[#allocation4 + $0x18] sm:$0xff]
      %v4113 = vld [vmem:[#allocation4 + $0x20] sm:$0xff]
      %v4114 = vld [vmem:[#allocation4 + $0x28] sm:$0xff]
      %v4115 = vld [vmem:[#allocation4 + $0x30] sm:$0xff]
      %v4116 = vld [vmem:[#allocation4 + $0x38] sm:$0xff]
      %v4117 = vld [vmem:[#allocation4 + $0x40] sm:$0xff]
      %v4118 = vld [vmem:[#allocation4 + $0x48] sm:$0xff]
      %v4119 = vld [vmem:[#allocation4 + $0x50] sm:$0xff]
      %v4120 = vld [vmem:[#allocation4 + $0x58] sm:$0xff]
      %v4121 = vld [vmem:[#allocation4 + $0x60] sm:$0xff]
      %v4122 = vld [vmem:[#allocation4 + $0x68] sm:$0xff]
      %v4123 = vld [vmem:[#allocation4 + $0x70] sm:$0xff]
      %v4124 = vld [vmem:[#allocation4 + $0x78] sm:$0xff]
      %v4125 = vld [vmem:[#allocation4 + $0x80] sm:$0xff]
      %v4126 = vld [vmem:[#allocation4 + $0x88] sm:$0xff]
      %v4127 = vld [vmem:[#allocation4 + $0x90] sm:$0xff]
      %v4128 = vld [vmem:[#allocation4 + $0x98] sm:$0xff]
      %v4129 = vld [vmem:[#allocation4 + $0xa0] sm:$0xff]
      %v4130 = vld [vmem:[#allocation4 + $0xa8] sm:$0xff]
      %v4131 = vpack.c.bf16 %v4120, %v4109
      %v4132 = vpack.c.bf16 %v4121, %v4110
      %v4133 = vpack.c.bf16 %v4122, %v4111
      %v4134 = vpack.c.bf16 %v4123, %v4112
      %v4135 = vpack.c.bf16 %v4124, %v4113
      %v4136 = vpack.c.bf16 %v4125, %v4114
      %v4137 = vpack.c.bf16 %v4126, %v4115
      %v4138 = vpack.c.bf16 %v4127, %v4116
      %v4139 = vpack.c.bf16 %v4128, %v4117
      %v4140 = vpack.c.bf16 %v4129, %v4118
      %v4141 = vpack.c.bf16 %v4130, %v4119
      %4153 = vrot.lane.b32.xlu0 %v4131, 104
      %v4154 = vpop.permute.xlu0 %4153
      %4155 = vrot.lane.b32.xlu0 %v4132, 104
      %v4156 = vpop.permute.xlu0 %4155
      %4157 = vrot.lane.b32.xlu0 %v4133, 104
      %v4158 = vpop.permute.xlu0 %4157
      %4159 = vrot.lane.b32.xlu0 %v4134, 104
      %v4160 = vpop.permute.xlu0 %4159
      %4161 = vrot.lane.b32.xlu0 %v4135, 104
      %v4162 = vpop.permute.xlu0 %4161
      %4163 = vrot.lane.b32.xlu0 %v4136, 104
      %v4164 = vpop.permute.xlu0 %4163
      %4165 = vrot.lane.b32.xlu0 %v4137, 104
      %v4166 = vpop.permute.xlu0 %4165
      %4167 = vrot.lane.b32.xlu0 %v4138, 104
      %v4168 = vpop.permute.xlu0 %4167
      %4169 = vrot.lane.b32.xlu0 %v4139, 104
      %v4170 = vpop.permute.xlu0 %4169
      %4171 = vrot.lane.b32.xlu0 %v4140, 104
      %v4172 = vpop.permute.xlu0 %4171
      %4173 = vrot.lane.b32.xlu0 %v4141, 104
      %v4174 = vpop.permute.xlu0 %4173
      %v4175 = vsel %vm478, %v4154, %v4156
      %v4176 = vsel %vm478, %v4156, %v4158
      %v4177 = vsel %vm478, %v4158, %v4160
      %v4178 = vsel %vm478, %v4160, %v4162
      %v4179 = vsel %vm478, %v4162, %v4164
      %v4180 = vsel %vm478, %v4164, %v4166
      %v4181 = vsel %vm478, %v4166, %v4168
      %v4182 = vsel %vm478, %v4168, %v4170
      %v4183 = vsel %vm478, %v4170, %v4172
      %v4184 = vsel %vm478, %v4172, %v4174
      %4195 = vst [vmem:[#allocation5 + $0xf0] sm:$0xff] %v4175
      %4196 = vst [vmem:[#allocation5 + $0xf8] sm:$0xff] %v4176
      %4197 = vst [vmem:[#allocation5 + $0x100] sm:$0xff] %v4177
      %4198 = vst [vmem:[#allocation5 + $0x108] sm:$0xff] %v4178
      %4199 = vst [vmem:[#allocation5 + $0x110] sm:$0xff] %v4179
      %4200 = vst [vmem:[#allocation5 + $0x118] sm:$0xff] %v4180
      %4201 = vst [vmem:[#allocation5 + $0x120] sm:$0xff] %v4181
      %4202 = vst [vmem:[#allocation5 + $0x128] sm:$0xff] %v4182
      %4203 = vst [vmem:[#allocation5 + $0x130] sm:$0xff] %v4183
      %4204 = vst [vmem:[#allocation5 + $0x138] sm:$0xff] %v4184
      %v4205 = vld [vmem:[#allocation4] sm:$0xff]
      %v4206 = vld [vmem:[#allocation4 + $0x8] sm:$0xff]
      %v4207 = vld [vmem:[#allocation4 + $0x10] sm:$0xff]
      %v4208 = vld [vmem:[#allocation4 + $0x18] sm:$0xff]
      %v4209 = vld [vmem:[#allocation4 + $0x20] sm:$0xff]
      %v4210 = vld [vmem:[#allocation4 + $0x28] sm:$0xff]
      %v4211 = vld [vmem:[#allocation4 + $0x30] sm:$0xff]
      %v4212 = vld [vmem:[#allocation4 + $0x38] sm:$0xff]
      %v4213 = vld [vmem:[#allocation4 + $0x40] sm:$0xff]
      %v4214 = vld [vmem:[#allocation4 + $0x48] sm:$0xff]
      %v4215 = vld [vmem:[#allocation4 + $0x50] sm:$0xff]
      %v4216 = vld [vmem:[#allocation4 + $0x58] sm:$0xff]
      %v4217 = vld [vmem:[#allocation4 + $0x60] sm:$0xff]
      %v4218 = vld [vmem:[#allocation4 + $0x68] sm:$0xff]
      %v4219 = vld [vmem:[#allocation4 + $0x70] sm:$0xff]
      %v4220 = vld [vmem:[#allocation4 + $0x78] sm:$0xff]
      %v4221 = vld [vmem:[#allocation4 + $0x80] sm:$0xff]
      %v4222 = vld [vmem:[#allocation4 + $0x88] sm:$0xff]
      %v4223 = vld [vmem:[#allocation4 + $0x90] sm:$0xff]
      %v4224 = vld [vmem:[#allocation4 + $0x98] sm:$0xff]
      %v4225 = vld [vmem:[#allocation4 + $0xa0] sm:$0xff]
      %v4226 = vld [vmem:[#allocation4 + $0xa8] sm:$0xff]
      %v4227 = vpack.c.bf16 %v4216, %v4205
      %v4228 = vpack.c.bf16 %v4217, %v4206
      %v4229 = vpack.c.bf16 %v4218, %v4207
      %v4230 = vpack.c.bf16 %v4219, %v4208
      %v4231 = vpack.c.bf16 %v4220, %v4209
      %v4232 = vpack.c.bf16 %v4221, %v4210
      %v4233 = vpack.c.bf16 %v4222, %v4211
      %v4234 = vpack.c.bf16 %v4223, %v4212
      %v4235 = vpack.c.bf16 %v4224, %v4213
      %v4236 = vpack.c.bf16 %v4225, %v4214
      %v4237 = vpack.c.bf16 %v4226, %v4215
      %4249 = vrot.lane.b32.xlu0 %v4227, 103
      %v4250 = vpop.permute.xlu0 %4249
      %4251 = vrot.lane.b32.xlu0 %v4228, 103
      %v4252 = vpop.permute.xlu0 %4251
      %4253 = vrot.lane.b32.xlu0 %v4229, 103
      %v4254 = vpop.permute.xlu0 %4253
      %4255 = vrot.lane.b32.xlu0 %v4230, 103
      %v4256 = vpop.permute.xlu0 %4255
      %4257 = vrot.lane.b32.xlu0 %v4231, 103
      %v4258 = vpop.permute.xlu0 %4257
      %4259 = vrot.lane.b32.xlu0 %v4232, 103
      %v4260 = vpop.permute.xlu0 %4259
      %4261 = vrot.lane.b32.xlu0 %v4233, 103
      %v4262 = vpop.permute.xlu0 %4261
      %4263 = vrot.lane.b32.xlu0 %v4234, 103
      %v4264 = vpop.permute.xlu0 %4263
      %4265 = vrot.lane.b32.xlu0 %v4235, 103
      %v4266 = vpop.permute.xlu0 %4265
      %4267 = vrot.lane.b32.xlu0 %v4236, 103
      %v4268 = vpop.permute.xlu0 %4267
      %4269 = vrot.lane.b32.xlu0 %v4237, 103
      %v4270 = vpop.permute.xlu0 %4269
      %v4271 = vsel %vm575, %v4250, %v4252
      %v4272 = vsel %vm575, %v4252, %v4254
      %v4273 = vsel %vm575, %v4254, %v4256
      %v4274 = vsel %vm575, %v4256, %v4258
      %v4275 = vsel %vm575, %v4258, %v4260
      %v4276 = vsel %vm575, %v4260, %v4262
      %v4277 = vsel %vm575, %v4262, %v4264
      %v4278 = vsel %vm575, %v4264, %v4266
      %v4279 = vsel %vm575, %v4266, %v4268
      %v4280 = vsel %vm575, %v4268, %v4270
      %4291 = vst [vmem:[#allocation5 + $0x140] sm:$0xff] %v4271
      %4292 = vst [vmem:[#allocation5 + $0x148] sm:$0xff] %v4272
      %4293 = vst [vmem:[#allocation5 + $0x150] sm:$0xff] %v4273
      %4294 = vst [vmem:[#allocation5 + $0x158] sm:$0xff] %v4274
      %4295 = vst [vmem:[#allocation5 + $0x160] sm:$0xff] %v4275
      %4296 = vst [vmem:[#allocation5 + $0x168] sm:$0xff] %v4276
      %4297 = vst [vmem:[#allocation5 + $0x170] sm:$0xff] %v4277
      %4298 = vst [vmem:[#allocation5 + $0x178] sm:$0xff] %v4278
      %4299 = vst [vmem:[#allocation5 + $0x180] sm:$0xff] %v4279
      %4300 = vst [vmem:[#allocation5 + $0x188] sm:$0xff] %v4280
      %v4301 = vld [vmem:[#allocation4] sm:$0xff]
      %v4302 = vld [vmem:[#allocation4 + $0x8] sm:$0xff]
      %v4303 = vld [vmem:[#allocation4 + $0x10] sm:$0xff]
      %v4304 = vld [vmem:[#allocation4 + $0x18] sm:$0xff]
      %v4305 = vld [vmem:[#allocation4 + $0x20] sm:$0xff]
      %v4306 = vld [vmem:[#allocation4 + $0x28] sm:$0xff]
      %v4307 = vld [vmem:[#allocation4 + $0x30] sm:$0xff]
      %v4308 = vld [vmem:[#allocation4 + $0x38] sm:$0xff]
      %v4309 = vld [vmem:[#allocation4 + $0x40] sm:$0xff]
      %v4310 = vld [vmem:[#allocation4 + $0x48] sm:$0xff]
      %v4311 = vld [vmem:[#allocation4 + $0x50] sm:$0xff]
      %v4312 = vld [vmem:[#allocation4 + $0x58] sm:$0xff]
      %v4313 = vld [vmem:[#allocation4 + $0x60] sm:$0xff]
      %v4314 = vld [vmem:[#allocation4 + $0x68] sm:$0xff]
      %v4315 = vld [vmem:[#allocation4 + $0x70] sm:$0xff]
      %v4316 = vld [vmem:[#allocation4 + $0x78] sm:$0xff]
      %v4317 = vld [vmem:[#allocation4 + $0x80] sm:$0xff]
      %v4318 = vld [vmem:[#allocation4 + $0x88] sm:$0xff]
      %v4319 = vld [vmem:[#allocation4 + $0x90] sm:$0xff]
      %v4320 = vld [vmem:[#allocation4 + $0x98] sm:$0xff]
      %v4321 = vld [vmem:[#allocation4 + $0xa0] sm:$0xff]
      %v4322 = vld [vmem:[#allocation4 + $0xa8] sm:$0xff]
      %v4323 = vpack.c.bf16 %v4312, %v4301
      %v4324 = vpack.c.bf16 %v4313, %v4302
      %v4325 = vpack.c.bf16 %v4314, %v4303
      %v4326 = vpack.c.bf16 %v4315, %v4304
      %v4327 = vpack.c.bf16 %v4316, %v4305
      %v4328 = vpack.c.bf16 %v4317, %v4306
      %v4329 = vpack.c.bf16 %v4318, %v4307
      %v4330 = vpack.c.bf16 %v4319, %v4308
      %v4331 = vpack.c.bf16 %v4320, %v4309
      %v4332 = vpack.c.bf16 %v4321, %v4310
      %v4333 = vpack.c.bf16 %v4322, %v4311
      %4345 = vrot.lane.b32.xlu0 %v4323, 102
      %v4346 = vpop.permute.xlu0 %4345
      %4347 = vrot.lane.b32.xlu0 %v4324, 102
      %v4348 = vpop.permute.xlu0 %4347
      %4349 = vrot.lane.b32.xlu0 %v4325, 102
      %v4350 = vpop.permute.xlu0 %4349
      %4351 = vrot.lane.b32.xlu0 %v4326, 102
      %v4352 = vpop.permute.xlu0 %4351
      %4353 = vrot.lane.b32.xlu0 %v4327, 102
      %v4354 = vpop.permute.xlu0 %4353
      %4355 = vrot.lane.b32.xlu0 %v4328, 102
      %v4356 = vpop.permute.xlu0 %4355
      %4357 = vrot.lane.b32.xlu0 %v4329, 102
      %v4358 = vpop.permute.xlu0 %4357
      %4359 = vrot.lane.b32.xlu0 %v4330, 102
      %v4360 = vpop.permute.xlu0 %4359
      %4361 = vrot.lane.b32.xlu0 %v4331, 102
      %v4362 = vpop.permute.xlu0 %4361
      %4363 = vrot.lane.b32.xlu0 %v4332, 102
      %v4364 = vpop.permute.xlu0 %4363
      %4365 = vrot.lane.b32.xlu0 %v4333, 102
      %v4366 = vpop.permute.xlu0 %4365
      %v4367 = vsel %vm672, %v4346, %v4348
      %v4368 = vsel %vm672, %v4348, %v4350
      %v4369 = vsel %vm672, %v4350, %v4352
      %v4370 = vsel %vm672, %v4352, %v4354
      %v4371 = vsel %vm672, %v4354, %v4356
      %v4372 = vsel %vm672, %v4356, %v4358
      %v4373 = vsel %vm672, %v4358, %v4360
      %v4374 = vsel %vm672, %v4360, %v4362
      %v4375 = vsel %vm672, %v4362, %v4364
      %v4376 = vsel %vm672, %v4364, %v4366
      %4387 = vst [vmem:[#allocation5 + $0x190] sm:$0xff] %v4367
      %4388 = vst [vmem:[#allocation5 + $0x198] sm:$0xff] %v4368
      %4389 = vst [vmem:[#allocation5 + $0x1a0] sm:$0xff] %v4369
      %4390 = vst [vmem:[#allocation5 + $0x1a8] sm:$0xff] %v4370
      %4391 = vst [vmem:[#allocation5 + $0x1b0] sm:$0xff] %v4371
      %4392 = vst [vmem:[#allocation5 + $0x1b8] sm:$0xff] %v4372
      %4393 = vst [vmem:[#allocation5 + $0x1c0] sm:$0xff] %v4373
      %4394 = vst [vmem:[#allocation5 + $0x1c8] sm:$0xff] %v4374
      %4395 = vst [vmem:[#allocation5 + $0x1d0] sm:$0xff] %v4375
      %4396 = vst [vmem:[#allocation5 + $0x1d8] sm:$0xff] %v4376
      %v4397 = vld [vmem:[#allocation4] sm:$0xff]
      %v4398 = vld [vmem:[#allocation4 + $0x8] sm:$0xff]
      %v4399 = vld [vmem:[#allocation4 + $0x10] sm:$0xff]
      %v4400 = vld [vmem:[#allocation4 + $0x18] sm:$0xff]
      %v4401 = vld [vmem:[#allocation4 + $0x20] sm:$0xff]
      %v4402 = vld [vmem:[#allocation4 + $0x28] sm:$0xff]
      %v4403 = vld [vmem:[#allocation4 + $0x30] sm:$0xff]
      %v4404 = vld [vmem:[#allocation4 + $0x38] sm:$0xff]
      %v4405 = vld [vmem:[#allocation4 + $0x40] sm:$0xff]
      %v4406 = vld [vmem:[#allocation4 + $0x48] sm:$0xff]
      %v4407 = vld [vmem:[#allocation4 + $0x50] sm:$0xff]
      %v4408 = vld [vmem:[#allocation4 + $0x58] sm:$0xff]
      %v4409 = vld [vmem:[#allocation4 + $0x60] sm:$0xff]
      %v4410 = vld [vmem:[#allocation4 + $0x68] sm:$0xff]
      %v4411 = vld [vmem:[#allocation4 + $0x70] sm:$0xff]
      %v4412 = vld [vmem:[#allocation4 + $0x78] sm:$0xff]
      %v4413 = vld [vmem:[#allocation4 + $0x80] sm:$0xff]
      %v4414 = vld [vmem:[#allocation4 + $0x88] sm:$0xff]
      %v4415 = vld [vmem:[#allocation4 + $0x90] sm:$0xff]
      %v4416 = vld [vmem:[#allocation4 + $0x98] sm:$0xff]
      %v4417 = vld [vmem:[#allocation4 + $0xa0] sm:$0xff]
      %v4418 = vld [vmem:[#allocation4 + $0xa8] sm:$0xff]
      %v4419 = vpack.c.bf16 %v4408, %v4397
      %v4420 = vpack.c.bf16 %v4409, %v4398
      %v4421 = vpack.c.bf16 %v4410, %v4399
      %v4422 = vpack.c.bf16 %v4411, %v4400
      %v4423 = vpack.c.bf16 %v4412, %v4401
      %v4424 = vpack.c.bf16 %v4413, %v4402
      %v4425 = vpack.c.bf16 %v4414, %v4403
      %v4426 = vpack.c.bf16 %v4415, %v4404
      %v4427 = vpack.c.bf16 %v4416, %v4405
      %v4428 = vpack.c.bf16 %v4417, %v4406
      %v4429 = vpack.c.bf16 %v4418, %v4407
      %4441 = vrot.lane.b32.xlu0 %v4419, 80
      %v4442 = vpop.permute.xlu0 %4441
      %4443 = vrot.lane.b32.xlu0 %v4420, 80
      %v4444 = vpop.permute.xlu0 %4443
      %4445 = vrot.lane.b32.xlu0 %v4421, 80
      %v4446 = vpop.permute.xlu0 %4445
      %4447 = vrot.lane.b32.xlu0 %v4422, 80
      %v4448 = vpop.permute.xlu0 %4447
      %4449 = vrot.lane.b32.xlu0 %v4423, 80
      %v4450 = vpop.permute.xlu0 %4449
      %4451 = vrot.lane.b32.xlu0 %v4424, 80
      %v4452 = vpop.permute.xlu0 %4451
      %4453 = vrot.lane.b32.xlu0 %v4425, 80
      %v4454 = vpop.permute.xlu0 %4453
      %4455 = vrot.lane.b32.xlu0 %v4426, 80
      %v4456 = vpop.permute.xlu0 %4455
      %4457 = vrot.lane.b32.xlu0 %v4427, 80
      %v4458 = vpop.permute.xlu0 %4457
      %4459 = vrot.lane.b32.xlu0 %v4428, 80
      %v4460 = vpop.permute.xlu0 %4459
      %4461 = vrot.lane.b32.xlu0 %v4429, 80
      %v4462 = vpop.permute.xlu0 %4461
      %v4463 = vsel %vm769, %v4442, %v4444
      %v4464 = vsel %vm769, %v4444, %v4446
      %v4465 = vsel %vm769, %v4446, %v4448
      %v4466 = vsel %vm769, %v4448, %v4450
      %v4467 = vsel %vm769, %v4450, %v4452
      %v4468 = vsel %vm769, %v4452, %v4454
      %v4469 = vsel %vm769, %v4454, %v4456
      %v4470 = vsel %vm769, %v4456, %v4458
      %v4471 = vsel %vm769, %v4458, %v4460
      %v4472 = vsel %vm769, %v4460, %v4462
      %4483 = vst [vmem:[#allocation5 + $0x1e0] sm:$0xff] %v4463
      %4484 = vst [vmem:[#allocation5 + $0x1e8] sm:$0xff] %v4464
      %4485 = vst [vmem:[#allocation5 + $0x1f0] sm:$0xff] %v4465
      %4486 = vst [vmem:[#allocation5 + $0x1f8] sm:$0xff] %v4466
      %4487 = vst [vmem:[#allocation5 + $0x200] sm:$0xff] %v4467
      %4488 = vst [vmem:[#allocation5 + $0x208] sm:$0xff] %v4468
      %4489 = vst [vmem:[#allocation5 + $0x210] sm:$0xff] %v4469
      %4490 = vst [vmem:[#allocation5 + $0x218] sm:$0xff] %v4470
      %4491 = vst [vmem:[#allocation5 + $0x220] sm:$0xff] %v4471
      %4492 = vst [vmem:[#allocation5 + $0x228] sm:$0xff] %v4472
      %v4493 = vld [vmem:[#allocation4] sm:$0xff]
      %v4494 = vld [vmem:[#allocation4 + $0x8] sm:$0xff]
      %v4495 = vld [vmem:[#allocation4 + $0x10] sm:$0xff]
      %v4496 = vld [vmem:[#allocation4 + $0x18] sm:$0xff]
      %v4497 = vld [vmem:[#allocation4 + $0x20] sm:$0xff]
      %v4498 = vld [vmem:[#allocation4 + $0x28] sm:$0xff]
      %v4499 = vld [vmem:[#allocation4 + $0x30] sm:$0xff]
      %v4500 = vld [vmem:[#allocation4 + $0x38] sm:$0xff]
      %v4501 = vld [vmem:[#allocation4 + $0x40] sm:$0xff]
      %v4502 = vld [vmem:[#allocation4 + $0x48] sm:$0xff]
      %v4503 = vld [vmem:[#allocation4 + $0x50] sm:$0xff]
      %v4504 = vld [vmem:[#allocation4 + $0x58] sm:$0xff]
      %v4505 = vld [vmem:[#allocation4 + $0x60] sm:$0xff]
      %v4506 = vld [vmem:[#allocation4 + $0x68] sm:$0xff]
      %v4507 = vld [vmem:[#allocation4 + $0x70] sm:$0xff]
      %v4508 = vld [vmem:[#allocation4 + $0x78] sm:$0xff]
      %v4509 = vld [vmem:[#allocation4 + $0x80] sm:$0xff]
      %v4510 = vld [vmem:[#allocation4 + $0x88] sm:$0xff]
      %v4511 = vld [vmem:[#allocation4 + $0x90] sm:$0xff]
      %v4512 = vld [vmem:[#allocation4 + $0x98] sm:$0xff]
      %v4513 = vld [vmem:[#allocation4 + $0xa0] sm:$0xff]
      %v4514 = vld [vmem:[#allocation4 + $0xa8] sm:$0xff]
      %v4515 = vpack.c.bf16 %v4504, %v4493
      %v4516 = vpack.c.bf16 %v4505, %v4494
      %v4517 = vpack.c.bf16 %v4506, %v4495
      %v4518 = vpack.c.bf16 %v4507, %v4496
      %v4519 = vpack.c.bf16 %v4508, %v4497
      %v4520 = vpack.c.bf16 %v4509, %v4498
      %v4521 = vpack.c.bf16 %v4510, %v4499
      %v4522 = vpack.c.bf16 %v4511, %v4500
      %v4523 = vpack.c.bf16 %v4512, %v4501
      %v4524 = vpack.c.bf16 %v4513, %v4502
      %v4525 = vpack.c.bf16 %v4514, %v4503
      %4537 = vrot.lane.b32.xlu0 %v4515, 79
      %v4538 = vpop.permute.xlu0 %4537
      %4539 = vrot.lane.b32.xlu0 %v4516, 79
      %v4540 = vpop.permute.xlu0 %4539
      %4541 = vrot.lane.b32.xlu0 %v4517, 79
      %v4542 = vpop.permute.xlu0 %4541
      %4543 = vrot.lane.b32.xlu0 %v4518, 79
      %v4544 = vpop.permute.xlu0 %4543
      %4545 = vrot.lane.b32.xlu0 %v4519, 79
      %v4546 = vpop.permute.xlu0 %4545
      %4547 = vrot.lane.b32.xlu0 %v4520, 79
      %v4548 = vpop.permute.xlu0 %4547
      %4549 = vrot.lane.b32.xlu0 %v4521, 79
      %v4550 = vpop.permute.xlu0 %4549
      %4551 = vrot.lane.b32.xlu0 %v4522, 79
      %v4552 = vpop.permute.xlu0 %4551
      %4553 = vrot.lane.b32.xlu0 %v4523, 79
      %v4554 = vpop.permute.xlu0 %4553
      %4555 = vrot.lane.b32.xlu0 %v4524, 79
      %v4556 = vpop.permute.xlu0 %4555
      %4557 = vrot.lane.b32.xlu0 %v4525, 79
      %v4558 = vpop.permute.xlu0 %4557
      %v4559 = vsel %vm866, %v4538, %v4540
      %v4560 = vsel %vm866, %v4540, %v4542
      %v4561 = vsel %vm866, %v4542, %v4544
      %v4562 = vsel %vm866, %v4544, %v4546
      %v4563 = vsel %vm866, %v4546, %v4548
      %v4564 = vsel %vm866, %v4548, %v4550
      %v4565 = vsel %vm866, %v4550, %v4552
      %v4566 = vsel %vm866, %v4552, %v4554
      %v4567 = vsel %vm866, %v4554, %v4556
      %v4568 = vsel %vm866, %v4556, %v4558
      %4579 = vst [vmem:[#allocation5 + $0x230] sm:$0xff] %v4559
      %4580 = vst [vmem:[#allocation5 + $0x238] sm:$0xff] %v4560
      %4581 = vst [vmem:[#allocation5 + $0x240] sm:$0xff] %v4561
      %4582 = vst [vmem:[#allocation5 + $0x248] sm:$0xff] %v4562
      %4583 = vst [vmem:[#allocation5 + $0x250] sm:$0xff] %v4563
      %4584 = vst [vmem:[#allocation5 + $0x258] sm:$0xff] %v4564
      %4585 = vst [vmem:[#allocation5 + $0x260] sm:$0xff] %v4565
      %4586 = vst [vmem:[#allocation5 + $0x268] sm:$0xff] %v4566
      %4587 = vst [vmem:[#allocation5 + $0x270] sm:$0xff] %v4567
      %4588 = vst [vmem:[#allocation5 + $0x278] sm:$0xff] %v4568
      %v4589 = vld [vmem:[#allocation4] sm:$0xff]
      %v4590 = vld [vmem:[#allocation4 + $0x8] sm:$0xff]
      %v4591 = vld [vmem:[#allocation4 + $0x10] sm:$0xff]
      %v4592 = vld [vmem:[#allocation4 + $0x18] sm:$0xff]
      %v4593 = vld [vmem:[#allocation4 + $0x20] sm:$0xff]
      %v4594 = vld [vmem:[#allocation4 + $0x28] sm:$0xff]
      %v4595 = vld [vmem:[#allocation4 + $0x30] sm:$0xff]
      %v4596 = vld [vmem:[#allocation4 + $0x38] sm:$0xff]
      %v4597 = vld [vmem:[#allocation4 + $0x40] sm:$0xff]
      %v4598 = vld [vmem:[#allocation4 + $0x48] sm:$0xff]
      %v4599 = vld [vmem:[#allocation4 + $0x50] sm:$0xff]
      %v4600 = vld [vmem:[#allocation4 + $0x58] sm:$0xff]
      %v4601 = vld [vmem:[#allocation4 + $0x60] sm:$0xff]
      %v4602 = vld [vmem:[#allocation4 + $0x68] sm:$0xff]
      %v4603 = vld [vmem:[#allocation4 + $0x70] sm:$0xff]
      %v4604 = vld [vmem:[#allocation4 + $0x78] sm:$0xff]
      %v4605 = vld [vmem:[#allocation4 + $0x80] sm:$0xff]
      %v4606 = vld [vmem:[#allocation4 + $0x88] sm:$0xff]
      %v4607 = vld [vmem:[#allocation4 + $0x90] sm:$0xff]
      %v4608 = vld [vmem:[#allocation4 + $0x98] sm:$0xff]
      %v4609 = vld [vmem:[#allocation4 + $0xa0] sm:$0xff]
      %v4610 = vld [vmem:[#allocation4 + $0xa8] sm:$0xff]
      %v4611 = vpack.c.bf16 %v4600, %v4589
      %v4612 = vpack.c.bf16 %v4601, %v4590
      %v4613 = vpack.c.bf16 %v4602, %v4591
      %v4614 = vpack.c.bf16 %v4603, %v4592
      %v4615 = vpack.c.bf16 %v4604, %v4593
      %v4616 = vpack.c.bf16 %v4605, %v4594
      %v4617 = vpack.c.bf16 %v4606, %v4595
      %v4618 = vpack.c.bf16 %v4607, %v4596
      %v4619 = vpack.c.bf16 %v4608, %v4597
      %v4620 = vpack.c.bf16 %v4609, %v4598
      %v4621 = vpack.c.bf16 %v4610, %v4599
      %4633 = vrot.lane.b32.xlu0 %v4611, 78
      %v4634 = vpop.permute.xlu0 %4633
      %4635 = vrot.lane.b32.xlu0 %v4612, 78
      %v4636 = vpop.permute.xlu0 %4635
      %4637 = vrot.lane.b32.xlu0 %v4613, 78
      %v4638 = vpop.permute.xlu0 %4637
      %4639 = vrot.lane.b32.xlu0 %v4614, 78
      %v4640 = vpop.permute.xlu0 %4639
      %4641 = vrot.lane.b32.xlu0 %v4615, 78
      %v4642 = vpop.permute.xlu0 %4641
      %4643 = vrot.lane.b32.xlu0 %v4616, 78
      %v4644 = vpop.permute.xlu0 %4643
      %4645 = vrot.lane.b32.xlu0 %v4617, 78
      %v4646 = vpop.permute.xlu0 %4645
      %4647 = vrot.lane.b32.xlu0 %v4618, 78
      %v4648 = vpop.permute.xlu0 %4647
      %4649 = vrot.lane.b32.xlu0 %v4619, 78
      %v4650 = vpop.permute.xlu0 %4649
      %4651 = vrot.lane.b32.xlu0 %v4620, 78
      %v4652 = vpop.permute.xlu0 %4651
      %4653 = vrot.lane.b32.xlu0 %v4621, 78
      %v4654 = vpop.permute.xlu0 %4653
      %v4655 = vsel %vm963, %v4634, %v4636
      %v4656 = vsel %vm963, %v4636, %v4638
      %v4657 = vsel %vm963, %v4638, %v4640
      %v4658 = vsel %vm963, %v4640, %v4642
      %v4659 = vsel %vm963, %v4642, %v4644
      %v4660 = vsel %vm963, %v4644, %v4646
      %v4661 = vsel %vm963, %v4646, %v4648
      %v4662 = vsel %vm963, %v4648, %v4650
      %v4663 = vsel %vm963, %v4650, %v4652
      %v4664 = vsel %vm963, %v4652, %v4654
      %4675 = vst [vmem:[#allocation5 + $0x280] sm:$0xff] %v4655
      %4676 = vst [vmem:[#allocation5 + $0x288] sm:$0xff] %v4656
      %4677 = vst [vmem:[#allocation5 + $0x290] sm:$0xff] %v4657
      %4678 = vst [vmem:[#allocation5 + $0x298] sm:$0xff] %v4658
      %4679 = vst [vmem:[#allocation5 + $0x2a0] sm:$0xff] %v4659
      %4680 = vst [vmem:[#allocation5 + $0x2a8] sm:$0xff] %v4660
      %4681 = vst [vmem:[#allocation5 + $0x2b0] sm:$0xff] %v4661
      %4682 = vst [vmem:[#allocation5 + $0x2b8] sm:$0xff] %v4662
      %4683 = vst [vmem:[#allocation5 + $0x2c0] sm:$0xff] %v4663
      %4684 = vst [vmem:[#allocation5 + $0x2c8] sm:$0xff] %v4664
      %s4685 = scalar_lea.vmem %s1, 48
      %v4686 = vld [vmem:[%s4685] sm:$0xff]
      %v4687 = vld [vmem:[%s4685 + $0x8] sm:$0xff]
      %v4688 = vld [vmem:[#allocation5] sm:$0xff]
      %v4689 = vld [vmem:[#allocation5 + $0x8] sm:$0xff]
      %v4690 = vld [vmem:[#allocation5 + $0x10] sm:$0xff]
      %v4691 = vld [vmem:[#allocation5 + $0x18] sm:$0xff]
      %v4692 = vld [vmem:[#allocation5 + $0x20] sm:$0xff]
      %v4693 = vld [vmem:[#allocation5 + $0x28] sm:$0xff]
      %v4694 = vld [vmem:[#allocation5 + $0x30] sm:$0xff]
      %v4695 = vld [vmem:[#allocation5 + $0x38] sm:$0xff]
      %v4696 = vld [vmem:[#allocation5 + $0x40] sm:$0xff]
      %v4697 = vld [vmem:[#allocation5 + $0x48] sm:$0xff]
      %v4698 = vld [vmem:[#allocation5 + $0x50] sm:$0xff]
      %v4699 = vld [vmem:[#allocation5 + $0x58] sm:$0xff]
      %v4700 = vld [vmem:[#allocation5 + $0x60] sm:$0xff]
      %v4701 = vld [vmem:[#allocation5 + $0x68] sm:$0xff]
      %v4702 = vld [vmem:[#allocation5 + $0x70] sm:$0xff]
      %v4703 = vld [vmem:[#allocation5 + $0x78] sm:$0xff]
      %v4704 = vld [vmem:[#allocation5 + $0x80] sm:$0xff]
      %v4705 = vld [vmem:[#allocation5 + $0x88] sm:$0xff]
      %v4706 = vld [vmem:[#allocation5 + $0x90] sm:$0xff]
      %v4707 = vld [vmem:[#allocation5 + $0x98] sm:$0xff]
      %v4708 = vld [vmem:[#allocation5 + $0xa0] sm:$0xff]
      %v4709 = vld [vmem:[#allocation5 + $0xa8] sm:$0xff]
      %v4710 = vld [vmem:[#allocation5 + $0xb0] sm:$0xff]
      %v4711 = vld [vmem:[#allocation5 + $0xb8] sm:$0xff]
      %v4712 = vld [vmem:[#allocation5 + $0xc0] sm:$0xff]
      %v4713 = vld [vmem:[#allocation5 + $0xc8] sm:$0xff]
      %v4714 = vld [vmem:[#allocation5 + $0xd0] sm:$0xff]
      %v4715 = vld [vmem:[#allocation5 + $0xd8] sm:$0xff]
      %v4716 = vld [vmem:[#allocation5 + $0xe0] sm:$0xff]
      %v4717 = vld [vmem:[#allocation5 + $0xe8] sm:$0xff]
      %v4718 = vld [vmem:[#allocation5 + $0xf0] sm:$0xff]
      %v4719 = vld [vmem:[#allocation5 + $0xf8] sm:$0xff]
      %v4720 = vld [vmem:[#allocation5 + $0x100] sm:$0xff]
      %v4721 = vld [vmem:[#allocation5 + $0x108] sm:$0xff]
      %v4722 = vld [vmem:[#allocation5 + $0x110] sm:$0xff]
      %v4723 = vld [vmem:[#allocation5 + $0x118] sm:$0xff]
      %v4724 = vld [vmem:[#allocation5 + $0x120] sm:$0xff]
      %v4725 = vld [vmem:[#allocation5 + $0x128] sm:$0xff]
      %v4726 = vld [vmem:[#allocation5 + $0x130] sm:$0xff]
      %v4727 = vld [vmem:[#allocation5 + $0x138] sm:$0xff]
      %v4728 = vld [vmem:[#allocation5 + $0x140] sm:$0xff]
      %v4729 = vld [vmem:[#allocation5 + $0x148] sm:$0xff]
      %v4730 = vld [vmem:[#allocation5 + $0x150] sm:$0xff]
      %v4731 = vld [vmem:[#allocation5 + $0x158] sm:$0xff]
      %v4732 = vld [vmem:[#allocation5 + $0x160] sm:$0xff]
      %v4733 = vld [vmem:[#allocation5 + $0x168] sm:$0xff]
      %v4734 = vld [vmem:[#allocation5 + $0x170] sm:$0xff]
      %v4735 = vld [vmem:[#allocation5 + $0x178] sm:$0xff]
      %v4736 = vld [vmem:[#allocation5 + $0x180] sm:$0xff]
      %v4737 = vld [vmem:[#allocation5 + $0x188] sm:$0xff]
      %v4738 = vld [vmem:[#allocation5 + $0x190] sm:$0xff]
      %v4739 = vld [vmem:[#allocation5 + $0x198] sm:$0xff]
      %v4740 = vld [vmem:[#allocation5 + $0x1a0] sm:$0xff]
      %v4741 = vld [vmem:[#allocation5 + $0x1a8] sm:$0xff]
      %v4742 = vld [vmem:[#allocation5 + $0x1b0] sm:$0xff]
      %v4743 = vld [vmem:[#allocation5 + $0x1b8] sm:$0xff]
      %v4744 = vld [vmem:[#allocation5 + $0x1c0] sm:$0xff]
      %v4745 = vld [vmem:[#allocation5 + $0x1c8] sm:$0xff]
      %v4746 = vld [vmem:[#allocation5 + $0x1d0] sm:$0xff]
      %v4747 = vld [vmem:[#allocation5 + $0x1d8] sm:$0xff]
      %v4748 = vld [vmem:[#allocation5 + $0x1e0] sm:$0xff]
      %v4749 = vld [vmem:[#allocation5 + $0x1e8] sm:$0xff]
      %v4750 = vld [vmem:[#allocation5 + $0x1f0] sm:$0xff]
      %v4751 = vld [vmem:[#allocation5 + $0x1f8] sm:$0xff]
      %v4752 = vld [vmem:[#allocation5 + $0x200] sm:$0xff]
      %v4753 = vld [vmem:[#allocation5 + $0x208] sm:$0xff]
      %v4754 = vld [vmem:[#allocation5 + $0x210] sm:$0xff]
      %v4755 = vld [vmem:[#allocation5 + $0x218] sm:$0xff]
      %v4756 = vld [vmem:[#allocation5 + $0x220] sm:$0xff]
      %v4757 = vld [vmem:[#allocation5 + $0x228] sm:$0xff]
      %v4758 = vld [vmem:[#allocation5 + $0x230] sm:$0xff]
      %v4759 = vld [vmem:[#allocation5 + $0x238] sm:$0xff]
      %v4760 = vld [vmem:[#allocation5 + $0x240] sm:$0xff]
      %v4761 = vld [vmem:[#allocation5 + $0x248] sm:$0xff]
      %v4762 = vld [vmem:[#allocation5 + $0x250] sm:$0xff]
      %v4763 = vld [vmem:[#allocation5 + $0x258] sm:$0xff]
      %v4764 = vld [vmem:[#allocation5 + $0x260] sm:$0xff]
      %v4765 = vld [vmem:[#allocation5 + $0x268] sm:$0xff]
      %v4766 = vld [vmem:[#allocation5 + $0x270] sm:$0xff]
      %v4767 = vld [vmem:[#allocation5 + $0x278] sm:$0xff]
      %v4768 = vld [vmem:[#allocation5 + $0x280] sm:$0xff]
      %v4769 = vld [vmem:[#allocation5 + $0x288] sm:$0xff]
      %v4770 = vld [vmem:[#allocation5 + $0x290] sm:$0xff]
      %v4771 = vld [vmem:[#allocation5 + $0x298] sm:$0xff]
      %v4772 = vld [vmem:[#allocation5 + $0x2a0] sm:$0xff]
      %v4773 = vld [vmem:[#allocation5 + $0x2a8] sm:$0xff]
      %v4774 = vld [vmem:[#allocation5 + $0x2b0] sm:$0xff]
      %v4775 = vld [vmem:[#allocation5 + $0x2b8] sm:$0xff]
      %v4776 = vld [vmem:[#allocation5 + $0x2c0] sm:$0xff]
      %v4777 = vld [vmem:[#allocation5 + $0x2c8] sm:$0xff]
      %s4778 = scalar_lea.vmem %s2, 48
      %v4779 = vld [vmem:[%s4778] sm:$0xff]
      %v4780 = vld [vmem:[%s4778 + $0x8] sm:$0xff]
      %4782 = vset.pattern.permute.xlu0 0
      %4783 = vperm.xlu0 %4782, %v4779
      %v4784 = vpop.permute.xlu0 %4783
      %4787 = vset.pattern.permute.xlu0 0
      %4788 = vperm.xlu0 %4787, %v4780
      %v4789 = vpop.permute.xlu0 %4788
      %v4793 = vunpack.c.l.b16 %v4686
      %v4794 = vunpack.c.h.b16 %v4686
      %v4795 = vunpack.c.l.b16 %v4687
      %v4796 = vunpack.c.h.b16 %v4687
      %v4797 = vpack.c.b16 %v4795, %v4793
      %v4798 = vpack.c.b16 %v4796, %v4794
      %v4801 = vsel %vm1107, %v4798, 0
      %4803 = vmatprep.subr.bf16.mxu0 %v4689
      %4804 = vmatpush1.bf16.msra.mxu0 %v4688
      %4805 = vmatprep.subr.bf16.mxu0 %v4699
      %4806 = vmatpush1.bf16.msra.mxu0 %v4698
      %4807 = vmatprep.subr.bf16.mxu0 %v4709
      %4808 = vmatpush1.bf16.msra.mxu0 %v4708
      %4809 = vmatprep.subr.bf16.mxu0 %v4719
      %4810 = vmatpush1.bf16.msra.mxu0 %v4718
      %4811 = vmatprep.subr.bf16.mxu0 %v4729
      %4812 = vmatpush1.bf16.msra.mxu0 %v4728
      %4813 = vmatprep.subr.bf16.mxu0 %v4739
      %4814 = vmatpush1.bf16.msra.mxu0 %v4738
      %4815 = vmatprep.subr.bf16.mxu0 %v4749
      %4816 = vmatpush1.bf16.msra.mxu0 %v4748
      %4817 = vmatprep.subr.bf16.mxu0 %v4759
      %4818 = vmatpush1.bf16.msra.mxu0 %v4758
      %4819 = vmatprep.subr.bf16.mxu0 %v4769
      %4820 = vmatpush1.bf16.msra.mxu0 %v4768
      %4821 = vmatprep.subr.bf16.mxu0 0
      %4822 = vmatpush1.bf16.msra.mxu0 0
      %4823 = vmatprep.subr.bf16.mxu0 0
      %4824 = vmatpush1.bf16.msra.mxu0 0
      %4825 = vmatprep.subr.bf16.mxu0 0
      %4826 = vmatpush1.bf16.msra.mxu0 0
      %4827 = vmatprep.subr.bf16.mxu0 0
      %4828 = vmatpush1.bf16.msra.mxu0 0
      %4829 = vmatprep.subr.bf16.mxu0 0
      %4830 = vmatpush1.bf16.msra.mxu0 0
      %4831 = vmatprep.subr.bf16.mxu0 0
      %4832 = vmatpush1.bf16.msra.mxu0 0
      %4833 = vmatprep.subr.bf16.mxu0 0
      %4834 = vmatpush1.bf16.msra.mxu0 0
      %4835 = vmatprep.mubr.bf16.mxu0 %v4801
      %4836 = vmatmul.mubr.bf16.gmra.mrb[0].mxu0 %v4797
      %v4837 = vpop.f32.mrb[0].mxu0
      %v4838 = vadd.f32 %v4784, %v4837
      %v4839 = vpop.f32.mrb[0].mxu0
      %v4840 = vadd.f32 %v4784, %v4839
      %v4841 = vpop.f32.mrb[0].mxu0
      %v4842 = vadd.f32 %v4789, %v4841
      %v4843 = vpop.f32.mrb[0].mxu0
      %v4844 = vadd.f32 %v4789, %v4843
      %4845 = vdwg.mxu0
      %4846 = vmatprep.subr.bf16.mxu0 %v4691
      %4847 = vmatpush1.bf16.msra.mxu0 %v4690
      %4848 = vmatprep.subr.bf16.mxu0 %v4701
      %4849 = vmatpush1.bf16.msra.mxu0 %v4700
      %4850 = vmatprep.subr.bf16.mxu0 %v4711
      %4851 = vmatpush1.bf16.msra.mxu0 %v4710
      %4852 = vmatprep.subr.bf16.mxu0 %v4721
      %4853 = vmatpush1.bf16.msra.mxu0 %v4720
      %4854 = vmatprep.subr.bf16.mxu0 %v4731
      %4855 = vmatpush1.bf16.msra.mxu0 %v4730
      %4856 = vmatprep.subr.bf16.mxu0 %v4741
      %4857 = vmatpush1.bf16.msra.mxu0 %v4740
      %4858 = vmatprep.subr.bf16.mxu0 %v4751
      %4859 = vmatpush1.bf16.msra.mxu0 %v4750
      %4860 = vmatprep.subr.bf16.mxu0 %v4761
      %4861 = vmatpush1.bf16.msra.mxu0 %v4760
      %4862 = vmatprep.subr.bf16.mxu0 %v4771
      %4863 = vmatpush1.bf16.msra.mxu0 %v4770
      %4864 = vmatprep.subr.bf16.mxu0 0
      %4865 = vmatpush1.bf16.msra.mxu0 0
      %4866 = vmatprep.subr.bf16.mxu0 0
      %4867 = vmatpush1.bf16.msra.mxu0 0
      %4868 = vmatprep.subr.bf16.mxu0 0
      %4869 = vmatpush1.bf16.msra.mxu0 0
      %4870 = vmatprep.subr.bf16.mxu0 0
      %4871 = vmatpush1.bf16.msra.mxu0 0
      %4872 = vmatprep.subr.bf16.mxu0 0
      %4873 = vmatpush1.bf16.msra.mxu0 0
      %4874 = vmatprep.subr.bf16.mxu0 0
      %4875 = vmatpush1.bf16.msra.mxu0 0
      %4876 = vmatprep.subr.bf16.mxu0 0
      %4877 = vmatpush1.bf16.msra.mxu0 0
      %4878 = vmatprep.mubr.bf16.mxu0 %v4801
      %4879 = vmatmul.mubr.bf16.gmra.mrb[0].mxu0 %v4797
      %v4880 = vpop.f32.mrb[0].mxu0
      %v4881 = vadd.f32 %v4784, %v4880
      %v4882 = vpop.f32.mrb[0].mxu0
      %v4883 = vadd.f32 %v4784, %v4882
      %v4884 = vpop.f32.mrb[0].mxu0
      %v4885 = vadd.f32 %v4789, %v4884
      %v4886 = vpop.f32.mrb[0].mxu0
      %v4887 = vadd.f32 %v4789, %v4886
      %4888 = vdwg.mxu0
      %4889 = vmatprep.subr.bf16.mxu0 %v4693
      %4890 = vmatpush1.bf16.msra.mxu0 %v4692
      %4891 = vmatprep.subr.bf16.mxu0 %v4703
      %4892 = vmatpush1.bf16.msra.mxu0 %v4702
      %4893 = vmatprep.subr.bf16.mxu0 %v4713
      %4894 = vmatpush1.bf16.msra.mxu0 %v4712
      %4895 = vmatprep.subr.bf16.mxu0 %v4723
      %4896 = vmatpush1.bf16.msra.mxu0 %v4722
      %4897 = vmatprep.subr.bf16.mxu0 %v4733
      %4898 = vmatpush1.bf16.msra.mxu0 %v4732
      %4899 = vmatprep.subr.bf16.mxu0 %v4743
      %4900 = vmatpush1.bf16.msra.mxu0 %v4742
      %4901 = vmatprep.subr.bf16.mxu0 %v4753
      %4902 = vmatpush1.bf16.msra.mxu0 %v4752
      %4903 = vmatprep.subr.bf16.mxu0 %v4763
      %4904 = vmatpush1.bf16.msra.mxu0 %v4762
      %4905 = vmatprep.subr.bf16.mxu0 %v4773
      %4906 = vmatpush1.bf16.msra.mxu0 %v4772
      %4907 = vmatprep.subr.bf16.mxu0 0
      %4908 = vmatpush1.bf16.msra.mxu0 0
      %4909 = vmatprep.subr.bf16.mxu0 0
      %4910 = vmatpush1.bf16.msra.mxu0 0
      %4911 = vmatprep.subr.bf16.mxu0 0
      %4912 = vmatpush1.bf16.msra.mxu0 0
      %4913 = vmatprep.subr.bf16.mxu0 0
      %4914 = vmatpush1.bf16.msra.mxu0 0
      %4915 = vmatprep.subr.bf16.mxu0 0
      %4916 = vmatpush1.bf16.msra.mxu0 0
      %4917 = vmatprep.subr.bf16.mxu0 0
      %4918 = vmatpush1.bf16.msra.mxu0 0
      %4919 = vmatprep.subr.bf16.mxu0 0
      %4920 = vmatpush1.bf16.msra.mxu0 0
      %4921 = vmatprep.mubr.bf16.mxu0 %v4801
      %4922 = vmatmul.mubr.bf16.gmra.mrb[0].mxu0 %v4797
      %v4923 = vpop.f32.mrb[0].mxu0
      %v4924 = vadd.f32 %v4784, %v4923
      %v4925 = vpop.f32.mrb[0].mxu0
      %v4926 = vadd.f32 %v4784, %v4925
      %v4927 = vpop.f32.mrb[0].mxu0
      %v4928 = vadd.f32 %v4789, %v4927
      %v4929 = vpop.f32.mrb[0].mxu0
      %v4930 = vadd.f32 %v4789, %v4929
      %4931 = vdwg.mxu0
      %4932 = vmatprep.subr.bf16.mxu0 %v4695
      %4933 = vmatpush1.bf16.msra.mxu0 %v4694
      %4934 = vmatprep.subr.bf16.mxu0 %v4705
      %4935 = vmatpush1.bf16.msra.mxu0 %v4704
      %4936 = vmatprep.subr.bf16.mxu0 %v4715
      %4937 = vmatpush1.bf16.msra.mxu0 %v4714
      %4938 = vmatprep.subr.bf16.mxu0 %v4725
      %4939 = vmatpush1.bf16.msra.mxu0 %v4724
      %4940 = vmatprep.subr.bf16.mxu0 %v4735
      %4941 = vmatpush1.bf16.msra.mxu0 %v4734
      %4942 = vmatprep.subr.bf16.mxu0 %v4745
      %4943 = vmatpush1.bf16.msra.mxu0 %v4744
      %4944 = vmatprep.subr.bf16.mxu0 %v4755
      %4945 = vmatpush1.bf16.msra.mxu0 %v4754
      %4946 = vmatprep.subr.bf16.mxu0 %v4765
      %4947 = vmatpush1.bf16.msra.mxu0 %v4764
      %4948 = vmatprep.subr.bf16.mxu0 %v4775
      %4949 = vmatpush1.bf16.msra.mxu0 %v4774
      %4950 = vmatprep.subr.bf16.mxu0 0
      %4951 = vmatpush1.bf16.msra.mxu0 0
      %4952 = vmatprep.subr.bf16.mxu0 0
      %4953 = vmatpush1.bf16.msra.mxu0 0
      %4954 = vmatprep.subr.bf16.mxu0 0
      %4955 = vmatpush1.bf16.msra.mxu0 0
      %4956 = vmatprep.subr.bf16.mxu0 0
      %4957 = vmatpush1.bf16.msra.mxu0 0
      %4958 = vmatprep.subr.bf16.mxu0 0
      %4959 = vmatpush1.bf16.msra.mxu0 0
      %4960 = vmatprep.subr.bf16.mxu0 0
      %4961 = vmatpush1.bf16.msra.mxu0 0
      %4962 = vmatprep.subr.bf16.mxu0 0
      %4963 = vmatpush1.bf16.msra.mxu0 0
      %4964 = vmatprep.mubr.bf16.mxu0 %v4801
      %4965 = vmatmul.mubr.bf16.gmra.mrb[0].mxu0 %v4797
      %v4966 = vpop.f32.mrb[0].mxu0
      %v4967 = vadd.f32 %v4784, %v4966
      %v4968 = vpop.f32.mrb[0].mxu0
      %v4969 = vadd.f32 %v4784, %v4968
      %v4970 = vpop.f32.mrb[0].mxu0
      %v4971 = vadd.f32 %v4789, %v4970
      %v4972 = vpop.f32.mrb[0].mxu0
      %v4973 = vadd.f32 %v4789, %v4972
      %4974 = vdwg.mxu0
      %4975 = vmatprep.subr.bf16.mxu0 %v4697
      %4976 = vmatpush1.bf16.msra.mxu0 %v4696
      %4977 = vmatprep.subr.bf16.mxu0 %v4707
      %4978 = vmatpush1.bf16.msra.mxu0 %v4706
      %4979 = vmatprep.subr.bf16.mxu0 %v4717
      %4980 = vmatpush1.bf16.msra.mxu0 %v4716
      %4981 = vmatprep.subr.bf16.mxu0 %v4727
      %4982 = vmatpush1.bf16.msra.mxu0 %v4726
      %4983 = vmatprep.subr.bf16.mxu0 %v4737
      %4984 = vmatpush1.bf16.msra.mxu0 %v4736
      %4985 = vmatprep.subr.bf16.mxu0 %v4747
      %4986 = vmatpush1.bf16.msra.mxu0 %v4746
      %4987 = vmatprep.subr.bf16.mxu0 %v4757
      %4988 = vmatpush1.bf16.msra.mxu0 %v4756
      %4989 = vmatprep.subr.bf16.mxu0 %v4767
      %4990 = vmatpush1.bf16.msra.mxu0 %v4766
      %4991 = vmatprep.subr.bf16.mxu0 %v4777
      %4992 = vmatpush1.bf16.msra.mxu0 %v4776
      %4993 = vmatprep.subr.bf16.mxu0 0
      %4994 = vmatpush1.bf16.msra.mxu0 0
      %4995 = vmatprep.subr.bf16.mxu0 0
      %4996 = vmatpush1.bf16.msra.mxu0 0
      %4997 = vmatprep.subr.bf16.mxu0 0
      %4998 = vmatpush1.bf16.msra.mxu0 0
      %4999 = vmatprep.subr.bf16.mxu0 0
      %5000 = vmatpush1.bf16.msra.mxu0 0
      %5001 = vmatprep.subr.bf16.mxu0 0
      %5002 = vmatpush1.bf16.msra.mxu0 0
      %5003 = vmatprep.subr.bf16.mxu0 0
      %5004 = vmatpush1.bf16.msra.mxu0 0
      %5005 = vmatprep.subr.bf16.mxu0 0
      %5006 = vmatpush1.bf16.msra.mxu0 0
      %5007 = vmatprep.mubr.bf16.mxu0 %v4801
      %5008 = vmatmul.mubr.bf16.gmra.mrb[0].mxu0 %v4797
      %v5009 = vpop.f32.mrb[0].mxu0
      %v5010 = vadd.f32 %v4784, %v5009
      %v5011 = vpop.f32.mrb[0].mxu0
      %v5012 = vadd.f32 %v4784, %v5011
      %v5013 = vpop.f32.mrb[0].mxu0
      %v5014 = vadd.f32 %v4789, %v5013
      %v5015 = vpop.f32.mrb[0].mxu0
      %v5016 = vadd.f32 %v4789, %v5015
      %5017 = vdwg.mxu0
      %v5018 = vmax.f32 %v4838, 0.0
      %v5019 = vmax.f32 %v4840, 0.0
      %v5020 = vmax.f32 %v4881, 0.0
      %v5021 = vmax.f32 %v4883, 0.0
      %v5022 = vmax.f32 %v4924, 0.0
      %v5023 = vmax.f32 %v4926, 0.0
      %v5024 = vmax.f32 %v4967, 0.0
      %v5025 = vmax.f32 %v4969, 0.0
      %v5026 = vmax.f32 %v5010, 0.0
      %v5027 = vmax.f32 %v5012, 0.0
      %v5028 = vmax.f32 %v4842, 0.0
      %v5029 = vmax.f32 %v4844, 0.0
      %v5030 = vmax.f32 %v4885, 0.0
      %v5031 = vmax.f32 %v4887, 0.0
      %v5032 = vmax.f32 %v4928, 0.0
      %v5033 = vmax.f32 %v4930, 0.0
      %v5034 = vmax.f32 %v4971, 0.0
      %v5035 = vmax.f32 %v4973, 0.0
      %v5036 = vmax.f32 %v5014, 0.0
      %v5037 = vmax.f32 %v5016, 0.0
      %5038 = vst [vmem:[#allocation3] sm:$0xff] %v5018
      %5039 = vst [vmem:[#allocation3 + $0x8] sm:$0xff] %v5019
      %5040 = vst [vmem:[#allocation3 + $0x10] sm:$0xff] %v5020
      %5041 = vst [vmem:[#allocation3 + $0x18] sm:$0xff] %v5021
      %5042 = vst [vmem:[#allocation3 + $0x20] sm:$0xff] %v5022
      %5043 = vst [vmem:[#allocation3 + $0x28] sm:$0xff] %v5023
      %5044 = vst [vmem:[#allocation3 + $0x30] sm:$0xff] %v5024
      %5045 = vst [vmem:[#allocation3 + $0x38] sm:$0xff] %v5025
      %5046 = vst [vmem:[#allocation3 + $0x40] sm:$0xff] %v5026
      %5047 = vst [vmem:[#allocation3 + $0x48] sm:$0xff] %v5027
      %5048 = vst [vmem:[#allocation3 + $0x58] sm:$0xff] %v5028
      %5049 = vst [vmem:[#allocation3 + $0x60] sm:$0xff] %v5029
      %5050 = vst [vmem:[#allocation3 + $0x68] sm:$0xff] %v5030
      %5051 = vst [vmem:[#allocation3 + $0x70] sm:$0xff] %v5031
      %5052 = vst [vmem:[#allocation3 + $0x78] sm:$0xff] %v5032
      %5053 = vst [vmem:[#allocation3 + $0x80] sm:$0xff] %v5033
      %5054 = vst [vmem:[#allocation3 + $0x88] sm:$0xff] %v5034
      %5055 = vst [vmem:[#allocation3 + $0x90] sm:$0xff] %v5035
      %5056 = vst [vmem:[#allocation3 + $0x98] sm:$0xff] %v5036
      %5057 = vst [vmem:[#allocation3 + $0xa0] sm:$0xff] %v5037
      %v5058 = vld [vmem:[#allocation3] sm:$0xff]
      %v5059 = vld [vmem:[#allocation3 + $0x8] sm:$0xff]
      %v5060 = vld [vmem:[#allocation3 + $0x10] sm:$0xff]
      %v5061 = vld [vmem:[#allocation3 + $0x18] sm:$0xff]
      %v5062 = vld [vmem:[#allocation3 + $0x20] sm:$0xff]
      %v5063 = vld [vmem:[#allocation3 + $0x28] sm:$0xff]
      %v5064 = vld [vmem:[#allocation3 + $0x30] sm:$0xff]
      %v5065 = vld [vmem:[#allocation3 + $0x38] sm:$0xff]
      %v5066 = vld [vmem:[#allocation3 + $0x40] sm:$0xff]
      %v5067 = vld [vmem:[#allocation3 + $0x48] sm:$0xff]
      %v5068 = vld [vmem:[#allocation3 + $0x58] sm:$0xff]
      %v5069 = vld [vmem:[#allocation3 + $0x60] sm:$0xff]
      %v5070 = vld [vmem:[#allocation3 + $0x68] sm:$0xff]
      %v5071 = vld [vmem:[#allocation3 + $0x70] sm:$0xff]
      %v5072 = vld [vmem:[#allocation3 + $0x78] sm:$0xff]
      %v5073 = vld [vmem:[#allocation3 + $0x80] sm:$0xff]
      %v5074 = vld [vmem:[#allocation3 + $0x88] sm:$0xff]
      %v5075 = vld [vmem:[#allocation3 + $0x90] sm:$0xff]
      %v5076 = vld [vmem:[#allocation3 + $0x98] sm:$0xff]
      %v5077 = vld [vmem:[#allocation3 + $0xa0] sm:$0xff]
      %v5078 = vpack.c.bf16 %v5068, %v5058
      %v5079 = vpack.c.bf16 %v5069, %v5059
      %v5080 = vpack.c.bf16 %v5070, %v5060
      %v5081 = vpack.c.bf16 %v5071, %v5061
      %v5082 = vpack.c.bf16 %v5072, %v5062
      %v5083 = vpack.c.bf16 %v5073, %v5063
      %v5084 = vpack.c.bf16 %v5074, %v5064
      %v5085 = vpack.c.bf16 %v5075, %v5065
      %v5086 = vpack.c.bf16 %v5076, %v5066
      %v5087 = vpack.c.bf16 %v5077, %v5067
      %5088 = vst [vmem:[#allocation5] sm:$0xff] %v5078
      %5089 = vst [vmem:[#allocation5 + $0x8] sm:$0xff] %v5079
      %5090 = vst [vmem:[#allocation5 + $0x10] sm:$0xff] %v5080
      %5091 = vst [vmem:[#allocation5 + $0x18] sm:$0xff] %v5081
      %5092 = vst [vmem:[#allocation5 + $0x20] sm:$0xff] %v5082
      %5093 = vst [vmem:[#allocation5 + $0x28] sm:$0xff] %v5083
      %5094 = vst [vmem:[#allocation5 + $0x30] sm:$0xff] %v5084
      %5095 = vst [vmem:[#allocation5 + $0x38] sm:$0xff] %v5085
      %5096 = vst [vmem:[#allocation5 + $0x40] sm:$0xff] %v5086
      %5097 = vst [vmem:[#allocation5 + $0x48] sm:$0xff] %v5087
      %v5098 = vld [vmem:[#allocation3] sm:$0xff]
      %v5099 = vld [vmem:[#allocation3 + $0x8] sm:$0xff]
      %v5100 = vld [vmem:[#allocation3 + $0x10] sm:$0xff]
      %v5101 = vld [vmem:[#allocation3 + $0x18] sm:$0xff]
      %v5102 = vld [vmem:[#allocation3 + $0x20] sm:$0xff]
      %v5103 = vld [vmem:[#allocation3 + $0x28] sm:$0xff]
      %v5104 = vld [vmem:[#allocation3 + $0x30] sm:$0xff]
      %v5105 = vld [vmem:[#allocation3 + $0x38] sm:$0xff]
      %v5106 = vld [vmem:[#allocation3 + $0x40] sm:$0xff]
      %v5107 = vld [vmem:[#allocation3 + $0x48] sm:$0xff]
      %v5108 = vld [vmem:[#allocation3 + $0x50] sm:$0xff]
      %v5109 = vld [vmem:[#allocation3 + $0x58] sm:$0xff]
      %v5110 = vld [vmem:[#allocation3 + $0x60] sm:$0xff]
      %v5111 = vld [vmem:[#allocation3 + $0x68] sm:$0xff]
      %v5112 = vld [vmem:[#allocation3 + $0x70] sm:$0xff]
      %v5113 = vld [vmem:[#allocation3 + $0x78] sm:$0xff]
      %v5114 = vld [vmem:[#allocation3 + $0x80] sm:$0xff]
      %v5115 = vld [vmem:[#allocation3 + $0x88] sm:$0xff]
      %v5116 = vld [vmem:[#allocation3 + $0x90] sm:$0xff]
      %v5117 = vld [vmem:[#allocation3 + $0x98] sm:$0xff]
      %v5118 = vld [vmem:[#allocation3 + $0xa0] sm:$0xff]
      %v5119 = vld [vmem:[#allocation3 + $0xa8] sm:$0xff]
      %v5120 = vpack.c.bf16 %v5109, %v5098
      %v5121 = vpack.c.bf16 %v5110, %v5099
      %v5122 = vpack.c.bf16 %v5111, %v5100
      %v5123 = vpack.c.bf16 %v5112, %v5101
      %v5124 = vpack.c.bf16 %v5113, %v5102
      %v5125 = vpack.c.bf16 %v5114, %v5103
      %v5126 = vpack.c.bf16 %v5115, %v5104
      %v5127 = vpack.c.bf16 %v5116, %v5105
      %v5128 = vpack.c.bf16 %v5117, %v5106
      %v5129 = vpack.c.bf16 %v5118, %v5107
      %v5130 = vpack.c.bf16 %v5119, %v5108
      %5142 = vrot.lane.b32.xlu0 %v5120, 127
      %v5143 = vpop.permute.xlu0 %5142
      %5144 = vrot.lane.b32.xlu0 %v5121, 127
      %v5145 = vpop.permute.xlu0 %5144
      %5146 = vrot.lane.b32.xlu0 %v5122, 127
      %v5147 = vpop.permute.xlu0 %5146
      %5148 = vrot.lane.b32.xlu0 %v5123, 127
      %v5149 = vpop.permute.xlu0 %5148
      %5150 = vrot.lane.b32.xlu0 %v5124, 127
      %v5151 = vpop.permute.xlu0 %5150
      %5152 = vrot.lane.b32.xlu0 %v5125, 127
      %v5153 = vpop.permute.xlu0 %5152
      %5154 = vrot.lane.b32.xlu0 %v5126, 127
      %v5155 = vpop.permute.xlu0 %5154
      %5156 = vrot.lane.b32.xlu0 %v5127, 127
      %v5157 = vpop.permute.xlu0 %5156
      %5158 = vrot.lane.b32.xlu0 %v5128, 127
      %v5159 = vpop.permute.xlu0 %5158
      %5160 = vrot.lane.b32.xlu0 %v5129, 127
      %v5161 = vpop.permute.xlu0 %5160
      %5162 = vrot.lane.b32.xlu0 %v5130, 127
      %v5163 = vpop.permute.xlu0 %5162
      %v5164 = vsel %vm284, %v5143, %v5145
      %v5165 = vsel %vm284, %v5145, %v5147
      %v5166 = vsel %vm284, %v5147, %v5149
      %v5167 = vsel %vm284, %v5149, %v5151
      %v5168 = vsel %vm284, %v5151, %v5153
      %v5169 = vsel %vm284, %v5153, %v5155
      %v5170 = vsel %vm284, %v5155, %v5157
      %v5171 = vsel %vm284, %v5157, %v5159
      %v5172 = vsel %vm284, %v5159, %v5161
      %v5173 = vsel %vm284, %v5161, %v5163
      %5184 = vst [vmem:[#allocation5 + $0x50] sm:$0xff] %v5164
      %5185 = vst [vmem:[#allocation5 + $0x58] sm:$0xff] %v5165
      %5186 = vst [vmem:[#allocation5 + $0x60] sm:$0xff] %v5166
      %5187 = vst [vmem:[#allocation5 + $0x68] sm:$0xff] %v5167
      %5188 = vst [vmem:[#allocation5 + $0x70] sm:$0xff] %v5168
      %5189 = vst [vmem:[#allocation5 + $0x78] sm:$0xff] %v5169
      %5190 = vst [vmem:[#allocation5 + $0x80] sm:$0xff] %v5170
      %5191 = vst [vmem:[#allocation5 + $0x88] sm:$0xff] %v5171
      %5192 = vst [vmem:[#allocation5 + $0x90] sm:$0xff] %v5172
      %5193 = vst [vmem:[#allocation5 + $0x98] sm:$0xff] %v5173
      %v5194 = vld [vmem:[#allocation3] sm:$0xff]
      %v5195 = vld [vmem:[#allocation3 + $0x8] sm:$0xff]
      %v5196 = vld [vmem:[#allocation3 + $0x10] sm:$0xff]
      %v5197 = vld [vmem:[#allocation3 + $0x18] sm:$0xff]
      %v5198 = vld [vmem:[#allocation3 + $0x20] sm:$0xff]
      %v5199 = vld [vmem:[#allocation3 + $0x28] sm:$0xff]
      %v5200 = vld [vmem:[#allocation3 + $0x30] sm:$0xff]
      %v5201 = vld [vmem:[#allocation3 + $0x38] sm:$0xff]
      %v5202 = vld [vmem:[#allocation3 + $0x40] sm:$0xff]
      %v5203 = vld [vmem:[#allocation3 + $0x48] sm:$0xff]
      %v5204 = vld [vmem:[#allocation3 + $0x50] sm:$0xff]
      %v5205 = vld [vmem:[#allocation3 + $0x58] sm:$0xff]
      %v5206 = vld [vmem:[#allocation3 + $0x60] sm:$0xff]
      %v5207 = vld [vmem:[#allocation3 + $0x68] sm:$0xff]
      %v5208 = vld [vmem:[#allocation3 + $0x70] sm:$0xff]
      %v5209 = vld [vmem:[#allocation3 + $0x78] sm:$0xff]
      %v5210 = vld [vmem:[#allocation3 + $0x80] sm:$0xff]
      %v5211 = vld [vmem:[#allocation3 + $0x88] sm:$0xff]
      %v5212 = vld [vmem:[#allocation3 + $0x90] sm:$0xff]
      %v5213 = vld [vmem:[#allocation3 + $0x98] sm:$0xff]
      %v5214 = vld [vmem:[#allocation3 + $0xa0] sm:$0xff]
      %v5215 = vld [vmem:[#allocation3 + $0xa8] sm:$0xff]
      %v5216 = vpack.c.bf16 %v5205, %v5194
      %v5217 = vpack.c.bf16 %v5206, %v5195
      %v5218 = vpack.c.bf16 %v5207, %v5196
      %v5219 = vpack.c.bf16 %v5208, %v5197
      %v5220 = vpack.c.bf16 %v5209, %v5198
      %v5221 = vpack.c.bf16 %v5210, %v5199
      %v5222 = vpack.c.bf16 %v5211, %v5200
      %v5223 = vpack.c.bf16 %v5212, %v5201
      %v5224 = vpack.c.bf16 %v5213, %v5202
      %v5225 = vpack.c.bf16 %v5214, %v5203
      %v5226 = vpack.c.bf16 %v5215, %v5204
      %5238 = vrot.lane.b32.xlu0 %v5216, 126
      %v5239 = vpop.permute.xlu0 %5238
      %5240 = vrot.lane.b32.xlu0 %v5217, 126
      %v5241 = vpop.permute.xlu0 %5240
      %5242 = vrot.lane.b32.xlu0 %v5218, 126
      %v5243 = vpop.permute.xlu0 %5242
      %5244 = vrot.lane.b32.xlu0 %v5219, 126
      %v5245 = vpop.permute.xlu0 %5244
      %5246 = vrot.lane.b32.xlu0 %v5220, 126
      %v5247 = vpop.permute.xlu0 %5246
      %5248 = vrot.lane.b32.xlu0 %v5221, 126
      %v5249 = vpop.permute.xlu0 %5248
      %5250 = vrot.lane.b32.xlu0 %v5222, 126
      %v5251 = vpop.permute.xlu0 %5250
      %5252 = vrot.lane.b32.xlu0 %v5223, 126
      %v5253 = vpop.permute.xlu0 %5252
      %5254 = vrot.lane.b32.xlu0 %v5224, 126
      %v5255 = vpop.permute.xlu0 %5254
      %5256 = vrot.lane.b32.xlu0 %v5225, 126
      %v5257 = vpop.permute.xlu0 %5256
      %5258 = vrot.lane.b32.xlu0 %v5226, 126
      %v5259 = vpop.permute.xlu0 %5258
      %v5260 = vsel %vm381, %v5239, %v5241
      %v5261 = vsel %vm381, %v5241, %v5243
      %v5262 = vsel %vm381, %v5243, %v5245
      %v5263 = vsel %vm381, %v5245, %v5247
      %v5264 = vsel %vm381, %v5247, %v5249
      %v5265 = vsel %vm381, %v5249, %v5251
      %v5266 = vsel %vm381, %v5251, %v5253
      %v5267 = vsel %vm381, %v5253, %v5255
      %v5268 = vsel %vm381, %v5255, %v5257
      %v5269 = vsel %vm381, %v5257, %v5259
      %5280 = vst [vmem:[#allocation5 + $0xa0] sm:$0xff] %v5260
      %5281 = vst [vmem:[#allocation5 + $0xa8] sm:$0xff] %v5261
      %5282 = vst [vmem:[#allocation5 + $0xb0] sm:$0xff] %v5262
      %5283 = vst [vmem:[#allocation5 + $0xb8] sm:$0xff] %v5263
      %5284 = vst [vmem:[#allocation5 + $0xc0] sm:$0xff] %v5264
      %5285 = vst [vmem:[#allocation5 + $0xc8] sm:$0xff] %v5265
      %5286 = vst [vmem:[#allocation5 + $0xd0] sm:$0xff] %v5266
      %5287 = vst [vmem:[#allocation5 + $0xd8] sm:$0xff] %v5267
      %5288 = vst [vmem:[#allocation5 + $0xe0] sm:$0xff] %v5268
      %5289 = vst [vmem:[#allocation5 + $0xe8] sm:$0xff] %v5269
      %v5290 = vld [vmem:[#allocation3] sm:$0xff]
      %v5291 = vld [vmem:[#allocation3 + $0x8] sm:$0xff]
      %v5292 = vld [vmem:[#allocation3 + $0x10] sm:$0xff]
      %v5293 = vld [vmem:[#allocation3 + $0x18] sm:$0xff]
      %v5294 = vld [vmem:[#allocation3 + $0x20] sm:$0xff]
      %v5295 = vld [vmem:[#allocation3 + $0x28] sm:$0xff]
      %v5296 = vld [vmem:[#allocation3 + $0x30] sm:$0xff]
      %v5297 = vld [vmem:[#allocation3 + $0x38] sm:$0xff]
      %v5298 = vld [vmem:[#allocation3 + $0x40] sm:$0xff]
      %v5299 = vld [vmem:[#allocation3 + $0x48] sm:$0xff]
      %v5300 = vld [vmem:[#allocation3 + $0x50] sm:$0xff]
      %v5301 = vld [vmem:[#allocation3 + $0x58] sm:$0xff]
      %v5302 = vld [vmem:[#allocation3 + $0x60] sm:$0xff]
      %v5303 = vld [vmem:[#allocation3 + $0x68] sm:$0xff]
      %v5304 = vld [vmem:[#allocation3 + $0x70] sm:$0xff]
      %v5305 = vld [vmem:[#allocation3 + $0x78] sm:$0xff]
      %v5306 = vld [vmem:[#allocation3 + $0x80] sm:$0xff]
      %v5307 = vld [vmem:[#allocation3 + $0x88] sm:$0xff]
      %v5308 = vld [vmem:[#allocation3 + $0x90] sm:$0xff]
      %v5309 = vld [vmem:[#allocation3 + $0x98] sm:$0xff]
      %v5310 = vld [vmem:[#allocation3 + $0xa0] sm:$0xff]
      %v5311 = vld [vmem:[#allocation3 + $0xa8] sm:$0xff]
      %v5312 = vpack.c.bf16 %v5301, %v5290
      %v5313 = vpack.c.bf16 %v5302, %v5291
      %v5314 = vpack.c.bf16 %v5303, %v5292
      %v5315 = vpack.c.bf16 %v5304, %v5293
      %v5316 = vpack.c.bf16 %v5305, %v5294
      %v5317 = vpack.c.bf16 %v5306, %v5295
      %v5318 = vpack.c.bf16 %v5307, %v5296
      %v5319 = vpack.c.bf16 %v5308, %v5297
      %v5320 = vpack.c.bf16 %v5309, %v5298
      %v5321 = vpack.c.bf16 %v5310, %v5299
      %v5322 = vpack.c.bf16 %v5311, %v5300
      %5334 = vrot.lane.b32.xlu0 %v5312, 104
      %v5335 = vpop.permute.xlu0 %5334
      %5336 = vrot.lane.b32.xlu0 %v5313, 104
      %v5337 = vpop.permute.xlu0 %5336
      %5338 = vrot.lane.b32.xlu0 %v5314, 104
      %v5339 = vpop.permute.xlu0 %5338
      %5340 = vrot.lane.b32.xlu0 %v5315, 104
      %v5341 = vpop.permute.xlu0 %5340
      %5342 = vrot.lane.b32.xlu0 %v5316, 104
      %v5343 = vpop.permute.xlu0 %5342
      %5344 = vrot.lane.b32.xlu0 %v5317, 104
      %v5345 = vpop.permute.xlu0 %5344
      %5346 = vrot.lane.b32.xlu0 %v5318, 104
      %v5347 = vpop.permute.xlu0 %5346
      %5348 = vrot.lane.b32.xlu0 %v5319, 104
      %v5349 = vpop.permute.xlu0 %5348
      %5350 = vrot.lane.b32.xlu0 %v5320, 104
      %v5351 = vpop.permute.xlu0 %5350
      %5352 = vrot.lane.b32.xlu0 %v5321, 104
      %v5353 = vpop.permute.xlu0 %5352
      %5354 = vrot.lane.b32.xlu0 %v5322, 104
      %v5355 = vpop.permute.xlu0 %5354
      %v5356 = vsel %vm478, %v5335, %v5337
      %v5357 = vsel %vm478, %v5337, %v5339
      %v5358 = vsel %vm478, %v5339, %v5341
      %v5359 = vsel %vm478, %v5341, %v5343
      %v5360 = vsel %vm478, %v5343, %v5345
      %v5361 = vsel %vm478, %v5345, %v5347
      %v5362 = vsel %vm478, %v5347, %v5349
      %v5363 = vsel %vm478, %v5349, %v5351
      %v5364 = vsel %vm478, %v5351, %v5353
      %v5365 = vsel %vm478, %v5353, %v5355
      %5376 = vst [vmem:[#allocation5 + $0xf0] sm:$0xff] %v5356
      %5377 = vst [vmem:[#allocation5 + $0xf8] sm:$0xff] %v5357
      %5378 = vst [vmem:[#allocation5 + $0x100] sm:$0xff] %v5358
      %5379 = vst [vmem:[#allocation5 + $0x108] sm:$0xff] %v5359
      %5380 = vst [vmem:[#allocation5 + $0x110] sm:$0xff] %v5360
      %5381 = vst [vmem:[#allocation5 + $0x118] sm:$0xff] %v5361
      %5382 = vst [vmem:[#allocation5 + $0x120] sm:$0xff] %v5362
      %5383 = vst [vmem:[#allocation5 + $0x128] sm:$0xff] %v5363
      %5384 = vst [vmem:[#allocation5 + $0x130] sm:$0xff] %v5364
      %5385 = vst [vmem:[#allocation5 + $0x138] sm:$0xff] %v5365
      %v5386 = vld [vmem:[#allocation3] sm:$0xff]
      %v5387 = vld [vmem:[#allocation3 + $0x8] sm:$0xff]
      %v5388 = vld [vmem:[#allocation3 + $0x10] sm:$0xff]
      %v5389 = vld [vmem:[#allocation3 + $0x18] sm:$0xff]
      %v5390 = vld [vmem:[#allocation3 + $0x20] sm:$0xff]
      %v5391 = vld [vmem:[#allocation3 + $0x28] sm:$0xff]
      %v5392 = vld [vmem:[#allocation3 + $0x30] sm:$0xff]
      %v5393 = vld [vmem:[#allocation3 + $0x38] sm:$0xff]
      %v5394 = vld [vmem:[#allocation3 + $0x40] sm:$0xff]
      %v5395 = vld [vmem:[#allocation3 + $0x48] sm:$0xff]
      %v5396 = vld [vmem:[#allocation3 + $0x50] sm:$0xff]
      %v5397 = vld [vmem:[#allocation3 + $0x58] sm:$0xff]
      %v5398 = vld [vmem:[#allocation3 + $0x60] sm:$0xff]
      %v5399 = vld [vmem:[#allocation3 + $0x68] sm:$0xff]
      %v5400 = vld [vmem:[#allocation3 + $0x70] sm:$0xff]
      %v5401 = vld [vmem:[#allocation3 + $0x78] sm:$0xff]
      %v5402 = vld [vmem:[#allocation3 + $0x80] sm:$0xff]
      %v5403 = vld [vmem:[#allocation3 + $0x88] sm:$0xff]
      %v5404 = vld [vmem:[#allocation3 + $0x90] sm:$0xff]
      %v5405 = vld [vmem:[#allocation3 + $0x98] sm:$0xff]
      %v5406 = vld [vmem:[#allocation3 + $0xa0] sm:$0xff]
      %v5407 = vld [vmem:[#allocation3 + $0xa8] sm:$0xff]
      %v5408 = vpack.c.bf16 %v5397, %v5386
      %v5409 = vpack.c.bf16 %v5398, %v5387
      %v5410 = vpack.c.bf16 %v5399, %v5388
      %v5411 = vpack.c.bf16 %v5400, %v5389
      %v5412 = vpack.c.bf16 %v5401, %v5390
      %v5413 = vpack.c.bf16 %v5402, %v5391
      %v5414 = vpack.c.bf16 %v5403, %v5392
      %v5415 = vpack.c.bf16 %v5404, %v5393
      %v5416 = vpack.c.bf16 %v5405, %v5394
      %v5417 = vpack.c.bf16 %v5406, %v5395
      %v5418 = vpack.c.bf16 %v5407, %v5396
      %5430 = vrot.lane.b32.xlu0 %v5408, 103
      %v5431 = vpop.permute.xlu0 %5430
      %5432 = vrot.lane.b32.xlu0 %v5409, 103
      %v5433 = vpop.permute.xlu0 %5432
      %5434 = vrot.lane.b32.xlu0 %v5410, 103
      %v5435 = vpop.permute.xlu0 %5434
      %5436 = vrot.lane.b32.xlu0 %v5411, 103
      %v5437 = vpop.permute.xlu0 %5436
      %5438 = vrot.lane.b32.xlu0 %v5412, 103
      %v5439 = vpop.permute.xlu0 %5438
      %5440 = vrot.lane.b32.xlu0 %v5413, 103
      %v5441 = vpop.permute.xlu0 %5440
      %5442 = vrot.lane.b32.xlu0 %v5414, 103
      %v5443 = vpop.permute.xlu0 %5442
      %5444 = vrot.lane.b32.xlu0 %v5415, 103
      %v5445 = vpop.permute.xlu0 %5444
      %5446 = vrot.lane.b32.xlu0 %v5416, 103
      %v5447 = vpop.permute.xlu0 %5446
      %5448 = vrot.lane.b32.xlu0 %v5417, 103
      %v5449 = vpop.permute.xlu0 %5448
      %5450 = vrot.lane.b32.xlu0 %v5418, 103
      %v5451 = vpop.permute.xlu0 %5450
      %v5452 = vsel %vm575, %v5431, %v5433
      %v5453 = vsel %vm575, %v5433, %v5435
      %v5454 = vsel %vm575, %v5435, %v5437
      %v5455 = vsel %vm575, %v5437, %v5439
      %v5456 = vsel %vm575, %v5439, %v5441
      %v5457 = vsel %vm575, %v5441, %v5443
      %v5458 = vsel %vm575, %v5443, %v5445
      %v5459 = vsel %vm575, %v5445, %v5447
      %v5460 = vsel %vm575, %v5447, %v5449
      %v5461 = vsel %vm575, %v5449, %v5451
      %5472 = vst [vmem:[#allocation5 + $0x140] sm:$0xff] %v5452
      %5473 = vst [vmem:[#allocation5 + $0x148] sm:$0xff] %v5453
      %5474 = vst [vmem:[#allocation5 + $0x150] sm:$0xff] %v5454
      %5475 = vst [vmem:[#allocation5 + $0x158] sm:$0xff] %v5455
      %5476 = vst [vmem:[#allocation5 + $0x160] sm:$0xff] %v5456
      %5477 = vst [vmem:[#allocation5 + $0x168] sm:$0xff] %v5457
      %5478 = vst [vmem:[#allocation5 + $0x170] sm:$0xff] %v5458
      %5479 = vst [vmem:[#allocation5 + $0x178] sm:$0xff] %v5459
      %5480 = vst [vmem:[#allocation5 + $0x180] sm:$0xff] %v5460
      %5481 = vst [vmem:[#allocation5 + $0x188] sm:$0xff] %v5461
      %v5482 = vld [vmem:[#allocation3] sm:$0xff]
      %v5483 = vld [vmem:[#allocation3 + $0x8] sm:$0xff]
      %v5484 = vld [vmem:[#allocation3 + $0x10] sm:$0xff]
      %v5485 = vld [vmem:[#allocation3 + $0x18] sm:$0xff]
      %v5486 = vld [vmem:[#allocation3 + $0x20] sm:$0xff]
      %v5487 = vld [vmem:[#allocation3 + $0x28] sm:$0xff]
      %v5488 = vld [vmem:[#allocation3 + $0x30] sm:$0xff]
      %v5489 = vld [vmem:[#allocation3 + $0x38] sm:$0xff]
      %v5490 = vld [vmem:[#allocation3 + $0x40] sm:$0xff]
      %v5491 = vld [vmem:[#allocation3 + $0x48] sm:$0xff]
      %v5492 = vld [vmem:[#allocation3 + $0x50] sm:$0xff]
      %v5493 = vld [vmem:[#allocation3 + $0x58] sm:$0xff]
      %v5494 = vld [vmem:[#allocation3 + $0x60] sm:$0xff]
      %v5495 = vld [vmem:[#allocation3 + $0x68] sm:$0xff]
      %v5496 = vld [vmem:[#allocation3 + $0x70] sm:$0xff]
      %v5497 = vld [vmem:[#allocation3 + $0x78] sm:$0xff]
      %v5498 = vld [vmem:[#allocation3 + $0x80] sm:$0xff]
      %v5499 = vld [vmem:[#allocation3 + $0x88] sm:$0xff]
      %v5500 = vld [vmem:[#allocation3 + $0x90] sm:$0xff]
      %v5501 = vld [vmem:[#allocation3 + $0x98] sm:$0xff]
      %v5502 = vld [vmem:[#allocation3 + $0xa0] sm:$0xff]
      %v5503 = vld [vmem:[#allocation3 + $0xa8] sm:$0xff]
      %v5504 = vpack.c.bf16 %v5493, %v5482
      %v5505 = vpack.c.bf16 %v5494, %v5483
      %v5506 = vpack.c.bf16 %v5495, %v5484
      %v5507 = vpack.c.bf16 %v5496, %v5485
      %v5508 = vpack.c.bf16 %v5497, %v5486
      %v5509 = vpack.c.bf16 %v5498, %v5487
      %v5510 = vpack.c.bf16 %v5499, %v5488
      %v5511 = vpack.c.bf16 %v5500, %v5489
      %v5512 = vpack.c.bf16 %v5501, %v5490
      %v5513 = vpack.c.bf16 %v5502, %v5491
      %v5514 = vpack.c.bf16 %v5503, %v5492
      %5526 = vrot.lane.b32.xlu0 %v5504, 102
      %v5527 = vpop.permute.xlu0 %5526
      %5528 = vrot.lane.b32.xlu0 %v5505, 102
      %v5529 = vpop.permute.xlu0 %5528
      %5530 = vrot.lane.b32.xlu0 %v5506, 102
      %v5531 = vpop.permute.xlu0 %5530
      %5532 = vrot.lane.b32.xlu0 %v5507, 102
      %v5533 = vpop.permute.xlu0 %5532
      %5534 = vrot.lane.b32.xlu0 %v5508, 102
      %v5535 = vpop.permute.xlu0 %5534
      %5536 = vrot.lane.b32.xlu0 %v5509, 102
      %v5537 = vpop.permute.xlu0 %5536
      %5538 = vrot.lane.b32.xlu0 %v5510, 102
      %v5539 = vpop.permute.xlu0 %5538
      %5540 = vrot.lane.b32.xlu0 %v5511, 102
      %v5541 = vpop.permute.xlu0 %5540
      %5542 = vrot.lane.b32.xlu0 %v5512, 102
      %v5543 = vpop.permute.xlu0 %5542
      %5544 = vrot.lane.b32.xlu0 %v5513, 102
      %v5545 = vpop.permute.xlu0 %5544
      %5546 = vrot.lane.b32.xlu0 %v5514, 102
      %v5547 = vpop.permute.xlu0 %5546
      %v5548 = vsel %vm672, %v5527, %v5529
      %v5549 = vsel %vm672, %v5529, %v5531
      %v5550 = vsel %vm672, %v5531, %v5533
      %v5551 = vsel %vm672, %v5533, %v5535
      %v5552 = vsel %vm672, %v5535, %v5537
      %v5553 = vsel %vm672, %v5537, %v5539
      %v5554 = vsel %vm672, %v5539, %v5541
      %v5555 = vsel %vm672, %v5541, %v5543
      %v5556 = vsel %vm672, %v5543, %v5545
      %v5557 = vsel %vm672, %v5545, %v5547
      %5568 = vst [vmem:[#allocation5 + $0x190] sm:$0xff] %v5548
      %5569 = vst [vmem:[#allocation5 + $0x198] sm:$0xff] %v5549
      %5570 = vst [vmem:[#allocation5 + $0x1a0] sm:$0xff] %v5550
      %5571 = vst [vmem:[#allocation5 + $0x1a8] sm:$0xff] %v5551
      %5572 = vst [vmem:[#allocation5 + $0x1b0] sm:$0xff] %v5552
      %5573 = vst [vmem:[#allocation5 + $0x1b8] sm:$0xff] %v5553
      %5574 = vst [vmem:[#allocation5 + $0x1c0] sm:$0xff] %v5554
      %5575 = vst [vmem:[#allocation5 + $0x1c8] sm:$0xff] %v5555
      %5576 = vst [vmem:[#allocation5 + $0x1d0] sm:$0xff] %v5556
      %5577 = vst [vmem:[#allocation5 + $0x1d8] sm:$0xff] %v5557
      %v5578 = vld [vmem:[#allocation3] sm:$0xff]
      %v5579 = vld [vmem:[#allocation3 + $0x8] sm:$0xff]
      %v5580 = vld [vmem:[#allocation3 + $0x10] sm:$0xff]
      %v5581 = vld [vmem:[#allocation3 + $0x18] sm:$0xff]
      %v5582 = vld [vmem:[#allocation3 + $0x20] sm:$0xff]
      %v5583 = vld [vmem:[#allocation3 + $0x28] sm:$0xff]
      %v5584 = vld [vmem:[#allocation3 + $0x30] sm:$0xff]
      %v5585 = vld [vmem:[#allocation3 + $0x38] sm:$0xff]
      %v5586 = vld [vmem:[#allocation3 + $0x40] sm:$0xff]
      %v5587 = vld [vmem:[#allocation3 + $0x48] sm:$0xff]
      %v5588 = vld [vmem:[#allocation3 + $0x50] sm:$0xff]
      %v5589 = vld [vmem:[#allocation3 + $0x58] sm:$0xff]
      %v5590 = vld [vmem:[#allocation3 + $0x60] sm:$0xff]
      %v5591 = vld [vmem:[#allocation3 + $0x68] sm:$0xff]
      %v5592 = vld [vmem:[#allocation3 + $0x70] sm:$0xff]
      %v5593 = vld [vmem:[#allocation3 + $0x78] sm:$0xff]
      %v5594 = vld [vmem:[#allocation3 + $0x80] sm:$0xff]
      %v5595 = vld [vmem:[#allocation3 + $0x88] sm:$0xff]
      %v5596 = vld [vmem:[#allocation3 + $0x90] sm:$0xff]
      %v5597 = vld [vmem:[#allocation3 + $0x98] sm:$0xff]
      %v5598 = vld [vmem:[#allocation3 + $0xa0] sm:$0xff]
      %v5599 = vld [vmem:[#allocation3 + $0xa8] sm:$0xff]
      %v5600 = vpack.c.bf16 %v5589, %v5578
      %v5601 = vpack.c.bf16 %v5590, %v5579
      %v5602 = vpack.c.bf16 %v5591, %v5580
      %v5603 = vpack.c.bf16 %v5592, %v5581
      %v5604 = vpack.c.bf16 %v5593, %v5582
      %v5605 = vpack.c.bf16 %v5594, %v5583
      %v5606 = vpack.c.bf16 %v5595, %v5584
      %v5607 = vpack.c.bf16 %v5596, %v5585
      %v5608 = vpack.c.bf16 %v5597, %v5586
      %v5609 = vpack.c.bf16 %v5598, %v5587
      %v5610 = vpack.c.bf16 %v5599, %v5588
      %5622 = vrot.lane.b32.xlu0 %v5600, 80
      %v5623 = vpop.permute.xlu0 %5622
      %5624 = vrot.lane.b32.xlu0 %v5601, 80
      %v5625 = vpop.permute.xlu0 %5624
      %5626 = vrot.lane.b32.xlu0 %v5602, 80
      %v5627 = vpop.permute.xlu0 %5626
      %5628 = vrot.lane.b32.xlu0 %v5603, 80
      %v5629 = vpop.permute.xlu0 %5628
      %5630 = vrot.lane.b32.xlu0 %v5604, 80
      %v5631 = vpop.permute.xlu0 %5630
      %5632 = vrot.lane.b32.xlu0 %v5605, 80
      %v5633 = vpop.permute.xlu0 %5632
      %5634 = vrot.lane.b32.xlu0 %v5606, 80
      %v5635 = vpop.permute.xlu0 %5634
      %5636 = vrot.lane.b32.xlu0 %v5607, 80
      %v5637 = vpop.permute.xlu0 %5636
      %5638 = vrot.lane.b32.xlu0 %v5608, 80
      %v5639 = vpop.permute.xlu0 %5638
      %5640 = vrot.lane.b32.xlu0 %v5609, 80
      %v5641 = vpop.permute.xlu0 %5640
      %5642 = vrot.lane.b32.xlu0 %v5610, 80
      %v5643 = vpop.permute.xlu0 %5642
      %v5644 = vsel %vm769, %v5623, %v5625
      %v5645 = vsel %vm769, %v5625, %v5627
      %v5646 = vsel %vm769, %v5627, %v5629
      %v5647 = vsel %vm769, %v5629, %v5631
      %v5648 = vsel %vm769, %v5631, %v5633
      %v5649 = vsel %vm769, %v5633, %v5635
      %v5650 = vsel %vm769, %v5635, %v5637
      %v5651 = vsel %vm769, %v5637, %v5639
      %v5652 = vsel %vm769, %v5639, %v5641
      %v5653 = vsel %vm769, %v5641, %v5643
      %5664 = vst [vmem:[#allocation5 + $0x1e0] sm:$0xff] %v5644
      %5665 = vst [vmem:[#allocation5 + $0x1e8] sm:$0xff] %v5645
      %5666 = vst [vmem:[#allocation5 + $0x1f0] sm:$0xff] %v5646
      %5667 = vst [vmem:[#allocation5 + $0x1f8] sm:$0xff] %v5647
      %5668 = vst [vmem:[#allocation5 + $0x200] sm:$0xff] %v5648
      %5669 = vst [vmem:[#allocation5 + $0x208] sm:$0xff] %v5649
      %5670 = vst [vmem:[#allocation5 + $0x210] sm:$0xff] %v5650
      %5671 = vst [vmem:[#allocation5 + $0x218] sm:$0xff] %v5651
      %5672 = vst [vmem:[#allocation5 + $0x220] sm:$0xff] %v5652
      %5673 = vst [vmem:[#allocation5 + $0x228] sm:$0xff] %v5653
      %v5674 = vld [vmem:[#allocation3] sm:$0xff]
      %v5675 = vld [vmem:[#allocation3 + $0x8] sm:$0xff]
      %v5676 = vld [vmem:[#allocation3 + $0x10] sm:$0xff]
      %v5677 = vld [vmem:[#allocation3 + $0x18] sm:$0xff]
      %v5678 = vld [vmem:[#allocation3 + $0x20] sm:$0xff]
      %v5679 = vld [vmem:[#allocation3 + $0x28] sm:$0xff]
      %v5680 = vld [vmem:[#allocation3 + $0x30] sm:$0xff]
      %v5681 = vld [vmem:[#allocation3 + $0x38] sm:$0xff]
      %v5682 = vld [vmem:[#allocation3 + $0x40] sm:$0xff]
      %v5683 = vld [vmem:[#allocation3 + $0x48] sm:$0xff]
      %v5684 = vld [vmem:[#allocation3 + $0x50] sm:$0xff]
      %v5685 = vld [vmem:[#allocation3 + $0x58] sm:$0xff]
      %v5686 = vld [vmem:[#allocation3 + $0x60] sm:$0xff]
      %v5687 = vld [vmem:[#allocation3 + $0x68] sm:$0xff]
      %v5688 = vld [vmem:[#allocation3 + $0x70] sm:$0xff]
      %v5689 = vld [vmem:[#allocation3 + $0x78] sm:$0xff]
      %v5690 = vld [vmem:[#allocation3 + $0x80] sm:$0xff]
      %v5691 = vld [vmem:[#allocation3 + $0x88] sm:$0xff]
      %v5692 = vld [vmem:[#allocation3 + $0x90] sm:$0xff]
      %v5693 = vld [vmem:[#allocation3 + $0x98] sm:$0xff]
      %v5694 = vld [vmem:[#allocation3 + $0xa0] sm:$0xff]
      %v5695 = vld [vmem:[#allocation3 + $0xa8] sm:$0xff]
      %v5696 = vpack.c.bf16 %v5685, %v5674
      %v5697 = vpack.c.bf16 %v5686, %v5675
      %v5698 = vpack.c.bf16 %v5687, %v5676
      %v5699 = vpack.c.bf16 %v5688, %v5677
      %v5700 = vpack.c.bf16 %v5689, %v5678
      %v5701 = vpack.c.bf16 %v5690, %v5679
      %v5702 = vpack.c.bf16 %v5691, %v5680
      %v5703 = vpack.c.bf16 %v5692, %v5681
      %v5704 = vpack.c.bf16 %v5693, %v5682
      %v5705 = vpack.c.bf16 %v5694, %v5683
      %v5706 = vpack.c.bf16 %v5695, %v5684
      %5718 = vrot.lane.b32.xlu0 %v5696, 79
      %v5719 = vpop.permute.xlu0 %5718
      %5720 = vrot.lane.b32.xlu0 %v5697, 79
      %v5721 = vpop.permute.xlu0 %5720
      %5722 = vrot.lane.b32.xlu0 %v5698, 79
      %v5723 = vpop.permute.xlu0 %5722
      %5724 = vrot.lane.b32.xlu0 %v5699, 79
      %v5725 = vpop.permute.xlu0 %5724
      %5726 = vrot.lane.b32.xlu0 %v5700, 79
      %v5727 = vpop.permute.xlu0 %5726
      %5728 = vrot.lane.b32.xlu0 %v5701, 79
      %v5729 = vpop.permute.xlu0 %5728
      %5730 = vrot.lane.b32.xlu0 %v5702, 79
      %v5731 = vpop.permute.xlu0 %5730
      %5732 = vrot.lane.b32.xlu0 %v5703, 79
      %v5733 = vpop.permute.xlu0 %5732
      %5734 = vrot.lane.b32.xlu0 %v5704, 79
      %v5735 = vpop.permute.xlu0 %5734
      %5736 = vrot.lane.b32.xlu0 %v5705, 79
      %v5737 = vpop.permute.xlu0 %5736
      %5738 = vrot.lane.b32.xlu0 %v5706, 79
      %v5739 = vpop.permute.xlu0 %5738
      %v5740 = vsel %vm866, %v5719, %v5721
      %v5741 = vsel %vm866, %v5721, %v5723
      %v5742 = vsel %vm866, %v5723, %v5725
      %v5743 = vsel %vm866, %v5725, %v5727
      %v5744 = vsel %vm866, %v5727, %v5729
      %v5745 = vsel %vm866, %v5729, %v5731
      %v5746 = vsel %vm866, %v5731, %v5733
      %v5747 = vsel %vm866, %v5733, %v5735
      %v5748 = vsel %vm866, %v5735, %v5737
      %v5749 = vsel %vm866, %v5737, %v5739
      %5760 = vst [vmem:[#allocation5 + $0x230] sm:$0xff] %v5740
      %5761 = vst [vmem:[#allocation5 + $0x238] sm:$0xff] %v5741
      %5762 = vst [vmem:[#allocation5 + $0x240] sm:$0xff] %v5742
      %5763 = vst [vmem:[#allocation5 + $0x248] sm:$0xff] %v5743
      %5764 = vst [vmem:[#allocation5 + $0x250] sm:$0xff] %v5744
      %5765 = vst [vmem:[#allocation5 + $0x258] sm:$0xff] %v5745
      %5766 = vst [vmem:[#allocation5 + $0x260] sm:$0xff] %v5746
      %5767 = vst [vmem:[#allocation5 + $0x268] sm:$0xff] %v5747
      %5768 = vst [vmem:[#allocation5 + $0x270] sm:$0xff] %v5748
      %5769 = vst [vmem:[#allocation5 + $0x278] sm:$0xff] %v5749
      %v5770 = vld [vmem:[#allocation3] sm:$0xff]
      %v5771 = vld [vmem:[#allocation3 + $0x8] sm:$0xff]
      %v5772 = vld [vmem:[#allocation3 + $0x10] sm:$0xff]
      %v5773 = vld [vmem:[#allocation3 + $0x18] sm:$0xff]
      %v5774 = vld [vmem:[#allocation3 + $0x20] sm:$0xff]
      %v5775 = vld [vmem:[#allocation3 + $0x28] sm:$0xff]
      %v5776 = vld [vmem:[#allocation3 + $0x30] sm:$0xff]
      %v5777 = vld [vmem:[#allocation3 + $0x38] sm:$0xff]
      %v5778 = vld [vmem:[#allocation3 + $0x40] sm:$0xff]
      %v5779 = vld [vmem:[#allocation3 + $0x48] sm:$0xff]
      %v5780 = vld [vmem:[#allocation3 + $0x50] sm:$0xff]
      %v5781 = vld [vmem:[#allocation3 + $0x58] sm:$0xff]
      %v5782 = vld [vmem:[#allocation3 + $0x60] sm:$0xff]
      %v5783 = vld [vmem:[#allocation3 + $0x68] sm:$0xff]
      %v5784 = vld [vmem:[#allocation3 + $0x70] sm:$0xff]
      %v5785 = vld [vmem:[#allocation3 + $0x78] sm:$0xff]
      %v5786 = vld [vmem:[#allocation3 + $0x80] sm:$0xff]
      %v5787 = vld [vmem:[#allocation3 + $0x88] sm:$0xff]
      %v5788 = vld [vmem:[#allocation3 + $0x90] sm:$0xff]
      %v5789 = vld [vmem:[#allocation3 + $0x98] sm:$0xff]
      %v5790 = vld [vmem:[#allocation3 + $0xa0] sm:$0xff]
      %v5791 = vld [vmem:[#allocation3 + $0xa8] sm:$0xff]
      %v5792 = vpack.c.bf16 %v5781, %v5770
      %v5793 = vpack.c.bf16 %v5782, %v5771
      %v5794 = vpack.c.bf16 %v5783, %v5772
      %v5795 = vpack.c.bf16 %v5784, %v5773
      %v5796 = vpack.c.bf16 %v5785, %v5774
      %v5797 = vpack.c.bf16 %v5786, %v5775
      %v5798 = vpack.c.bf16 %v5787, %v5776
      %v5799 = vpack.c.bf16 %v5788, %v5777
      %v5800 = vpack.c.bf16 %v5789, %v5778
      %v5801 = vpack.c.bf16 %v5790, %v5779
      %v5802 = vpack.c.bf16 %v5791, %v5780
      %5814 = vrot.lane.b32.xlu0 %v5792, 78
      %v5815 = vpop.permute.xlu0 %5814
      %5816 = vrot.lane.b32.xlu0 %v5793, 78
      %v5817 = vpop.permute.xlu0 %5816
      %5818 = vrot.lane.b32.xlu0 %v5794, 78
      %v5819 = vpop.permute.xlu0 %5818
      %5820 = vrot.lane.b32.xlu0 %v5795, 78
      %v5821 = vpop.permute.xlu0 %5820
      %5822 = vrot.lane.b32.xlu0 %v5796, 78
      %v5823 = vpop.permute.xlu0 %5822
      %5824 = vrot.lane.b32.xlu0 %v5797, 78
      %v5825 = vpop.permute.xlu0 %5824
      %5826 = vrot.lane.b32.xlu0 %v5798, 78
      %v5827 = vpop.permute.xlu0 %5826
      %5828 = vrot.lane.b32.xlu0 %v5799, 78
      %v5829 = vpop.permute.xlu0 %5828
      %5830 = vrot.lane.b32.xlu0 %v5800, 78
      %v5831 = vpop.permute.xlu0 %5830
      %5832 = vrot.lane.b32.xlu0 %v5801, 78
      %v5833 = vpop.permute.xlu0 %5832
      %5834 = vrot.lane.b32.xlu0 %v5802, 78
      %v5835 = vpop.permute.xlu0 %5834
      %v5836 = vsel %vm963, %v5815, %v5817
      %v5837 = vsel %vm963, %v5817, %v5819
      %v5838 = vsel %vm963, %v5819, %v5821
      %v5839 = vsel %vm963, %v5821, %v5823
      %v5840 = vsel %vm963, %v5823, %v5825
      %v5841 = vsel %vm963, %v5825, %v5827
      %v5842 = vsel %vm963, %v5827, %v5829
      %v5843 = vsel %vm963, %v5829, %v5831
      %v5844 = vsel %vm963, %v5831, %v5833
      %v5845 = vsel %vm963, %v5833, %v5835
      %5856 = vst [vmem:[#allocation5 + $0x280] sm:$0xff] %v5836
      %5857 = vst [vmem:[#allocation5 + $0x288] sm:$0xff] %v5837
      %5858 = vst [vmem:[#allocation5 + $0x290] sm:$0xff] %v5838
      %5859 = vst [vmem:[#allocation5 + $0x298] sm:$0xff] %v5839
      %5860 = vst [vmem:[#allocation5 + $0x2a0] sm:$0xff] %v5840
      %5861 = vst [vmem:[#allocation5 + $0x2a8] sm:$0xff] %v5841
      %5862 = vst [vmem:[#allocation5 + $0x2b0] sm:$0xff] %v5842
      %5863 = vst [vmem:[#allocation5 + $0x2b8] sm:$0xff] %v5843
      %5864 = vst [vmem:[#allocation5 + $0x2c0] sm:$0xff] %v5844
      %5865 = vst [vmem:[#allocation5 + $0x2c8] sm:$0xff] %v5845
      %s5866 = scalar_lea.vmem %s1, 64
      %v5867 = vld [vmem:[%s5866] sm:$0xff]
      %v5868 = vld [vmem:[%s5866 + $0x8] sm:$0xff]
      %v5869 = vld [vmem:[#allocation5] sm:$0xff]
      %v5870 = vld [vmem:[#allocation5 + $0x8] sm:$0xff]
      %v5871 = vld [vmem:[#allocation5 + $0x10] sm:$0xff]
      %v5872 = vld [vmem:[#allocation5 + $0x18] sm:$0xff]
      %v5873 = vld [vmem:[#allocation5 + $0x20] sm:$0xff]
      %v5874 = vld [vmem:[#allocation5 + $0x28] sm:$0xff]
      %v5875 = vld [vmem:[#allocation5 + $0x30] sm:$0xff]
      %v5876 = vld [vmem:[#allocation5 + $0x38] sm:$0xff]
      %v5877 = vld [vmem:[#allocation5 + $0x40] sm:$0xff]
      %v5878 = vld [vmem:[#allocation5 + $0x48] sm:$0xff]
      %v5879 = vld [vmem:[#allocation5 + $0x50] sm:$0xff]
      %v5880 = vld [vmem:[#allocation5 + $0x58] sm:$0xff]
      %v5881 = vld [vmem:[#allocation5 + $0x60] sm:$0xff]
      %v5882 = vld [vmem:[#allocation5 + $0x68] sm:$0xff]
      %v5883 = vld [vmem:[#allocation5 + $0x70] sm:$0xff]
      %v5884 = vld [vmem:[#allocation5 + $0x78] sm:$0xff]
      %v5885 = vld [vmem:[#allocation5 + $0x80] sm:$0xff]
      %v5886 = vld [vmem:[#allocation5 + $0x88] sm:$0xff]
      %v5887 = vld [vmem:[#allocation5 + $0x90] sm:$0xff]
      %v5888 = vld [vmem:[#allocation5 + $0x98] sm:$0xff]
      %v5889 = vld [vmem:[#allocation5 + $0xa0] sm:$0xff]
      %v5890 = vld [vmem:[#allocation5 + $0xa8] sm:$0xff]
      %v5891 = vld [vmem:[#allocation5 + $0xb0] sm:$0xff]
      %v5892 = vld [vmem:[#allocation5 + $0xb8] sm:$0xff]
      %v5893 = vld [vmem:[#allocation5 + $0xc0] sm:$0xff]
      %v5894 = vld [vmem:[#allocation5 + $0xc8] sm:$0xff]
      %v5895 = vld [vmem:[#allocation5 + $0xd0] sm:$0xff]
      %v5896 = vld [vmem:[#allocation5 + $0xd8] sm:$0xff]
      %v5897 = vld [vmem:[#allocation5 + $0xe0] sm:$0xff]
      %v5898 = vld [vmem:[#allocation5 + $0xe8] sm:$0xff]
      %v5899 = vld [vmem:[#allocation5 + $0xf0] sm:$0xff]
      %v5900 = vld [vmem:[#allocation5 + $0xf8] sm:$0xff]
      %v5901 = vld [vmem:[#allocation5 + $0x100] sm:$0xff]
      %v5902 = vld [vmem:[#allocation5 + $0x108] sm:$0xff]
      %v5903 = vld [vmem:[#allocation5 + $0x110] sm:$0xff]
      %v5904 = vld [vmem:[#allocation5 + $0x118] sm:$0xff]
      %v5905 = vld [vmem:[#allocation5 + $0x120] sm:$0xff]
      %v5906 = vld [vmem:[#allocation5 + $0x128] sm:$0xff]
      %v5907 = vld [vmem:[#allocation5 + $0x130] sm:$0xff]
      %v5908 = vld [vmem:[#allocation5 + $0x138] sm:$0xff]
      %v5909 = vld [vmem:[#allocation5 + $0x140] sm:$0xff]
      %v5910 = vld [vmem:[#allocation5 + $0x148] sm:$0xff]
      %v5911 = vld [vmem:[#allocation5 + $0x150] sm:$0xff]
      %v5912 = vld [vmem:[#allocation5 + $0x158] sm:$0xff]
      %v5913 = vld [vmem:[#allocation5 + $0x160] sm:$0xff]
      %v5914 = vld [vmem:[#allocation5 + $0x168] sm:$0xff]
      %v5915 = vld [vmem:[#allocation5 + $0x170] sm:$0xff]
      %v5916 = vld [vmem:[#allocation5 + $0x178] sm:$0xff]
      %v5917 = vld [vmem:[#allocation5 + $0x180] sm:$0xff]
      %v5918 = vld [vmem:[#allocation5 + $0x188] sm:$0xff]
      %v5919 = vld [vmem:[#allocation5 + $0x190] sm:$0xff]
      %v5920 = vld [vmem:[#allocation5 + $0x198] sm:$0xff]
      %v5921 = vld [vmem:[#allocation5 + $0x1a0] sm:$0xff]
      %v5922 = vld [vmem:[#allocation5 + $0x1a8] sm:$0xff]
      %v5923 = vld [vmem:[#allocation5 + $0x1b0] sm:$0xff]
      %v5924 = vld [vmem:[#allocation5 + $0x1b8] sm:$0xff]
      %v5925 = vld [vmem:[#allocation5 + $0x1c0] sm:$0xff]
      %v5926 = vld [vmem:[#allocation5 + $0x1c8] sm:$0xff]
      %v5927 = vld [vmem:[#allocation5 + $0x1d0] sm:$0xff]
      %v5928 = vld [vmem:[#allocation5 + $0x1d8] sm:$0xff]
      %v5929 = vld [vmem:[#allocation5 + $0x1e0] sm:$0xff]
      %v5930 = vld [vmem:[#allocation5 + $0x1e8] sm:$0xff]
      %v5931 = vld [vmem:[#allocation5 + $0x1f0] sm:$0xff]
      %v5932 = vld [vmem:[#allocation5 + $0x1f8] sm:$0xff]
      %v5933 = vld [vmem:[#allocation5 + $0x200] sm:$0xff]
      %v5934 = vld [vmem:[#allocation5 + $0x208] sm:$0xff]
      %v5935 = vld [vmem:[#allocation5 + $0x210] sm:$0xff]
      %v5936 = vld [vmem:[#allocation5 + $0x218] sm:$0xff]
      %v5937 = vld [vmem:[#allocation5 + $0x220] sm:$0xff]
      %v5938 = vld [vmem:[#allocation5 + $0x228] sm:$0xff]
      %v5939 = vld [vmem:[#allocation5 + $0x230] sm:$0xff]
      %v5940 = vld [vmem:[#allocation5 + $0x238] sm:$0xff]
      %v5941 = vld [vmem:[#allocation5 + $0x240] sm:$0xff]
      %v5942 = vld [vmem:[#allocation5 + $0x248] sm:$0xff]
      %v5943 = vld [vmem:[#allocation5 + $0x250] sm:$0xff]
      %v5944 = vld [vmem:[#allocation5 + $0x258] sm:$0xff]
      %v5945 = vld [vmem:[#allocation5 + $0x260] sm:$0xff]
      %v5946 = vld [vmem:[#allocation5 + $0x268] sm:$0xff]
      %v5947 = vld [vmem:[#allocation5 + $0x270] sm:$0xff]
      %v5948 = vld [vmem:[#allocation5 + $0x278] sm:$0xff]
      %v5949 = vld [vmem:[#allocation5 + $0x280] sm:$0xff]
      %v5950 = vld [vmem:[#allocation5 + $0x288] sm:$0xff]
      %v5951 = vld [vmem:[#allocation5 + $0x290] sm:$0xff]
      %v5952 = vld [vmem:[#allocation5 + $0x298] sm:$0xff]
      %v5953 = vld [vmem:[#allocation5 + $0x2a0] sm:$0xff]
      %v5954 = vld [vmem:[#allocation5 + $0x2a8] sm:$0xff]
      %v5955 = vld [vmem:[#allocation5 + $0x2b0] sm:$0xff]
      %v5956 = vld [vmem:[#allocation5 + $0x2b8] sm:$0xff]
      %v5957 = vld [vmem:[#allocation5 + $0x2c0] sm:$0xff]
      %v5958 = vld [vmem:[#allocation5 + $0x2c8] sm:$0xff]
      %s5959 = scalar_lea.vmem %s2, 64
      %v5960 = vld [vmem:[%s5959] sm:$0xff]
      %v5961 = vld [vmem:[%s5959 + $0x8] sm:$0xff]
      %5963 = vset.pattern.permute.xlu0 0
      %5964 = vperm.xlu0 %5963, %v5960
      %v5965 = vpop.permute.xlu0 %5964
      %5968 = vset.pattern.permute.xlu0 0
      %5969 = vperm.xlu0 %5968, %v5961
      %v5970 = vpop.permute.xlu0 %5969
      %v5974 = vunpack.c.l.b16 %v5867
      %v5975 = vunpack.c.h.b16 %v5867
      %v5976 = vunpack.c.l.b16 %v5868
      %v5977 = vunpack.c.h.b16 %v5868
      %v5978 = vpack.c.b16 %v5976, %v5974
      %v5979 = vpack.c.b16 %v5977, %v5975
      %v5982 = vsel %vm1107, %v5979, 0
      %5984 = vmatprep.subr.bf16.mxu0 %v5870
      %5985 = vmatpush1.bf16.msra.mxu0 %v5869
      %5986 = vmatprep.subr.bf16.mxu0 %v5880
      %5987 = vmatpush1.bf16.msra.mxu0 %v5879
      %5988 = vmatprep.subr.bf16.mxu0 %v5890
      %5989 = vmatpush1.bf16.msra.mxu0 %v5889
      %5990 = vmatprep.subr.bf16.mxu0 %v5900
      %5991 = vmatpush1.bf16.msra.mxu0 %v5899
      %5992 = vmatprep.subr.bf16.mxu0 %v5910
      %5993 = vmatpush1.bf16.msra.mxu0 %v5909
      %5994 = vmatprep.subr.bf16.mxu0 %v5920
      %5995 = vmatpush1.bf16.msra.mxu0 %v5919
      %5996 = vmatprep.subr.bf16.mxu0 %v5930
      %5997 = vmatpush1.bf16.msra.mxu0 %v5929
      %5998 = vmatprep.subr.bf16.mxu0 %v5940
      %5999 = vmatpush1.bf16.msra.mxu0 %v5939
      %6000 = vmatprep.subr.bf16.mxu0 %v5950
      %6001 = vmatpush1.bf16.msra.mxu0 %v5949
      %6002 = vmatprep.subr.bf16.mxu0 0
      %6003 = vmatpush1.bf16.msra.mxu0 0
      %6004 = vmatprep.subr.bf16.mxu0 0
      %6005 = vmatpush1.bf16.msra.mxu0 0
      %6006 = vmatprep.subr.bf16.mxu0 0
      %6007 = vmatpush1.bf16.msra.mxu0 0
      %6008 = vmatprep.subr.bf16.mxu0 0
      %6009 = vmatpush1.bf16.msra.mxu0 0
      %6010 = vmatprep.subr.bf16.mxu0 0
      %6011 = vmatpush1.bf16.msra.mxu0 0
      %6012 = vmatprep.subr.bf16.mxu0 0
      %6013 = vmatpush1.bf16.msra.mxu0 0
      %6014 = vmatprep.subr.bf16.mxu0 0
      %6015 = vmatpush1.bf16.msra.mxu0 0
      %6016 = vmatprep.mubr.bf16.mxu0 %v5982
      %6017 = vmatmul.mubr.bf16.gmra.mrb[0].mxu0 %v5978
      %v6018 = vpop.f32.mrb[0].mxu0
      %v6019 = vadd.f32 %v5965, %v6018
      %v6020 = vpop.f32.mrb[0].mxu0
      %v6021 = vadd.f32 %v5965, %v6020
      %v6022 = vpop.f32.mrb[0].mxu0
      %v6023 = vadd.f32 %v5970, %v6022
      %v6024 = vpop.f32.mrb[0].mxu0
      %v6025 = vadd.f32 %v5970, %v6024
      %6026 = vdwg.mxu0
      %6027 = vmatprep.subr.bf16.mxu0 %v5872
      %6028 = vmatpush1.bf16.msra.mxu0 %v5871
      %6029 = vmatprep.subr.bf16.mxu0 %v5882
      %6030 = vmatpush1.bf16.msra.mxu0 %v5881
      %6031 = vmatprep.subr.bf16.mxu0 %v5892
      %6032 = vmatpush1.bf16.msra.mxu0 %v5891
      %6033 = vmatprep.subr.bf16.mxu0 %v5902
      %6034 = vmatpush1.bf16.msra.mxu0 %v5901
      %6035 = vmatprep.subr.bf16.mxu0 %v5912
      %6036 = vmatpush1.bf16.msra.mxu0 %v5911
      %6037 = vmatprep.subr.bf16.mxu0 %v5922
      %6038 = vmatpush1.bf16.msra.mxu0 %v5921
      %6039 = vmatprep.subr.bf16.mxu0 %v5932
      %6040 = vmatpush1.bf16.msra.mxu0 %v5931
      %6041 = vmatprep.subr.bf16.mxu0 %v5942
      %6042 = vmatpush1.bf16.msra.mxu0 %v5941
      %6043 = vmatprep.subr.bf16.mxu0 %v5952
      %6044 = vmatpush1.bf16.msra.mxu0 %v5951
      %6045 = vmatprep.subr.bf16.mxu0 0
      %6046 = vmatpush1.bf16.msra.mxu0 0
      %6047 = vmatprep.subr.bf16.mxu0 0
      %6048 = vmatpush1.bf16.msra.mxu0 0
      %6049 = vmatprep.subr.bf16.mxu0 0
      %6050 = vmatpush1.bf16.msra.mxu0 0
      %6051 = vmatprep.subr.bf16.mxu0 0
      %6052 = vmatpush1.bf16.msra.mxu0 0
      %6053 = vmatprep.subr.bf16.mxu0 0
      %6054 = vmatpush1.bf16.msra.mxu0 0
      %6055 = vmatprep.subr.bf16.mxu0 0
      %6056 = vmatpush1.bf16.msra.mxu0 0
      %6057 = vmatprep.subr.bf16.mxu0 0
      %6058 = vmatpush1.bf16.msra.mxu0 0
      %6059 = vmatprep.mubr.bf16.mxu0 %v5982
      %6060 = vmatmul.mubr.bf16.gmra.mrb[0].mxu0 %v5978
      %v6061 = vpop.f32.mrb[0].mxu0
      %v6062 = vadd.f32 %v5965, %v6061
      %v6063 = vpop.f32.mrb[0].mxu0
      %v6064 = vadd.f32 %v5965, %v6063
      %v6065 = vpop.f32.mrb[0].mxu0
      %v6066 = vadd.f32 %v5970, %v6065
      %v6067 = vpop.f32.mrb[0].mxu0
      %v6068 = vadd.f32 %v5970, %v6067
      %6069 = vdwg.mxu0
      %6070 = vmatprep.subr.bf16.mxu0 %v5874
      %6071 = vmatpush1.bf16.msra.mxu0 %v5873
      %6072 = vmatprep.subr.bf16.mxu0 %v5884
      %6073 = vmatpush1.bf16.msra.mxu0 %v5883
      %6074 = vmatprep.subr.bf16.mxu0 %v5894
      %6075 = vmatpush1.bf16.msra.mxu0 %v5893
      %6076 = vmatprep.subr.bf16.mxu0 %v5904
      %6077 = vmatpush1.bf16.msra.mxu0 %v5903
      %6078 = vmatprep.subr.bf16.mxu0 %v5914
      %6079 = vmatpush1.bf16.msra.mxu0 %v5913
      %6080 = vmatprep.subr.bf16.mxu0 %v5924
      %6081 = vmatpush1.bf16.msra.mxu0 %v5923
      %6082 = vmatprep.subr.bf16.mxu0 %v5934
      %6083 = vmatpush1.bf16.msra.mxu0 %v5933
      %6084 = vmatprep.subr.bf16.mxu0 %v5944
      %6085 = vmatpush1.bf16.msra.mxu0 %v5943
      %6086 = vmatprep.subr.bf16.mxu0 %v5954
      %6087 = vmatpush1.bf16.msra.mxu0 %v5953
      %6088 = vmatprep.subr.bf16.mxu0 0
      %6089 = vmatpush1.bf16.msra.mxu0 0
      %6090 = vmatprep.subr.bf16.mxu0 0
      %6091 = vmatpush1.bf16.msra.mxu0 0
      %6092 = vmatprep.subr.bf16.mxu0 0
      %6093 = vmatpush1.bf16.msra.mxu0 0
      %6094 = vmatprep.subr.bf16.mxu0 0
      %6095 = vmatpush1.bf16.msra.mxu0 0
      %6096 = vmatprep.subr.bf16.mxu0 0
      %6097 = vmatpush1.bf16.msra.mxu0 0
      %6098 = vmatprep.subr.bf16.mxu0 0
      %6099 = vmatpush1.bf16.msra.mxu0 0
      %6100 = vmatprep.subr.bf16.mxu0 0
      %6101 = vmatpush1.bf16.msra.mxu0 0
      %6102 = vmatprep.mubr.bf16.mxu0 %v5982
      %6103 = vmatmul.mubr.bf16.gmra.mrb[0].mxu0 %v5978
      %v6104 = vpop.f32.mrb[0].mxu0
      %v6105 = vadd.f32 %v5965, %v6104
      %v6106 = vpop.f32.mrb[0].mxu0
      %v6107 = vadd.f32 %v5965, %v6106
      %v6108 = vpop.f32.mrb[0].mxu0
      %v6109 = vadd.f32 %v5970, %v6108
      %v6110 = vpop.f32.mrb[0].mxu0
      %v6111 = vadd.f32 %v5970, %v6110
      %6112 = vdwg.mxu0
      %6113 = vmatprep.subr.bf16.mxu0 %v5876
      %6114 = vmatpush1.bf16.msra.mxu0 %v5875
      %6115 = vmatprep.subr.bf16.mxu0 %v5886
      %6116 = vmatpush1.bf16.msra.mxu0 %v5885
      %6117 = vmatprep.subr.bf16.mxu0 %v5896
      %6118 = vmatpush1.bf16.msra.mxu0 %v5895
      %6119 = vmatprep.subr.bf16.mxu0 %v5906
      %6120 = vmatpush1.bf16.msra.mxu0 %v5905
      %6121 = vmatprep.subr.bf16.mxu0 %v5916
      %6122 = vmatpush1.bf16.msra.mxu0 %v5915
      %6123 = vmatprep.subr.bf16.mxu0 %v5926
      %6124 = vmatpush1.bf16.msra.mxu0 %v5925
      %6125 = vmatprep.subr.bf16.mxu0 %v5936
      %6126 = vmatpush1.bf16.msra.mxu0 %v5935
      %6127 = vmatprep.subr.bf16.mxu0 %v5946
      %6128 = vmatpush1.bf16.msra.mxu0 %v5945
      %6129 = vmatprep.subr.bf16.mxu0 %v5956
      %6130 = vmatpush1.bf16.msra.mxu0 %v5955
      %6131 = vmatprep.subr.bf16.mxu0 0
      %6132 = vmatpush1.bf16.msra.mxu0 0
      %6133 = vmatprep.subr.bf16.mxu0 0
      %6134 = vmatpush1.bf16.msra.mxu0 0
      %6135 = vmatprep.subr.bf16.mxu0 0
      %6136 = vmatpush1.bf16.msra.mxu0 0
      %6137 = vmatprep.subr.bf16.mxu0 0
      %6138 = vmatpush1.bf16.msra.mxu0 0
      %6139 = vmatprep.subr.bf16.mxu0 0
      %6140 = vmatpush1.bf16.msra.mxu0 0
      %6141 = vmatprep.subr.bf16.mxu0 0
      %6142 = vmatpush1.bf16.msra.mxu0 0
      %6143 = vmatprep.subr.bf16.mxu0 0
      %6144 = vmatpush1.bf16.msra.mxu0 0
      %6145 = vmatprep.mubr.bf16.mxu0 %v5982
      %6146 = vmatmul.mubr.bf16.gmra.mrb[0].mxu0 %v5978
      %v6147 = vpop.f32.mrb[0].mxu0
      %v6148 = vadd.f32 %v5965, %v6147
      %v6149 = vpop.f32.mrb[0].mxu0
      %v6150 = vadd.f32 %v5965, %v6149
      %v6151 = vpop.f32.mrb[0].mxu0
      %v6152 = vadd.f32 %v5970, %v6151
      %v6153 = vpop.f32.mrb[0].mxu0
      %v6154 = vadd.f32 %v5970, %v6153
      %6155 = vdwg.mxu0
      %6156 = vmatprep.subr.bf16.mxu0 %v5878
      %6157 = vmatpush1.bf16.msra.mxu0 %v5877
      %6158 = vmatprep.subr.bf16.mxu0 %v5888
      %6159 = vmatpush1.bf16.msra.mxu0 %v5887
      %6160 = vmatprep.subr.bf16.mxu0 %v5898
      %6161 = vmatpush1.bf16.msra.mxu0 %v5897
      %6162 = vmatprep.subr.bf16.mxu0 %v5908
      %6163 = vmatpush1.bf16.msra.mxu0 %v5907
      %6164 = vmatprep.subr.bf16.mxu0 %v5918
      %6165 = vmatpush1.bf16.msra.mxu0 %v5917
      %6166 = vmatprep.subr.bf16.mxu0 %v5928
      %6167 = vmatpush1.bf16.msra.mxu0 %v5927
      %6168 = vmatprep.subr.bf16.mxu0 %v5938
      %6169 = vmatpush1.bf16.msra.mxu0 %v5937
      %6170 = vmatprep.subr.bf16.mxu0 %v5948
      %6171 = vmatpush1.bf16.msra.mxu0 %v5947
      %6172 = vmatprep.subr.bf16.mxu0 %v5958
      %6173 = vmatpush1.bf16.msra.mxu0 %v5957
      %6174 = vmatprep.subr.bf16.mxu0 0
      %6175 = vmatpush1.bf16.msra.mxu0 0
      %6176 = vmatprep.subr.bf16.mxu0 0
      %6177 = vmatpush1.bf16.msra.mxu0 0
      %6178 = vmatprep.subr.bf16.mxu0 0
      %6179 = vmatpush1.bf16.msra.mxu0 0
      %6180 = vmatprep.subr.bf16.mxu0 0
      %6181 = vmatpush1.bf16.msra.mxu0 0
      %6182 = vmatprep.subr.bf16.mxu0 0
      %6183 = vmatpush1.bf16.msra.mxu0 0
      %6184 = vmatprep.subr.bf16.mxu0 0
      %6185 = vmatpush1.bf16.msra.mxu0 0
      %6186 = vmatprep.subr.bf16.mxu0 0
      %6187 = vmatpush1.bf16.msra.mxu0 0
      %6188 = vmatprep.mubr.bf16.mxu0 %v5982
      %6189 = vmatmul.mubr.bf16.gmra.mrb[0].mxu0 %v5978
      %v6190 = vpop.f32.mrb[0].mxu0
      %v6191 = vadd.f32 %v5965, %v6190
      %v6192 = vpop.f32.mrb[0].mxu0
      %v6193 = vadd.f32 %v5965, %v6192
      %v6194 = vpop.f32.mrb[0].mxu0
      %v6195 = vadd.f32 %v5970, %v6194
      %v6196 = vpop.f32.mrb[0].mxu0
      %v6197 = vadd.f32 %v5970, %v6196
      %6198 = vdwg.mxu0
      %v6199 = vmax.f32 %v6019, 0.0
      %v6200 = vmax.f32 %v6021, 0.0
      %v6201 = vmax.f32 %v6062, 0.0
      %v6202 = vmax.f32 %v6064, 0.0
      %v6203 = vmax.f32 %v6105, 0.0
      %v6204 = vmax.f32 %v6107, 0.0
      %v6205 = vmax.f32 %v6148, 0.0
      %v6206 = vmax.f32 %v6150, 0.0
      %v6207 = vmax.f32 %v6191, 0.0
      %v6208 = vmax.f32 %v6193, 0.0
      %v6209 = vmax.f32 %v6023, 0.0
      %v6210 = vmax.f32 %v6025, 0.0
      %v6211 = vmax.f32 %v6066, 0.0
      %v6212 = vmax.f32 %v6068, 0.0
      %v6213 = vmax.f32 %v6109, 0.0
      %v6214 = vmax.f32 %v6111, 0.0
      %v6215 = vmax.f32 %v6152, 0.0
      %v6216 = vmax.f32 %v6154, 0.0
      %v6217 = vmax.f32 %v6195, 0.0
      %v6218 = vmax.f32 %v6197, 0.0
      %v6219 = vld [vmem:[#allocation4] sm:$0xff]
      %v6220 = vld [vmem:[#allocation4 + $0x8] sm:$0xff]
      %v6221 = vld [vmem:[#allocation4 + $0x10] sm:$0xff]
      %v6222 = vld [vmem:[#allocation4 + $0x18] sm:$0xff]
      %v6223 = vld [vmem:[#allocation4 + $0x20] sm:$0xff]
      %v6224 = vld [vmem:[#allocation4 + $0x28] sm:$0xff]
      %v6225 = vld [vmem:[#allocation4 + $0x30] sm:$0xff]
      %v6226 = vld [vmem:[#allocation4 + $0x38] sm:$0xff]
      %v6227 = vld [vmem:[#allocation4 + $0x40] sm:$0xff]
      %v6228 = vld [vmem:[#allocation4 + $0x48] sm:$0xff]
      %v6229 = vld [vmem:[#allocation4 + $0x50] sm:$0xff]
      %v6230 = vld [vmem:[#allocation4 + $0x58] sm:$0xff]
      %v6231 = vld [vmem:[#allocation4 + $0x60] sm:$0xff]
      %v6232 = vld [vmem:[#allocation4 + $0x68] sm:$0xff]
      %v6233 = vld [vmem:[#allocation4 + $0x70] sm:$0xff]
      %v6234 = vld [vmem:[#allocation4 + $0x78] sm:$0xff]
      %v6235 = vld [vmem:[#allocation4 + $0x80] sm:$0xff]
      %v6236 = vld [vmem:[#allocation4 + $0x88] sm:$0xff]
      %v6237 = vld [vmem:[#allocation4 + $0x90] sm:$0xff]
      %v6238 = vld [vmem:[#allocation4 + $0x98] sm:$0xff]
      %v6239 = vld [vmem:[#allocation4 + $0xa0] sm:$0xff]
      %v6240 = vld [vmem:[#allocation4 + $0xa8] sm:$0xff]
      %6263 = vrot.lane.b32.xlu0 %v6219, 78
      %v6264 = vpop.permute.xlu0 %6263
      %6265 = vrot.lane.b32.xlu0 %v6220, 78
      %v6266 = vpop.permute.xlu0 %6265
      %6267 = vrot.lane.b32.xlu0 %v6221, 78
      %v6268 = vpop.permute.xlu0 %6267
      %6269 = vrot.lane.b32.xlu0 %v6222, 78
      %v6270 = vpop.permute.xlu0 %6269
      %6271 = vrot.lane.b32.xlu0 %v6223, 78
      %v6272 = vpop.permute.xlu0 %6271
      %6273 = vrot.lane.b32.xlu0 %v6224, 78
      %v6274 = vpop.permute.xlu0 %6273
      %6275 = vrot.lane.b32.xlu0 %v6225, 78
      %v6276 = vpop.permute.xlu0 %6275
      %6277 = vrot.lane.b32.xlu0 %v6226, 78
      %v6278 = vpop.permute.xlu0 %6277
      %6279 = vrot.lane.b32.xlu0 %v6227, 78
      %v6280 = vpop.permute.xlu0 %6279
      %6281 = vrot.lane.b32.xlu0 %v6228, 78
      %v6282 = vpop.permute.xlu0 %6281
      %6283 = vrot.lane.b32.xlu0 %v6229, 78
      %v6284 = vpop.permute.xlu0 %6283
      %6285 = vrot.lane.b32.xlu0 %v6230, 78
      %v6286 = vpop.permute.xlu0 %6285
      %6287 = vrot.lane.b32.xlu0 %v6231, 78
      %v6288 = vpop.permute.xlu0 %6287
      %6289 = vrot.lane.b32.xlu0 %v6232, 78
      %v6290 = vpop.permute.xlu0 %6289
      %6291 = vrot.lane.b32.xlu0 %v6233, 78
      %v6292 = vpop.permute.xlu0 %6291
      %6293 = vrot.lane.b32.xlu0 %v6234, 78
      %v6294 = vpop.permute.xlu0 %6293
      %6295 = vrot.lane.b32.xlu0 %v6235, 78
      %v6296 = vpop.permute.xlu0 %6295
      %6297 = vrot.lane.b32.xlu0 %v6236, 78
      %v6298 = vpop.permute.xlu0 %6297
      %6299 = vrot.lane.b32.xlu0 %v6237, 78
      %v6300 = vpop.permute.xlu0 %6299
      %6301 = vrot.lane.b32.xlu0 %v6238, 78
      %v6302 = vpop.permute.xlu0 %6301
      %6303 = vrot.lane.b32.xlu0 %v6239, 78
      %v6304 = vpop.permute.xlu0 %6303
      %6305 = vrot.lane.b32.xlu0 %v6240, 78
      %v6306 = vpop.permute.xlu0 %6305
      %v6307 = vsel %vm3796, %v6264, %v6266
      %v6308 = vsel %vm3796, %v6266, %v6268
      %v6309 = vsel %vm3796, %v6268, %v6270
      %v6310 = vsel %vm3796, %v6270, %v6272
      %v6311 = vsel %vm3796, %v6272, %v6274
      %v6312 = vsel %vm3796, %v6274, %v6276
      %v6313 = vsel %vm3796, %v6276, %v6278
      %v6314 = vsel %vm3796, %v6278, %v6280
      %v6315 = vsel %vm3796, %v6280, %v6282
      %v6316 = vsel %vm3796, %v6282, %v6284
      %v6317 = vsel %vm3796, %v6286, %v6288
      %v6318 = vsel %vm3796, %v6288, %v6290
      %v6319 = vsel %vm3796, %v6290, %v6292
      %v6320 = vsel %vm3796, %v6292, %v6294
      %v6321 = vsel %vm3796, %v6294, %v6296
      %v6322 = vsel %vm3796, %v6296, %v6298
      %v6323 = vsel %vm3796, %v6298, %v6300
      %v6324 = vsel %vm3796, %v6300, %v6302
      %v6325 = vsel %vm3796, %v6302, %v6304
      %v6326 = vsel %vm3796, %v6304, %v6306
      %v6347 = vadd.f32 %v6199, %v6307
      %v6348 = vadd.f32 %v6200, %v6308
      %v6349 = vadd.f32 %v6201, %v6309
      %v6350 = vadd.f32 %v6202, %v6310
      %v6351 = vadd.f32 %v6203, %v6311
      %v6352 = vadd.f32 %v6204, %v6312
      %v6353 = vadd.f32 %v6205, %v6313
      %v6354 = vadd.f32 %v6206, %v6314
      %v6355 = vadd.f32 %v6207, %v6315
      %v6356 = vadd.f32 %v6208, %v6316
      %v6357 = vadd.f32 %v6209, %v6317
      %v6358 = vadd.f32 %v6210, %v6318
      %v6359 = vadd.f32 %v6211, %v6319
      %v6360 = vadd.f32 %v6212, %v6320
      %v6361 = vadd.f32 %v6213, %v6321
      %v6362 = vadd.f32 %v6214, %v6322
      %v6363 = vadd.f32 %v6215, %v6323
      %v6364 = vadd.f32 %v6216, %v6324
      %v6365 = vadd.f32 %v6217, %v6325
      %v6366 = vadd.f32 %v6218, %v6326
      %6367 = vst [vmem:[#allocation2] sm:$0xff] %v6347
      %6368 = vst [vmem:[#allocation2 + $0x8] sm:$0xff] %v6348
      %6369 = vst [vmem:[#allocation2 + $0x10] sm:$0xff] %v6349
      %6370 = vst [vmem:[#allocation2 + $0x18] sm:$0xff] %v6350
      %6371 = vst [vmem:[#allocation2 + $0x20] sm:$0xff] %v6351
      %6372 = vst [vmem:[#allocation2 + $0x28] sm:$0xff] %v6352
      %6373 = vst [vmem:[#allocation2 + $0x30] sm:$0xff] %v6353
      %6374 = vst [vmem:[#allocation2 + $0x38] sm:$0xff] %v6354
      %6375 = vst [vmem:[#allocation2 + $0x40] sm:$0xff] %v6355
      %6376 = vst [vmem:[#allocation2 + $0x48] sm:$0xff] %v6356
      %6377 = vst [vmem:[#allocation2 + $0x58] sm:$0xff] %v6357
      %6378 = vst [vmem:[#allocation2 + $0x60] sm:$0xff] %v6358
      %6379 = vst [vmem:[#allocation2 + $0x68] sm:$0xff] %v6359
      %6380 = vst [vmem:[#allocation2 + $0x70] sm:$0xff] %v6360
      %6381 = vst [vmem:[#allocation2 + $0x78] sm:$0xff] %v6361
      %6382 = vst [vmem:[#allocation2 + $0x80] sm:$0xff] %v6362
      %6383 = vst [vmem:[#allocation2 + $0x88] sm:$0xff] %v6363
      %6384 = vst [vmem:[#allocation2 + $0x90] sm:$0xff] %v6364
      %6385 = vst [vmem:[#allocation2 + $0x98] sm:$0xff] %v6365
      %6386 = vst [vmem:[#allocation2 + $0xa0] sm:$0xff] %v6366
      %v6387 = vld [vmem:[#allocation2] sm:$0xff]
      %v6388 = vld [vmem:[#allocation2 + $0x8] sm:$0xff]
      %v6389 = vld [vmem:[#allocation2 + $0x10] sm:$0xff]
      %v6390 = vld [vmem:[#allocation2 + $0x18] sm:$0xff]
      %v6391 = vld [vmem:[#allocation2 + $0x20] sm:$0xff]
      %v6392 = vld [vmem:[#allocation2 + $0x28] sm:$0xff]
      %v6393 = vld [vmem:[#allocation2 + $0x30] sm:$0xff]
      %v6394 = vld [vmem:[#allocation2 + $0x38] sm:$0xff]
      %v6395 = vld [vmem:[#allocation2 + $0x40] sm:$0xff]
      %v6396 = vld [vmem:[#allocation2 + $0x48] sm:$0xff]
      %v6397 = vld [vmem:[#allocation2 + $0x58] sm:$0xff]
      %v6398 = vld [vmem:[#allocation2 + $0x60] sm:$0xff]
      %v6399 = vld [vmem:[#allocation2 + $0x68] sm:$0xff]
      %v6400 = vld [vmem:[#allocation2 + $0x70] sm:$0xff]
      %v6401 = vld [vmem:[#allocation2 + $0x78] sm:$0xff]
      %v6402 = vld [vmem:[#allocation2 + $0x80] sm:$0xff]
      %v6403 = vld [vmem:[#allocation2 + $0x88] sm:$0xff]
      %v6404 = vld [vmem:[#allocation2 + $0x90] sm:$0xff]
      %v6405 = vld [vmem:[#allocation2 + $0x98] sm:$0xff]
      %v6406 = vld [vmem:[#allocation2 + $0xa0] sm:$0xff]
      %v6407 = vpack.c.bf16 %v6397, %v6387
      %v6408 = vpack.c.bf16 %v6398, %v6388
      %v6409 = vpack.c.bf16 %v6399, %v6389
      %v6410 = vpack.c.bf16 %v6400, %v6390
      %v6411 = vpack.c.bf16 %v6401, %v6391
      %v6412 = vpack.c.bf16 %v6402, %v6392
      %v6413 = vpack.c.bf16 %v6403, %v6393
      %v6414 = vpack.c.bf16 %v6404, %v6394
      %v6415 = vpack.c.bf16 %v6405, %v6395
      %v6416 = vpack.c.bf16 %v6406, %v6396
      %6417 = vst [vmem:[#allocation5] sm:$0xff] %v6407
      %6418 = vst [vmem:[#allocation5 + $0x8] sm:$0xff] %v6408
      %6419 = vst [vmem:[#allocation5 + $0x10] sm:$0xff] %v6409
      %6420 = vst [vmem:[#allocation5 + $0x18] sm:$0xff] %v6410
      %6421 = vst [vmem:[#allocation5 + $0x20] sm:$0xff] %v6411
      %6422 = vst [vmem:[#allocation5 + $0x28] sm:$0xff] %v6412
      %6423 = vst [vmem:[#allocation5 + $0x30] sm:$0xff] %v6413
      %6424 = vst [vmem:[#allocation5 + $0x38] sm:$0xff] %v6414
      %6425 = vst [vmem:[#allocation5 + $0x40] sm:$0xff] %v6415
      %6426 = vst [vmem:[#allocation5 + $0x48] sm:$0xff] %v6416
      %v6427 = vld [vmem:[#allocation2] sm:$0xff]
      %v6428 = vld [vmem:[#allocation2 + $0x8] sm:$0xff]
      %v6429 = vld [vmem:[#allocation2 + $0x10] sm:$0xff]
      %v6430 = vld [vmem:[#allocation2 + $0x18] sm:$0xff]
      %v6431 = vld [vmem:[#allocation2 + $0x20] sm:$0xff]
      %v6432 = vld [vmem:[#allocation2 + $0x28] sm:$0xff]
      %v6433 = vld [vmem:[#allocation2 + $0x30] sm:$0xff]
      %v6434 = vld [vmem:[#allocation2 + $0x38] sm:$0xff]
      %v6435 = vld [vmem:[#allocation2 + $0x40] sm:$0xff]
      %v6436 = vld [vmem:[#allocation2 + $0x48] sm:$0xff]
      %v6437 = vld [vmem:[#allocation2 + $0x50] sm:$0xff]
      %v6438 = vld [vmem:[#allocation2 + $0x58] sm:$0xff]
      %v6439 = vld [vmem:[#allocation2 + $0x60] sm:$0xff]
      %v6440 = vld [vmem:[#allocation2 + $0x68] sm:$0xff]
      %v6441 = vld [vmem:[#allocation2 + $0x70] sm:$0xff]
      %v6442 = vld [vmem:[#allocation2 + $0x78] sm:$0xff]
      %v6443 = vld [vmem:[#allocation2 + $0x80] sm:$0xff]
      %v6444 = vld [vmem:[#allocation2 + $0x88] sm:$0xff]
      %v6445 = vld [vmem:[#allocation2 + $0x90] sm:$0xff]
      %v6446 = vld [vmem:[#allocation2 + $0x98] sm:$0xff]
      %v6447 = vld [vmem:[#allocation2 + $0xa0] sm:$0xff]
      %v6448 = vld [vmem:[#allocation2 + $0xa8] sm:$0xff]
      %v6449 = vpack.c.bf16 %v6438, %v6427
      %v6450 = vpack.c.bf16 %v6439, %v6428
      %v6451 = vpack.c.bf16 %v6440, %v6429
      %v6452 = vpack.c.bf16 %v6441, %v6430
      %v6453 = vpack.c.bf16 %v6442, %v6431
      %v6454 = vpack.c.bf16 %v6443, %v6432
      %v6455 = vpack.c.bf16 %v6444, %v6433
      %v6456 = vpack.c.bf16 %v6445, %v6434
      %v6457 = vpack.c.bf16 %v6446, %v6435
      %v6458 = vpack.c.bf16 %v6447, %v6436
      %v6459 = vpack.c.bf16 %v6448, %v6437
      %6471 = vrot.lane.b32.xlu0 %v6449, 127
      %v6472 = vpop.permute.xlu0 %6471
      %6473 = vrot.lane.b32.xlu0 %v6450, 127
      %v6474 = vpop.permute.xlu0 %6473
      %6475 = vrot.lane.b32.xlu0 %v6451, 127
      %v6476 = vpop.permute.xlu0 %6475
      %6477 = vrot.lane.b32.xlu0 %v6452, 127
      %v6478 = vpop.permute.xlu0 %6477
      %6479 = vrot.lane.b32.xlu0 %v6453, 127
      %v6480 = vpop.permute.xlu0 %6479
      %6481 = vrot.lane.b32.xlu0 %v6454, 127
      %v6482 = vpop.permute.xlu0 %6481
      %6483 = vrot.lane.b32.xlu0 %v6455, 127
      %v6484 = vpop.permute.xlu0 %6483
      %6485 = vrot.lane.b32.xlu0 %v6456, 127
      %v6486 = vpop.permute.xlu0 %6485
      %6487 = vrot.lane.b32.xlu0 %v6457, 127
      %v6488 = vpop.permute.xlu0 %6487
      %6489 = vrot.lane.b32.xlu0 %v6458, 127
      %v6490 = vpop.permute.xlu0 %6489
      %6491 = vrot.lane.b32.xlu0 %v6459, 127
      %v6492 = vpop.permute.xlu0 %6491
      %v6493 = vsel %vm284, %v6472, %v6474
      %v6494 = vsel %vm284, %v6474, %v6476
      %v6495 = vsel %vm284, %v6476, %v6478
      %v6496 = vsel %vm284, %v6478, %v6480
      %v6497 = vsel %vm284, %v6480, %v6482
      %v6498 = vsel %vm284, %v6482, %v6484
      %v6499 = vsel %vm284, %v6484, %v6486
      %v6500 = vsel %vm284, %v6486, %v6488
      %v6501 = vsel %vm284, %v6488, %v6490
      %v6502 = vsel %vm284, %v6490, %v6492
      %6513 = vst [vmem:[#allocation5 + $0x50] sm:$0xff] %v6493
      %6514 = vst [vmem:[#allocation5 + $0x58] sm:$0xff] %v6494
      %6515 = vst [vmem:[#allocation5 + $0x60] sm:$0xff] %v6495
      %6516 = vst [vmem:[#allocation5 + $0x68] sm:$0xff] %v6496
      %6517 = vst [vmem:[#allocation5 + $0x70] sm:$0xff] %v6497
      %6518 = vst [vmem:[#allocation5 + $0x78] sm:$0xff] %v6498
      %6519 = vst [vmem:[#allocation5 + $0x80] sm:$0xff] %v6499
      %6520 = vst [vmem:[#allocation5 + $0x88] sm:$0xff] %v6500
      %6521 = vst [vmem:[#allocation5 + $0x90] sm:$0xff] %v6501
      %6522 = vst [vmem:[#allocation5 + $0x98] sm:$0xff] %v6502
      %v6523 = vld [vmem:[#allocation2] sm:$0xff]
      %v6524 = vld [vmem:[#allocation2 + $0x8] sm:$0xff]
      %v6525 = vld [vmem:[#allocation2 + $0x10] sm:$0xff]
      %v6526 = vld [vmem:[#allocation2 + $0x18] sm:$0xff]
      %v6527 = vld [vmem:[#allocation2 + $0x20] sm:$0xff]
      %v6528 = vld [vmem:[#allocation2 + $0x28] sm:$0xff]
      %v6529 = vld [vmem:[#allocation2 + $0x30] sm:$0xff]
      %v6530 = vld [vmem:[#allocation2 + $0x38] sm:$0xff]
      %v6531 = vld [vmem:[#allocation2 + $0x40] sm:$0xff]
      %v6532 = vld [vmem:[#allocation2 + $0x48] sm:$0xff]
      %v6533 = vld [vmem:[#allocation2 + $0x50] sm:$0xff]
      %v6534 = vld [vmem:[#allocation2 + $0x58] sm:$0xff]
      %v6535 = vld [vmem:[#allocation2 + $0x60] sm:$0xff]
      %v6536 = vld [vmem:[#allocation2 + $0x68] sm:$0xff]
      %v6537 = vld [vmem:[#allocation2 + $0x70] sm:$0xff]
      %v6538 = vld [vmem:[#allocation2 + $0x78] sm:$0xff]
      %v6539 = vld [vmem:[#allocation2 + $0x80] sm:$0xff]
      %v6540 = vld [vmem:[#allocation2 + $0x88] sm:$0xff]
      %v6541 = vld [vmem:[#allocation2 + $0x90] sm:$0xff]
      %v6542 = vld [vmem:[#allocation2 + $0x98] sm:$0xff]
      %v6543 = vld [vmem:[#allocation2 + $0xa0] sm:$0xff]
      %v6544 = vld [vmem:[#allocation2 + $0xa8] sm:$0xff]
      %v6545 = vpack.c.bf16 %v6534, %v6523
      %v6546 = vpack.c.bf16 %v6535, %v6524
      %v6547 = vpack.c.bf16 %v6536, %v6525
      %v6548 = vpack.c.bf16 %v6537, %v6526
      %v6549 = vpack.c.bf16 %v6538, %v6527
      %v6550 = vpack.c.bf16 %v6539, %v6528
      %v6551 = vpack.c.bf16 %v6540, %v6529
      %v6552 = vpack.c.bf16 %v6541, %v6530
      %v6553 = vpack.c.bf16 %v6542, %v6531
      %v6554 = vpack.c.bf16 %v6543, %v6532
      %v6555 = vpack.c.bf16 %v6544, %v6533
      %6567 = vrot.lane.b32.xlu0 %v6545, 126
      %v6568 = vpop.permute.xlu0 %6567
      %6569 = vrot.lane.b32.xlu0 %v6546, 126
      %v6570 = vpop.permute.xlu0 %6569
      %6571 = vrot.lane.b32.xlu0 %v6547, 126
      %v6572 = vpop.permute.xlu0 %6571
      %6573 = vrot.lane.b32.xlu0 %v6548, 126
      %v6574 = vpop.permute.xlu0 %6573
      %6575 = vrot.lane.b32.xlu0 %v6549, 126
      %v6576 = vpop.permute.xlu0 %6575
      %6577 = vrot.lane.b32.xlu0 %v6550, 126
      %v6578 = vpop.permute.xlu0 %6577
      %6579 = vrot.lane.b32.xlu0 %v6551, 126
      %v6580 = vpop.permute.xlu0 %6579
      %6581 = vrot.lane.b32.xlu0 %v6552, 126
      %v6582 = vpop.permute.xlu0 %6581
      %6583 = vrot.lane.b32.xlu0 %v6553, 126
      %v6584 = vpop.permute.xlu0 %6583
      %6585 = vrot.lane.b32.xlu0 %v6554, 126
      %v6586 = vpop.permute.xlu0 %6585
      %6587 = vrot.lane.b32.xlu0 %v6555, 126
      %v6588 = vpop.permute.xlu0 %6587
      %v6589 = vsel %vm381, %v6568, %v6570
      %v6590 = vsel %vm381, %v6570, %v6572
      %v6591 = vsel %vm381, %v6572, %v6574
      %v6592 = vsel %vm381, %v6574, %v6576
      %v6593 = vsel %vm381, %v6576, %v6578
      %v6594 = vsel %vm381, %v6578, %v6580
      %v6595 = vsel %vm381, %v6580, %v6582
      %v6596 = vsel %vm381, %v6582, %v6584
      %v6597 = vsel %vm381, %v6584, %v6586
      %v6598 = vsel %vm381, %v6586, %v6588
      %6609 = vst [vmem:[#allocation5 + $0xa0] sm:$0xff] %v6589
      %6610 = vst [vmem:[#allocation5 + $0xa8] sm:$0xff] %v6590
      %6611 = vst [vmem:[#allocation5 + $0xb0] sm:$0xff] %v6591
      %6612 = vst [vmem:[#allocation5 + $0xb8] sm:$0xff] %v6592
      %6613 = vst [vmem:[#allocation5 + $0xc0] sm:$0xff] %v6593
      %6614 = vst [vmem:[#allocation5 + $0xc8] sm:$0xff] %v6594
      %6615 = vst [vmem:[#allocation5 + $0xd0] sm:$0xff] %v6595
      %6616 = vst [vmem:[#allocation5 + $0xd8] sm:$0xff] %v6596
      %6617 = vst [vmem:[#allocation5 + $0xe0] sm:$0xff] %v6597
      %6618 = vst [vmem:[#allocation5 + $0xe8] sm:$0xff] %v6598
      %v6619 = vld [vmem:[#allocation2] sm:$0xff]
      %v6620 = vld [vmem:[#allocation2 + $0x8] sm:$0xff]
      %v6621 = vld [vmem:[#allocation2 + $0x10] sm:$0xff]
      %v6622 = vld [vmem:[#allocation2 + $0x18] sm:$0xff]
      %v6623 = vld [vmem:[#allocation2 + $0x20] sm:$0xff]
      %v6624 = vld [vmem:[#allocation2 + $0x28] sm:$0xff]
      %v6625 = vld [vmem:[#allocation2 + $0x30] sm:$0xff]
      %v6626 = vld [vmem:[#allocation2 + $0x38] sm:$0xff]
      %v6627 = vld [vmem:[#allocation2 + $0x40] sm:$0xff]
      %v6628 = vld [vmem:[#allocation2 + $0x48] sm:$0xff]
      %v6629 = vld [vmem:[#allocation2 + $0x50] sm:$0xff]
      %v6630 = vld [vmem:[#allocation2 + $0x58] sm:$0xff]
      %v6631 = vld [vmem:[#allocation2 + $0x60] sm:$0xff]
      %v6632 = vld [vmem:[#allocation2 + $0x68] sm:$0xff]
      %v6633 = vld [vmem:[#allocation2 + $0x70] sm:$0xff]
      %v6634 = vld [vmem:[#allocation2 + $0x78] sm:$0xff]
      %v6635 = vld [vmem:[#allocation2 + $0x80] sm:$0xff]
      %v6636 = vld [vmem:[#allocation2 + $0x88] sm:$0xff]
      %v6637 = vld [vmem:[#allocation2 + $0x90] sm:$0xff]
      %v6638 = vld [vmem:[#allocation2 + $0x98] sm:$0xff]
      %v6639 = vld [vmem:[#allocation2 + $0xa0] sm:$0xff]
      %v6640 = vld [vmem:[#allocation2 + $0xa8] sm:$0xff]
      %v6641 = vpack.c.bf16 %v6630, %v6619
      %v6642 = vpack.c.bf16 %v6631, %v6620
      %v6643 = vpack.c.bf16 %v6632, %v6621
      %v6644 = vpack.c.bf16 %v6633, %v6622
      %v6645 = vpack.c.bf16 %v6634, %v6623
      %v6646 = vpack.c.bf16 %v6635, %v6624
      %v6647 = vpack.c.bf16 %v6636, %v6625
      %v6648 = vpack.c.bf16 %v6637, %v6626
      %v6649 = vpack.c.bf16 %v6638, %v6627
      %v6650 = vpack.c.bf16 %v6639, %v6628
      %v6651 = vpack.c.bf16 %v6640, %v6629
      %6663 = vrot.lane.b32.xlu0 %v6641, 104
      %v6664 = vpop.permute.xlu0 %6663
      %6665 = vrot.lane.b32.xlu0 %v6642, 104
      %v6666 = vpop.permute.xlu0 %6665
      %6667 = vrot.lane.b32.xlu0 %v6643, 104
      %v6668 = vpop.permute.xlu0 %6667
      %6669 = vrot.lane.b32.xlu0 %v6644, 104
      %v6670 = vpop.permute.xlu0 %6669
      %6671 = vrot.lane.b32.xlu0 %v6645, 104
      %v6672 = vpop.permute.xlu0 %6671
      %6673 = vrot.lane.b32.xlu0 %v6646, 104
      %v6674 = vpop.permute.xlu0 %6673
      %6675 = vrot.lane.b32.xlu0 %v6647, 104
      %v6676 = vpop.permute.xlu0 %6675
      %6677 = vrot.lane.b32.xlu0 %v6648, 104
      %v6678 = vpop.permute.xlu0 %6677
      %6679 = vrot.lane.b32.xlu0 %v6649, 104
      %v6680 = vpop.permute.xlu0 %6679
      %6681 = vrot.lane.b32.xlu0 %v6650, 104
      %v6682 = vpop.permute.xlu0 %6681
      %6683 = vrot.lane.b32.xlu0 %v6651, 104
      %v6684 = vpop.permute.xlu0 %6683
      %v6685 = vsel %vm478, %v6664, %v6666
      %v6686 = vsel %vm478, %v6666, %v6668
      %v6687 = vsel %vm478, %v6668, %v6670
      %v6688 = vsel %vm478, %v6670, %v6672
      %v6689 = vsel %vm478, %v6672, %v6674
      %v6690 = vsel %vm478, %v6674, %v6676
      %v6691 = vsel %vm478, %v6676, %v6678
      %v6692 = vsel %vm478, %v6678, %v6680
      %v6693 = vsel %vm478, %v6680, %v6682
      %v6694 = vsel %vm478, %v6682, %v6684
      %6705 = vst [vmem:[#allocation5 + $0xf0] sm:$0xff] %v6685
      %6706 = vst [vmem:[#allocation5 + $0xf8] sm:$0xff] %v6686
      %6707 = vst [vmem:[#allocation5 + $0x100] sm:$0xff] %v6687
      %6708 = vst [vmem:[#allocation5 + $0x108] sm:$0xff] %v6688
      %6709 = vst [vmem:[#allocation5 + $0x110] sm:$0xff] %v6689
      %6710 = vst [vmem:[#allocation5 + $0x118] sm:$0xff] %v6690
      %6711 = vst [vmem:[#allocation5 + $0x120] sm:$0xff] %v6691
      %6712 = vst [vmem:[#allocation5 + $0x128] sm:$0xff] %v6692
      %6713 = vst [vmem:[#allocation5 + $0x130] sm:$0xff] %v6693
      %6714 = vst [vmem:[#allocation5 + $0x138] sm:$0xff] %v6694
      %v6715 = vld [vmem:[#allocation2] sm:$0xff]
      %v6716 = vld [vmem:[#allocation2 + $0x8] sm:$0xff]
      %v6717 = vld [vmem:[#allocation2 + $0x10] sm:$0xff]
      %v6718 = vld [vmem:[#allocation2 + $0x18] sm:$0xff]
      %v6719 = vld [vmem:[#allocation2 + $0x20] sm:$0xff]
      %v6720 = vld [vmem:[#allocation2 + $0x28] sm:$0xff]
      %v6721 = vld [vmem:[#allocation2 + $0x30] sm:$0xff]
      %v6722 = vld [vmem:[#allocation2 + $0x38] sm:$0xff]
      %v6723 = vld [vmem:[#allocation2 + $0x40] sm:$0xff]
      %v6724 = vld [vmem:[#allocation2 + $0x48] sm:$0xff]
      %v6725 = vld [vmem:[#allocation2 + $0x50] sm:$0xff]
      %v6726 = vld [vmem:[#allocation2 + $0x58] sm:$0xff]
      %v6727 = vld [vmem:[#allocation2 + $0x60] sm:$0xff]
      %v6728 = vld [vmem:[#allocation2 + $0x68] sm:$0xff]
      %v6729 = vld [vmem:[#allocation2 + $0x70] sm:$0xff]
      %v6730 = vld [vmem:[#allocation2 + $0x78] sm:$0xff]
      %v6731 = vld [vmem:[#allocation2 + $0x80] sm:$0xff]
      %v6732 = vld [vmem:[#allocation2 + $0x88] sm:$0xff]
      %v6733 = vld [vmem:[#allocation2 + $0x90] sm:$0xff]
      %v6734 = vld [vmem:[#allocation2 + $0x98] sm:$0xff]
      %v6735 = vld [vmem:[#allocation2 + $0xa0] sm:$0xff]
      %v6736 = vld [vmem:[#allocation2 + $0xa8] sm:$0xff]
      %v6737 = vpack.c.bf16 %v6726, %v6715
      %v6738 = vpack.c.bf16 %v6727, %v6716
      %v6739 = vpack.c.bf16 %v6728, %v6717
      %v6740 = vpack.c.bf16 %v6729, %v6718
      %v6741 = vpack.c.bf16 %v6730, %v6719
      %v6742 = vpack.c.bf16 %v6731, %v6720
      %v6743 = vpack.c.bf16 %v6732, %v6721
      %v6744 = vpack.c.bf16 %v6733, %v6722
      %v6745 = vpack.c.bf16 %v6734, %v6723
      %v6746 = vpack.c.bf16 %v6735, %v6724
      %v6747 = vpack.c.bf16 %v6736, %v6725
      %6759 = vrot.lane.b32.xlu0 %v6737, 103
      %v6760 = vpop.permute.xlu0 %6759
      %6761 = vrot.lane.b32.xlu0 %v6738, 103
      %v6762 = vpop.permute.xlu0 %6761
      %6763 = vrot.lane.b32.xlu0 %v6739, 103
      %v6764 = vpop.permute.xlu0 %6763
      %6765 = vrot.lane.b32.xlu0 %v6740, 103
      %v6766 = vpop.permute.xlu0 %6765
      %6767 = vrot.lane.b32.xlu0 %v6741, 103
      %v6768 = vpop.permute.xlu0 %6767
      %6769 = vrot.lane.b32.xlu0 %v6742, 103
      %v6770 = vpop.permute.xlu0 %6769
      %6771 = vrot.lane.b32.xlu0 %v6743, 103
      %v6772 = vpop.permute.xlu0 %6771
      %6773 = vrot.lane.b32.xlu0 %v6744, 103
      %v6774 = vpop.permute.xlu0 %6773
      %6775 = vrot.lane.b32.xlu0 %v6745, 103
      %v6776 = vpop.permute.xlu0 %6775
      %6777 = vrot.lane.b32.xlu0 %v6746, 103
      %v6778 = vpop.permute.xlu0 %6777
      %6779 = vrot.lane.b32.xlu0 %v6747, 103
      %v6780 = vpop.permute.xlu0 %6779
      %v6781 = vsel %vm575, %v6760, %v6762
      %v6782 = vsel %vm575, %v6762, %v6764
      %v6783 = vsel %vm575, %v6764, %v6766
      %v6784 = vsel %vm575, %v6766, %v6768
      %v6785 = vsel %vm575, %v6768, %v6770
      %v6786 = vsel %vm575, %v6770, %v6772
      %v6787 = vsel %vm575, %v6772, %v6774
      %v6788 = vsel %vm575, %v6774, %v6776
      %v6789 = vsel %vm575, %v6776, %v6778
      %v6790 = vsel %vm575, %v6778, %v6780
      %6801 = vst [vmem:[#allocation5 + $0x140] sm:$0xff] %v6781
      %6802 = vst [vmem:[#allocation5 + $0x148] sm:$0xff] %v6782
      %6803 = vst [vmem:[#allocation5 + $0x150] sm:$0xff] %v6783
      %6804 = vst [vmem:[#allocation5 + $0x158] sm:$0xff] %v6784
      %6805 = vst [vmem:[#allocation5 + $0x160] sm:$0xff] %v6785
      %6806 = vst [vmem:[#allocation5 + $0x168] sm:$0xff] %v6786
      %6807 = vst [vmem:[#allocation5 + $0x170] sm:$0xff] %v6787
      %6808 = vst [vmem:[#allocation5 + $0x178] sm:$0xff] %v6788
      %6809 = vst [vmem:[#allocation5 + $0x180] sm:$0xff] %v6789
      %6810 = vst [vmem:[#allocation5 + $0x188] sm:$0xff] %v6790
      %v6811 = vld [vmem:[#allocation2] sm:$0xff]
      %v6812 = vld [vmem:[#allocation2 + $0x8] sm:$0xff]
      %v6813 = vld [vmem:[#allocation2 + $0x10] sm:$0xff]
      %v6814 = vld [vmem:[#allocation2 + $0x18] sm:$0xff]
      %v6815 = vld [vmem:[#allocation2 + $0x20] sm:$0xff]
      %v6816 = vld [vmem:[#allocation2 + $0x28] sm:$0xff]
      %v6817 = vld [vmem:[#allocation2 + $0x30] sm:$0xff]
      %v6818 = vld [vmem:[#allocation2 + $0x38] sm:$0xff]
      %v6819 = vld [vmem:[#allocation2 + $0x40] sm:$0xff]
      %v6820 = vld [vmem:[#allocation2 + $0x48] sm:$0xff]
      %v6821 = vld [vmem:[#allocation2 + $0x50] sm:$0xff]
      %v6822 = vld [vmem:[#allocation2 + $0x58] sm:$0xff]
      %v6823 = vld [vmem:[#allocation2 + $0x60] sm:$0xff]
      %v6824 = vld [vmem:[#allocation2 + $0x68] sm:$0xff]
      %v6825 = vld [vmem:[#allocation2 + $0x70] sm:$0xff]
      %v6826 = vld [vmem:[#allocation2 + $0x78] sm:$0xff]
      %v6827 = vld [vmem:[#allocation2 + $0x80] sm:$0xff]
      %v6828 = vld [vmem:[#allocation2 + $0x88] sm:$0xff]
      %v6829 = vld [vmem:[#allocation2 + $0x90] sm:$0xff]
      %v6830 = vld [vmem:[#allocation2 + $0x98] sm:$0xff]
      %v6831 = vld [vmem:[#allocation2 + $0xa0] sm:$0xff]
      %v6832 = vld [vmem:[#allocation2 + $0xa8] sm:$0xff]
      %v6833 = vpack.c.bf16 %v6822, %v6811
      %v6834 = vpack.c.bf16 %v6823, %v6812
      %v6835 = vpack.c.bf16 %v6824, %v6813
      %v6836 = vpack.c.bf16 %v6825, %v6814
      %v6837 = vpack.c.bf16 %v6826, %v6815
      %v6838 = vpack.c.bf16 %v6827, %v6816
      %v6839 = vpack.c.bf16 %v6828, %v6817
      %v6840 = vpack.c.bf16 %v6829, %v6818
      %v6841 = vpack.c.bf16 %v6830, %v6819
      %v6842 = vpack.c.bf16 %v6831, %v6820
      %v6843 = vpack.c.bf16 %v6832, %v6821
      %6855 = vrot.lane.b32.xlu0 %v6833, 102
      %v6856 = vpop.permute.xlu0 %6855
      %6857 = vrot.lane.b32.xlu0 %v6834, 102
      %v6858 = vpop.permute.xlu0 %6857
      %6859 = vrot.lane.b32.xlu0 %v6835, 102
      %v6860 = vpop.permute.xlu0 %6859
      %6861 = vrot.lane.b32.xlu0 %v6836, 102
      %v6862 = vpop.permute.xlu0 %6861
      %6863 = vrot.lane.b32.xlu0 %v6837, 102
      %v6864 = vpop.permute.xlu0 %6863
      %6865 = vrot.lane.b32.xlu0 %v6838, 102
      %v6866 = vpop.permute.xlu0 %6865
      %6867 = vrot.lane.b32.xlu0 %v6839, 102
      %v6868 = vpop.permute.xlu0 %6867
      %6869 = vrot.lane.b32.xlu0 %v6840, 102
      %v6870 = vpop.permute.xlu0 %6869
      %6871 = vrot.lane.b32.xlu0 %v6841, 102
      %v6872 = vpop.permute.xlu0 %6871
      %6873 = vrot.lane.b32.xlu0 %v6842, 102
      %v6874 = vpop.permute.xlu0 %6873
      %6875 = vrot.lane.b32.xlu0 %v6843, 102
      %v6876 = vpop.permute.xlu0 %6875
      %v6877 = vsel %vm672, %v6856, %v6858
      %v6878 = vsel %vm672, %v6858, %v6860
      %v6879 = vsel %vm672, %v6860, %v6862
      %v6880 = vsel %vm672, %v6862, %v6864
      %v6881 = vsel %vm672, %v6864, %v6866
      %v6882 = vsel %vm672, %v6866, %v6868
      %v6883 = vsel %vm672, %v6868, %v6870
      %v6884 = vsel %vm672, %v6870, %v6872
      %v6885 = vsel %vm672, %v6872, %v6874
      %v6886 = vsel %vm672, %v6874, %v6876
      %6897 = vst [vmem:[#allocation5 + $0x190] sm:$0xff] %v6877
      %6898 = vst [vmem:[#allocation5 + $0x198] sm:$0xff] %v6878
      %6899 = vst [vmem:[#allocation5 + $0x1a0] sm:$0xff] %v6879
      %6900 = vst [vmem:[#allocation5 + $0x1a8] sm:$0xff] %v6880
      %6901 = vst [vmem:[#allocation5 + $0x1b0] sm:$0xff] %v6881
      %6902 = vst [vmem:[#allocation5 + $0x1b8] sm:$0xff] %v6882
      %6903 = vst [vmem:[#allocation5 + $0x1c0] sm:$0xff] %v6883
      %6904 = vst [vmem:[#allocation5 + $0x1c8] sm:$0xff] %v6884
      %6905 = vst [vmem:[#allocation5 + $0x1d0] sm:$0xff] %v6885
      %6906 = vst [vmem:[#allocation5 + $0x1d8] sm:$0xff] %v6886
      %v6907 = vld [vmem:[#allocation2] sm:$0xff]
      %v6908 = vld [vmem:[#allocation2 + $0x8] sm:$0xff]
      %v6909 = vld [vmem:[#allocation2 + $0x10] sm:$0xff]
      %v6910 = vld [vmem:[#allocation2 + $0x18] sm:$0xff]
      %v6911 = vld [vmem:[#allocation2 + $0x20] sm:$0xff]
      %v6912 = vld [vmem:[#allocation2 + $0x28] sm:$0xff]
      %v6913 = vld [vmem:[#allocation2 + $0x30] sm:$0xff]
      %v6914 = vld [vmem:[#allocation2 + $0x38] sm:$0xff]
      %v6915 = vld [vmem:[#allocation2 + $0x40] sm:$0xff]
      %v6916 = vld [vmem:[#allocation2 + $0x48] sm:$0xff]
      %v6917 = vld [vmem:[#allocation2 + $0x50] sm:$0xff]
      %v6918 = vld [vmem:[#allocation2 + $0x58] sm:$0xff]
      %v6919 = vld [vmem:[#allocation2 + $0x60] sm:$0xff]
      %v6920 = vld [vmem:[#allocation2 + $0x68] sm:$0xff]
      %v6921 = vld [vmem:[#allocation2 + $0x70] sm:$0xff]
      %v6922 = vld [vmem:[#allocation2 + $0x78] sm:$0xff]
      %v6923 = vld [vmem:[#allocation2 + $0x80] sm:$0xff]
      %v6924 = vld [vmem:[#allocation2 + $0x88] sm:$0xff]
      %v6925 = vld [vmem:[#allocation2 + $0x90] sm:$0xff]
      %v6926 = vld [vmem:[#allocation2 + $0x98] sm:$0xff]
      %v6927 = vld [vmem:[#allocation2 + $0xa0] sm:$0xff]
      %v6928 = vld [vmem:[#allocation2 + $0xa8] sm:$0xff]
      %v6929 = vpack.c.bf16 %v6918, %v6907
      %v6930 = vpack.c.bf16 %v6919, %v6908
      %v6931 = vpack.c.bf16 %v6920, %v6909
      %v6932 = vpack.c.bf16 %v6921, %v6910
      %v6933 = vpack.c.bf16 %v6922, %v6911
      %v6934 = vpack.c.bf16 %v6923, %v6912
      %v6935 = vpack.c.bf16 %v6924, %v6913
      %v6936 = vpack.c.bf16 %v6925, %v6914
      %v6937 = vpack.c.bf16 %v6926, %v6915
      %v6938 = vpack.c.bf16 %v6927, %v6916
      %v6939 = vpack.c.bf16 %v6928, %v6917
      %6951 = vrot.lane.b32.xlu0 %v6929, 80
      %v6952 = vpop.permute.xlu0 %6951
      %6953 = vrot.lane.b32.xlu0 %v6930, 80
      %v6954 = vpop.permute.xlu0 %6953
      %6955 = vrot.lane.b32.xlu0 %v6931, 80
      %v6956 = vpop.permute.xlu0 %6955
      %6957 = vrot.lane.b32.xlu0 %v6932, 80
      %v6958 = vpop.permute.xlu0 %6957
      %6959 = vrot.lane.b32.xlu0 %v6933, 80
      %v6960 = vpop.permute.xlu0 %6959
      %6961 = vrot.lane.b32.xlu0 %v6934, 80
      %v6962 = vpop.permute.xlu0 %6961
      %6963 = vrot.lane.b32.xlu0 %v6935, 80
      %v6964 = vpop.permute.xlu0 %6963
      %6965 = vrot.lane.b32.xlu0 %v6936, 80
      %v6966 = vpop.permute.xlu0 %6965
      %6967 = vrot.lane.b32.xlu0 %v6937, 80
      %v6968 = vpop.permute.xlu0 %6967
      %6969 = vrot.lane.b32.xlu0 %v6938, 80
      %v6970 = vpop.permute.xlu0 %6969
      %6971 = vrot.lane.b32.xlu0 %v6939, 80
      %v6972 = vpop.permute.xlu0 %6971
      %v6973 = vsel %vm769, %v6952, %v6954
      %v6974 = vsel %vm769, %v6954, %v6956
      %v6975 = vsel %vm769, %v6956, %v6958
      %v6976 = vsel %vm769, %v6958, %v6960
      %v6977 = vsel %vm769, %v6960, %v6962
      %v6978 = vsel %vm769, %v6962, %v6964
      %v6979 = vsel %vm769, %v6964, %v6966
      %v6980 = vsel %vm769, %v6966, %v6968
      %v6981 = vsel %vm769, %v6968, %v6970
      %v6982 = vsel %vm769, %v6970, %v6972
      %6993 = vst [vmem:[#allocation5 + $0x1e0] sm:$0xff] %v6973
      %6994 = vst [vmem:[#allocation5 + $0x1e8] sm:$0xff] %v6974
      %6995 = vst [vmem:[#allocation5 + $0x1f0] sm:$0xff] %v6975
      %6996 = vst [vmem:[#allocation5 + $0x1f8] sm:$0xff] %v6976
      %6997 = vst [vmem:[#allocation5 + $0x200] sm:$0xff] %v6977
      %6998 = vst [vmem:[#allocation5 + $0x208] sm:$0xff] %v6978
      %6999 = vst [vmem:[#allocation5 + $0x210] sm:$0xff] %v6979
      %7000 = vst [vmem:[#allocation5 + $0x218] sm:$0xff] %v6980
      %7001 = vst [vmem:[#allocation5 + $0x220] sm:$0xff] %v6981
      %7002 = vst [vmem:[#allocation5 + $0x228] sm:$0xff] %v6982
      %v7003 = vld [vmem:[#allocation2] sm:$0xff]
      %v7004 = vld [vmem:[#allocation2 + $0x8] sm:$0xff]
      %v7005 = vld [vmem:[#allocation2 + $0x10] sm:$0xff]
      %v7006 = vld [vmem:[#allocation2 + $0x18] sm:$0xff]
      %v7007 = vld [vmem:[#allocation2 + $0x20] sm:$0xff]
      %v7008 = vld [vmem:[#allocation2 + $0x28] sm:$0xff]
      %v7009 = vld [vmem:[#allocation2 + $0x30] sm:$0xff]
      %v7010 = vld [vmem:[#allocation2 + $0x38] sm:$0xff]
      %v7011 = vld [vmem:[#allocation2 + $0x40] sm:$0xff]
      %v7012 = vld [vmem:[#allocation2 + $0x48] sm:$0xff]
      %v7013 = vld [vmem:[#allocation2 + $0x50] sm:$0xff]
      %v7014 = vld [vmem:[#allocation2 + $0x58] sm:$0xff]
      %v7015 = vld [vmem:[#allocation2 + $0x60] sm:$0xff]
      %v7016 = vld [vmem:[#allocation2 + $0x68] sm:$0xff]
      %v7017 = vld [vmem:[#allocation2 + $0x70] sm:$0xff]
      %v7018 = vld [vmem:[#allocation2 + $0x78] sm:$0xff]
      %v7019 = vld [vmem:[#allocation2 + $0x80] sm:$0xff]
      %v7020 = vld [vmem:[#allocation2 + $0x88] sm:$0xff]
      %v7021 = vld [vmem:[#allocation2 + $0x90] sm:$0xff]
      %v7022 = vld [vmem:[#allocation2 + $0x98] sm:$0xff]
      %v7023 = vld [vmem:[#allocation2 + $0xa0] sm:$0xff]
      %v7024 = vld [vmem:[#allocation2 + $0xa8] sm:$0xff]
      %v7025 = vpack.c.bf16 %v7014, %v7003
      %v7026 = vpack.c.bf16 %v7015, %v7004
      %v7027 = vpack.c.bf16 %v7016, %v7005
      %v7028 = vpack.c.bf16 %v7017, %v7006
      %v7029 = vpack.c.bf16 %v7018, %v7007
      %v7030 = vpack.c.bf16 %v7019, %v7008
      %v7031 = vpack.c.bf16 %v7020, %v7009
      %v7032 = vpack.c.bf16 %v7021, %v7010
      %v7033 = vpack.c.bf16 %v7022, %v7011
      %v7034 = vpack.c.bf16 %v7023, %v7012
      %v7035 = vpack.c.bf16 %v7024, %v7013
      %7047 = vrot.lane.b32.xlu0 %v7025, 79
      %v7048 = vpop.permute.xlu0 %7047
      %7049 = vrot.lane.b32.xlu0 %v7026, 79
      %v7050 = vpop.permute.xlu0 %7049
      %7051 = vrot.lane.b32.xlu0 %v7027, 79
      %v7052 = vpop.permute.xlu0 %7051
      %7053 = vrot.lane.b32.xlu0 %v7028, 79
      %v7054 = vpop.permute.xlu0 %7053
      %7055 = vrot.lane.b32.xlu0 %v7029, 79
      %v7056 = vpop.permute.xlu0 %7055
      %7057 = vrot.lane.b32.xlu0 %v7030, 79
      %v7058 = vpop.permute.xlu0 %7057
      %7059 = vrot.lane.b32.xlu0 %v7031, 79
      %v7060 = vpop.permute.xlu0 %7059
      %7061 = vrot.lane.b32.xlu0 %v7032, 79
      %v7062 = vpop.permute.xlu0 %7061
      %7063 = vrot.lane.b32.xlu0 %v7033, 79
      %v7064 = vpop.permute.xlu0 %7063
      %7065 = vrot.lane.b32.xlu0 %v7034, 79
      %v7066 = vpop.permute.xlu0 %7065
      %7067 = vrot.lane.b32.xlu0 %v7035, 79
      %v7068 = vpop.permute.xlu0 %7067
      %v7069 = vsel %vm866, %v7048, %v7050
      %v7070 = vsel %vm866, %v7050, %v7052
      %v7071 = vsel %vm866, %v7052, %v7054
      %v7072 = vsel %vm866, %v7054, %v7056
      %v7073 = vsel %vm866, %v7056, %v7058
      %v7074 = vsel %vm866, %v7058, %v7060
      %v7075 = vsel %vm866, %v7060, %v7062
      %v7076 = vsel %vm866, %v7062, %v7064
      %v7077 = vsel %vm866, %v7064, %v7066
      %v7078 = vsel %vm866, %v7066, %v7068
      %7089 = vst [vmem:[#allocation5 + $0x230] sm:$0xff] %v7069
      %7090 = vst [vmem:[#allocation5 + $0x238] sm:$0xff] %v7070
      %7091 = vst [vmem:[#allocation5 + $0x240] sm:$0xff] %v7071
      %7092 = vst [vmem:[#allocation5 + $0x248] sm:$0xff] %v7072
      %7093 = vst [vmem:[#allocation5 + $0x250] sm:$0xff] %v7073
      %7094 = vst [vmem:[#allocation5 + $0x258] sm:$0xff] %v7074
      %7095 = vst [vmem:[#allocation5 + $0x260] sm:$0xff] %v7075
      %7096 = vst [vmem:[#allocation5 + $0x268] sm:$0xff] %v7076
      %7097 = vst [vmem:[#allocation5 + $0x270] sm:$0xff] %v7077
      %7098 = vst [vmem:[#allocation5 + $0x278] sm:$0xff] %v7078
      %v7099 = vld [vmem:[#allocation2] sm:$0xff]
      %v7100 = vld [vmem:[#allocation2 + $0x8] sm:$0xff]
      %v7101 = vld [vmem:[#allocation2 + $0x10] sm:$0xff]
      %v7102 = vld [vmem:[#allocation2 + $0x18] sm:$0xff]
      %v7103 = vld [vmem:[#allocation2 + $0x20] sm:$0xff]
      %v7104 = vld [vmem:[#allocation2 + $0x28] sm:$0xff]
      %v7105 = vld [vmem:[#allocation2 + $0x30] sm:$0xff]
      %v7106 = vld [vmem:[#allocation2 + $0x38] sm:$0xff]
      %v7107 = vld [vmem:[#allocation2 + $0x40] sm:$0xff]
      %v7108 = vld [vmem:[#allocation2 + $0x48] sm:$0xff]
      %v7109 = vld [vmem:[#allocation2 + $0x50] sm:$0xff]
      %v7110 = vld [vmem:[#allocation2 + $0x58] sm:$0xff]
      %v7111 = vld [vmem:[#allocation2 + $0x60] sm:$0xff]
      %v7112 = vld [vmem:[#allocation2 + $0x68] sm:$0xff]
      %v7113 = vld [vmem:[#allocation2 + $0x70] sm:$0xff]
      %v7114 = vld [vmem:[#allocation2 + $0x78] sm:$0xff]
      %v7115 = vld [vmem:[#allocation2 + $0x80] sm:$0xff]
      %v7116 = vld [vmem:[#allocation2 + $0x88] sm:$0xff]
      %v7117 = vld [vmem:[#allocation2 + $0x90] sm:$0xff]
      %v7118 = vld [vmem:[#allocation2 + $0x98] sm:$0xff]
      %v7119 = vld [vmem:[#allocation2 + $0xa0] sm:$0xff]
      %v7120 = vld [vmem:[#allocation2 + $0xa8] sm:$0xff]
      %v7121 = vpack.c.bf16 %v7110, %v7099
      %v7122 = vpack.c.bf16 %v7111, %v7100
      %v7123 = vpack.c.bf16 %v7112, %v7101
      %v7124 = vpack.c.bf16 %v7113, %v7102
      %v7125 = vpack.c.bf16 %v7114, %v7103
      %v7126 = vpack.c.bf16 %v7115, %v7104
      %v7127 = vpack.c.bf16 %v7116, %v7105
      %v7128 = vpack.c.bf16 %v7117, %v7106
      %v7129 = vpack.c.bf16 %v7118, %v7107
      %v7130 = vpack.c.bf16 %v7119, %v7108
      %v7131 = vpack.c.bf16 %v7120, %v7109
      %7143 = vrot.lane.b32.xlu0 %v7121, 78
      %v7144 = vpop.permute.xlu0 %7143
      %7145 = vrot.lane.b32.xlu0 %v7122, 78
      %v7146 = vpop.permute.xlu0 %7145
      %7147 = vrot.lane.b32.xlu0 %v7123, 78
      %v7148 = vpop.permute.xlu0 %7147
      %7149 = vrot.lane.b32.xlu0 %v7124, 78
      %v7150 = vpop.permute.xlu0 %7149
      %7151 = vrot.lane.b32.xlu0 %v7125, 78
      %v7152 = vpop.permute.xlu0 %7151
      %7153 = vrot.lane.b32.xlu0 %v7126, 78
      %v7154 = vpop.permute.xlu0 %7153
      %7155 = vrot.lane.b32.xlu0 %v7127, 78
      %v7156 = vpop.permute.xlu0 %7155
      %7157 = vrot.lane.b32.xlu0 %v7128, 78
      %v7158 = vpop.permute.xlu0 %7157
      %7159 = vrot.lane.b32.xlu0 %v7129, 78
      %v7160 = vpop.permute.xlu0 %7159
      %7161 = vrot.lane.b32.xlu0 %v7130, 78
      %v7162 = vpop.permute.xlu0 %7161
      %7163 = vrot.lane.b32.xlu0 %v7131, 78
      %v7164 = vpop.permute.xlu0 %7163
      %v7165 = vsel %vm963, %v7144, %v7146
      %v7166 = vsel %vm963, %v7146, %v7148
      %v7167 = vsel %vm963, %v7148, %v7150
      %v7168 = vsel %vm963, %v7150, %v7152
      %v7169 = vsel %vm963, %v7152, %v7154
      %v7170 = vsel %vm963, %v7154, %v7156
      %v7171 = vsel %vm963, %v7156, %v7158
      %v7172 = vsel %vm963, %v7158, %v7160
      %v7173 = vsel %vm963, %v7160, %v7162
      %v7174 = vsel %vm963, %v7162, %v7164
      %7185 = vst [vmem:[#allocation5 + $0x280] sm:$0xff] %v7165
      %7186 = vst [vmem:[#allocation5 + $0x288] sm:$0xff] %v7166
      %7187 = vst [vmem:[#allocation5 + $0x290] sm:$0xff] %v7167
      %7188 = vst [vmem:[#allocation5 + $0x298] sm:$0xff] %v7168
      %7189 = vst [vmem:[#allocation5 + $0x2a0] sm:$0xff] %v7169
      %7190 = vst [vmem:[#allocation5 + $0x2a8] sm:$0xff] %v7170
      %7191 = vst [vmem:[#allocation5 + $0x2b0] sm:$0xff] %v7171
      %7192 = vst [vmem:[#allocation5 + $0x2b8] sm:$0xff] %v7172
      %7193 = vst [vmem:[#allocation5 + $0x2c0] sm:$0xff] %v7173
      %7194 = vst [vmem:[#allocation5 + $0x2c8] sm:$0xff] %v7174
      %s7195 = scalar_lea.vmem %s1, 80
      %v7196 = vld [vmem:[%s7195] sm:$0xff]
      %v7197 = vld [vmem:[%s7195 + $0x8] sm:$0xff]
      %v7198 = vld [vmem:[#allocation5] sm:$0xff]
      %v7199 = vld [vmem:[#allocation5 + $0x8] sm:$0xff]
      %v7200 = vld [vmem:[#allocation5 + $0x10] sm:$0xff]
      %v7201 = vld [vmem:[#allocation5 + $0x18] sm:$0xff]
      %v7202 = vld [vmem:[#allocation5 + $0x20] sm:$0xff]
      %v7203 = vld [vmem:[#allocation5 + $0x28] sm:$0xff]
      %v7204 = vld [vmem:[#allocation5 + $0x30] sm:$0xff]
      %v7205 = vld [vmem:[#allocation5 + $0x38] sm:$0xff]
      %v7206 = vld [vmem:[#allocation5 + $0x40] sm:$0xff]
      %v7207 = vld [vmem:[#allocation5 + $0x48] sm:$0xff]
      %v7208 = vld [vmem:[#allocation5 + $0x50] sm:$0xff]
      %v7209 = vld [vmem:[#allocation5 + $0x58] sm:$0xff]
      %v7210 = vld [vmem:[#allocation5 + $0x60] sm:$0xff]
      %v7211 = vld [vmem:[#allocation5 + $0x68] sm:$0xff]
      %v7212 = vld [vmem:[#allocation5 + $0x70] sm:$0xff]
      %v7213 = vld [vmem:[#allocation5 + $0x78] sm:$0xff]
      %v7214 = vld [vmem:[#allocation5 + $0x80] sm:$0xff]
      %v7215 = vld [vmem:[#allocation5 + $0x88] sm:$0xff]
      %v7216 = vld [vmem:[#allocation5 + $0x90] sm:$0xff]
      %v7217 = vld [vmem:[#allocation5 + $0x98] sm:$0xff]
      %v7218 = vld [vmem:[#allocation5 + $0xa0] sm:$0xff]
      %v7219 = vld [vmem:[#allocation5 + $0xa8] sm:$0xff]
      %v7220 = vld [vmem:[#allocation5 + $0xb0] sm:$0xff]
      %v7221 = vld [vmem:[#allocation5 + $0xb8] sm:$0xff]
      %v7222 = vld [vmem:[#allocation5 + $0xc0] sm:$0xff]
      %v7223 = vld [vmem:[#allocation5 + $0xc8] sm:$0xff]
      %v7224 = vld [vmem:[#allocation5 + $0xd0] sm:$0xff]
      %v7225 = vld [vmem:[#allocation5 + $0xd8] sm:$0xff]
      %v7226 = vld [vmem:[#allocation5 + $0xe0] sm:$0xff]
      %v7227 = vld [vmem:[#allocation5 + $0xe8] sm:$0xff]
      %v7228 = vld [vmem:[#allocation5 + $0xf0] sm:$0xff]
      %v7229 = vld [vmem:[#allocation5 + $0xf8] sm:$0xff]
      %v7230 = vld [vmem:[#allocation5 + $0x100] sm:$0xff]
      %v7231 = vld [vmem:[#allocation5 + $0x108] sm:$0xff]
      %v7232 = vld [vmem:[#allocation5 + $0x110] sm:$0xff]
      %v7233 = vld [vmem:[#allocation5 + $0x118] sm:$0xff]
      %v7234 = vld [vmem:[#allocation5 + $0x120] sm:$0xff]
      %v7235 = vld [vmem:[#allocation5 + $0x128] sm:$0xff]
      %v7236 = vld [vmem:[#allocation5 + $0x130] sm:$0xff]
      %v7237 = vld [vmem:[#allocation5 + $0x138] sm:$0xff]
      %v7238 = vld [vmem:[#allocation5 + $0x140] sm:$0xff]
      %v7239 = vld [vmem:[#allocation5 + $0x148] sm:$0xff]
      %v7240 = vld [vmem:[#allocation5 + $0x150] sm:$0xff]
      %v7241 = vld [vmem:[#allocation5 + $0x158] sm:$0xff]
      %v7242 = vld [vmem:[#allocation5 + $0x160] sm:$0xff]
      %v7243 = vld [vmem:[#allocation5 + $0x168] sm:$0xff]
      %v7244 = vld [vmem:[#allocation5 + $0x170] sm:$0xff]
      %v7245 = vld [vmem:[#allocation5 + $0x178] sm:$0xff]
      %v7246 = vld [vmem:[#allocation5 + $0x180] sm:$0xff]
      %v7247 = vld [vmem:[#allocation5 + $0x188] sm:$0xff]
      %v7248 = vld [vmem:[#allocation5 + $0x190] sm:$0xff]
      %v7249 = vld [vmem:[#allocation5 + $0x198] sm:$0xff]
      %v7250 = vld [vmem:[#allocation5 + $0x1a0] sm:$0xff]
      %v7251 = vld [vmem:[#allocation5 + $0x1a8] sm:$0xff]
      %v7252 = vld [vmem:[#allocation5 + $0x1b0] sm:$0xff]
      %v7253 = vld [vmem:[#allocation5 + $0x1b8] sm:$0xff]
      %v7254 = vld [vmem:[#allocation5 + $0x1c0] sm:$0xff]
      %v7255 = vld [vmem:[#allocation5 + $0x1c8] sm:$0xff]
      %v7256 = vld [vmem:[#allocation5 + $0x1d0] sm:$0xff]
      %v7257 = vld [vmem:[#allocation5 + $0x1d8] sm:$0xff]
      %v7258 = vld [vmem:[#allocation5 + $0x1e0] sm:$0xff]
      %v7259 = vld [vmem:[#allocation5 + $0x1e8] sm:$0xff]
      %v7260 = vld [vmem:[#allocation5 + $0x1f0] sm:$0xff]
      %v7261 = vld [vmem:[#allocation5 + $0x1f8] sm:$0xff]
      %v7262 = vld [vmem:[#allocation5 + $0x200] sm:$0xff]
      %v7263 = vld [vmem:[#allocation5 + $0x208] sm:$0xff]
      %v7264 = vld [vmem:[#allocation5 + $0x210] sm:$0xff]
      %v7265 = vld [vmem:[#allocation5 + $0x218] sm:$0xff]
      %v7266 = vld [vmem:[#allocation5 + $0x220] sm:$0xff]
      %v7267 = vld [vmem:[#allocation5 + $0x228] sm:$0xff]
      %v7268 = vld [vmem:[#allocation5 + $0x230] sm:$0xff]
      %v7269 = vld [vmem:[#allocation5 + $0x238] sm:$0xff]
      %v7270 = vld [vmem:[#allocation5 + $0x240] sm:$0xff]
      %v7271 = vld [vmem:[#allocation5 + $0x248] sm:$0xff]
      %v7272 = vld [vmem:[#allocation5 + $0x250] sm:$0xff]
      %v7273 = vld [vmem:[#allocation5 + $0x258] sm:$0xff]
      %v7274 = vld [vmem:[#allocation5 + $0x260] sm:$0xff]
      %v7275 = vld [vmem:[#allocation5 + $0x268] sm:$0xff]
      %v7276 = vld [vmem:[#allocation5 + $0x270] sm:$0xff]
      %v7277 = vld [vmem:[#allocation5 + $0x278] sm:$0xff]
      %v7278 = vld [vmem:[#allocation5 + $0x280] sm:$0xff]
      %v7279 = vld [vmem:[#allocation5 + $0x288] sm:$0xff]
      %v7280 = vld [vmem:[#allocation5 + $0x290] sm:$0xff]
      %v7281 = vld [vmem:[#allocation5 + $0x298] sm:$0xff]
      %v7282 = vld [vmem:[#allocation5 + $0x2a0] sm:$0xff]
      %v7283 = vld [vmem:[#allocation5 + $0x2a8] sm:$0xff]
      %v7284 = vld [vmem:[#allocation5 + $0x2b0] sm:$0xff]
      %v7285 = vld [vmem:[#allocation5 + $0x2b8] sm:$0xff]
      %v7286 = vld [vmem:[#allocation5 + $0x2c0] sm:$0xff]
      %v7287 = vld [vmem:[#allocation5 + $0x2c8] sm:$0xff]
      %s7288 = scalar_lea.vmem %s2, 80
      %v7289 = vld [vmem:[%s7288] sm:$0xff]
      %v7290 = vld [vmem:[%s7288 + $0x8] sm:$0xff]
      %7292 = vset.pattern.permute.xlu0 0
      %7293 = vperm.xlu0 %7292, %v7289
      %v7294 = vpop.permute.xlu0 %7293
      %7297 = vset.pattern.permute.xlu0 0
      %7298 = vperm.xlu0 %7297, %v7290
      %v7299 = vpop.permute.xlu0 %7298
      %v7303 = vunpack.c.l.b16 %v7196
      %v7304 = vunpack.c.h.b16 %v7196
      %v7305 = vunpack.c.l.b16 %v7197
      %v7306 = vunpack.c.h.b16 %v7197
      %v7307 = vpack.c.b16 %v7305, %v7303
      %v7308 = vpack.c.b16 %v7306, %v7304
      %v7311 = vsel %vm1107, %v7308, 0
      %7313 = vmatprep.subr.bf16.mxu0 %v7199
      %7314 = vmatpush1.bf16.msra.mxu0 %v7198
      %7315 = vmatprep.subr.bf16.mxu0 %v7209
      %7316 = vmatpush1.bf16.msra.mxu0 %v7208
      %7317 = vmatprep.subr.bf16.mxu0 %v7219
      %7318 = vmatpush1.bf16.msra.mxu0 %v7218
      %7319 = vmatprep.subr.bf16.mxu0 %v7229
      %7320 = vmatpush1.bf16.msra.mxu0 %v7228
      %7321 = vmatprep.subr.bf16.mxu0 %v7239
      %7322 = vmatpush1.bf16.msra.mxu0 %v7238
      %7323 = vmatprep.subr.bf16.mxu0 %v7249
      %7324 = vmatpush1.bf16.msra.mxu0 %v7248
      %7325 = vmatprep.subr.bf16.mxu0 %v7259
      %7326 = vmatpush1.bf16.msra.mxu0 %v7258
      %7327 = vmatprep.subr.bf16.mxu0 %v7269
      %7328 = vmatpush1.bf16.msra.mxu0 %v7268
      %7329 = vmatprep.subr.bf16.mxu0 %v7279
      %7330 = vmatpush1.bf16.msra.mxu0 %v7278
      %7331 = vmatprep.subr.bf16.mxu0 0
      %7332 = vmatpush1.bf16.msra.mxu0 0
      %7333 = vmatprep.subr.bf16.mxu0 0
      %7334 = vmatpush1.bf16.msra.mxu0 0
      %7335 = vmatprep.subr.bf16.mxu0 0
      %7336 = vmatpush1.bf16.msra.mxu0 0
      %7337 = vmatprep.subr.bf16.mxu0 0
      %7338 = vmatpush1.bf16.msra.mxu0 0
      %7339 = vmatprep.subr.bf16.mxu0 0
      %7340 = vmatpush1.bf16.msra.mxu0 0
      %7341 = vmatprep.subr.bf16.mxu0 0
      %7342 = vmatpush1.bf16.msra.mxu0 0
      %7343 = vmatprep.subr.bf16.mxu0 0
      %7344 = vmatpush1.bf16.msra.mxu0 0
      %7345 = vmatprep.mubr.bf16.mxu0 %v7311
      %7346 = vmatmul.mubr.bf16.gmra.mrb[0].mxu0 %v7307
      %v7347 = vpop.f32.mrb[0].mxu0
      %v7348 = vadd.f32 %v7294, %v7347
      %v7349 = vpop.f32.mrb[0].mxu0
      %v7350 = vadd.f32 %v7294, %v7349
      %v7351 = vpop.f32.mrb[0].mxu0
      %v7352 = vadd.f32 %v7299, %v7351
      %v7353 = vpop.f32.mrb[0].mxu0
      %v7354 = vadd.f32 %v7299, %v7353
      %7355 = vdwg.mxu0
      %7356 = vmatprep.subr.bf16.mxu0 %v7201
      %7357 = vmatpush1.bf16.msra.mxu0 %v7200
      %7358 = vmatprep.subr.bf16.mxu0 %v7211
      %7359 = vmatpush1.bf16.msra.mxu0 %v7210
      %7360 = vmatprep.subr.bf16.mxu0 %v7221
      %7361 = vmatpush1.bf16.msra.mxu0 %v7220
      %7362 = vmatprep.subr.bf16.mxu0 %v7231
      %7363 = vmatpush1.bf16.msra.mxu0 %v7230
      %7364 = vmatprep.subr.bf16.mxu0 %v7241
      %7365 = vmatpush1.bf16.msra.mxu0 %v7240
      %7366 = vmatprep.subr.bf16.mxu0 %v7251
      %7367 = vmatpush1.bf16.msra.mxu0 %v7250
      %7368 = vmatprep.subr.bf16.mxu0 %v7261
      %7369 = vmatpush1.bf16.msra.mxu0 %v7260
      %7370 = vmatprep.subr.bf16.mxu0 %v7271
      %7371 = vmatpush1.bf16.msra.mxu0 %v7270
      %7372 = vmatprep.subr.bf16.mxu0 %v7281
      %7373 = vmatpush1.bf16.msra.mxu0 %v7280
      %7374 = vmatprep.subr.bf16.mxu0 0
      %7375 = vmatpush1.bf16.msra.mxu0 0
      %7376 = vmatprep.subr.bf16.mxu0 0
      %7377 = vmatpush1.bf16.msra.mxu0 0
      %7378 = vmatprep.subr.bf16.mxu0 0
      %7379 = vmatpush1.bf16.msra.mxu0 0
      %7380 = vmatprep.subr.bf16.mxu0 0
      %7381 = vmatpush1.bf16.msra.mxu0 0
      %7382 = vmatprep.subr.bf16.mxu0 0
      %7383 = vmatpush1.bf16.msra.mxu0 0
      %7384 = vmatprep.subr.bf16.mxu0 0
      %7385 = vmatpush1.bf16.msra.mxu0 0
      %7386 = vmatprep.subr.bf16.mxu0 0
      %7387 = vmatpush1.bf16.msra.mxu0 0
      %7388 = vmatprep.mubr.bf16.mxu0 %v7311
      %7389 = vmatmul.mubr.bf16.gmra.mrb[0].mxu0 %v7307
      %v7390 = vpop.f32.mrb[0].mxu0
      %v7391 = vadd.f32 %v7294, %v7390
      %v7392 = vpop.f32.mrb[0].mxu0
      %v7393 = vadd.f32 %v7294, %v7392
      %v7394 = vpop.f32.mrb[0].mxu0
      %v7395 = vadd.f32 %v7299, %v7394
      %v7396 = vpop.f32.mrb[0].mxu0
      %v7397 = vadd.f32 %v7299, %v7396
      %7398 = vdwg.mxu0
      %7399 = vmatprep.subr.bf16.mxu0 %v7203
      %7400 = vmatpush1.bf16.msra.mxu0 %v7202
      %7401 = vmatprep.subr.bf16.mxu0 %v7213
      %7402 = vmatpush1.bf16.msra.mxu0 %v7212
      %7403 = vmatprep.subr.bf16.mxu0 %v7223
      %7404 = vmatpush1.bf16.msra.mxu0 %v7222
      %7405 = vmatprep.subr.bf16.mxu0 %v7233
      %7406 = vmatpush1.bf16.msra.mxu0 %v7232
      %7407 = vmatprep.subr.bf16.mxu0 %v7243
      %7408 = vmatpush1.bf16.msra.mxu0 %v7242
      %7409 = vmatprep.subr.bf16.mxu0 %v7253
      %7410 = vmatpush1.bf16.msra.mxu0 %v7252
      %7411 = vmatprep.subr.bf16.mxu0 %v7263
      %7412 = vmatpush1.bf16.msra.mxu0 %v7262
      %7413 = vmatprep.subr.bf16.mxu0 %v7273
      %7414 = vmatpush1.bf16.msra.mxu0 %v7272
      %7415 = vmatprep.subr.bf16.mxu0 %v7283
      %7416 = vmatpush1.bf16.msra.mxu0 %v7282
      %7417 = vmatprep.subr.bf16.mxu0 0
      %7418 = vmatpush1.bf16.msra.mxu0 0
      %7419 = vmatprep.subr.bf16.mxu0 0
      %7420 = vmatpush1.bf16.msra.mxu0 0
      %7421 = vmatprep.subr.bf16.mxu0 0
      %7422 = vmatpush1.bf16.msra.mxu0 0
      %7423 = vmatprep.subr.bf16.mxu0 0
      %7424 = vmatpush1.bf16.msra.mxu0 0
      %7425 = vmatprep.subr.bf16.mxu0 0
      %7426 = vmatpush1.bf16.msra.mxu0 0
      %7427 = vmatprep.subr.bf16.mxu0 0
      %7428 = vmatpush1.bf16.msra.mxu0 0
      %7429 = vmatprep.subr.bf16.mxu0 0
      %7430 = vmatpush1.bf16.msra.mxu0 0
      %7431 = vmatprep.mubr.bf16.mxu0 %v7311
      %7432 = vmatmul.mubr.bf16.gmra.mrb[0].mxu0 %v7307
      %v7433 = vpop.f32.mrb[0].mxu0
      %v7434 = vadd.f32 %v7294, %v7433
      %v7435 = vpop.f32.mrb[0].mxu0
      %v7436 = vadd.f32 %v7294, %v7435
      %v7437 = vpop.f32.mrb[0].mxu0
      %v7438 = vadd.f32 %v7299, %v7437
      %v7439 = vpop.f32.mrb[0].mxu0
      %v7440 = vadd.f32 %v7299, %v7439
      %7441 = vdwg.mxu0
      %7442 = vmatprep.subr.bf16.mxu0 %v7205
      %7443 = vmatpush1.bf16.msra.mxu0 %v7204
      %7444 = vmatprep.subr.bf16.mxu0 %v7215
      %7445 = vmatpush1.bf16.msra.mxu0 %v7214
      %7446 = vmatprep.subr.bf16.mxu0 %v7225
      %7447 = vmatpush1.bf16.msra.mxu0 %v7224
      %7448 = vmatprep.subr.bf16.mxu0 %v7235
      %7449 = vmatpush1.bf16.msra.mxu0 %v7234
      %7450 = vmatprep.subr.bf16.mxu0 %v7245
      %7451 = vmatpush1.bf16.msra.mxu0 %v7244
      %7452 = vmatprep.subr.bf16.mxu0 %v7255
      %7453 = vmatpush1.bf16.msra.mxu0 %v7254
      %7454 = vmatprep.subr.bf16.mxu0 %v7265
      %7455 = vmatpush1.bf16.msra.mxu0 %v7264
      %7456 = vmatprep.subr.bf16.mxu0 %v7275
      %7457 = vmatpush1.bf16.msra.mxu0 %v7274
      %7458 = vmatprep.subr.bf16.mxu0 %v7285
      %7459 = vmatpush1.bf16.msra.mxu0 %v7284
      %7460 = vmatprep.subr.bf16.mxu0 0
      %7461 = vmatpush1.bf16.msra.mxu0 0
      %7462 = vmatprep.subr.bf16.mxu0 0
      %7463 = vmatpush1.bf16.msra.mxu0 0
      %7464 = vmatprep.subr.bf16.mxu0 0
      %7465 = vmatpush1.bf16.msra.mxu0 0
      %7466 = vmatprep.subr.bf16.mxu0 0
      %7467 = vmatpush1.bf16.msra.mxu0 0
      %7468 = vmatprep.subr.bf16.mxu0 0
      %7469 = vmatpush1.bf16.msra.mxu0 0
      %7470 = vmatprep.subr.bf16.mxu0 0
      %7471 = vmatpush1.bf16.msra.mxu0 0
      %7472 = vmatprep.subr.bf16.mxu0 0
      %7473 = vmatpush1.bf16.msra.mxu0 0
      %7474 = vmatprep.mubr.bf16.mxu0 %v7311
      %7475 = vmatmul.mubr.bf16.gmra.mrb[0].mxu0 %v7307
      %v7476 = vpop.f32.mrb[0].mxu0
      %v7477 = vadd.f32 %v7294, %v7476
      %v7478 = vpop.f32.mrb[0].mxu0
      %v7479 = vadd.f32 %v7294, %v7478
      %v7480 = vpop.f32.mrb[0].mxu0
      %v7481 = vadd.f32 %v7299, %v7480
      %v7482 = vpop.f32.mrb[0].mxu0
      %v7483 = vadd.f32 %v7299, %v7482
      %7484 = vdwg.mxu0
      %7485 = vmatprep.subr.bf16.mxu0 %v7207
      %7486 = vmatpush1.bf16.msra.mxu0 %v7206
      %7487 = vmatprep.subr.bf16.mxu0 %v7217
      %7488 = vmatpush1.bf16.msra.mxu0 %v7216
      %7489 = vmatprep.subr.bf16.mxu0 %v7227
      %7490 = vmatpush1.bf16.msra.mxu0 %v7226
      %7491 = vmatprep.subr.bf16.mxu0 %v7237
      %7492 = vmatpush1.bf16.msra.mxu0 %v7236
      %7493 = vmatprep.subr.bf16.mxu0 %v7247
      %7494 = vmatpush1.bf16.msra.mxu0 %v7246
      %7495 = vmatprep.subr.bf16.mxu0 %v7257
      %7496 = vmatpush1.bf16.msra.mxu0 %v7256
      %7497 = vmatprep.subr.bf16.mxu0 %v7267
      %7498 = vmatpush1.bf16.msra.mxu0 %v7266
      %7499 = vmatprep.subr.bf16.mxu0 %v7277
      %7500 = vmatpush1.bf16.msra.mxu0 %v7276
      %7501 = vmatprep.subr.bf16.mxu0 %v7287
      %7502 = vmatpush1.bf16.msra.mxu0 %v7286
      %7503 = vmatprep.subr.bf16.mxu0 0
      %7504 = vmatpush1.bf16.msra.mxu0 0
      %7505 = vmatprep.subr.bf16.mxu0 0
      %7506 = vmatpush1.bf16.msra.mxu0 0
      %7507 = vmatprep.subr.bf16.mxu0 0
      %7508 = vmatpush1.bf16.msra.mxu0 0
      %7509 = vmatprep.subr.bf16.mxu0 0
      %7510 = vmatpush1.bf16.msra.mxu0 0
      %7511 = vmatprep.subr.bf16.mxu0 0
      %7512 = vmatpush1.bf16.msra.mxu0 0
      %7513 = vmatprep.subr.bf16.mxu0 0
      %7514 = vmatpush1.bf16.msra.mxu0 0
      %7515 = vmatprep.subr.bf16.mxu0 0
      %7516 = vmatpush1.bf16.msra.mxu0 0
      %7517 = vmatprep.mubr.bf16.mxu0 %v7311
      %7518 = vmatmul.mubr.bf16.gmra.mrb[0].mxu0 %v7307
      %v7519 = vpop.f32.mrb[0].mxu0
      %v7520 = vadd.f32 %v7294, %v7519
      %v7521 = vpop.f32.mrb[0].mxu0
      %v7522 = vadd.f32 %v7294, %v7521
      %v7523 = vpop.f32.mrb[0].mxu0
      %v7524 = vadd.f32 %v7299, %v7523
      %v7525 = vpop.f32.mrb[0].mxu0
      %v7526 = vadd.f32 %v7299, %v7525
      %7527 = vdwg.mxu0
      %v7528 = vmax.f32 %v7348, 0.0
      %v7529 = vmax.f32 %v7350, 0.0
      %v7530 = vmax.f32 %v7391, 0.0
      %v7531 = vmax.f32 %v7393, 0.0
      %v7532 = vmax.f32 %v7434, 0.0
      %v7533 = vmax.f32 %v7436, 0.0
      %v7534 = vmax.f32 %v7477, 0.0
      %v7535 = vmax.f32 %v7479, 0.0
      %v7536 = vmax.f32 %v7520, 0.0
      %v7537 = vmax.f32 %v7522, 0.0
      %v7538 = vmax.f32 %v7352, 0.0
      %v7539 = vmax.f32 %v7354, 0.0
      %v7540 = vmax.f32 %v7395, 0.0
      %v7541 = vmax.f32 %v7397, 0.0
      %v7542 = vmax.f32 %v7438, 0.0
      %v7543 = vmax.f32 %v7440, 0.0
      %v7544 = vmax.f32 %v7481, 0.0
      %v7545 = vmax.f32 %v7483, 0.0
      %v7546 = vmax.f32 %v7524, 0.0
      %v7547 = vmax.f32 %v7526, 0.0
      %7548 = vst [vmem:[#allocation3] sm:$0xff] %v7528
      %7549 = vst [vmem:[#allocation3 + $0x8] sm:$0xff] %v7529
      %7550 = vst [vmem:[#allocation3 + $0x10] sm:$0xff] %v7530
      %7551 = vst [vmem:[#allocation3 + $0x18] sm:$0xff] %v7531
      %7552 = vst [vmem:[#allocation3 + $0x20] sm:$0xff] %v7532
      %7553 = vst [vmem:[#allocation3 + $0x28] sm:$0xff] %v7533
      %7554 = vst [vmem:[#allocation3 + $0x30] sm:$0xff] %v7534
      %7555 = vst [vmem:[#allocation3 + $0x38] sm:$0xff] %v7535
      %7556 = vst [vmem:[#allocation3 + $0x40] sm:$0xff] %v7536
      %7557 = vst [vmem:[#allocation3 + $0x48] sm:$0xff] %v7537
      %7558 = vst [vmem:[#allocation3 + $0x58] sm:$0xff] %v7538
      %7559 = vst [vmem:[#allocation3 + $0x60] sm:$0xff] %v7539
      %7560 = vst [vmem:[#allocation3 + $0x68] sm:$0xff] %v7540
      %7561 = vst [vmem:[#allocation3 + $0x70] sm:$0xff] %v7541
      %7562 = vst [vmem:[#allocation3 + $0x78] sm:$0xff] %v7542
      %7563 = vst [vmem:[#allocation3 + $0x80] sm:$0xff] %v7543
      %7564 = vst [vmem:[#allocation3 + $0x88] sm:$0xff] %v7544
      %7565 = vst [vmem:[#allocation3 + $0x90] sm:$0xff] %v7545
      %7566 = vst [vmem:[#allocation3 + $0x98] sm:$0xff] %v7546
      %7567 = vst [vmem:[#allocation3 + $0xa0] sm:$0xff] %v7547
      %v7568 = vld [vmem:[#allocation3] sm:$0xff]
      %v7569 = vld [vmem:[#allocation3 + $0x8] sm:$0xff]
      %v7570 = vld [vmem:[#allocation3 + $0x10] sm:$0xff]
      %v7571 = vld [vmem:[#allocation3 + $0x18] sm:$0xff]
      %v7572 = vld [vmem:[#allocation3 + $0x20] sm:$0xff]
      %v7573 = vld [vmem:[#allocation3 + $0x28] sm:$0xff]
      %v7574 = vld [vmem:[#allocation3 + $0x30] sm:$0xff]
      %v7575 = vld [vmem:[#allocation3 + $0x38] sm:$0xff]
      %v7576 = vld [vmem:[#allocation3 + $0x40] sm:$0xff]
      %v7577 = vld [vmem:[#allocation3 + $0x48] sm:$0xff]
      %v7578 = vld [vmem:[#allocation3 + $0x58] sm:$0xff]
      %v7579 = vld [vmem:[#allocation3 + $0x60] sm:$0xff]
      %v7580 = vld [vmem:[#allocation3 + $0x68] sm:$0xff]
      %v7581 = vld [vmem:[#allocation3 + $0x70] sm:$0xff]
      %v7582 = vld [vmem:[#allocation3 + $0x78] sm:$0xff]
      %v7583 = vld [vmem:[#allocation3 + $0x80] sm:$0xff]
      %v7584 = vld [vmem:[#allocation3 + $0x88] sm:$0xff]
      %v7585 = vld [vmem:[#allocation3 + $0x90] sm:$0xff]
      %v7586 = vld [vmem:[#allocation3 + $0x98] sm:$0xff]
      %v7587 = vld [vmem:[#allocation3 + $0xa0] sm:$0xff]
      %v7588 = vpack.c.bf16 %v7578, %v7568
      %v7589 = vpack.c.bf16 %v7579, %v7569
      %v7590 = vpack.c.bf16 %v7580, %v7570
      %v7591 = vpack.c.bf16 %v7581, %v7571
      %v7592 = vpack.c.bf16 %v7582, %v7572
      %v7593 = vpack.c.bf16 %v7583, %v7573
      %v7594 = vpack.c.bf16 %v7584, %v7574
      %v7595 = vpack.c.bf16 %v7585, %v7575
      %v7596 = vpack.c.bf16 %v7586, %v7576
      %v7597 = vpack.c.bf16 %v7587, %v7577
      %7598 = vst [vmem:[#allocation5] sm:$0xff] %v7588
      %7599 = vst [vmem:[#allocation5 + $0x8] sm:$0xff] %v7589
      %7600 = vst [vmem:[#allocation5 + $0x10] sm:$0xff] %v7590
      %7601 = vst [vmem:[#allocation5 + $0x18] sm:$0xff] %v7591
      %7602 = vst [vmem:[#allocation5 + $0x20] sm:$0xff] %v7592
      %7603 = vst [vmem:[#allocation5 + $0x28] sm:$0xff] %v7593
      %7604 = vst [vmem:[#allocation5 + $0x30] sm:$0xff] %v7594
      %7605 = vst [vmem:[#allocation5 + $0x38] sm:$0xff] %v7595
      %7606 = vst [vmem:[#allocation5 + $0x40] sm:$0xff] %v7596
      %7607 = vst [vmem:[#allocation5 + $0x48] sm:$0xff] %v7597
      %v7608 = vld [vmem:[#allocation3] sm:$0xff]
      %v7609 = vld [vmem:[#allocation3 + $0x8] sm:$0xff]
      %v7610 = vld [vmem:[#allocation3 + $0x10] sm:$0xff]
      %v7611 = vld [vmem:[#allocation3 + $0x18] sm:$0xff]
      %v7612 = vld [vmem:[#allocation3 + $0x20] sm:$0xff]
      %v7613 = vld [vmem:[#allocation3 + $0x28] sm:$0xff]
      %v7614 = vld [vmem:[#allocation3 + $0x30] sm:$0xff]
      %v7615 = vld [vmem:[#allocation3 + $0x38] sm:$0xff]
      %v7616 = vld [vmem:[#allocation3 + $0x40] sm:$0xff]
      %v7617 = vld [vmem:[#allocation3 + $0x48] sm:$0xff]
      %v7618 = vld [vmem:[#allocation3 + $0x50] sm:$0xff]
      %v7619 = vld [vmem:[#allocation3 + $0x58] sm:$0xff]
      %v7620 = vld [vmem:[#allocation3 + $0x60] sm:$0xff]
      %v7621 = vld [vmem:[#allocation3 + $0x68] sm:$0xff]
      %v7622 = vld [vmem:[#allocation3 + $0x70] sm:$0xff]
      %v7623 = vld [vmem:[#allocation3 + $0x78] sm:$0xff]
      %v7624 = vld [vmem:[#allocation3 + $0x80] sm:$0xff]
      %v7625 = vld [vmem:[#allocation3 + $0x88] sm:$0xff]
      %v7626 = vld [vmem:[#allocation3 + $0x90] sm:$0xff]
      %v7627 = vld [vmem:[#allocation3 + $0x98] sm:$0xff]
      %v7628 = vld [vmem:[#allocation3 + $0xa0] sm:$0xff]
      %v7629 = vld [vmem:[#allocation3 + $0xa8] sm:$0xff]
      %v7630 = vpack.c.bf16 %v7619, %v7608
      %v7631 = vpack.c.bf16 %v7620, %v7609
      %v7632 = vpack.c.bf16 %v7621, %v7610
      %v7633 = vpack.c.bf16 %v7622, %v7611
      %v7634 = vpack.c.bf16 %v7623, %v7612
      %v7635 = vpack.c.bf16 %v7624, %v7613
      %v7636 = vpack.c.bf16 %v7625, %v7614
      %v7637 = vpack.c.bf16 %v7626, %v7615
      %v7638 = vpack.c.bf16 %v7627, %v7616
      %v7639 = vpack.c.bf16 %v7628, %v7617
      %v7640 = vpack.c.bf16 %v7629, %v7618
      %7652 = vrot.lane.b32.xlu0 %v7630, 127
      %v7653 = vpop.permute.xlu0 %7652
      %7654 = vrot.lane.b32.xlu0 %v7631, 127
      %v7655 = vpop.permute.xlu0 %7654
      %7656 = vrot.lane.b32.xlu0 %v7632, 127
      %v7657 = vpop.permute.xlu0 %7656
      %7658 = vrot.lane.b32.xlu0 %v7633, 127
      %v7659 = vpop.permute.xlu0 %7658
      %7660 = vrot.lane.b32.xlu0 %v7634, 127
      %v7661 = vpop.permute.xlu0 %7660
      %7662 = vrot.lane.b32.xlu0 %v7635, 127
      %v7663 = vpop.permute.xlu0 %7662
      %7664 = vrot.lane.b32.xlu0 %v7636, 127
      %v7665 = vpop.permute.xlu0 %7664
      %7666 = vrot.lane.b32.xlu0 %v7637, 127
      %v7667 = vpop.permute.xlu0 %7666
      %7668 = vrot.lane.b32.xlu0 %v7638, 127
      %v7669 = vpop.permute.xlu0 %7668
      %7670 = vrot.lane.b32.xlu0 %v7639, 127
      %v7671 = vpop.permute.xlu0 %7670
      %7672 = vrot.lane.b32.xlu0 %v7640, 127
      %v7673 = vpop.permute.xlu0 %7672
      %v7674 = vsel %vm284, %v7653, %v7655
      %v7675 = vsel %vm284, %v7655, %v7657
      %v7676 = vsel %vm284, %v7657, %v7659
      %v7677 = vsel %vm284, %v7659, %v7661
      %v7678 = vsel %vm284, %v7661, %v7663
      %v7679 = vsel %vm284, %v7663, %v7665
      %v7680 = vsel %vm284, %v7665, %v7667
      %v7681 = vsel %vm284, %v7667, %v7669
      %v7682 = vsel %vm284, %v7669, %v7671
      %v7683 = vsel %vm284, %v7671, %v7673
      %7694 = vst [vmem:[#allocation5 + $0x50] sm:$0xff] %v7674
      %7695 = vst [vmem:[#allocation5 + $0x58] sm:$0xff] %v7675
      %7696 = vst [vmem:[#allocation5 + $0x60] sm:$0xff] %v7676
      %7697 = vst [vmem:[#allocation5 + $0x68] sm:$0xff] %v7677
      %7698 = vst [vmem:[#allocation5 + $0x70] sm:$0xff] %v7678
      %7699 = vst [vmem:[#allocation5 + $0x78] sm:$0xff] %v7679
      %7700 = vst [vmem:[#allocation5 + $0x80] sm:$0xff] %v7680
      %7701 = vst [vmem:[#allocation5 + $0x88] sm:$0xff] %v7681
      %7702 = vst [vmem:[#allocation5 + $0x90] sm:$0xff] %v7682
      %7703 = vst [vmem:[#allocation5 + $0x98] sm:$0xff] %v7683
      %v7704 = vld [vmem:[#allocation3] sm:$0xff]
      %v7705 = vld [vmem:[#allocation3 + $0x8] sm:$0xff]
      %v7706 = vld [vmem:[#allocation3 + $0x10] sm:$0xff]
      %v7707 = vld [vmem:[#allocation3 + $0x18] sm:$0xff]
      %v7708 = vld [vmem:[#allocation3 + $0x20] sm:$0xff]
      %v7709 = vld [vmem:[#allocation3 + $0x28] sm:$0xff]
      %v7710 = vld [vmem:[#allocation3 + $0x30] sm:$0xff]
      %v7711 = vld [vmem:[#allocation3 + $0x38] sm:$0xff]
      %v7712 = vld [vmem:[#allocation3 + $0x40] sm:$0xff]
      %v7713 = vld [vmem:[#allocation3 + $0x48] sm:$0xff]
      %v7714 = vld [vmem:[#allocation3 + $0x50] sm:$0xff]
      %v7715 = vld [vmem:[#allocation3 + $0x58] sm:$0xff]
      %v7716 = vld [vmem:[#allocation3 + $0x60] sm:$0xff]
      %v7717 = vld [vmem:[#allocation3 + $0x68] sm:$0xff]
      %v7718 = vld [vmem:[#allocation3 + $0x70] sm:$0xff]
      %v7719 = vld [vmem:[#allocation3 + $0x78] sm:$0xff]
      %v7720 = vld [vmem:[#allocation3 + $0x80] sm:$0xff]
      %v7721 = vld [vmem:[#allocation3 + $0x88] sm:$0xff]
      %v7722 = vld [vmem:[#allocation3 + $0x90] sm:$0xff]
      %v7723 = vld [vmem:[#allocation3 + $0x98] sm:$0xff]
      %v7724 = vld [vmem:[#allocation3 + $0xa0] sm:$0xff]
      %v7725 = vld [vmem:[#allocation3 + $0xa8] sm:$0xff]
      %v7726 = vpack.c.bf16 %v7715, %v7704
      %v7727 = vpack.c.bf16 %v7716, %v7705
      %v7728 = vpack.c.bf16 %v7717, %v7706
      %v7729 = vpack.c.bf16 %v7718, %v7707
      %v7730 = vpack.c.bf16 %v7719, %v7708
      %v7731 = vpack.c.bf16 %v7720, %v7709
      %v7732 = vpack.c.bf16 %v7721, %v7710
      %v7733 = vpack.c.bf16 %v7722, %v7711
      %v7734 = vpack.c.bf16 %v7723, %v7712
      %v7735 = vpack.c.bf16 %v7724, %v7713
      %v7736 = vpack.c.bf16 %v7725, %v7714
      %7748 = vrot.lane.b32.xlu0 %v7726, 126
      %v7749 = vpop.permute.xlu0 %7748
      %7750 = vrot.lane.b32.xlu0 %v7727, 126
      %v7751 = vpop.permute.xlu0 %7750
      %7752 = vrot.lane.b32.xlu0 %v7728, 126
      %v7753 = vpop.permute.xlu0 %7752
      %7754 = vrot.lane.b32.xlu0 %v7729, 126
      %v7755 = vpop.permute.xlu0 %7754
      %7756 = vrot.lane.b32.xlu0 %v7730, 126
      %v7757 = vpop.permute.xlu0 %7756
      %7758 = vrot.lane.b32.xlu0 %v7731, 126
      %v7759 = vpop.permute.xlu0 %7758
      %7760 = vrot.lane.b32.xlu0 %v7732, 126
      %v7761 = vpop.permute.xlu0 %7760
      %7762 = vrot.lane.b32.xlu0 %v7733, 126
      %v7763 = vpop.permute.xlu0 %7762
      %7764 = vrot.lane.b32.xlu0 %v7734, 126
      %v7765 = vpop.permute.xlu0 %7764
      %7766 = vrot.lane.b32.xlu0 %v7735, 126
      %v7767 = vpop.permute.xlu0 %7766
      %7768 = vrot.lane.b32.xlu0 %v7736, 126
      %v7769 = vpop.permute.xlu0 %7768
      %v7770 = vsel %vm381, %v7749, %v7751
      %v7771 = vsel %vm381, %v7751, %v7753
      %v7772 = vsel %vm381, %v7753, %v7755
      %v7773 = vsel %vm381, %v7755, %v7757
      %v7774 = vsel %vm381, %v7757, %v7759
      %v7775 = vsel %vm381, %v7759, %v7761
      %v7776 = vsel %vm381, %v7761, %v7763
      %v7777 = vsel %vm381, %v7763, %v7765
      %v7778 = vsel %vm381, %v7765, %v7767
      %v7779 = vsel %vm381, %v7767, %v7769
      %7790 = vst [vmem:[#allocation5 + $0xa0] sm:$0xff] %v7770
      %7791 = vst [vmem:[#allocation5 + $0xa8] sm:$0xff] %v7771
      %7792 = vst [vmem:[#allocation5 + $0xb0] sm:$0xff] %v7772
      %7793 = vst [vmem:[#allocation5 + $0xb8] sm:$0xff] %v7773
      %7794 = vst [vmem:[#allocation5 + $0xc0] sm:$0xff] %v7774
      %7795 = vst [vmem:[#allocation5 + $0xc8] sm:$0xff] %v7775
      %7796 = vst [vmem:[#allocation5 + $0xd0] sm:$0xff] %v7776
      %7797 = vst [vmem:[#allocation5 + $0xd8] sm:$0xff] %v7777
      %7798 = vst [vmem:[#allocation5 + $0xe0] sm:$0xff] %v7778
      %7799 = vst [vmem:[#allocation5 + $0xe8] sm:$0xff] %v7779
      %v7800 = vld [vmem:[#allocation3] sm:$0xff]
      %v7801 = vld [vmem:[#allocation3 + $0x8] sm:$0xff]
      %v7802 = vld [vmem:[#allocation3 + $0x10] sm:$0xff]
      %v7803 = vld [vmem:[#allocation3 + $0x18] sm:$0xff]
      %v7804 = vld [vmem:[#allocation3 + $0x20] sm:$0xff]
      %v7805 = vld [vmem:[#allocation3 + $0x28] sm:$0xff]
      %v7806 = vld [vmem:[#allocation3 + $0x30] sm:$0xff]
      %v7807 = vld [vmem:[#allocation3 + $0x38] sm:$0xff]
      %v7808 = vld [vmem:[#allocation3 + $0x40] sm:$0xff]
      %v7809 = vld [vmem:[#allocation3 + $0x48] sm:$0xff]
      %v7810 = vld [vmem:[#allocation3 + $0x50] sm:$0xff]
      %v7811 = vld [vmem:[#allocation3 + $0x58] sm:$0xff]
      %v7812 = vld [vmem:[#allocation3 + $0x60] sm:$0xff]
      %v7813 = vld [vmem:[#allocation3 + $0x68] sm:$0xff]
      %v7814 = vld [vmem:[#allocation3 + $0x70] sm:$0xff]
      %v7815 = vld [vmem:[#allocation3 + $0x78] sm:$0xff]
      %v7816 = vld [vmem:[#allocation3 + $0x80] sm:$0xff]
      %v7817 = vld [vmem:[#allocation3 + $0x88] sm:$0xff]
      %v7818 = vld [vmem:[#allocation3 + $0x90] sm:$0xff]
      %v7819 = vld [vmem:[#allocation3 + $0x98] sm:$0xff]
      %v7820 = vld [vmem:[#allocation3 + $0xa0] sm:$0xff]
      %v7821 = vld [vmem:[#allocation3 + $0xa8] sm:$0xff]
      %v7822 = vpack.c.bf16 %v7811, %v7800
      %v7823 = vpack.c.bf16 %v7812, %v7801
      %v7824 = vpack.c.bf16 %v7813, %v7802
      %v7825 = vpack.c.bf16 %v7814, %v7803
      %v7826 = vpack.c.bf16 %v7815, %v7804
      %v7827 = vpack.c.bf16 %v7816, %v7805
      %v7828 = vpack.c.bf16 %v7817, %v7806
      %v7829 = vpack.c.bf16 %v7818, %v7807
      %v7830 = vpack.c.bf16 %v7819, %v7808
      %v7831 = vpack.c.bf16 %v7820, %v7809
      %v7832 = vpack.c.bf16 %v7821, %v7810
      %7844 = vrot.lane.b32.xlu0 %v7822, 104
      %v7845 = vpop.permute.xlu0 %7844
      %7846 = vrot.lane.b32.xlu0 %v7823, 104
      %v7847 = vpop.permute.xlu0 %7846
      %7848 = vrot.lane.b32.xlu0 %v7824, 104
      %v7849 = vpop.permute.xlu0 %7848
      %7850 = vrot.lane.b32.xlu0 %v7825, 104
      %v7851 = vpop.permute.xlu0 %7850
      %7852 = vrot.lane.b32.xlu0 %v7826, 104
      %v7853 = vpop.permute.xlu0 %7852
      %7854 = vrot.lane.b32.xlu0 %v7827, 104
      %v7855 = vpop.permute.xlu0 %7854
      %7856 = vrot.lane.b32.xlu0 %v7828, 104
      %v7857 = vpop.permute.xlu0 %7856
      %7858 = vrot.lane.b32.xlu0 %v7829, 104
      %v7859 = vpop.permute.xlu0 %7858
      %7860 = vrot.lane.b32.xlu0 %v7830, 104
      %v7861 = vpop.permute.xlu0 %7860
      %7862 = vrot.lane.b32.xlu0 %v7831, 104
      %v7863 = vpop.permute.xlu0 %7862
      %7864 = vrot.lane.b32.xlu0 %v7832, 104
      %v7865 = vpop.permute.xlu0 %7864
      %v7866 = vsel %vm478, %v7845, %v7847
      %v7867 = vsel %vm478, %v7847, %v7849
      %v7868 = vsel %vm478, %v7849, %v7851
      %v7869 = vsel %vm478, %v7851, %v7853
      %v7870 = vsel %vm478, %v7853, %v7855
      %v7871 = vsel %vm478, %v7855, %v7857
      %v7872 = vsel %vm478, %v7857, %v7859
      %v7873 = vsel %vm478, %v7859, %v7861
      %v7874 = vsel %vm478, %v7861, %v7863
      %v7875 = vsel %vm478, %v7863, %v7865
      %7886 = vst [vmem:[#allocation5 + $0xf0] sm:$0xff] %v7866
      %7887 = vst [vmem:[#allocation5 + $0xf8] sm:$0xff] %v7867
      %7888 = vst [vmem:[#allocation5 + $0x100] sm:$0xff] %v7868
      %7889 = vst [vmem:[#allocation5 + $0x108] sm:$0xff] %v7869
      %7890 = vst [vmem:[#allocation5 + $0x110] sm:$0xff] %v7870
      %7891 = vst [vmem:[#allocation5 + $0x118] sm:$0xff] %v7871
      %7892 = vst [vmem:[#allocation5 + $0x120] sm:$0xff] %v7872
      %7893 = vst [vmem:[#allocation5 + $0x128] sm:$0xff] %v7873
      %7894 = vst [vmem:[#allocation5 + $0x130] sm:$0xff] %v7874
      %7895 = vst [vmem:[#allocation5 + $0x138] sm:$0xff] %v7875
      %v7896 = vld [vmem:[#allocation3] sm:$0xff]
      %v7897 = vld [vmem:[#allocation3 + $0x8] sm:$0xff]
      %v7898 = vld [vmem:[#allocation3 + $0x10] sm:$0xff]
      %v7899 = vld [vmem:[#allocation3 + $0x18] sm:$0xff]
      %v7900 = vld [vmem:[#allocation3 + $0x20] sm:$0xff]
      %v7901 = vld [vmem:[#allocation3 + $0x28] sm:$0xff]
      %v7902 = vld [vmem:[#allocation3 + $0x30] sm:$0xff]
      %v7903 = vld [vmem:[#allocation3 + $0x38] sm:$0xff]
      %v7904 = vld [vmem:[#allocation3 + $0x40] sm:$0xff]
      %v7905 = vld [vmem:[#allocation3 + $0x48] sm:$0xff]
      %v7906 = vld [vmem:[#allocation3 + $0x50] sm:$0xff]
      %v7907 = vld [vmem:[#allocation3 + $0x58] sm:$0xff]
      %v7908 = vld [vmem:[#allocation3 + $0x60] sm:$0xff]
      %v7909 = vld [vmem:[#allocation3 + $0x68] sm:$0xff]
      %v7910 = vld [vmem:[#allocation3 + $0x70] sm:$0xff]
      %v7911 = vld [vmem:[#allocation3 + $0x78] sm:$0xff]
      %v7912 = vld [vmem:[#allocation3 + $0x80] sm:$0xff]
      %v7913 = vld [vmem:[#allocation3 + $0x88] sm:$0xff]
      %v7914 = vld [vmem:[#allocation3 + $0x90] sm:$0xff]
      %v7915 = vld [vmem:[#allocation3 + $0x98] sm:$0xff]
      %v7916 = vld [vmem:[#allocation3 + $0xa0] sm:$0xff]
      %v7917 = vld [vmem:[#allocation3 + $0xa8] sm:$0xff]
      %v7918 = vpack.c.bf16 %v7907, %v7896
      %v7919 = vpack.c.bf16 %v7908, %v7897
      %v7920 = vpack.c.bf16 %v7909, %v7898
      %v7921 = vpack.c.bf16 %v7910, %v7899
      %v7922 = vpack.c.bf16 %v7911, %v7900
      %v7923 = vpack.c.bf16 %v7912, %v7901
      %v7924 = vpack.c.bf16 %v7913, %v7902
      %v7925 = vpack.c.bf16 %v7914, %v7903
      %v7926 = vpack.c.bf16 %v7915, %v7904
      %v7927 = vpack.c.bf16 %v7916, %v7905
      %v7928 = vpack.c.bf16 %v7917, %v7906
      %7940 = vrot.lane.b32.xlu0 %v7918, 103
      %v7941 = vpop.permute.xlu0 %7940
      %7942 = vrot.lane.b32.xlu0 %v7919, 103
      %v7943 = vpop.permute.xlu0 %7942
      %7944 = vrot.lane.b32.xlu0 %v7920, 103
      %v7945 = vpop.permute.xlu0 %7944
      %7946 = vrot.lane.b32.xlu0 %v7921, 103
      %v7947 = vpop.permute.xlu0 %7946
      %7948 = vrot.lane.b32.xlu0 %v7922, 103
      %v7949 = vpop.permute.xlu0 %7948
      %7950 = vrot.lane.b32.xlu0 %v7923, 103
      %v7951 = vpop.permute.xlu0 %7950
      %7952 = vrot.lane.b32.xlu0 %v7924, 103
      %v7953 = vpop.permute.xlu0 %7952
      %7954 = vrot.lane.b32.xlu0 %v7925, 103
      %v7955 = vpop.permute.xlu0 %7954
      %7956 = vrot.lane.b32.xlu0 %v7926, 103
      %v7957 = vpop.permute.xlu0 %7956
      %7958 = vrot.lane.b32.xlu0 %v7927, 103
      %v7959 = vpop.permute.xlu0 %7958
      %7960 = vrot.lane.b32.xlu0 %v7928, 103
      %v7961 = vpop.permute.xlu0 %7960
      %v7962 = vsel %vm575, %v7941, %v7943
      %v7963 = vsel %vm575, %v7943, %v7945
      %v7964 = vsel %vm575, %v7945, %v7947
      %v7965 = vsel %vm575, %v7947, %v7949
      %v7966 = vsel %vm575, %v7949, %v7951
      %v7967 = vsel %vm575, %v7951, %v7953
      %v7968 = vsel %vm575, %v7953, %v7955
      %v7969 = vsel %vm575, %v7955, %v7957
      %v7970 = vsel %vm575, %v7957, %v7959
      %v7971 = vsel %vm575, %v7959, %v7961
      %7982 = vst [vmem:[#allocation5 + $0x140] sm:$0xff] %v7962
      %7983 = vst [vmem:[#allocation5 + $0x148] sm:$0xff] %v7963
      %7984 = vst [vmem:[#allocation5 + $0x150] sm:$0xff] %v7964
      %7985 = vst [vmem:[#allocation5 + $0x158] sm:$0xff] %v7965
      %7986 = vst [vmem:[#allocation5 + $0x160] sm:$0xff] %v7966
      %7987 = vst [vmem:[#allocation5 + $0x168] sm:$0xff] %v7967
      %7988 = vst [vmem:[#allocation5 + $0x170] sm:$0xff] %v7968
      %7989 = vst [vmem:[#allocation5 + $0x178] sm:$0xff] %v7969
      %7990 = vst [vmem:[#allocation5 + $0x180] sm:$0xff] %v7970
      %7991 = vst [vmem:[#allocation5 + $0x188] sm:$0xff] %v7971
      %v7992 = vld [vmem:[#allocation3] sm:$0xff]
      %v7993 = vld [vmem:[#allocation3 + $0x8] sm:$0xff]
      %v7994 = vld [vmem:[#allocation3 + $0x10] sm:$0xff]
      %v7995 = vld [vmem:[#allocation3 + $0x18] sm:$0xff]
      %v7996 = vld [vmem:[#allocation3 + $0x20] sm:$0xff]
      %v7997 = vld [vmem:[#allocation3 + $0x28] sm:$0xff]
      %v7998 = vld [vmem:[#allocation3 + $0x30] sm:$0xff]
      %v7999 = vld [vmem:[#allocation3 + $0x38] sm:$0xff]
      %v8000 = vld [vmem:[#allocation3 + $0x40] sm:$0xff]
      %v8001 = vld [vmem:[#allocation3 + $0x48] sm:$0xff]
      %v8002 = vld [vmem:[#allocation3 + $0x50] sm:$0xff]
      %v8003 = vld [vmem:[#allocation3 + $0x58] sm:$0xff]
      %v8004 = vld [vmem:[#allocation3 + $0x60] sm:$0xff]
      %v8005 = vld [vmem:[#allocation3 + $0x68] sm:$0xff]
      %v8006 = vld [vmem:[#allocation3 + $0x70] sm:$0xff]
      %v8007 = vld [vmem:[#allocation3 + $0x78] sm:$0xff]
      %v8008 = vld [vmem:[#allocation3 + $0x80] sm:$0xff]
      %v8009 = vld [vmem:[#allocation3 + $0x88] sm:$0xff]
      %v8010 = vld [vmem:[#allocation3 + $0x90] sm:$0xff]
      %v8011 = vld [vmem:[#allocation3 + $0x98] sm:$0xff]
      %v8012 = vld [vmem:[#allocation3 + $0xa0] sm:$0xff]
      %v8013 = vld [vmem:[#allocation3 + $0xa8] sm:$0xff]
      %v8014 = vpack.c.bf16 %v8003, %v7992
      %v8015 = vpack.c.bf16 %v8004, %v7993
      %v8016 = vpack.c.bf16 %v8005, %v7994
      %v8017 = vpack.c.bf16 %v8006, %v7995
      %v8018 = vpack.c.bf16 %v8007, %v7996
      %v8019 = vpack.c.bf16 %v8008, %v7997
      %v8020 = vpack.c.bf16 %v8009, %v7998
      %v8021 = vpack.c.bf16 %v8010, %v7999
      %v8022 = vpack.c.bf16 %v8011, %v8000
      %v8023 = vpack.c.bf16 %v8012, %v8001
      %v8024 = vpack.c.bf16 %v8013, %v8002
      %8036 = vrot.lane.b32.xlu0 %v8014, 102
      %v8037 = vpop.permute.xlu0 %8036
      %8038 = vrot.lane.b32.xlu0 %v8015, 102
      %v8039 = vpop.permute.xlu0 %8038
      %8040 = vrot.lane.b32.xlu0 %v8016, 102
      %v8041 = vpop.permute.xlu0 %8040
      %8042 = vrot.lane.b32.xlu0 %v8017, 102
      %v8043 = vpop.permute.xlu0 %8042
      %8044 = vrot.lane.b32.xlu0 %v8018, 102
      %v8045 = vpop.permute.xlu0 %8044
      %8046 = vrot.lane.b32.xlu0 %v8019, 102
      %v8047 = vpop.permute.xlu0 %8046
      %8048 = vrot.lane.b32.xlu0 %v8020, 102
      %v8049 = vpop.permute.xlu0 %8048
      %8050 = vrot.lane.b32.xlu0 %v8021, 102
      %v8051 = vpop.permute.xlu0 %8050
      %8052 = vrot.lane.b32.xlu0 %v8022, 102
      %v8053 = vpop.permute.xlu0 %8052
      %8054 = vrot.lane.b32.xlu0 %v8023, 102
      %v8055 = vpop.permute.xlu0 %8054
      %8056 = vrot.lane.b32.xlu0 %v8024, 102
      %v8057 = vpop.permute.xlu0 %8056
      %v8058 = vsel %vm672, %v8037, %v8039
      %v8059 = vsel %vm672, %v8039, %v8041
      %v8060 = vsel %vm672, %v8041, %v8043
      %v8061 = vsel %vm672, %v8043, %v8045
      %v8062 = vsel %vm672, %v8045, %v8047
      %v8063 = vsel %vm672, %v8047, %v8049
      %v8064 = vsel %vm672, %v8049, %v8051
      %v8065 = vsel %vm672, %v8051, %v8053
      %v8066 = vsel %vm672, %v8053, %v8055
      %v8067 = vsel %vm672, %v8055, %v8057
      %8078 = vst [vmem:[#allocation5 + $0x190] sm:$0xff] %v8058
      %8079 = vst [vmem:[#allocation5 + $0x198] sm:$0xff] %v8059
      %8080 = vst [vmem:[#allocation5 + $0x1a0] sm:$0xff] %v8060
      %8081 = vst [vmem:[#allocation5 + $0x1a8] sm:$0xff] %v8061
      %8082 = vst [vmem:[#allocation5 + $0x1b0] sm:$0xff] %v8062
      %8083 = vst [vmem:[#allocation5 + $0x1b8] sm:$0xff] %v8063
      %8084 = vst [vmem:[#allocation5 + $0x1c0] sm:$0xff] %v8064
      %8085 = vst [vmem:[#allocation5 + $0x1c8] sm:$0xff] %v8065
      %8086 = vst [vmem:[#allocation5 + $0x1d0] sm:$0xff] %v8066
      %8087 = vst [vmem:[#allocation5 + $0x1d8] sm:$0xff] %v8067
      %v8088 = vld [vmem:[#allocation3] sm:$0xff]
      %v8089 = vld [vmem:[#allocation3 + $0x8] sm:$0xff]
      %v8090 = vld [vmem:[#allocation3 + $0x10] sm:$0xff]
      %v8091 = vld [vmem:[#allocation3 + $0x18] sm:$0xff]
      %v8092 = vld [vmem:[#allocation3 + $0x20] sm:$0xff]
      %v8093 = vld [vmem:[#allocation3 + $0x28] sm:$0xff]
      %v8094 = vld [vmem:[#allocation3 + $0x30] sm:$0xff]
      %v8095 = vld [vmem:[#allocation3 + $0x38] sm:$0xff]
      %v8096 = vld [vmem:[#allocation3 + $0x40] sm:$0xff]
      %v8097 = vld [vmem:[#allocation3 + $0x48] sm:$0xff]
      %v8098 = vld [vmem:[#allocation3 + $0x50] sm:$0xff]
      %v8099 = vld [vmem:[#allocation3 + $0x58] sm:$0xff]
      %v8100 = vld [vmem:[#allocation3 + $0x60] sm:$0xff]
      %v8101 = vld [vmem:[#allocation3 + $0x68] sm:$0xff]
      %v8102 = vld [vmem:[#allocation3 + $0x70] sm:$0xff]
      %v8103 = vld [vmem:[#allocation3 + $0x78] sm:$0xff]
      %v8104 = vld [vmem:[#allocation3 + $0x80] sm:$0xff]
      %v8105 = vld [vmem:[#allocation3 + $0x88] sm:$0xff]
      %v8106 = vld [vmem:[#allocation3 + $0x90] sm:$0xff]
      %v8107 = vld [vmem:[#allocation3 + $0x98] sm:$0xff]
      %v8108 = vld [vmem:[#allocation3 + $0xa0] sm:$0xff]
      %v8109 = vld [vmem:[#allocation3 + $0xa8] sm:$0xff]
      %v8110 = vpack.c.bf16 %v8099, %v8088
      %v8111 = vpack.c.bf16 %v8100, %v8089
      %v8112 = vpack.c.bf16 %v8101, %v8090
      %v8113 = vpack.c.bf16 %v8102, %v8091
      %v8114 = vpack.c.bf16 %v8103, %v8092
      %v8115 = vpack.c.bf16 %v8104, %v8093
      %v8116 = vpack.c.bf16 %v8105, %v8094
      %v8117 = vpack.c.bf16 %v8106, %v8095
      %v8118 = vpack.c.bf16 %v8107, %v8096
      %v8119 = vpack.c.bf16 %v8108, %v8097
      %v8120 = vpack.c.bf16 %v8109, %v8098
      %8132 = vrot.lane.b32.xlu0 %v8110, 80
      %v8133 = vpop.permute.xlu0 %8132
      %8134 = vrot.lane.b32.xlu0 %v8111, 80
      %v8135 = vpop.permute.xlu0 %8134
      %8136 = vrot.lane.b32.xlu0 %v8112, 80
      %v8137 = vpop.permute.xlu0 %8136
      %8138 = vrot.lane.b32.xlu0 %v8113, 80
      %v8139 = vpop.permute.xlu0 %8138
      %8140 = vrot.lane.b32.xlu0 %v8114, 80
      %v8141 = vpop.permute.xlu0 %8140
      %8142 = vrot.lane.b32.xlu0 %v8115, 80
      %v8143 = vpop.permute.xlu0 %8142
      %8144 = vrot.lane.b32.xlu0 %v8116, 80
      %v8145 = vpop.permute.xlu0 %8144
      %8146 = vrot.lane.b32.xlu0 %v8117, 80
      %v8147 = vpop.permute.xlu0 %8146
      %8148 = vrot.lane.b32.xlu0 %v8118, 80
      %v8149 = vpop.permute.xlu0 %8148
      %8150 = vrot.lane.b32.xlu0 %v8119, 80
      %v8151 = vpop.permute.xlu0 %8150
      %8152 = vrot.lane.b32.xlu0 %v8120, 80
      %v8153 = vpop.permute.xlu0 %8152
      %v8154 = vsel %vm769, %v8133, %v8135
      %v8155 = vsel %vm769, %v8135, %v8137
      %v8156 = vsel %vm769, %v8137, %v8139
      %v8157 = vsel %vm769, %v8139, %v8141
      %v8158 = vsel %vm769, %v8141, %v8143
      %v8159 = vsel %vm769, %v8143, %v8145
      %v8160 = vsel %vm769, %v8145, %v8147
      %v8161 = vsel %vm769, %v8147, %v8149
      %v8162 = vsel %vm769, %v8149, %v8151
      %v8163 = vsel %vm769, %v8151, %v8153
      %8174 = vst [vmem:[#allocation5 + $0x1e0] sm:$0xff] %v8154
      %8175 = vst [vmem:[#allocation5 + $0x1e8] sm:$0xff] %v8155
      %8176 = vst [vmem:[#allocation5 + $0x1f0] sm:$0xff] %v8156
      %8177 = vst [vmem:[#allocation5 + $0x1f8] sm:$0xff] %v8157
      %8178 = vst [vmem:[#allocation5 + $0x200] sm:$0xff] %v8158
      %8179 = vst [vmem:[#allocation5 + $0x208] sm:$0xff] %v8159
      %8180 = vst [vmem:[#allocation5 + $0x210] sm:$0xff] %v8160
      %8181 = vst [vmem:[#allocation5 + $0x218] sm:$0xff] %v8161
      %8182 = vst [vmem:[#allocation5 + $0x220] sm:$0xff] %v8162
      %8183 = vst [vmem:[#allocation5 + $0x228] sm:$0xff] %v8163
      %v8184 = vld [vmem:[#allocation3] sm:$0xff]
      %v8185 = vld [vmem:[#allocation3 + $0x8] sm:$0xff]
      %v8186 = vld [vmem:[#allocation3 + $0x10] sm:$0xff]
      %v8187 = vld [vmem:[#allocation3 + $0x18] sm:$0xff]
      %v8188 = vld [vmem:[#allocation3 + $0x20] sm:$0xff]
      %v8189 = vld [vmem:[#allocation3 + $0x28] sm:$0xff]
      %v8190 = vld [vmem:[#allocation3 + $0x30] sm:$0xff]
      %v8191 = vld [vmem:[#allocation3 + $0x38] sm:$0xff]
      %v8192 = vld [vmem:[#allocation3 + $0x40] sm:$0xff]
      %v8193 = vld [vmem:[#allocation3 + $0x48] sm:$0xff]
      %v8194 = vld [vmem:[#allocation3 + $0x50] sm:$0xff]
      %v8195 = vld [vmem:[#allocation3 + $0x58] sm:$0xff]
      %v8196 = vld [vmem:[#allocation3 + $0x60] sm:$0xff]
      %v8197 = vld [vmem:[#allocation3 + $0x68] sm:$0xff]
      %v8198 = vld [vmem:[#allocation3 + $0x70] sm:$0xff]
      %v8199 = vld [vmem:[#allocation3 + $0x78] sm:$0xff]
      %v8200 = vld [vmem:[#allocation3 + $0x80] sm:$0xff]
      %v8201 = vld [vmem:[#allocation3 + $0x88] sm:$0xff]
      %v8202 = vld [vmem:[#allocation3 + $0x90] sm:$0xff]
      %v8203 = vld [vmem:[#allocation3 + $0x98] sm:$0xff]
      %v8204 = vld [vmem:[#allocation3 + $0xa0] sm:$0xff]
      %v8205 = vld [vmem:[#allocation3 + $0xa8] sm:$0xff]
      %v8206 = vpack.c.bf16 %v8195, %v8184
      %v8207 = vpack.c.bf16 %v8196, %v8185
      %v8208 = vpack.c.bf16 %v8197, %v8186
      %v8209 = vpack.c.bf16 %v8198, %v8187
      %v8210 = vpack.c.bf16 %v8199, %v8188
      %v8211 = vpack.c.bf16 %v8200, %v8189
      %v8212 = vpack.c.bf16 %v8201, %v8190
      %v8213 = vpack.c.bf16 %v8202, %v8191
      %v8214 = vpack.c.bf16 %v8203, %v8192
      %v8215 = vpack.c.bf16 %v8204, %v8193
      %v8216 = vpack.c.bf16 %v8205, %v8194
      %8228 = vrot.lane.b32.xlu0 %v8206, 79
      %v8229 = vpop.permute.xlu0 %8228
      %8230 = vrot.lane.b32.xlu0 %v8207, 79
      %v8231 = vpop.permute.xlu0 %8230
      %8232 = vrot.lane.b32.xlu0 %v8208, 79
      %v8233 = vpop.permute.xlu0 %8232
      %8234 = vrot.lane.b32.xlu0 %v8209, 79
      %v8235 = vpop.permute.xlu0 %8234
      %8236 = vrot.lane.b32.xlu0 %v8210, 79
      %v8237 = vpop.permute.xlu0 %8236
      %8238 = vrot.lane.b32.xlu0 %v8211, 79
      %v8239 = vpop.permute.xlu0 %8238
      %8240 = vrot.lane.b32.xlu0 %v8212, 79
      %v8241 = vpop.permute.xlu0 %8240
      %8242 = vrot.lane.b32.xlu0 %v8213, 79
      %v8243 = vpop.permute.xlu0 %8242
      %8244 = vrot.lane.b32.xlu0 %v8214, 79
      %v8245 = vpop.permute.xlu0 %8244
      %8246 = vrot.lane.b32.xlu0 %v8215, 79
      %v8247 = vpop.permute.xlu0 %8246
      %8248 = vrot.lane.b32.xlu0 %v8216, 79
      %v8249 = vpop.permute.xlu0 %8248
      %v8250 = vsel %vm866, %v8229, %v8231
      %v8251 = vsel %vm866, %v8231, %v8233
      %v8252 = vsel %vm866, %v8233, %v8235
      %v8253 = vsel %vm866, %v8235, %v8237
      %v8254 = vsel %vm866, %v8237, %v8239
      %v8255 = vsel %vm866, %v8239, %v8241
      %v8256 = vsel %vm866, %v8241, %v8243
      %v8257 = vsel %vm866, %v8243, %v8245
      %v8258 = vsel %vm866, %v8245, %v8247
      %v8259 = vsel %vm866, %v8247, %v8249
      %8270 = vst [vmem:[#allocation5 + $0x230] sm:$0xff] %v8250
      %8271 = vst [vmem:[#allocation5 + $0x238] sm:$0xff] %v8251
      %8272 = vst [vmem:[#allocation5 + $0x240] sm:$0xff] %v8252
      %8273 = vst [vmem:[#allocation5 + $0x248] sm:$0xff] %v8253
      %8274 = vst [vmem:[#allocation5 + $0x250] sm:$0xff] %v8254
      %8275 = vst [vmem:[#allocation5 + $0x258] sm:$0xff] %v8255
      %8276 = vst [vmem:[#allocation5 + $0x260] sm:$0xff] %v8256
      %8277 = vst [vmem:[#allocation5 + $0x268] sm:$0xff] %v8257
      %8278 = vst [vmem:[#allocation5 + $0x270] sm:$0xff] %v8258
      %8279 = vst [vmem:[#allocation5 + $0x278] sm:$0xff] %v8259
      %v8280 = vld [vmem:[#allocation3] sm:$0xff]
      %v8281 = vld [vmem:[#allocation3 + $0x8] sm:$0xff]
      %v8282 = vld [vmem:[#allocation3 + $0x10] sm:$0xff]
      %v8283 = vld [vmem:[#allocation3 + $0x18] sm:$0xff]
      %v8284 = vld [vmem:[#allocation3 + $0x20] sm:$0xff]
      %v8285 = vld [vmem:[#allocation3 + $0x28] sm:$0xff]
      %v8286 = vld [vmem:[#allocation3 + $0x30] sm:$0xff]
      %v8287 = vld [vmem:[#allocation3 + $0x38] sm:$0xff]
      %v8288 = vld [vmem:[#allocation3 + $0x40] sm:$0xff]
      %v8289 = vld [vmem:[#allocation3 + $0x48] sm:$0xff]
      %v8290 = vld [vmem:[#allocation3 + $0x50] sm:$0xff]
      %v8291 = vld [vmem:[#allocation3 + $0x58] sm:$0xff]
      %v8292 = vld [vmem:[#allocation3 + $0x60] sm:$0xff]
      %v8293 = vld [vmem:[#allocation3 + $0x68] sm:$0xff]
      %v8294 = vld [vmem:[#allocation3 + $0x70] sm:$0xff]
      %v8295 = vld [vmem:[#allocation3 + $0x78] sm:$0xff]
      %v8296 = vld [vmem:[#allocation3 + $0x80] sm:$0xff]
      %v8297 = vld [vmem:[#allocation3 + $0x88] sm:$0xff]
      %v8298 = vld [vmem:[#allocation3 + $0x90] sm:$0xff]
      %v8299 = vld [vmem:[#allocation3 + $0x98] sm:$0xff]
      %v8300 = vld [vmem:[#allocation3 + $0xa0] sm:$0xff]
      %v8301 = vld [vmem:[#allocation3 + $0xa8] sm:$0xff]
      %v8302 = vpack.c.bf16 %v8291, %v8280
      %v8303 = vpack.c.bf16 %v8292, %v8281
      %v8304 = vpack.c.bf16 %v8293, %v8282
      %v8305 = vpack.c.bf16 %v8294, %v8283
      %v8306 = vpack.c.bf16 %v8295, %v8284
      %v8307 = vpack.c.bf16 %v8296, %v8285
      %v8308 = vpack.c.bf16 %v8297, %v8286
      %v8309 = vpack.c.bf16 %v8298, %v8287
      %v8310 = vpack.c.bf16 %v8299, %v8288
      %v8311 = vpack.c.bf16 %v8300, %v8289
      %v8312 = vpack.c.bf16 %v8301, %v8290
      %8324 = vrot.lane.b32.xlu0 %v8302, 78
      %v8325 = vpop.permute.xlu0 %8324
      %8326 = vrot.lane.b32.xlu0 %v8303, 78
      %v8327 = vpop.permute.xlu0 %8326
      %8328 = vrot.lane.b32.xlu0 %v8304, 78
      %v8329 = vpop.permute.xlu0 %8328
      %8330 = vrot.lane.b32.xlu0 %v8305, 78
      %v8331 = vpop.permute.xlu0 %8330
      %8332 = vrot.lane.b32.xlu0 %v8306, 78
      %v8333 = vpop.permute.xlu0 %8332
      %8334 = vrot.lane.b32.xlu0 %v8307, 78
      %v8335 = vpop.permute.xlu0 %8334
      %8336 = vrot.lane.b32.xlu0 %v8308, 78
      %v8337 = vpop.permute.xlu0 %8336
      %8338 = vrot.lane.b32.xlu0 %v8309, 78
      %v8339 = vpop.permute.xlu0 %8338
      %8340 = vrot.lane.b32.xlu0 %v8310, 78
      %v8341 = vpop.permute.xlu0 %8340
      %8342 = vrot.lane.b32.xlu0 %v8311, 78
      %v8343 = vpop.permute.xlu0 %8342
      %8344 = vrot.lane.b32.xlu0 %v8312, 78
      %v8345 = vpop.permute.xlu0 %8344
      %v8346 = vsel %vm963, %v8325, %v8327
      %v8347 = vsel %vm963, %v8327, %v8329
      %v8348 = vsel %vm963, %v8329, %v8331
      %v8349 = vsel %vm963, %v8331, %v8333
      %v8350 = vsel %vm963, %v8333, %v8335
      %v8351 = vsel %vm963, %v8335, %v8337
      %v8352 = vsel %vm963, %v8337, %v8339
      %v8353 = vsel %vm963, %v8339, %v8341
      %v8354 = vsel %vm963, %v8341, %v8343
      %v8355 = vsel %vm963, %v8343, %v8345
      %8366 = vst [vmem:[#allocation5 + $0x280] sm:$0xff] %v8346
      %8367 = vst [vmem:[#allocation5 + $0x288] sm:$0xff] %v8347
      %8368 = vst [vmem:[#allocation5 + $0x290] sm:$0xff] %v8348
      %8369 = vst [vmem:[#allocation5 + $0x298] sm:$0xff] %v8349
      %8370 = vst [vmem:[#allocation5 + $0x2a0] sm:$0xff] %v8350
      %8371 = vst [vmem:[#allocation5 + $0x2a8] sm:$0xff] %v8351
      %8372 = vst [vmem:[#allocation5 + $0x2b0] sm:$0xff] %v8352
      %8373 = vst [vmem:[#allocation5 + $0x2b8] sm:$0xff] %v8353
      %8374 = vst [vmem:[#allocation5 + $0x2c0] sm:$0xff] %v8354
      %8375 = vst [vmem:[#allocation5 + $0x2c8] sm:$0xff] %v8355
      %s8376 = scalar_lea.vmem %s1, 96
      %v8377 = vld [vmem:[%s8376] sm:$0xff]
      %v8378 = vld [vmem:[%s8376 + $0x8] sm:$0xff]
      %v8379 = vld [vmem:[#allocation5] sm:$0xff]
      %v8380 = vld [vmem:[#allocation5 + $0x8] sm:$0xff]
      %v8381 = vld [vmem:[#allocation5 + $0x10] sm:$0xff]
      %v8382 = vld [vmem:[#allocation5 + $0x18] sm:$0xff]
      %v8383 = vld [vmem:[#allocation5 + $0x20] sm:$0xff]
      %v8384 = vld [vmem:[#allocation5 + $0x28] sm:$0xff]
      %v8385 = vld [vmem:[#allocation5 + $0x30] sm:$0xff]
      %v8386 = vld [vmem:[#allocation5 + $0x38] sm:$0xff]
      %v8387 = vld [vmem:[#allocation5 + $0x40] sm:$0xff]
      %v8388 = vld [vmem:[#allocation5 + $0x48] sm:$0xff]
      %v8389 = vld [vmem:[#allocation5 + $0x50] sm:$0xff]
      %v8390 = vld [vmem:[#allocation5 + $0x58] sm:$0xff]
      %v8391 = vld [vmem:[#allocation5 + $0x60] sm:$0xff]
      %v8392 = vld [vmem:[#allocation5 + $0x68] sm:$0xff]
      %v8393 = vld [vmem:[#allocation5 + $0x70] sm:$0xff]
      %v8394 = vld [vmem:[#allocation5 + $0x78] sm:$0xff]
      %v8395 = vld [vmem:[#allocation5 + $0x80] sm:$0xff]
      %v8396 = vld [vmem:[#allocation5 + $0x88] sm:$0xff]
      %v8397 = vld [vmem:[#allocation5 + $0x90] sm:$0xff]
      %v8398 = vld [vmem:[#allocation5 + $0x98] sm:$0xff]
      %v8399 = vld [vmem:[#allocation5 + $0xa0] sm:$0xff]
      %v8400 = vld [vmem:[#allocation5 + $0xa8] sm:$0xff]
      %v8401 = vld [vmem:[#allocation5 + $0xb0] sm:$0xff]
      %v8402 = vld [vmem:[#allocation5 + $0xb8] sm:$0xff]
      %v8403 = vld [vmem:[#allocation5 + $0xc0] sm:$0xff]
      %v8404 = vld [vmem:[#allocation5 + $0xc8] sm:$0xff]
      %v8405 = vld [vmem:[#allocation5 + $0xd0] sm:$0xff]
      %v8406 = vld [vmem:[#allocation5 + $0xd8] sm:$0xff]
      %v8407 = vld [vmem:[#allocation5 + $0xe0] sm:$0xff]
      %v8408 = vld [vmem:[#allocation5 + $0xe8] sm:$0xff]
      %v8409 = vld [vmem:[#allocation5 + $0xf0] sm:$0xff]
      %v8410 = vld [vmem:[#allocation5 + $0xf8] sm:$0xff]
      %v8411 = vld [vmem:[#allocation5 + $0x100] sm:$0xff]
      %v8412 = vld [vmem:[#allocation5 + $0x108] sm:$0xff]
      %v8413 = vld [vmem:[#allocation5 + $0x110] sm:$0xff]
      %v8414 = vld [vmem:[#allocation5 + $0x118] sm:$0xff]
      %v8415 = vld [vmem:[#allocation5 + $0x120] sm:$0xff]
      %v8416 = vld [vmem:[#allocation5 + $0x128] sm:$0xff]
      %v8417 = vld [vmem:[#allocation5 + $0x130] sm:$0xff]
      %v8418 = vld [vmem:[#allocation5 + $0x138] sm:$0xff]
      %v8419 = vld [vmem:[#allocation5 + $0x140] sm:$0xff]
      %v8420 = vld [vmem:[#allocation5 + $0x148] sm:$0xff]
      %v8421 = vld [vmem:[#allocation5 + $0x150] sm:$0xff]
      %v8422 = vld [vmem:[#allocation5 + $0x158] sm:$0xff]
      %v8423 = vld [vmem:[#allocation5 + $0x160] sm:$0xff]
      %v8424 = vld [vmem:[#allocation5 + $0x168] sm:$0xff]
      %v8425 = vld [vmem:[#allocation5 + $0x170] sm:$0xff]
      %v8426 = vld [vmem:[#allocation5 + $0x178] sm:$0xff]
      %v8427 = vld [vmem:[#allocation5 + $0x180] sm:$0xff]
      %v8428 = vld [vmem:[#allocation5 + $0x188] sm:$0xff]
      %v8429 = vld [vmem:[#allocation5 + $0x190] sm:$0xff]
      %v8430 = vld [vmem:[#allocation5 + $0x198] sm:$0xff]
      %v8431 = vld [vmem:[#allocation5 + $0x1a0] sm:$0xff]
      %v8432 = vld [vmem:[#allocation5 + $0x1a8] sm:$0xff]
      %v8433 = vld [vmem:[#allocation5 + $0x1b0] sm:$0xff]
      %v8434 = vld [vmem:[#allocation5 + $0x1b8] sm:$0xff]
      %v8435 = vld [vmem:[#allocation5 + $0x1c0] sm:$0xff]
      %v8436 = vld [vmem:[#allocation5 + $0x1c8] sm:$0xff]
      %v8437 = vld [vmem:[#allocation5 + $0x1d0] sm:$0xff]
      %v8438 = vld [vmem:[#allocation5 + $0x1d8] sm:$0xff]
      %v8439 = vld [vmem:[#allocation5 + $0x1e0] sm:$0xff]
      %v8440 = vld [vmem:[#allocation5 + $0x1e8] sm:$0xff]
      %v8441 = vld [vmem:[#allocation5 + $0x1f0] sm:$0xff]
      %v8442 = vld [vmem:[#allocation5 + $0x1f8] sm:$0xff]
      %v8443 = vld [vmem:[#allocation5 + $0x200] sm:$0xff]
      %v8444 = vld [vmem:[#allocation5 + $0x208] sm:$0xff]
      %v8445 = vld [vmem:[#allocation5 + $0x210] sm:$0xff]
      %v8446 = vld [vmem:[#allocation5 + $0x218] sm:$0xff]
      %v8447 = vld [vmem:[#allocation5 + $0x220] sm:$0xff]
      %v8448 = vld [vmem:[#allocation5 + $0x228] sm:$0xff]
      %v8449 = vld [vmem:[#allocation5 + $0x230] sm:$0xff]
      %v8450 = vld [vmem:[#allocation5 + $0x238] sm:$0xff]
      %v8451 = vld [vmem:[#allocation5 + $0x240] sm:$0xff]
      %v8452 = vld [vmem:[#allocation5 + $0x248] sm:$0xff]
      %v8453 = vld [vmem:[#allocation5 + $0x250] sm:$0xff]
      %v8454 = vld [vmem:[#allocation5 + $0x258] sm:$0xff]
      %v8455 = vld [vmem:[#allocation5 + $0x260] sm:$0xff]
      %v8456 = vld [vmem:[#allocation5 + $0x268] sm:$0xff]
      %v8457 = vld [vmem:[#allocation5 + $0x270] sm:$0xff]
      %v8458 = vld [vmem:[#allocation5 + $0x278] sm:$0xff]
      %v8459 = vld [vmem:[#allocation5 + $0x280] sm:$0xff]
      %v8460 = vld [vmem:[#allocation5 + $0x288] sm:$0xff]
      %v8461 = vld [vmem:[#allocation5 + $0x290] sm:$0xff]
      %v8462 = vld [vmem:[#allocation5 + $0x298] sm:$0xff]
      %v8463 = vld [vmem:[#allocation5 + $0x2a0] sm:$0xff]
      %v8464 = vld [vmem:[#allocation5 + $0x2a8] sm:$0xff]
      %v8465 = vld [vmem:[#allocation5 + $0x2b0] sm:$0xff]
      %v8466 = vld [vmem:[#allocation5 + $0x2b8] sm:$0xff]
      %v8467 = vld [vmem:[#allocation5 + $0x2c0] sm:$0xff]
      %v8468 = vld [vmem:[#allocation5 + $0x2c8] sm:$0xff]
      %s8469 = scalar_lea.vmem %s2, 96
      %v8470 = vld [vmem:[%s8469] sm:$0xff]
      %v8471 = vld [vmem:[%s8469 + $0x8] sm:$0xff]
      %8473 = vset.pattern.permute.xlu0 0
      %8474 = vperm.xlu0 %8473, %v8470
      %v8475 = vpop.permute.xlu0 %8474
      %8478 = vset.pattern.permute.xlu0 0
      %8479 = vperm.xlu0 %8478, %v8471
      %v8480 = vpop.permute.xlu0 %8479
      %v8484 = vunpack.c.l.b16 %v8377
      %v8485 = vunpack.c.h.b16 %v8377
      %v8486 = vunpack.c.l.b16 %v8378
      %v8487 = vunpack.c.h.b16 %v8378
      %v8488 = vpack.c.b16 %v8486, %v8484
      %v8489 = vpack.c.b16 %v8487, %v8485
      %v8492 = vsel %vm1107, %v8489, 0
      %8494 = vmatprep.subr.bf16.mxu0 %v8380
      %8495 = vmatpush1.bf16.msra.mxu0 %v8379
      %8496 = vmatprep.subr.bf16.mxu0 %v8390
      %8497 = vmatpush1.bf16.msra.mxu0 %v8389
      %8498 = vmatprep.subr.bf16.mxu0 %v8400
      %8499 = vmatpush1.bf16.msra.mxu0 %v8399
      %8500 = vmatprep.subr.bf16.mxu0 %v8410
      %8501 = vmatpush1.bf16.msra.mxu0 %v8409
      %8502 = vmatprep.subr.bf16.mxu0 %v8420
      %8503 = vmatpush1.bf16.msra.mxu0 %v8419
      %8504 = vmatprep.subr.bf16.mxu0 %v8430
      %8505 = vmatpush1.bf16.msra.mxu0 %v8429
      %8506 = vmatprep.subr.bf16.mxu0 %v8440
      %8507 = vmatpush1.bf16.msra.mxu0 %v8439
      %8508 = vmatprep.subr.bf16.mxu0 %v8450
      %8509 = vmatpush1.bf16.msra.mxu0 %v8449
      %8510 = vmatprep.subr.bf16.mxu0 %v8460
      %8511 = vmatpush1.bf16.msra.mxu0 %v8459
      %8512 = vmatprep.subr.bf16.mxu0 0
      %8513 = vmatpush1.bf16.msra.mxu0 0
      %8514 = vmatprep.subr.bf16.mxu0 0
      %8515 = vmatpush1.bf16.msra.mxu0 0
      %8516 = vmatprep.subr.bf16.mxu0 0
      %8517 = vmatpush1.bf16.msra.mxu0 0
      %8518 = vmatprep.subr.bf16.mxu0 0
      %8519 = vmatpush1.bf16.msra.mxu0 0
      %8520 = vmatprep.subr.bf16.mxu0 0
      %8521 = vmatpush1.bf16.msra.mxu0 0
      %8522 = vmatprep.subr.bf16.mxu0 0
      %8523 = vmatpush1.bf16.msra.mxu0 0
      %8524 = vmatprep.subr.bf16.mxu0 0
      %8525 = vmatpush1.bf16.msra.mxu0 0
      %8526 = vmatprep.mubr.bf16.mxu0 %v8492
      %8527 = vmatmul.mubr.bf16.gmra.mrb[0].mxu0 %v8488
      %v8528 = vpop.f32.mrb[0].mxu0
      %v8529 = vadd.f32 %v8475, %v8528
      %v8530 = vpop.f32.mrb[0].mxu0
      %v8531 = vadd.f32 %v8475, %v8530
      %v8532 = vpop.f32.mrb[0].mxu0
      %v8533 = vadd.f32 %v8480, %v8532
      %v8534 = vpop.f32.mrb[0].mxu0
      %v8535 = vadd.f32 %v8480, %v8534
      %8536 = vdwg.mxu0
      %8537 = vmatprep.subr.bf16.mxu0 %v8382
      %8538 = vmatpush1.bf16.msra.mxu0 %v8381
      %8539 = vmatprep.subr.bf16.mxu0 %v8392
      %8540 = vmatpush1.bf16.msra.mxu0 %v8391
      %8541 = vmatprep.subr.bf16.mxu0 %v8402
      %8542 = vmatpush1.bf16.msra.mxu0 %v8401
      %8543 = vmatprep.subr.bf16.mxu0 %v8412
      %8544 = vmatpush1.bf16.msra.mxu0 %v8411
      %8545 = vmatprep.subr.bf16.mxu0 %v8422
      %8546 = vmatpush1.bf16.msra.mxu0 %v8421
      %8547 = vmatprep.subr.bf16.mxu0 %v8432
      %8548 = vmatpush1.bf16.msra.mxu0 %v8431
      %8549 = vmatprep.subr.bf16.mxu0 %v8442
      %8550 = vmatpush1.bf16.msra.mxu0 %v8441
      %8551 = vmatprep.subr.bf16.mxu0 %v8452
      %8552 = vmatpush1.bf16.msra.mxu0 %v8451
      %8553 = vmatprep.subr.bf16.mxu0 %v8462
      %8554 = vmatpush1.bf16.msra.mxu0 %v8461
      %8555 = vmatprep.subr.bf16.mxu0 0
      %8556 = vmatpush1.bf16.msra.mxu0 0
      %8557 = vmatprep.subr.bf16.mxu0 0
      %8558 = vmatpush1.bf16.msra.mxu0 0
      %8559 = vmatprep.subr.bf16.mxu0 0
      %8560 = vmatpush1.bf16.msra.mxu0 0
      %8561 = vmatprep.subr.bf16.mxu0 0
      %8562 = vmatpush1.bf16.msra.mxu0 0
      %8563 = vmatprep.subr.bf16.mxu0 0
      %8564 = vmatpush1.bf16.msra.mxu0 0
      %8565 = vmatprep.subr.bf16.mxu0 0
      %8566 = vmatpush1.bf16.msra.mxu0 0
      %8567 = vmatprep.subr.bf16.mxu0 0
      %8568 = vmatpush1.bf16.msra.mxu0 0
      %8569 = vmatprep.mubr.bf16.mxu0 %v8492
      %8570 = vmatmul.mubr.bf16.gmra.mrb[0].mxu0 %v8488
      %v8571 = vpop.f32.mrb[0].mxu0
      %v8572 = vadd.f32 %v8475, %v8571
      %v8573 = vpop.f32.mrb[0].mxu0
      %v8574 = vadd.f32 %v8475, %v8573
      %v8575 = vpop.f32.mrb[0].mxu0
      %v8576 = vadd.f32 %v8480, %v8575
      %v8577 = vpop.f32.mrb[0].mxu0
      %v8578 = vadd.f32 %v8480, %v8577
      %8579 = vdwg.mxu0
      %8580 = vmatprep.subr.bf16.mxu0 %v8384
      %8581 = vmatpush1.bf16.msra.mxu0 %v8383
      %8582 = vmatprep.subr.bf16.mxu0 %v8394
      %8583 = vmatpush1.bf16.msra.mxu0 %v8393
      %8584 = vmatprep.subr.bf16.mxu0 %v8404
      %8585 = vmatpush1.bf16.msra.mxu0 %v8403
      %8586 = vmatprep.subr.bf16.mxu0 %v8414
      %8587 = vmatpush1.bf16.msra.mxu0 %v8413
      %8588 = vmatprep.subr.bf16.mxu0 %v8424
      %8589 = vmatpush1.bf16.msra.mxu0 %v8423
      %8590 = vmatprep.subr.bf16.mxu0 %v8434
      %8591 = vmatpush1.bf16.msra.mxu0 %v8433
      %8592 = vmatprep.subr.bf16.mxu0 %v8444
      %8593 = vmatpush1.bf16.msra.mxu0 %v8443
      %8594 = vmatprep.subr.bf16.mxu0 %v8454
      %8595 = vmatpush1.bf16.msra.mxu0 %v8453
      %8596 = vmatprep.subr.bf16.mxu0 %v8464
      %8597 = vmatpush1.bf16.msra.mxu0 %v8463
      %8598 = vmatprep.subr.bf16.mxu0 0
      %8599 = vmatpush1.bf16.msra.mxu0 0
      %8600 = vmatprep.subr.bf16.mxu0 0
      %8601 = vmatpush1.bf16.msra.mxu0 0
      %8602 = vmatprep.subr.bf16.mxu0 0
      %8603 = vmatpush1.bf16.msra.mxu0 0
      %8604 = vmatprep.subr.bf16.mxu0 0
      %8605 = vmatpush1.bf16.msra.mxu0 0
      %8606 = vmatprep.subr.bf16.mxu0 0
      %8607 = vmatpush1.bf16.msra.mxu0 0
      %8608 = vmatprep.subr.bf16.mxu0 0
      %8609 = vmatpush1.bf16.msra.mxu0 0
      %8610 = vmatprep.subr.bf16.mxu0 0
      %8611 = vmatpush1.bf16.msra.mxu0 0
      %8612 = vmatprep.mubr.bf16.mxu0 %v8492
      %8613 = vmatmul.mubr.bf16.gmra.mrb[0].mxu0 %v8488
      %v8614 = vpop.f32.mrb[0].mxu0
      %v8615 = vadd.f32 %v8475, %v8614
      %v8616 = vpop.f32.mrb[0].mxu0
      %v8617 = vadd.f32 %v8475, %v8616
      %v8618 = vpop.f32.mrb[0].mxu0
      %v8619 = vadd.f32 %v8480, %v8618
      %v8620 = vpop.f32.mrb[0].mxu0
      %v8621 = vadd.f32 %v8480, %v8620
      %8622 = vdwg.mxu0
      %8623 = vmatprep.subr.bf16.mxu0 %v8386
      %8624 = vmatpush1.bf16.msra.mxu0 %v8385
      %8625 = vmatprep.subr.bf16.mxu0 %v8396
      %8626 = vmatpush1.bf16.msra.mxu0 %v8395
      %8627 = vmatprep.subr.bf16.mxu0 %v8406
      %8628 = vmatpush1.bf16.msra.mxu0 %v8405
      %8629 = vmatprep.subr.bf16.mxu0 %v8416
      %8630 = vmatpush1.bf16.msra.mxu0 %v8415
      %8631 = vmatprep.subr.bf16.mxu0 %v8426
      %8632 = vmatpush1.bf16.msra.mxu0 %v8425
      %8633 = vmatprep.subr.bf16.mxu0 %v8436
      %8634 = vmatpush1.bf16.msra.mxu0 %v8435
      %8635 = vmatprep.subr.bf16.mxu0 %v8446
      %8636 = vmatpush1.bf16.msra.mxu0 %v8445
      %8637 = vmatprep.subr.bf16.mxu0 %v8456
      %8638 = vmatpush1.bf16.msra.mxu0 %v8455
      %8639 = vmatprep.subr.bf16.mxu0 %v8466
      %8640 = vmatpush1.bf16.msra.mxu0 %v8465
      %8641 = vmatprep.subr.bf16.mxu0 0
      %8642 = vmatpush1.bf16.msra.mxu0 0
      %8643 = vmatprep.subr.bf16.mxu0 0
      %8644 = vmatpush1.bf16.msra.mxu0 0
      %8645 = vmatprep.subr.bf16.mxu0 0
      %8646 = vmatpush1.bf16.msra.mxu0 0
      %8647 = vmatprep.subr.bf16.mxu0 0
      %8648 = vmatpush1.bf16.msra.mxu0 0
      %8649 = vmatprep.subr.bf16.mxu0 0
      %8650 = vmatpush1.bf16.msra.mxu0 0
      %8651 = vmatprep.subr.bf16.mxu0 0
      %8652 = vmatpush1.bf16.msra.mxu0 0
      %8653 = vmatprep.subr.bf16.mxu0 0
      %8654 = vmatpush1.bf16.msra.mxu0 0
      %8655 = vmatprep.mubr.bf16.mxu0 %v8492
      %8656 = vmatmul.mubr.bf16.gmra.mrb[0].mxu0 %v8488
      %v8657 = vpop.f32.mrb[0].mxu0
      %v8658 = vadd.f32 %v8475, %v8657
      %v8659 = vpop.f32.mrb[0].mxu0
      %v8660 = vadd.f32 %v8475, %v8659
      %v8661 = vpop.f32.mrb[0].mxu0
      %v8662 = vadd.f32 %v8480, %v8661
      %v8663 = vpop.f32.mrb[0].mxu0
      %v8664 = vadd.f32 %v8480, %v8663
      %8665 = vdwg.mxu0
      %8666 = vmatprep.subr.bf16.mxu0 %v8388
      %8667 = vmatpush1.bf16.msra.mxu0 %v8387
      %8668 = vmatprep.subr.bf16.mxu0 %v8398
      %8669 = vmatpush1.bf16.msra.mxu0 %v8397
      %8670 = vmatprep.subr.bf16.mxu0 %v8408
      %8671 = vmatpush1.bf16.msra.mxu0 %v8407
      %8672 = vmatprep.subr.bf16.mxu0 %v8418
      %8673 = vmatpush1.bf16.msra.mxu0 %v8417
      %8674 = vmatprep.subr.bf16.mxu0 %v8428
      %8675 = vmatpush1.bf16.msra.mxu0 %v8427
      %8676 = vmatprep.subr.bf16.mxu0 %v8438
      %8677 = vmatpush1.bf16.msra.mxu0 %v8437
      %8678 = vmatprep.subr.bf16.mxu0 %v8448
      %8679 = vmatpush1.bf16.msra.mxu0 %v8447
      %8680 = vmatprep.subr.bf16.mxu0 %v8458
      %8681 = vmatpush1.bf16.msra.mxu0 %v8457
      %8682 = vmatprep.subr.bf16.mxu0 %v8468
      %8683 = vmatpush1.bf16.msra.mxu0 %v8467
      %8684 = vmatprep.subr.bf16.mxu0 0
      %8685 = vmatpush1.bf16.msra.mxu0 0
      %8686 = vmatprep.subr.bf16.mxu0 0
      %8687 = vmatpush1.bf16.msra.mxu0 0
      %8688 = vmatprep.subr.bf16.mxu0 0
      %8689 = vmatpush1.bf16.msra.mxu0 0
      %8690 = vmatprep.subr.bf16.mxu0 0
      %8691 = vmatpush1.bf16.msra.mxu0 0
      %8692 = vmatprep.subr.bf16.mxu0 0
      %8693 = vmatpush1.bf16.msra.mxu0 0
      %8694 = vmatprep.subr.bf16.mxu0 0
      %8695 = vmatpush1.bf16.msra.mxu0 0
      %8696 = vmatprep.subr.bf16.mxu0 0
      %8697 = vmatpush1.bf16.msra.mxu0 0
      %8698 = vmatprep.mubr.bf16.mxu0 %v8492
      %8699 = vmatmul.mubr.bf16.gmra.mrb[0].mxu0 %v8488
      %v8700 = vpop.f32.mrb[0].mxu0
      %v8701 = vadd.f32 %v8475, %v8700
      %v8702 = vpop.f32.mrb[0].mxu0
      %v8703 = vadd.f32 %v8475, %v8702
      %v8704 = vpop.f32.mrb[0].mxu0
      %v8705 = vadd.f32 %v8480, %v8704
      %v8706 = vpop.f32.mrb[0].mxu0
      %v8707 = vadd.f32 %v8480, %v8706
      %8708 = vdwg.mxu0
      %v8709 = vmax.f32 %v8529, 0.0
      %v8710 = vmax.f32 %v8531, 0.0
      %v8711 = vmax.f32 %v8572, 0.0
      %v8712 = vmax.f32 %v8574, 0.0
      %v8713 = vmax.f32 %v8615, 0.0
      %v8714 = vmax.f32 %v8617, 0.0
      %v8715 = vmax.f32 %v8658, 0.0
      %v8716 = vmax.f32 %v8660, 0.0
      %v8717 = vmax.f32 %v8701, 0.0
      %v8718 = vmax.f32 %v8703, 0.0
      %v8719 = vmax.f32 %v8533, 0.0
      %v8720 = vmax.f32 %v8535, 0.0
      %v8721 = vmax.f32 %v8576, 0.0
      %v8722 = vmax.f32 %v8578, 0.0
      %v8723 = vmax.f32 %v8619, 0.0
      %v8724 = vmax.f32 %v8621, 0.0
      %v8725 = vmax.f32 %v8662, 0.0
      %v8726 = vmax.f32 %v8664, 0.0
      %v8727 = vmax.f32 %v8705, 0.0
      %v8728 = vmax.f32 %v8707, 0.0
      %v8729 = vld [vmem:[#allocation2] sm:$0xff]
      %v8730 = vld [vmem:[#allocation2 + $0x8] sm:$0xff]
      %v8731 = vld [vmem:[#allocation2 + $0x10] sm:$0xff]
      %v8732 = vld [vmem:[#allocation2 + $0x18] sm:$0xff]
      %v8733 = vld [vmem:[#allocation2 + $0x20] sm:$0xff]
      %v8734 = vld [vmem:[#allocation2 + $0x28] sm:$0xff]
      %v8735 = vld [vmem:[#allocation2 + $0x30] sm:$0xff]
      %v8736 = vld [vmem:[#allocation2 + $0x38] sm:$0xff]
      %v8737 = vld [vmem:[#allocation2 + $0x40] sm:$0xff]
      %v8738 = vld [vmem:[#allocation2 + $0x48] sm:$0xff]
      %v8739 = vld [vmem:[#allocation2 + $0x50] sm:$0xff]
      %v8740 = vld [vmem:[#allocation2 + $0x58] sm:$0xff]
      %v8741 = vld [vmem:[#allocation2 + $0x60] sm:$0xff]
      %v8742 = vld [vmem:[#allocation2 + $0x68] sm:$0xff]
      %v8743 = vld [vmem:[#allocation2 + $0x70] sm:$0xff]
      %v8744 = vld [vmem:[#allocation2 + $0x78] sm:$0xff]
      %v8745 = vld [vmem:[#allocation2 + $0x80] sm:$0xff]
      %v8746 = vld [vmem:[#allocation2 + $0x88] sm:$0xff]
      %v8747 = vld [vmem:[#allocation2 + $0x90] sm:$0xff]
      %v8748 = vld [vmem:[#allocation2 + $0x98] sm:$0xff]
      %v8749 = vld [vmem:[#allocation2 + $0xa0] sm:$0xff]
      %v8750 = vld [vmem:[#allocation2 + $0xa8] sm:$0xff]
      %8773 = vrot.lane.b32.xlu0 %v8729, 78
      %v8774 = vpop.permute.xlu0 %8773
      %8775 = vrot.lane.b32.xlu0 %v8730, 78
      %v8776 = vpop.permute.xlu0 %8775
      %8777 = vrot.lane.b32.xlu0 %v8731, 78
      %v8778 = vpop.permute.xlu0 %8777
      %8779 = vrot.lane.b32.xlu0 %v8732, 78
      %v8780 = vpop.permute.xlu0 %8779
      %8781 = vrot.lane.b32.xlu0 %v8733, 78
      %v8782 = vpop.permute.xlu0 %8781
      %8783 = vrot.lane.b32.xlu0 %v8734, 78
      %v8784 = vpop.permute.xlu0 %8783
      %8785 = vrot.lane.b32.xlu0 %v8735, 78
      %v8786 = vpop.permute.xlu0 %8785
      %8787 = vrot.lane.b32.xlu0 %v8736, 78
      %v8788 = vpop.permute.xlu0 %8787
      %8789 = vrot.lane.b32.xlu0 %v8737, 78
      %v8790 = vpop.permute.xlu0 %8789
      %8791 = vrot.lane.b32.xlu0 %v8738, 78
      %v8792 = vpop.permute.xlu0 %8791
      %8793 = vrot.lane.b32.xlu0 %v8739, 78
      %v8794 = vpop.permute.xlu0 %8793
      %8795 = vrot.lane.b32.xlu0 %v8740, 78
      %v8796 = vpop.permute.xlu0 %8795
      %8797 = vrot.lane.b32.xlu0 %v8741, 78
      %v8798 = vpop.permute.xlu0 %8797
      %8799 = vrot.lane.b32.xlu0 %v8742, 78
      %v8800 = vpop.permute.xlu0 %8799
      %8801 = vrot.lane.b32.xlu0 %v8743, 78
      %v8802 = vpop.permute.xlu0 %8801
      %8803 = vrot.lane.b32.xlu0 %v8744, 78
      %v8804 = vpop.permute.xlu0 %8803
      %8805 = vrot.lane.b32.xlu0 %v8745, 78
      %v8806 = vpop.permute.xlu0 %8805
      %8807 = vrot.lane.b32.xlu0 %v8746, 78
      %v8808 = vpop.permute.xlu0 %8807
      %8809 = vrot.lane.b32.xlu0 %v8747, 78
      %v8810 = vpop.permute.xlu0 %8809
      %8811 = vrot.lane.b32.xlu0 %v8748, 78
      %v8812 = vpop.permute.xlu0 %8811
      %8813 = vrot.lane.b32.xlu0 %v8749, 78
      %v8814 = vpop.permute.xlu0 %8813
      %8815 = vrot.lane.b32.xlu0 %v8750, 78
      %v8816 = vpop.permute.xlu0 %8815
      %v8817 = vsel %vm3796, %v8774, %v8776
      %v8818 = vsel %vm3796, %v8776, %v8778
      %v8819 = vsel %vm3796, %v8778, %v8780
      %v8820 = vsel %vm3796, %v8780, %v8782
      %v8821 = vsel %vm3796, %v8782, %v8784
      %v8822 = vsel %vm3796, %v8784, %v8786
      %v8823 = vsel %vm3796, %v8786, %v8788
      %v8824 = vsel %vm3796, %v8788, %v8790
      %v8825 = vsel %vm3796, %v8790, %v8792
      %v8826 = vsel %vm3796, %v8792, %v8794
      %v8827 = vsel %vm3796, %v8796, %v8798
      %v8828 = vsel %vm3796, %v8798, %v8800
      %v8829 = vsel %vm3796, %v8800, %v8802
      %v8830 = vsel %vm3796, %v8802, %v8804
      %v8831 = vsel %vm3796, %v8804, %v8806
      %v8832 = vsel %vm3796, %v8806, %v8808
      %v8833 = vsel %vm3796, %v8808, %v8810
      %v8834 = vsel %vm3796, %v8810, %v8812
      %v8835 = vsel %vm3796, %v8812, %v8814
      %v8836 = vsel %vm3796, %v8814, %v8816
      %v8857 = vadd.f32 %v8709, %v8817
      %v8858 = vadd.f32 %v8710, %v8818
      %v8859 = vadd.f32 %v8711, %v8819
      %v8860 = vadd.f32 %v8712, %v8820
      %v8861 = vadd.f32 %v8713, %v8821
      %v8862 = vadd.f32 %v8714, %v8822
      %v8863 = vadd.f32 %v8715, %v8823
      %v8864 = vadd.f32 %v8716, %v8824
      %v8865 = vadd.f32 %v8717, %v8825
      %v8866 = vadd.f32 %v8718, %v8826
      %v8867 = vadd.f32 %v8719, %v8827
      %v8868 = vadd.f32 %v8720, %v8828
      %v8869 = vadd.f32 %v8721, %v8829
      %v8870 = vadd.f32 %v8722, %v8830
      %v8871 = vadd.f32 %v8723, %v8831
      %v8872 = vadd.f32 %v8724, %v8832
      %v8873 = vadd.f32 %v8725, %v8833
      %v8874 = vadd.f32 %v8726, %v8834
      %v8875 = vadd.f32 %v8727, %v8835
      %v8876 = vadd.f32 %v8728, %v8836
      %8877 = vst [vmem:[%s170] sm:$0xff] %v8857
      %8878 = vst [vmem:[%s170 + $0x8] sm:$0xff] %v8858
      %8879 = vst [vmem:[%s170 + $0x10] sm:$0xff] %v8859
      %8880 = vst [vmem:[%s170 + $0x18] sm:$0xff] %v8860
      %8881 = vst [vmem:[%s170 + $0x20] sm:$0xff] %v8861
      %8882 = vst [vmem:[%s170 + $0x28] sm:$0xff] %v8862
      %8883 = vst [vmem:[%s170 + $0x30] sm:$0xff] %v8863
      %8884 = vst [vmem:[%s170 + $0x38] sm:$0xff] %v8864
      %8885 = vst [vmem:[%s170 + $0x40] sm:$0xff] %v8865
      %8886 = vst [vmem:[%s170 + $0x48] sm:$0xff] %v8866
      %8887 = vst [vmem:[%s170 + $0x50] sm:$0xff] %v8867
      %8888 = vst [vmem:[%s170 + $0x58] sm:$0xff] %v8868
      %8889 = vst [vmem:[%s170 + $0x60] sm:$0xff] %v8869
      %8890 = vst [vmem:[%s170 + $0x68] sm:$0xff] %v8870
      %8891 = vst [vmem:[%s170 + $0x70] sm:$0xff] %v8871
      %8892 = vst [vmem:[%s170 + $0x78] sm:$0xff] %v8872
      %8893 = vst [vmem:[%s170 + $0x80] sm:$0xff] %v8873
      %8894 = vst [vmem:[%s170 + $0x88] sm:$0xff] %v8874
      %8895 = vst [vmem:[%s170 + $0x90] sm:$0xff] %v8875
      %8896 = vst [vmem:[%s170 + $0x98] sm:$0xff] %v8876
      %p8897 = scmp.lt.s32.totalorder %s14, 1
      %s8898 = scalar_select %p8897, %s14, 1
      %s8899 = smul.addr %s8898, 20
      %s8900 = smul.addr %s8899, 8
      %s8901 = scalar_lea.vmem %s3, %s8900
      // Predicated region
      $region33: #{res1_forward_pallas.1} parent=31 // pred_check
        %p8902 = pneg %p100
      $region34: #{res1_forward_pallas.1} parent=31 // pred_check_branch
        %8904 = sbr.rel (%p8902) target = $region36
      $region35: #{res1_forward_pallas.1} parent=31 // pred_region
        _
      $region36: #{res1_forward_pallas.1} parent=31 // pred_fallthru
        _
    $region32: #{res1_forward_pallas.1} parent=5 // pred_fallthru
      _
    %p8905 = scmp.le.s32.totalorder 2, %s9
    // Predicated region
    $region37: #{res1_forward_pallas.1} parent=5 // pred_check
      %p8906 = pneg %p8905
    $region38: #{res1_forward_pallas.1} parent=5 // pred_check_branch
      %8908 = sbr.rel (%p8906) target = $region40
    $region39: #{res1_forward_pallas.1} parent=5 // pred_region
      %s8909 = ssub.s32 %s9, 2
      // Predicated region
      $region41: #{res1_forward_pallas.1} parent=39 // pred_check
        %p8910 = pneg %p106
      $region42: #{res1_forward_pallas.1} parent=39 // pred_check_branch
        %8912 = sbr.rel (%p8910) target = $region44
      $region43: #{res1_forward_pallas.1} parent=39 // pred_region
        %p8913 = scmp.lt.s32.totalorder %s15, 1
        %s8914 = scalar_select %p8913, %s15, 1
        %s8915 = smul.addr %s8914, 20
        %s8916 = smul.addr %s8915, 8
        %s8917 = scalar_lea.vmem %s3, %s8916
      $region44: #{res1_forward_pallas.1} parent=39 // pred_fallthru
        _
    $region40: #{res1_forward_pallas.1} parent=5 // pred_fallthru
      _
  $region6: #{res1_forward_pallas.1} parent=0 // loop_footer
    %s13 = sadd.s32 1, %s9
  $region7: #{res1_forward_pallas.1} parent=0 // loop_footer_branch
    %8 = sbr.rel target = $region3
  $region8: #{res1_forward_pallas.1} parent=0 // loop_exit
    _

</llo_original>
